<compile_context>
chip_gen: v6e
topology: v6e:2x2x1
jax: 0.10.0
libtpu: 0.0.40
codegen_flags: <defaults>
</compile_context>

<pallas_src>
import numpy as np
import jax
import jax.numpy as jnp
from jax.experimental import pallas as pl
from jax.experimental.pallas import tpu as pltpu


def _round_up(x, m):
    return (x + m - 1) // m * m


# ----------------------------------------------------------------------------
# Kernel bodies
# ----------------------------------------------------------------------------
def _apply_interp_kernel(a_ref, x_ref, o_ref):
    # One separable bilinear pass: o = A @ x (A is a small interpolation matrix).
    o_ref[...] = jnp.dot(a_ref[...], x_ref[...],
                         preferred_element_type=jnp.float32)


def _conv_chain_kernel(x_ref, w1_ref, b1_ref, w2_ref, b2_ref, w3_ref,
                       o_ref, acc_ref):
    # Fused Conv1x1(+b) -> Conv1x1(+b) -> Conv1x1 chain.
    # Grid = (pixel tiles [parallel], Cin tiles [arbitrary, innermost]).
    # Only the first (large) matmul is K-tiled; the epilogue runs once per
    # pixel tile on the finalize step.
    k = pl.program_id(1)

    @pl.when(k == 0)
    def _init():
        acc_ref[...] = jnp.zeros_like(acc_ref)

    acc_ref[...] += jnp.dot(x_ref[...], w1_ref[...],
                            preferred_element_type=jnp.float32)

    @pl.when(k == pl.num_programs(1) - 1)
    def _finalize():
        h1 = acc_ref[...] + b1_ref[...]                        # f32 bias add
        h2 = jnp.dot(h1.astype(jnp.bfloat16), w2_ref[...],
                     preferred_element_type=jnp.float32) + b2_ref[...]
        o_ref[...] = jnp.dot(h2.astype(jnp.bfloat16), w3_ref[...],
                             preferred_element_type=jnp.float32)


# ----------------------------------------------------------------------------
# Separable bilinear resize (PyTorch align_corners=False semantics)
# ----------------------------------------------------------------------------
def _interp_matrix(in_size, out_size):
    # Host-side (numpy) 1-D bilinear interpolation matrix matching
    # F.interpolate(mode='bilinear', align_corners=False, antialias=False).
    scale = in_size / out_size
    out_idx = np.arange(out_size)
    real = (out_idx + 0.5) * scale - 0.5
    real = np.maximum(real, 0.0)
    i0 = np.minimum(np.floor(real).astype(np.int64), in_size - 1)
    i1 = np.minimum(i0 + 1, in_size - 1)
    frac = (real - i0).astype(np.float32)
    A = np.zeros((out_size, in_size), dtype=np.float32)
    np.add.at(A, (out_idx, i0), 1.0 - frac)
    np.add.at(A, (out_idx, i1), frac)
    return A


def resize_bilinear_nhwc(x, out_h, out_w):
    """Separable bilinear resize of an NHWC tensor (two Pallas matmul passes)."""
    N, Hin, Win, C = x.shape
    if (Hin, Win) == (out_h, out_w):
        return x
    Ah = jnp.asarray(_interp_matrix(Hin, out_h))      # (out_h, Hin)
    Aw = jnp.asarray(_interp_matrix(Win, out_w))      # (out_w, Win)

    # ---- pass 1: H axis.  Per batch image: (out_h, Hin) @ (Hin, Win*C).
    x_h = x.reshape(N, Hin, Win * C)
    y = pl.pallas_call(
        _apply_interp_kernel,
        out_shape=jax.ShapeDtypeStruct((N, out_h, Win * C), jnp.float32),
        grid_spec=pltpu.PrefetchScalarGridSpec(
            num_scalar_prefetch=0,
            grid=(N,),
            in_specs=[pl.BlockSpec((out_h, Hin), lambda n: (0, 0)),
                      pl.BlockSpec((None, Hin, Win * C), lambda n: (n, 0, 0))],
            out_specs=pl.BlockSpec((None, out_h, Win * C), lambda n: (n, 0, 0)),
        ),
        compiler_params=pltpu.CompilerParams(
            dimension_semantics=("parallel",)),
    )(Ah, x_h)

    # ---- pass 2: W axis.  Per output row: (out_w, Win) @ (Win, C).
    y_w = y.reshape(N * out_h, Win, C)
    z = pl.pallas_call(
        _apply_interp_kernel,
        out_shape=jax.ShapeDtypeStruct((N * out_h, out_w, C), jnp.float32),
        grid_spec=pltpu.PrefetchScalarGridSpec(
            num_scalar_prefetch=0,
            grid=(N * out_h,),
            in_specs=[pl.BlockSpec((out_w, Win), lambda r: (0, 0)),
                      pl.BlockSpec((None, Win, C), lambda r: (r, 0, 0))],
            out_specs=pl.BlockSpec((None, out_w, C), lambda r: (r, 0, 0)),
        ),
        compiler_params=pltpu.CompilerParams(
            dimension_semantics=("parallel",)),
    )(Aw, y_w)
    return z.reshape(N, out_h, out_w, C)


# ----------------------------------------------------------------------------
# Fused 1x1-conv chain (tiled over pixels and input channels)
# ----------------------------------------------------------------------------
def conv_chain_nhwc(x_nhwc, w1, b1, w2, b2, w3, *, tile_m=256, max_tile_k=512):
    """Conv1x1(+bias) -> Conv1x1(+bias) -> Conv1x1(no bias) on NHWC input."""
    N, H, W, Cin = x_nhwc.shape
    cm1 = w1.shape[0]
    cm2 = w2.shape[0]
    cout = w3.shape[0]
    P = N * H * W

    # TPU-friendly padded sizes (lane-dense channel dims, (8,128)-aligned tiles).
    tk = min(max_tile_k, _round_up(Cin, 128))
    Cin_p = _round_up(Cin, tk)
    tm = min(tile_m, _round_up(P, 8))
    P_p = _round_up(P, tm)
    cm1_p = _round_up(cm1, 128)
    cm2_p = _round_up(cm2, 128)
    cout_p = _round_up(cout, 128)

    xf = x_nhwc.reshape(P, Cin)
    xf = jnp.pad(xf, ((0, P_p - P), (0, Cin_p - Cin))).astype(jnp.bfloat16)

    w1p = jnp.pad(w1.T, ((0, Cin_p - Cin), (0, cm1_p - cm1))).astype(jnp.bfloat16)
    b1p = jnp.pad(b1, (0, cm1_p - cm1)).reshape(1, cm1_p).astype(jnp.float32)
    w2p = jnp.pad(w2.T, ((0, cm1_p - cm1), (0, cm2_p - cm2))).astype(jnp.bfloat16)
    b2p = jnp.pad(b2, (0, cm2_p - cm2)).reshape(1, cm2_p).astype(jnp.float32)
    w3p = jnp.pad(w3.T, ((0, cm2_p - cm2), (0, cout_p - cout))).astype(jnp.bfloat16)

    grid = (P_p // tm, Cin_p // tk)

    out = pl.pallas_call(
        _conv_chain_kernel,
        out_shape=jax.ShapeDtypeStruct((P_p, cout_p), jnp.float32),
        grid_spec=pltpu.PrefetchScalarGridSpec(
            num_scalar_prefetch=0,
            grid=grid,
            in_specs=[
                pl.BlockSpec((tm, tk), lambda i, k: (i, k)),        # x tile
                pl.BlockSpec((tk, cm1_p), lambda i, k: (k, 0)),     # w1 K-slab
                pl.BlockSpec((1, cm1_p), lambda i, k: (0, 0)),      # b1
                pl.BlockSpec((cm1_p, cm2_p), lambda i, k: (0, 0)),  # w2
                pl.BlockSpec((1, cm2_p), lambda i, k: (0, 0)),      # b2
                pl.BlockSpec((cm2_p, cout_p), lambda i, k: (0, 0)), # w3
            ],
            out_specs=pl.BlockSpec((tm, cout_p), lambda i, k: (i, 0)),
            scratch_shapes=[pltpu.VMEM((tm, cm1_p), jnp.float32)],
        ),
        compiler_params=pltpu.CompilerParams(
            dimension_semantics=("parallel", "arbitrary"),
            vmem_limit_bytes=64 * 1024 * 1024,
        ),
    )(xf, w1p, b1p, w2p, b2p, w3p)

    out = out[:P, :cout].reshape(N, H, W, cout)
    return out


# ----------------------------------------------------------------------------
# Neck forward pass (semantics of the PyTorch module)
# ----------------------------------------------------------------------------
def neck_forward(scale_1, scale_2, scale_3, params):
    # NCHW (PyTorch convention) -> NHWC once at the boundary.
    s1 = jnp.transpose(scale_1, (0, 2, 3, 1))
    s2 = jnp.transpose(scale_2, (0, 2, 3, 1))
    s3 = jnp.transpose(scale_3, (0, 2, 3, 1))
    H1, W1 = s1.shape[1], s1.shape[2]
    H2, W2 = s2.shape[1], s2.shape[2]
    H3, W3 = s3.shape[1], s3.shape[2]

    scale_2_d = resize_bilinear_nhwc(s2, H1, W1)
    out1 = jnp.concatenate([scale_2_d, s1], axis=-1)

    out_1_up = resize_bilinear_nhwc(out1, H2, W2)
    scale_3_d = resize_bilinear_nhwc(s3, H2, W2)
    out_2 = jnp.concatenate([out_1_up, scale_3_d, s2], axis=-1)

    # TODO(synk): the channel concats could be fused into the conv-chain
    # K-tiling (one K-slab per constituent tensor) to save extra HBM passes.
    out_2_d = resize_bilinear_nhwc(out_2, H1, W1)
    scale1_in = jnp.concatenate([out_2_d, out1], axis=-1)
    output_scale1 = conv_chain_nhwc(scale1_in, *params["conv1"])

    out2_up = resize_bilinear_nhwc(out_2, H3, W3)
    out3 = jnp.concatenate([out2_up, s3], axis=-1)
    out3_d = resize_bilinear_nhwc(out3, H2, W2)
    scale2_in = jnp.concatenate([out3_d, out_2], axis=-1)
    output_scale2 = conv_chain_nhwc(scale2_in, *params["conv2"])

    output_scale3 = conv_chain_nhwc(out3, *params["conv3"])

    # Back to NCHW to match the PyTorch module's output layout.
    to_nchw = lambda t: jnp.transpose(t, (0, 3, 1, 2))
    return [to_nchw(output_scale1), to_nchw(output_scale2), to_nchw(output_scale3)]


# ----------------------------------------------------------------------------
# Deterministic parameter init (1x1 conv weights stored as (Cout, Cin))
# ----------------------------------------------------------------------------
def _init_conv_chain(key, cin, cm1, cm2, cout):
    ks = jax.random.split(key, 5)

    def init(k, shape, fan_in):
        return jax.random.normal(k, shape, jnp.float32) / np.sqrt(fan_in)

    w1 = init(ks[0], (cm1, cin), cin)
    b1 = init(ks[1], (cm1,), cin)
    w2 = init(ks[2], (cm2, cm1), cm1)
    b2 = init(ks[3], (cm2,), cm1)
    w3 = init(ks[4], (cout, cm2), cm2)   # third conv has bias=False in torch
    return (w1, b1, w2, b2, w3)


def init_params(key, c1, c2, c3):
    k1, k2, k3 = jax.random.split(key, 3)
    cin1 = 2 * c1 + 3 * c2 + c3          # analog of 5984
    cin2 = 2 * c1 + 4 * c2 + 3 * c3      # analog of 11232
    cin3 = c1 + 2 * c2 + 2 * c3          # analog of 6656
    return {
        "conv1": _init_conv_chain(k1, cin1, cin1 // 4, cin1 // 8, 8),
        "conv2": _init_conv_chain(k2, cin2, cin2 // 4, cin2 // 8, 16),
        "conv3": _init_conv_chain(k3, cin3, cin3 // 2, cin3 // 4, 32),
    }


if __name__ == "__main__":
    key = jax.random.PRNGKey(0)
    k1, k2, k3, kp = jax.random.split(key, 4)

    N = 2
    C1, C2, C3 = 4, 8, 16
    H1 = W1 = 8
    H2 = W2 = 16
    H3 = W3 = 32

    scale_1 = jax.random.normal(k1, (N, C1, H1, W1), jnp.float32)
    scale_2 = jax.random.normal(k2, (N, C2, H2, W2), jnp.float32)
    scale_3 = jax.random.normal(k3, (N, C3, H3, W3), jnp.float32)

    params = init_params(kp, C1, C2, C3)

    fwd = jax.jit(neck_forward)
    outs = fwd(scale_1, scale_2, scale_3, params)
    for o in outs:
        jax.block_until_ready(o)

    assert outs[0].shape == (N, 8, H1, W1)
    assert outs[1].shape == (N, 16, H2, W2)
    assert outs[2].shape == (N, 32, H3, W3)
    print("KERNEL_OK")
</pallas_src>

<mosaic_0001>
module attributes {stable_mosaic.version = 11 : i64} {
  func.func @_apply_interp_kernel(%arg0: i32, %arg1: memref<8x16xf32, #tpu.memory_space<vmem>>, %arg2: memref<1x16x8xf32, #tpu.memory_space<vmem>>, %arg3: memref<1x8x8xf32, #tpu.memory_space<vmem>>) attributes {dimension_semantics = [#tpu.dimension_semantics<parallel>], iteration_bounds = array<i64: 16>, scalar_prefetch = 0 : i64, scratch_operands = 0 : i64, tpu.core_type = #tpu.core_type<tc>, window_params = [{pipeline_mode = #tpu.pipeline_mode<synchronous>, transform_indices = @transform_0, window_bounds = array<i64: 8, 16>}, {transform_indices = @transform_1, window_bounds = array<i64: 1, 16, 8>}, {transform_indices = @transform_2, window_bounds = array<i64: 1, 8, 8>}]} {
    %c0 = arith.constant 0 : index
    %c0_0 = arith.constant 0 : index
    %0 = vector.load %arg1[%c0, %c0_0] : memref<8x16xf32, #tpu.memory_space<vmem>>, vector<8x16xf32>
    %c0_1 = arith.constant 0 : index
    %c0_2 = arith.constant 0 : index
    %c0_3 = arith.constant 0 : index
    %1 = vector.load %arg2[%c0_1, %c0_2, %c0_3] : memref<1x16x8xf32, #tpu.memory_space<vmem>>, vector<1x16x8xf32>
    %2 = vector.shape_cast %1 : vector<1x16x8xf32> to vector<16x8xf32>
    %cst = arith.constant dense<0.000000e+00> : vector<8x8xf32>
    %3 = tpu.matmul %0, %2, %cst {dimension_numbers = #tpu.dot_dimension_numbers<[1], [0], [0], [1], [0, 0, 1, 1], [], []>} : vector<8x16xf32>, vector<16x8xf32>, vector<8x8xf32> -> vector<8x8xf32>
    %c0_4 = arith.constant 0 : index
    %c0_5 = arith.constant 0 : index
    %c0_6 = arith.constant 0 : index
    %4 = vector.load %arg3[%c0_4, %c0_5, %c0_6] : memref<1x8x8xf32, #tpu.memory_space<vmem>>, vector<1x8x8xf32>
    %5 = vector.shape_cast %4 : vector<1x8x8xf32> to vector<8x8xf32>
    %6 = vector.shape_cast %3 : vector<8x8xf32> to vector<1x8x8xf32>
    tpu.vector_store %arg3[%c0_4, %c0_5, %c0_6], %6 {strides = array<i32>} : memref<1x8x8xf32, #tpu.memory_space<vmem>>, vector<1x8x8xf32>,
    return
  }
  func.func @transform_0(%arg0: i32) -> (i32, i32) {
    %c0_i32 = arith.constant 0 : i32
    %c0_i32_0 = arith.constant 0 : i32
    %c0_i32_1 = arith.constant 0 : i32
    return %c0_i32, %c0_i32_0 : i32, i32
  }
  func.func @transform_1(%arg0: i32) -> (i32, i32, i32) {
    %c0_i32 = arith.constant 0 : i32
    %c0_i32_0 = arith.constant 0 : i32
    %c0_i32_1 = arith.constant 0 : i32
    return %arg0, %c0_i32, %c0_i32_0 : i32, i32, i32
  }
  func.func @transform_2(%arg0: i32) -> (i32, i32, i32) {
    %c0_i32 = arith.constant 0 : i32
    %c0_i32_0 = arith.constant 0 : i32
    %c0_i32_1 = arith.constant 0 : i32
    return %arg0, %c0_i32, %c0_i32_0 : i32, i32, i32
  }
}

module attributes {stable_mosaic.version = 11 : i64} {
  func.func @_apply_interp_kernel(%arg0: i32, %arg1: memref<8x16xf32, #tpu.memory_space<vmem>>, %arg2: memref<1x16x128xf32, #tpu.memory_space<vmem>>, %arg3: memref<1x8x128xf32, #tpu.memory_space<vmem>>) attributes {dimension_semantics = [#tpu.dimension_semantics<parallel>], iteration_bounds = array<i64: 2>, scalar_prefetch = 0 : i64, scratch_operands = 0 : i64, tpu.core_type = #tpu.core_type<tc>, window_params = [{pipeline_mode = #tpu.pipeline_mode<synchronous>, transform_indices = @transform_0, window_bounds = array<i64: 8, 16>}, {transform_indices = @transform_1, window_bounds = array<i64: 1, 16, 128>}, {transform_indices = @transform_2, window_bounds = array<i64: 1, 8, 128>}]} {
    %c0 = arith.constant 0 : index
    %c0_0 = arith.constant 0 : index
    %0 = vector.load %arg1[%c0, %c0_0] : memref<8x16xf32, #tpu.memory_space<vmem>>, vector<8x16xf32>
    %c0_1 = arith.constant 0 : index
    %c0_2 = arith.constant 0 : index
    %c0_3 = arith.constant 0 : index
    %1 = vector.load %arg2[%c0_1, %c0_2, %c0_3] : memref<1x16x128xf32, #tpu.memory_space<vmem>>, vector<1x16x128xf32>
    %2 = vector.shape_cast %1 : vector<1x16x128xf32> to vector<16x128xf32>
    %cst = arith.constant dense<0.000000e+00> : vector<8x128xf32>
    %3 = tpu.matmul %0, %2, %cst {dimension_numbers = #tpu.dot_dimension_numbers<[1], [0], [0], [1], [0, 0, 1, 1], [], []>} : vector<8x16xf32>, vector<16x128xf32>, vector<8x128xf32> -> vector<8x128xf32>
    %c0_4 = arith.constant 0 : index
    %c0_5 = arith.constant 0 : index
    %c0_6 = arith.constant 0 : index
    %4 = vector.load %arg3[%c0_4, %c0_5, %c0_6] : memref<1x8x128xf32, #tpu.memory_space<vmem>>, vector<1x8x128xf32>
    %5 = vector.shape_cast %4 : vector<1x8x128xf32> to vector<8x128xf32>
    %6 = vector.shape_cast %3 : vector<8x128xf32> to vector<1x8x128xf32>
    tpu.vector_store %arg3[%c0_4, %c0_5, %c0_6], %6 {strides = array<i32>} : memref<1x8x128xf32, #tpu.memory_space<vmem>>, vector<1x8x128xf32>,
    return
  }
  func.func @transform_0(%arg0: i32) -> (i32, i32) {
    %c0_i32 = arith.constant 0 : i32
    %c0_i32_0 = arith.constant 0 : i32
    %c0_i32_1 = arith.constant 0 : i32
    return %c0_i32, %c0_i32_0 : i32, i32
  }
  func.func @transform_1(%arg0: i32) -> (i32, i32, i32) {
    %c0_i32 = arith.constant 0 : i32
    %c0_i32_0 = arith.constant 0 : i32
    %c0_i32_1 = arith.constant 0 : i32
    return %arg0, %c0_i32, %c0_i32_0 : i32, i32, i32
  }
  func.func @transform_2(%arg0: i32) -> (i32, i32, i32) {
    %c0_i32 = arith.constant 0 : i32
    %c0_i32_0 = arith.constant 0 : i32
    %c0_i32_1 = arith.constant 0 : i32
    return %arg0, %c0_i32, %c0_i32_0 : i32, i32, i32
  }
}

module attributes {stable_mosaic.version = 11 : i64} {
  func.func @_apply_interp_kernel(%arg0: i32, %arg1: memref<16x32xf32, #tpu.memory_space<vmem>>, %arg2: memref<1x32x512xf32, #tpu.memory_space<vmem>>, %arg3: memref<1x16x512xf32, #tpu.memory_space<vmem>>) attributes {dimension_semantics = [#tpu.dimension_semantics<parallel>], iteration_bounds = array<i64: 2>, scalar_prefetch = 0 : i64, scratch_operands = 0 : i64, tpu.core_type = #tpu.core_type<tc>, window_params = [{pipeline_mode = #tpu.pipeline_mode<synchronous>, transform_indices = @transform_0, window_bounds = array<i64: 16, 32>}, {transform_indices = @transform_1, window_bounds = array<i64: 1, 32, 512>}, {transform_indices = @transform_2, window_bounds = array<i64: 1, 16, 512>}]} {
    %c0 = arith.constant 0 : index
    %c0_0 = arith.constant 0 : index
    %0 = vector.load %arg1[%c0, %c0_0] : memref<16x32xf32, #tpu.memory_space<vmem>>, vector<16x32xf32>
    %c0_1 = arith.constant 0 : index
    %c0_2 = arith.constant 0 : index
    %c0_3 = arith.constant 0 : index
    %1 = vector.load %arg2[%c0_1, %c0_2, %c0_3] : memref<1x32x512xf32, #tpu.memory_space<vmem>>, vector<1x32x512xf32>
    %2 = vector.shape_cast %1 : vector<1x32x512xf32> to vector<32x512xf32>
    %cst = arith.constant dense<0.000000e+00> : vector<16x512xf32>
    %3 = tpu.matmul %0, %2, %cst {dimension_numbers = #tpu.dot_dimension_numbers<[1], [0], [0], [1], [0, 0, 1, 1], [], []>} : vector<16x32xf32>, vector<32x512xf32>, vector<16x512xf32> -> vector<16x512xf32>
    %c0_4 = arith.constant 0 : index
    %c0_5 = arith.constant 0 : index
    %c0_6 = arith.constant 0 : index
    %4 = vector.load %arg3[%c0_4, %c0_5, %c0_6] : memref<1x16x512xf32, #tpu.memory_space<vmem>>, vector<1x16x512xf32>
    %5 = vector.shape_cast %4 : vector<1x16x512xf32> to vector<16x512xf32>
    %6 = vector.shape_cast %3 : vector<16x512xf32> to vector<1x16x512xf32>
    tpu.vector_store %arg3[%c0_4, %c0_5, %c0_6], %6 {strides = array<i32>} : memref<1x16x512xf32, #tpu.memory_space<vmem>>, vector<1x16x512xf32>,
    return
  }
  func.func @transform_0(%arg0: i32) -> (i32, i32) {
    %c0_i32 = arith.constant 0 : i32
    %c0_i32_0 = arith.constant 0 : i32
    %c0_i32_1 = arith.constant 0 : i32
    return %c0_i32, %c0_i32_0 : i32, i32
  }
  func.func @transform_1(%arg0: i32) -> (i32, i32, i32) {
    %c0_i32 = arith.constant 0 : i32
    %c0_i32_0 = arith.constant 0 : i32
    %c0_i32_1 = arith.constant 0 : i32
    return %arg0, %c0_i32, %c0_i32_0 : i32, i32, i32
  }
  func.func @transform_2(%arg0: i32) -> (i32, i32, i32) {
    %c0_i32 = arith.constant 0 : i32
    %c0_i32_0 = arith.constant 0 : i32
    %c0_i32_1 = arith.constant 0 : i32
    return %arg0, %c0_i32, %c0_i32_0 : i32, i32, i32
  }
}

module attributes {stable_mosaic.version = 11 : i64} {
  func.func @_apply_interp_kernel(%arg0: i32, %arg1: memref<16x8xf32, #tpu.memory_space<vmem>>, %arg2: memref<1x8x96xf32, #tpu.memory_space<vmem>>, %arg3: memref<1x16x96xf32, #tpu.memory_space<vmem>>) attributes {dimension_semantics = [#tpu.dimension_semantics<parallel>], iteration_bounds = array<i64: 2>, scalar_prefetch = 0 : i64, scratch_operands = 0 : i64, tpu.core_type = #tpu.core_type<tc>, window_params = [{pipeline_mode = #tpu.pipeline_mode<synchronous>, transform_indices = @transform_0, window_bounds = array<i64: 16, 8>}, {transform_indices = @transform_1, window_bounds = array<i64: 1, 8, 96>}, {transform_indices = @transform_2, window_bounds = array<i64: 1, 16, 96>}]} {
    %c0 = arith.constant 0 : index
    %c0_0 = arith.constant 0 : index
    %0 = vector.load %arg1[%c0, %c0_0] : memref<16x8xf32, #tpu.memory_space<vmem>>, vector<16x8xf32>
    %c0_1 = arith.constant 0 : index
    %c0_2 = arith.constant 0 : index
    %c0_3 = arith.constant 0 : index
    %1 = vector.load %arg2[%c0_1, %c0_2, %c0_3] : memref<1x8x96xf32, #tpu.memory_space<vmem>>, vector<1x8x96xf32>
    %2 = vector.shape_cast %1 : vector<1x8x96xf32> to vector<8x96xf32>
    %cst = arith.constant dense<0.000000e+00> : vector<16x96xf32>
    %3 = tpu.matmul %0, %2, %cst {dimension_numbers = #tpu.dot_dimension_numbers<[1], [0], [0], [1], [0, 0, 1, 1], [], []>} : vector<16x8xf32>, vector<8x96xf32>, vector<16x96xf32> -> vector<16x96xf32>
    %c0_4 = arith.constant 0 : index
    %c0_5 = arith.constant 0 : index
    %c0_6 = arith.constant 0 : index
    %4 = vector.load %arg3[%c0_4, %c0_5, %c0_6] : memref<1x16x96xf32, #tpu.memory_space<vmem>>, vector<1x16x96xf32>
    %5 = vector.shape_cast %4 : vector<1x16x96xf32> to vector<16x96xf32>
    %6 = vector.shape_cast %3 : vector<16x96xf32> to vector<1x16x96xf32>
    tpu.vector_store %arg3[%c0_4, %c0_5, %c0_6], %6 {strides = array<i32>} : memref<1x16x96xf32, #tpu.memory_space<vmem>>, vector<1x16x96xf32>,
    return
  }
  func.func @transform_0(%arg0: i32) -> (i32, i32) {
    %c0_i32 = arith.constant 0 : i32
    %c0_i32_0 = arith.constant 0 : i32
    %c0_i32_1 = arith.constant 0 : i32
    return %c0_i32, %c0_i32_0 : i32, i32
  }
  func.func @transform_1(%arg0: i32) -> (i32, i32, i32) {
    %c0_i32 = arith.constant 0 : i32
    %c0_i32_0 = arith.constant 0 : i32
    %c0_i32_1 = arith.constant 0 : i32
    return %arg0, %c0_i32, %c0_i32_0 : i32, i32, i32
  }
  func.func @transform_2(%arg0: i32) -> (i32, i32, i32) {
    %c0_i32 = arith.constant 0 : i32
    %c0_i32_0 = arith.constant 0 : i32
    %c0_i32_1 = arith.constant 0 : i32
    return %arg0, %c0_i32, %c0_i32_0 : i32, i32, i32
  }
}

module attributes {stable_mosaic.version = 11 : i64} {
  func.func @_apply_interp_kernel(%arg0: i32, %arg1: memref<16x32xf32, #tpu.memory_space<vmem>>, %arg2: memref<1x32x16xf32, #tpu.memory_space<vmem>>, %arg3: memref<1x16x16xf32, #tpu.memory_space<vmem>>) attributes {dimension_semantics = [#tpu.dimension_semantics<parallel>], iteration_bounds = array<i64: 32>, scalar_prefetch = 0 : i64, scratch_operands = 0 : i64, tpu.core_type = #tpu.core_type<tc>, window_params = [{pipeline_mode = #tpu.pipeline_mode<synchronous>, transform_indices = @transform_0, window_bounds = array<i64: 16, 32>}, {transform_indices = @transform_1, window_bounds = array<i64: 1, 32, 16>}, {transform_indices = @transform_2, window_bounds = array<i64: 1, 16, 16>}]} {
    %c0 = arith.constant 0 : index
    %c0_0 = arith.constant 0 : index
    %0 = vector.load %arg1[%c0, %c0_0] : memref<16x32xf32, #tpu.memory_space<vmem>>, vector<16x32xf32>
    %c0_1 = arith.constant 0 : index
    %c0_2 = arith.constant 0 : index
    %c0_3 = arith.constant 0 : index
    %1 = vector.load %arg2[%c0_1, %c0_2, %c0_3] : memref<1x32x16xf32, #tpu.memory_space<vmem>>, vector<1x32x16xf32>
    %2 = vector.shape_cast %1 : vector<1x32x16xf32> to vector<32x16xf32>
    %cst = arith.constant dense<0.000000e+00> : vector<16x16xf32>
    %3 = tpu.matmul %0, %2, %cst {dimension_numbers = #tpu.dot_dimension_numbers<[1], [0], [0], [1], [0, 0, 1, 1], [], []>} : vector<16x32xf32>, vector<32x16xf32>, vector<16x16xf32> -> vector<16x16xf32>
    %c0_4 = arith.constant 0 : index
    %c0_5 = arith.constant 0 : index
    %c0_6 = arith.constant 0 : index
    %4 = vector.load %arg3[%c0_4, %c0_5, %c0_6] : memref<1x16x16xf32, #tpu.memory_space<vmem>>, vector<1x16x16xf32>
    %5 = vector.shape_cast %4 : vector<1x16x16xf32> to vector<16x16xf32>
    %6 = vector.shape_cast %3 : vector<16x16xf32> to vector<1x16x16xf32>
    tpu.vector_store %arg3[%c0_4, %c0_5, %c0_6], %6 {strides = array<i32>} : memref<1x16x16xf32, #tpu.memory_space<vmem>>, vector<1x16x16xf32>,
    return
  }
  func.func @transform_0(%arg0: i32) -> (i32, i32) {
    %c0_i32 = arith.constant 0 : i32
    %c0_i32_0 = arith.constant 0 : i32
    %c0_i32_1 = arith.constant 0 : i32
    return %c0_i32, %c0_i32_0 : i32, i32
  }
  func.func @transform_1(%arg0: i32) -> (i32, i32, i32) {
    %c0_i32 = arith.constant 0 : i32
    %c0_i32_0 = arith.constant 0 : i32
    %c0_i32_1 = arith.constant 0 : i32
    return %arg0, %c0_i32, %c0_i32_0 : i32, i32, i32
  }
  func.func @transform_2(%arg0: i32) -> (i32, i32, i32) {
    %c0_i32 = arith.constant 0 : i32
    %c0_i32_0 = arith.constant 0 : i32
    %c0_i32_1 = arith.constant 0 : i32
    return %arg0, %c0_i32, %c0_i32_0 : i32, i32, i32
  }
}

module attributes {stable_mosaic.version = 11 : i64} {
  func.func @_apply_interp_kernel(%arg0: i32, %arg1: memref<16x8xf32, #tpu.memory_space<vmem>>, %arg2: memref<1x8x12xf32, #tpu.memory_space<vmem>>, %arg3: memref<1x16x12xf32, #tpu.memory_space<vmem>>) attributes {dimension_semantics = [#tpu.dimension_semantics<parallel>], iteration_bounds = array<i64: 32>, scalar_prefetch = 0 : i64, scratch_operands = 0 : i64, tpu.core_type = #tpu.core_type<tc>, window_params = [{pipeline_mode = #tpu.pipeline_mode<synchronous>, transform_indices = @transform_0, window_bounds = array<i64: 16, 8>}, {transform_indices = @transform_1, window_bounds = array<i64: 1, 8, 12>}, {transform_indices = @transform_2, window_bounds = array<i64: 1, 16, 12>}]} {
    %c0 = arith.constant 0 : index
    %c0_0 = arith.constant 0 : index
    %0 = vector.load %arg1[%c0, %c0_0] : memref<16x8xf32, #tpu.memory_space<vmem>>, vector<16x8xf32>
    %c0_1 = arith.constant 0 : index
    %c0_2 = arith.constant 0 : index
    %c0_3 = arith.constant 0 : index
    %1 = vector.load %arg2[%c0_1, %c0_2, %c0_3] : memref<1x8x12xf32, #tpu.memory_space<vmem>>, vector<1x8x12xf32>
    %2 = vector.shape_cast %1 : vector<1x8x12xf32> to vector<8x12xf32>
    %cst = arith.constant dense<0.000000e+00> : vector<16x12xf32>
    %3 = tpu.matmul %0, %2, %cst {dimension_numbers = #tpu.dot_dimension_numbers<[1], [0], [0], [1], [0, 0, 1, 1], [], []>} : vector<16x8xf32>, vector<8x12xf32>, vector<16x12xf32> -> vector<16x12xf32>
    %c0_4 = arith.constant 0 : index
    %c0_5 = arith.constant 0 : index
    %c0_6 = arith.constant 0 : index
    %4 = vector.load %arg3[%c0_4, %c0_5, %c0_6] : memref<1x16x12xf32, #tpu.memory_space<vmem>>, vector<1x16x12xf32>
    %5 = vector.shape_cast %4 : vector<1x16x12xf32> to vector<16x12xf32>
    %6 = vector.shape_cast %3 : vector<16x12xf32> to vector<1x16x12xf32>
    tpu.vector_store %arg3[%c0_4, %c0_5, %c0_6], %6 {strides = array<i32>} : memref<1x16x12xf32, #tpu.memory_space<vmem>>, vector<1x16x12xf32>,
    return
  }
  func.func @transform_0(%arg0: i32) -> (i32, i32) {
    %c0_i32 = arith.constant 0 : i32
    %c0_i32_0 = arith.constant 0 : i32
    %c0_i32_1 = arith.constant 0 : i32
    return %c0_i32, %c0_i32_0 : i32, i32
  }
  func.func @transform_1(%arg0: i32) -> (i32, i32, i32) {
    %c0_i32 = arith.constant 0 : i32
    %c0_i32_0 = arith.constant 0 : i32
    %c0_i32_1 = arith.constant 0 : i32
    return %arg0, %c0_i32, %c0_i32_0 : i32, i32, i32
  }
  func.func @transform_2(%arg0: i32) -> (i32, i32, i32) {
    %c0_i32 = arith.constant 0 : i32
    %c0_i32_0 = arith.constant 0 : i32
    %c0_i32_1 = arith.constant 0 : i32
    return %arg0, %c0_i32, %c0_i32_0 : i32, i32, i32
  }
}

module attributes {stable_mosaic.version = 11 : i64} {
  func.func @_apply_interp_kernel(%arg0: i32, %arg1: memref<8x16xf32, #tpu.memory_space<vmem>>, %arg2: memref<1x16x576xf32, #tpu.memory_space<vmem>>, %arg3: memref<1x8x576xf32, #tpu.memory_space<vmem>>) attributes {dimension_semantics = [#tpu.dimension_semantics<parallel>], iteration_bounds = array<i64: 2>, scalar_prefetch = 0 : i64, scratch_operands = 0 : i64, tpu.core_type = #tpu.core_type<tc>, window_params = [{pipeline_mode = #tpu.pipeline_mode<synchronous>, transform_indices = @transform_0, window_bounds = array<i64: 8, 16>}, {transform_indices = @transform_1, window_bounds = array<i64: 1, 16, 576>}, {transform_indices = @transform_2, window_bounds = array<i64: 1, 8, 576>}]} {
    %c0 = arith.constant 0 : index
    %c0_0 = arith.constant 0 : index
    %0 = vector.load %arg1[%c0, %c0_0] : memref<8x16xf32, #tpu.memory_space<vmem>>, vector<8x16xf32>
    %c0_1 = arith.constant 0 : index
    %c0_2 = arith.constant 0 : index
    %c0_3 = arith.constant 0 : index
    %1 = vector.load %arg2[%c0_1, %c0_2, %c0_3] : memref<1x16x576xf32, #tpu.memory_space<vmem>>, vector<1x16x576xf32>
    %2 = vector.shape_cast %1 : vector<1x16x576xf32> to vector<16x576xf32>
    %cst = arith.constant dense<0.000000e+00> : vector<8x576xf32>
    %3 = tpu.matmul %0, %2, %cst {dimension_numbers = #tpu.dot_dimension_numbers<[1], [0], [0], [1], [0, 0, 1, 1], [], []>} : vector<8x16xf32>, vector<16x576xf32>, vector<8x576xf32> -> vector<8x576xf32>
    %c0_4 = arith.constant 0 : index
    %c0_5 = arith.constant 0 : index
    %c0_6 = arith.constant 0 : index
    %4 = vector.load %arg3[%c0_4, %c0_5, %c0_6] : memref<1x8x576xf32, #tpu.memory_space<vmem>>, vector<1x8x576xf32>
    %5 = vector.shape_cast %4 : vector<1x8x576xf32> to vector<8x576xf32>
    %6 = vector.shape_cast %3 : vector<8x576xf32> to vector<1x8x576xf32>
    tpu.vector_store %arg3[%c0_4, %c0_5, %c0_6], %6 {strides = array<i32>} : memref<1x8x576xf32, #tpu.memory_space<vmem>>, vector<1x8x576xf32>,
    return
  }
  func.func @transform_0(%arg0: i32) -> (i32, i32) {
    %c0_i32 = arith.constant 0 : i32
    %c0_i32_0 = arith.constant 0 : i32
    %c0_i32_1 = arith.constant 0 : i32
    return %c0_i32, %c0_i32_0 : i32, i32
  }
  func.func @transform_1(%arg0: i32) -> (i32, i32, i32) {
    %c0_i32 = arith.constant 0 : i32
    %c0_i32_0 = arith.constant 0 : i32
    %c0_i32_1 = arith.constant 0 : i32
    return %arg0, %c0_i32, %c0_i32_0 : i32, i32, i32
  }
  func.func @transform_2(%arg0: i32) -> (i32, i32, i32) {
    %c0_i32 = arith.constant 0 : i32
    %c0_i32_0 = arith.constant 0 : i32
    %c0_i32_1 = arith.constant 0 : i32
    return %arg0, %c0_i32, %c0_i32_0 : i32, i32, i32
  }
}

module attributes {stable_mosaic.version = 11 : i64} {
  func.func @_apply_interp_kernel(%arg0: i32, %arg1: memref<8x16xf32, #tpu.memory_space<vmem>>, %arg2: memref<1x16x36xf32, #tpu.memory_space<vmem>>, %arg3: memref<1x8x36xf32, #tpu.memory_space<vmem>>) attributes {dimension_semantics = [#tpu.dimension_semantics<parallel>], iteration_bounds = array<i64: 16>, scalar_prefetch = 0 : i64, scratch_operands = 0 : i64, tpu.core_type = #tpu.core_type<tc>, window_params = [{pipeline_mode = #tpu.pipeline_mode<synchronous>, transform_indices = @transform_0, window_bounds = array<i64: 8, 16>}, {transform_indices = @transform_1, window_bounds = array<i64: 1, 16, 36>}, {transform_indices = @transform_2, window_bounds = array<i64: 1, 8, 36>}]} {
    %c0 = arith.constant 0 : index
    %c0_0 = arith.constant 0 : index
    %0 = vector.load %arg1[%c0, %c0_0] : memref<8x16xf32, #tpu.memory_space<vmem>>, vector<8x16xf32>
    %c0_1 = arith.constant 0 : index
    %c0_2 = arith.constant 0 : index
    %c0_3 = arith.constant 0 : index
    %1 = vector.load %arg2[%c0_1, %c0_2, %c0_3] : memref<1x16x36xf32, #tpu.memory_space<vmem>>, vector<1x16x36xf32>
    %2 = vector.shape_cast %1 : vector<1x16x36xf32> to vector<16x36xf32>
    %cst = arith.constant dense<0.000000e+00> : vector<8x36xf32>
    %3 = tpu.matmul %0, %2, %cst {dimension_numbers = #tpu.dot_dimension_numbers<[1], [0], [0], [1], [0, 0, 1, 1], [], []>} : vector<8x16xf32>, vector<16x36xf32>, vector<8x36xf32> -> vector<8x36xf32>
    %c0_4 = arith.constant 0 : index
    %c0_5 = arith.constant 0 : index
    %c0_6 = arith.constant 0 : index
    %4 = vector.load %arg3[%c0_4, %c0_5, %c0_6] : memref<1x8x36xf32, #tpu.memory_space<vmem>>, vector<1x8x36xf32>
    %5 = vector.shape_cast %4 : vector<1x8x36xf32> to vector<8x36xf32>
    %6 = vector.shape_cast %3 : vector<8x36xf32> to vector<1x8x36xf32>
    tpu.vector_store %arg3[%c0_4, %c0_5, %c0_6], %6 {strides = array<i32>} : memref<1x8x36xf32, #tpu.memory_space<vmem>>, vector<1x8x36xf32>,
    return
  }
  func.func @transform_0(%arg0: i32) -> (i32, i32) {
    %c0_i32 = arith.constant 0 : i32
    %c0_i32_0 = arith.constant 0 : i32
    %c0_i32_1 = arith.constant 0 : i32
    return %c0_i32, %c0_i32_0 : i32, i32
  }
  func.func @transform_1(%arg0: i32) -> (i32, i32, i32) {
    %c0_i32 = arith.constant 0 : i32
    %c0_i32_0 = arith.constant 0 : i32
    %c0_i32_1 = arith.constant 0 : i32
    return %arg0, %c0_i32, %c0_i32_0 : i32, i32, i32
  }
  func.func @transform_2(%arg0: i32) -> (i32, i32, i32) {
    %c0_i32 = arith.constant 0 : i32
    %c0_i32_0 = arith.constant 0 : i32
    %c0_i32_1 = arith.constant 0 : i32
    return %arg0, %c0_i32, %c0_i32_0 : i32, i32, i32
  }
}

module attributes {stable_mosaic.version = 11 : i64} {
  func.func @_conv_chain_kernel(%arg0: i32, %arg1: i32, %arg2: memref<128x128xbf16, #tpu.memory_space<vmem>>, %arg3: memref<128x128xbf16, #tpu.memory_space<vmem>>, %arg4: memref<1x128xf32, #tpu.memory_space<vmem>>, %arg5: memref<128x128xbf16, #tpu.memory_space<vmem>>, %arg6: memref<1x128xf32, #tpu.memory_space<vmem>>, %arg7: memref<128x128xbf16, #tpu.memory_space<vmem>>, %arg8: memref<128x128xf32, #tpu.memory_space<vmem>>, %arg9: memref<128x128xf32, #tpu.memory_space<vmem>>) attributes {dimension_semantics = [#tpu.dimension_semantics<parallel>, #tpu.dimension_semantics<arbitrary>], iteration_bounds = array<i64: 1, 1>, scalar_prefetch = 0 : i64, scratch_operands = 1 : i64, tpu.core_type = #tpu.core_type<tc>, window_params = [{transform_indices = @transform_0, window_bounds = array<i64: 128, 128>}, {transform_indices = @transform_1, window_bounds = array<i64: 128, 128>}, {pipeline_mode = #tpu.pipeline_mode<synchronous>, transform_indices = @transform_2, window_bounds = array<i64: 1, 128>}, {pipeline_mode = #tpu.pipeline_mode<synchronous>, transform_indices = @transform_3, window_bounds = array<i64: 128, 128>}, {pipeline_mode = #tpu.pipeline_mode<synchronous>, transform_indices = @transform_4, window_bounds = array<i64: 1, 128>}, {pipeline_mode = #tpu.pipeline_mode<synchronous>, transform_indices = @transform_5, window_bounds = array<i64: 128, 128>}, {transform_indices = @transform_6, window_bounds = array<i64: 128, 128>}]} {
    %c0_i32 = arith.constant 0 : i32
    %0 = arith.cmpi eq, %arg1, %c0_i32 : i32
    %1 = arith.extui %0 : i1 to i32
    %c0_i32_0 = arith.constant 0 : i32
    %2 = arith.cmpi ne, %1, %c0_i32_0 : i32
    scf.if %2 {
      %cst_10 = arith.constant 0.000000e+00 : f32
      %12 = vector.broadcast %cst_10 : f32 to vector<128x128xf32>
      %c0_11 = arith.constant 0 : index
      %c0_12 = arith.constant 0 : index
      %13 = vector.load %arg9[%c0_11, %c0_12] : memref<128x128xf32, #tpu.memory_space<vmem>>, vector<128x128xf32>
      tpu.vector_store %arg9[%c0_11, %c0_12], %12 {strides = array<i32>} : memref<128x128xf32, #tpu.memory_space<vmem>>, vector<128x128xf32>,
    } else {
    }
    %c0 = arith.constant 0 : index
    %c0_1 = arith.constant 0 : index
    %3 = vector.load %arg9[%c0, %c0_1] : memref<128x128xf32, #tpu.memory_space<vmem>>, vector<128x128xf32>
    %c0_2 = arith.constant 0 : index
    %c0_3 = arith.constant 0 : index
    %4 = vector.load %arg2[%c0_2, %c0_3] : memref<128x128xbf16, #tpu.memory_space<vmem>>, vector<128x128xbf16>
    %c0_4 = arith.constant 0 : index
    %c0_5 = arith.constant 0 : index
    %5 = vector.load %arg3[%c0_4, %c0_5] : memref<128x128xbf16, #tpu.memory_space<vmem>>, vector<128x128xbf16>
    %cst = arith.constant dense<0.000000e+00> : vector<128x128xf32>
    %6 = tpu.matmul %4, %5, %cst {dimension_numbers = #tpu.dot_dimension_numbers<[1], [0], [0], [1], [0, 0, 1, 1], [], []>} : vector<128x128xbf16>, vector<128x128xbf16>, vector<128x128xf32> -> vector<128x128xf32>
    %7 = arith.addf %3, %6 : vector<128x128xf32>
    %c0_6 = arith.constant 0 : index
    %c0_7 = arith.constant 0 : index
    %8 = vector.load %arg9[%c0_6, %c0_7] : memref<128x128xf32, #tpu.memory_space<vmem>>, vector<128x128xf32>
    tpu.vector_store %arg9[%c0_6, %c0_7], %7 {strides = array<i32>} : memref<128x128xf32, #tpu.memory_space<vmem>>, vector<128x128xf32>,
    %c0_i32_8 = arith.constant 0 : i32
    %9 = arith.cmpi eq, %arg1, %c0_i32_8 : i32
    %10 = arith.extui %9 : i1 to i32
    %c0_i32_9 = arith.constant 0 : i32
    %11 = arith.cmpi ne, %10, %c0_i32_9 : i32
    scf.if %11 {
      %c0_10 = arith.constant 0 : index
      %c0_11 = arith.constant 0 : index
      %12 = vector.load %arg9[%c0_10, %c0_11] : memref<128x128xf32, #tpu.memory_space<vmem>>, vector<128x128xf32>
      %c0_12 = arith.constant 0 : index
      %c0_13 = arith.constant 0 : index
      %13 = vector.load %arg4[%c0_12, %c0_13] : memref<1x128xf32, #tpu.memory_space<vmem>>, vector<1x128xf32>
      %14 = vector.broadcast %13 : vector<1x128xf32> to vector<128x128xf32>
      %15 = arith.addf %12, %14 : vector<128x128xf32>
      %16 = arith.truncf %15 : vector<128x128xf32> to vector<128x128xbf16>
      %c0_14 = arith.constant 0 : index
      %c0_15 = arith.constant 0 : index
      %17 = vector.load %arg5[%c0_14, %c0_15] : memref<128x128xbf16, #tpu.memory_space<vmem>>, vector<128x128xbf16>
      %cst_16 = arith.constant dense<0.000000e+00> : vector<128x128xf32>
      %18 = tpu.matmul %16, %17, %cst_16 {dimension_numbers = #tpu.dot_dimension_numbers<[1], [0], [0], [1], [0, 0, 1, 1], [], []>} : vector<128x128xbf16>, vector<128x128xbf16>, vector<128x128xf32> -> vector<128x128xf32>
      %c0_17 = arith.constant 0 : index
      %c0_18 = arith.constant 0 : index
      %19 = vector.load %arg6[%c0_17, %c0_18] : memref<1x128xf32, #tpu.memory_space<vmem>>, vector<1x128xf32>
      %20 = vector.broadcast %19 : vector<1x128xf32> to vector<128x128xf32>
      %21 = arith.addf %18, %20 : vector<128x128xf32>
      %22 = arith.truncf %21 : vector<128x128xf32> to vector<128x128xbf16>
      %c0_19 = arith.constant 0 : index
      %c0_20 = arith.constant 0 : index
      %23 = vector.load %arg7[%c0_19, %c0_20] : memref<128x128xbf16, #tpu.memory_space<vmem>>, vector<128x128xbf16>
      %cst_21 = arith.constant dense<0.000000e+00> : vector<128x128xf32>
      %24 = tpu.matmul %22, %23, %cst_21 {dimension_numbers = #tpu.dot_dimension_numbers<[1], [0], [0], [1], [0, 0, 1, 1], [], []>} : vector<128x128xbf16>, vector<128x128xbf16>, vector<128x128xf32> -> vector<128x128xf32>
      %c0_22 = arith.constant 0 : index
      %c0_23 = arith.constant 0 : index
      %25 = vector.load %arg8[%c0_22, %c0_23] : memref<128x128xf32, #tpu.memory_space<vmem>>, vector<128x128xf32>
      tpu.vector_store %arg8[%c0_22, %c0_23], %24 {strides = array<i32>} : memref<128x128xf32, #tpu.memory_space<vmem>>, vector<128x128xf32>,
    } else {
    }
    return
  }
  func.func @transform_0(%arg0: i32, %arg1: i32) -> (i32, i32) {
    %c0_i32 = arith.constant 0 : i32
    return %arg0, %arg1 : i32, i32
  }
  func.func @transform_1(%arg0: i32, %arg1: i32) -> (i32, i32) {
    %c0_i32 = arith.constant 0 : i32
    %c0_i32_0 = arith.constant 0 : i32
    return %arg1, %c0_i32 : i32, i32
  }
  func.func @transform_2(%arg0: i32, %arg1: i32) -> (i32, i32) {
    %c0_i32 = arith.constant 0 : i32
    %c0_i32_0 = arith.constant 0 : i32
    %c0_i32_1 = arith.constant 0 : i32
    return %c0_i32, %c0_i32_0 : i32, i32
  }
  func.func @transform_3(%arg0: i32, %arg1: i32) -> (i32, i32) {
    %c0_i32 = arith.constant 0 : i32
    %c0_i32_0 = arith.constant 0 : i32
    %c0_i32_1 = arith.constant 0 : i32
    return %c0_i32, %c0_i32_0 : i32, i32
  }
  func.func @transform_4(%arg0: i32, %arg1: i32) -> (i32, i32) {
    %c0_i32 = arith.constant 0 : i32
    %c0_i32_0 = arith.constant 0 : i32
    %c0_i32_1 = arith.constant 0 : i32
    return %c0_i32, %c0_i32_0 : i32, i32
  }
  func.func @transform_5(%arg0: i32, %arg1: i32) -> (i32, i32) {
    %c0_i32 = arith.constant 0 : i32
    %c0_i32_0 = arith.constant 0 : i32
    %c0_i32_1 = arith.constant 0 : i32
    return %c0_i32, %c0_i32_0 : i32, i32
  }
  func.func @transform_6(%arg0: i32, %arg1: i32) -> (i32, i32) {
    %c0_i32 = arith.constant 0 : i32
    %c0_i32_0 = arith.constant 0 : i32
    return %arg0, %c0_i32 : i32, i32
  }
}

module attributes {stable_mosaic.version = 11 : i64} {
  func.func @_apply_interp_kernel(%arg0: i32, %arg1: memref<32x16xf32, #tpu.memory_space<vmem>>, %arg2: memref<1x16x576xf32, #tpu.memory_space<vmem>>, %arg3: memref<1x32x576xf32, #tpu.memory_space<vmem>>) attributes {dimension_semantics = [#tpu.dimension_semantics<parallel>], iteration_bounds = array<i64: 2>, scalar_prefetch = 0 : i64, scratch_operands = 0 : i64, tpu.core_type = #tpu.core_type<tc>, window_params = [{pipeline_mode = #tpu.pipeline_mode<synchronous>, transform_indices = @transform_0, window_bounds = array<i64: 32, 16>}, {transform_indices = @transform_1, window_bounds = array<i64: 1, 16, 576>}, {transform_indices = @transform_2, window_bounds = array<i64: 1, 32, 576>}]} {
    %c0 = arith.constant 0 : index
    %c0_0 = arith.constant 0 : index
    %0 = vector.load %arg1[%c0, %c0_0] : memref<32x16xf32, #tpu.memory_space<vmem>>, vector<32x16xf32>
    %c0_1 = arith.constant 0 : index
    %c0_2 = arith.constant 0 : index
    %c0_3 = arith.constant 0 : index
    %1 = vector.load %arg2[%c0_1, %c0_2, %c0_3] : memref<1x16x576xf32, #tpu.memory_space<vmem>>, vector<1x16x576xf32>
    %2 = vector.shape_cast %1 : vector<1x16x576xf32> to vector<16x576xf32>
    %cst = arith.constant dense<0.000000e+00> : vector<32x576xf32>
    %3 = tpu.matmul %0, %2, %cst {dimension_numbers = #tpu.dot_dimension_numbers<[1], [0], [0], [1], [0, 0, 1, 1], [], []>} : vector<32x16xf32>, vector<16x576xf32>, vector<32x576xf32> -> vector<32x576xf32>
    %c0_4 = arith.constant 0 : index
    %c0_5 = arith.constant 0 : index
    %c0_6 = arith.constant 0 : index
    %4 = vector.load %arg3[%c0_4, %c0_5, %c0_6] : memref<1x32x576xf32, #tpu.memory_space<vmem>>, vector<1x32x576xf32>
    %5 = vector.shape_cast %4 : vector<1x32x576xf32> to vector<32x576xf32>
    %6 = vector.shape_cast %3 : vector<32x576xf32> to vector<1x32x576xf32>
    tpu.vector_store %arg3[%c0_4, %c0_5, %c0_6], %6 {strides = array<i32>} : memref<1x32x576xf32, #tpu.memory_space<vmem>>, vector<1x32x576xf32>,
    return
  }
  func.func @transform_0(%arg0: i32) -> (i32, i32) {
    %c0_i32 = arith.constant 0 : i32
    %c0_i32_0 = arith.constant 0 : i32
    %c0_i32_1 = arith.constant 0 : i32
    return %c0_i32, %c0_i32_0 : i32, i32
  }
  func.func @transform_1(%arg0: i32) -> (i32, i32, i32) {
    %c0_i32 = arith.constant 0 : i32
    %c0_i32_0 = arith.constant 0 : i32
    %c0_i32_1 = arith.constant 0 : i32
    return %arg0, %c0_i32, %c0_i32_0 : i32, i32, i32
  }
  func.func @transform_2(%arg0: i32) -> (i32, i32, i32) {
    %c0_i32 = arith.constant 0 : i32
    %c0_i32_0 = arith.constant 0 : i32
    %c0_i32_1 = arith.constant 0 : i32
    return %arg0, %c0_i32, %c0_i32_0 : i32, i32, i32
  }
}

module attributes {stable_mosaic.version = 11 : i64} {
  func.func @_apply_interp_kernel(%arg0: i32, %arg1: memref<32x16xf32, #tpu.memory_space<vmem>>, %arg2: memref<1x16x36xf32, #tpu.memory_space<vmem>>, %arg3: memref<1x32x36xf32, #tpu.memory_space<vmem>>) attributes {dimension_semantics = [#tpu.dimension_semantics<parallel>], iteration_bounds = array<i64: 64>, scalar_prefetch = 0 : i64, scratch_operands = 0 : i64, tpu.core_type = #tpu.core_type<tc>, window_params = [{pipeline_mode = #tpu.pipeline_mode<synchronous>, transform_indices = @transform_0, window_bounds = array<i64: 32, 16>}, {transform_indices = @transform_1, window_bounds = array<i64: 1, 16, 36>}, {transform_indices = @transform_2, window_bounds = array<i64: 1, 32, 36>}]} {
    %c0 = arith.constant 0 : index
    %c0_0 = arith.constant 0 : index
    %0 = vector.load %arg1[%c0, %c0_0] : memref<32x16xf32, #tpu.memory_space<vmem>>, vector<32x16xf32>
    %c0_1 = arith.constant 0 : index
    %c0_2 = arith.constant 0 : index
    %c0_3 = arith.constant 0 : index
    %1 = vector.load %arg2[%c0_1, %c0_2, %c0_3] : memref<1x16x36xf32, #tpu.memory_space<vmem>>, vector<1x16x36xf32>
    %2 = vector.shape_cast %1 : vector<1x16x36xf32> to vector<16x36xf32>
    %cst = arith.constant dense<0.000000e+00> : vector<32x36xf32>
    %3 = tpu.matmul %0, %2, %cst {dimension_numbers = #tpu.dot_dimension_numbers<[1], [0], [0], [1], [0, 0, 1, 1], [], []>} : vector<32x16xf32>, vector<16x36xf32>, vector<32x36xf32> -> vector<32x36xf32>
    %c0_4 = arith.constant 0 : index
    %c0_5 = arith.constant 0 : index
    %c0_6 = arith.constant 0 : index
    %4 = vector.load %arg3[%c0_4, %c0_5, %c0_6] : memref<1x32x36xf32, #tpu.memory_space<vmem>>, vector<1x32x36xf32>
    %5 = vector.shape_cast %4 : vector<1x32x36xf32> to vector<32x36xf32>
    %6 = vector.shape_cast %3 : vector<32x36xf32> to vector<1x32x36xf32>
    tpu.vector_store %arg3[%c0_4, %c0_5, %c0_6], %6 {strides = array<i32>} : memref<1x32x36xf32, #tpu.memory_space<vmem>>, vector<1x32x36xf32>,
    return
  }
  func.func @transform_0(%arg0: i32) -> (i32, i32) {
    %c0_i32 = arith.constant 0 : i32
    %c0_i32_0 = arith.constant 0 : i32
    %c0_i32_1 = arith.constant 0 : i32
    return %c0_i32, %c0_i32_0 : i32, i32
  }
  func.func @transform_1(%arg0: i32) -> (i32, i32, i32) {
    %c0_i32 = arith.constant 0 : i32
    %c0_i32_0 = arith.constant 0 : i32
    %c0_i32_1 = arith.constant 0 : i32
    return %arg0, %c0_i32, %c0_i32_0 : i32, i32, i32
  }
  func.func @transform_2(%arg0: i32) -> (i32, i32, i32) {
    %c0_i32 = arith.constant 0 : i32
    %c0_i32_0 = arith.constant 0 : i32
    %c0_i32_1 = arith.constant 0 : i32
    return %arg0, %c0_i32, %c0_i32_0 : i32, i32, i32
  }
}

module attributes {stable_mosaic.version = 11 : i64} {
  func.func @_apply_interp_kernel(%arg0: i32, %arg1: memref<16x32xf32, #tpu.memory_space<vmem>>, %arg2: memref<1x32x1664xf32, #tpu.memory_space<vmem>>, %arg3: memref<1x16x1664xf32, #tpu.memory_space<vmem>>) attributes {dimension_semantics = [#tpu.dimension_semantics<parallel>], iteration_bounds = array<i64: 2>, scalar_prefetch = 0 : i64, scratch_operands = 0 : i64, tpu.core_type = #tpu.core_type<tc>, window_params = [{pipeline_mode = #tpu.pipeline_mode<synchronous>, transform_indices = @transform_0, window_bounds = array<i64: 16, 32>}, {transform_indices = @transform_1, window_bounds = array<i64: 1, 32, 1664>}, {transform_indices = @transform_2, window_bounds = array<i64: 1, 16, 1664>}]} {
    %c0 = arith.constant 0 : index
    %c0_0 = arith.constant 0 : index
    %0 = vector.load %arg1[%c0, %c0_0] : memref<16x32xf32, #tpu.memory_space<vmem>>, vector<16x32xf32>
    %c0_1 = arith.constant 0 : index
    %c0_2 = arith.constant 0 : index
    %c0_3 = arith.constant 0 : index
    %1 = vector.load %arg2[%c0_1, %c0_2, %c0_3] : memref<1x32x1664xf32, #tpu.memory_space<vmem>>, vector<1x32x1664xf32>
    %2 = vector.shape_cast %1 : vector<1x32x1664xf32> to vector<32x1664xf32>
    %cst = arith.constant dense<0.000000e+00> : vector<16x1664xf32>
    %3 = tpu.matmul %0, %2, %cst {dimension_numbers = #tpu.dot_dimension_numbers<[1], [0], [0], [1], [0, 0, 1, 1], [], []>} : vector<16x32xf32>, vector<32x1664xf32>, vector<16x1664xf32> -> vector<16x1664xf32>
    %c0_4 = arith.constant 0 : index
    %c0_5 = arith.constant 0 : index
    %c0_6 = arith.constant 0 : index
    %4 = vector.load %arg3[%c0_4, %c0_5, %c0_6] : memref<1x16x1664xf32, #tpu.memory_space<vmem>>, vector<1x16x1664xf32>
    %5 = vector.shape_cast %4 : vector<1x16x1664xf32> to vector<16x1664xf32>
    %6 = vector.shape_cast %3 : vector<16x1664xf32> to vector<1x16x1664xf32>
    tpu.vector_store %arg3[%c0_4, %c0_5, %c0_6], %6 {strides = array<i32>} : memref<1x16x1664xf32, #tpu.memory_space<vmem>>, vector<1x16x1664xf32>,
    return
  }
  func.func @transform_0(%arg0: i32) -> (i32, i32) {
    %c0_i32 = arith.constant 0 : i32
    %c0_i32_0 = arith.constant 0 : i32
    %c0_i32_1 = arith.constant 0 : i32
    return %c0_i32, %c0_i32_0 : i32, i32
  }
  func.func @transform_1(%arg0: i32) -> (i32, i32, i32) {
    %c0_i32 = arith.constant 0 : i32
    %c0_i32_0 = arith.constant 0 : i32
    %c0_i32_1 = arith.constant 0 : i32
    return %arg0, %c0_i32, %c0_i32_0 : i32, i32, i32
  }
  func.func @transform_2(%arg0: i32) -> (i32, i32, i32) {
    %c0_i32 = arith.constant 0 : i32
    %c0_i32_0 = arith.constant 0 : i32
    %c0_i32_1 = arith.constant 0 : i32
    return %arg0, %c0_i32, %c0_i32_0 : i32, i32, i32
  }
}

module attributes {stable_mosaic.version = 11 : i64} {
  func.func @_apply_interp_kernel(%arg0: i32, %arg1: memref<16x32xf32, #tpu.memory_space<vmem>>, %arg2: memref<1x32x52xf32, #tpu.memory_space<vmem>>, %arg3: memref<1x16x52xf32, #tpu.memory_space<vmem>>) attributes {dimension_semantics = [#tpu.dimension_semantics<parallel>], iteration_bounds = array<i64: 32>, scalar_prefetch = 0 : i64, scratch_operands = 0 : i64, tpu.core_type = #tpu.core_type<tc>, window_params = [{pipeline_mode = #tpu.pipeline_mode<synchronous>, transform_indices = @transform_0, window_bounds = array<i64: 16, 32>}, {transform_indices = @transform_1, window_bounds = array<i64: 1, 32, 52>}, {transform_indices = @transform_2, window_bounds = array<i64: 1, 16, 52>}]} {
    %c0 = arith.constant 0 : index
    %c0_0 = arith.constant 0 : index
    %0 = vector.load %arg1[%c0, %c0_0] : memref<16x32xf32, #tpu.memory_space<vmem>>, vector<16x32xf32>
    %c0_1 = arith.constant 0 : index
    %c0_2 = arith.constant 0 : index
    %c0_3 = arith.constant 0 : index
    %1 = vector.load %arg2[%c0_1, %c0_2, %c0_3] : memref<1x32x52xf32, #tpu.memory_space<vmem>>, vector<1x32x52xf32>
    %2 = vector.shape_cast %1 : vector<1x32x52xf32> to vector<32x52xf32>
    %cst = arith.constant dense<0.000000e+00> : vector<16x52xf32>
    %3 = tpu.matmul %0, %2, %cst {dimension_numbers = #tpu.dot_dimension_numbers<[1], [0], [0], [1], [0, 0, 1, 1], [], []>} : vector<16x32xf32>, vector<32x52xf32>, vector<16x52xf32> -> vector<16x52xf32>
    %c0_4 = arith.constant 0 : index
    %c0_5 = arith.constant 0 : index
    %c0_6 = arith.constant 0 : index
    %4 = vector.load %arg3[%c0_4, %c0_5, %c0_6] : memref<1x16x52xf32, #tpu.memory_space<vmem>>, vector<1x16x52xf32>
    %5 = vector.shape_cast %4 : vector<1x16x52xf32> to vector<16x52xf32>
    %6 = vector.shape_cast %3 : vector<16x52xf32> to vector<1x16x52xf32>
    tpu.vector_store %arg3[%c0_4, %c0_5, %c0_6], %6 {strides = array<i32>} : memref<1x16x52xf32, #tpu.memory_space<vmem>>, vector<1x16x52xf32>,
    return
  }
  func.func @transform_0(%arg0: i32) -> (i32, i32) {
    %c0_i32 = arith.constant 0 : i32
    %c0_i32_0 = arith.constant 0 : i32
    %c0_i32_1 = arith.constant 0 : i32
    return %c0_i32, %c0_i32_0 : i32, i32
  }
  func.func @transform_1(%arg0: i32) -> (i32, i32, i32) {
    %c0_i32 = arith.constant 0 : i32
    %c0_i32_0 = arith.constant 0 : i32
    %c0_i32_1 = arith.constant 0 : i32
    return %arg0, %c0_i32, %c0_i32_0 : i32, i32, i32
  }
  func.func @transform_2(%arg0: i32) -> (i32, i32, i32) {
    %c0_i32 = arith.constant 0 : i32
    %c0_i32_0 = arith.constant 0 : i32
    %c0_i32_1 = arith.constant 0 : i32
    return %arg0, %c0_i32, %c0_i32_0 : i32, i32, i32
  }
}

module attributes {stable_mosaic.version = 11 : i64} {
  func.func @_conv_chain_kernel(%arg0: i32, %arg1: i32, %arg2: memref<256x128xbf16, #tpu.memory_space<vmem>>, %arg3: memref<128x128xbf16, #tpu.memory_space<vmem>>, %arg4: memref<1x128xf32, #tpu.memory_space<vmem>>, %arg5: memref<128x128xbf16, #tpu.memory_space<vmem>>, %arg6: memref<1x128xf32, #tpu.memory_space<vmem>>, %arg7: memref<128x128xbf16, #tpu.memory_space<vmem>>, %arg8: memref<256x128xf32, #tpu.memory_space<vmem>>, %arg9: memref<256x128xf32, #tpu.memory_space<vmem>>) attributes {dimension_semantics = [#tpu.dimension_semantics<parallel>, #tpu.dimension_semantics<arbitrary>], iteration_bounds = array<i64: 2, 1>, scalar_prefetch = 0 : i64, scratch_operands = 1 : i64, tpu.core_type = #tpu.core_type<tc>, window_params = [{transform_indices = @transform_0, window_bounds = array<i64: 256, 128>}, {transform_indices = @transform_1, window_bounds = array<i64: 128, 128>}, {pipeline_mode = #tpu.pipeline_mode<synchronous>, transform_indices = @transform_2, window_bounds = array<i64: 1, 128>}, {pipeline_mode = #tpu.pipeline_mode<synchronous>, transform_indices = @transform_3, window_bounds = array<i64: 128, 128>}, {pipeline_mode = #tpu.pipeline_mode<synchronous>, transform_indices = @transform_4, window_bounds = array<i64: 1, 128>}, {pipeline_mode = #tpu.pipeline_mode<synchronous>, transform_indices = @transform_5, window_bounds = array<i64: 128, 128>}, {transform_indices = @transform_6, window_bounds = array<i64: 256, 128>}]} {
    %c0_i32 = arith.constant 0 : i32
    %0 = arith.cmpi eq, %arg1, %c0_i32 : i32
    %1 = arith.extui %0 : i1 to i32
    %c0_i32_0 = arith.constant 0 : i32
    %2 = arith.cmpi ne, %1, %c0_i32_0 : i32
    scf.if %2 {
      %cst_10 = arith.constant 0.000000e+00 : f32
      %12 = vector.broadcast %cst_10 : f32 to vector<256x128xf32>
      %c0_11 = arith.constant 0 : index
      %c0_12 = arith.constant 0 : index
      %13 = vector.load %arg9[%c0_11, %c0_12] : memref<256x128xf32, #tpu.memory_space<vmem>>, vector<256x128xf32>
      tpu.vector_store %arg9[%c0_11, %c0_12], %12 {strides = array<i32>} : memref<256x128xf32, #tpu.memory_space<vmem>>, vector<256x128xf32>,
    } else {
    }
    %c0 = arith.constant 0 : index
    %c0_1 = arith.constant 0 : index
    %3 = vector.load %arg9[%c0, %c0_1] : memref<256x128xf32, #tpu.memory_space<vmem>>, vector<256x128xf32>
    %c0_2 = arith.constant 0 : index
    %c0_3 = arith.constant 0 : index
    %4 = vector.load %arg2[%c0_2, %c0_3] : memref<256x128xbf16, #tpu.memory_space<vmem>>, vector<256x128xbf16>
    %c0_4 = arith.constant 0 : index
    %c0_5 = arith.constant 0 : index
    %5 = vector.load %arg3[%c0_4, %c0_5] : memref<128x128xbf16, #tpu.memory_space<vmem>>, vector<128x128xbf16>
    %cst = arith.constant dense<0.000000e+00> : vector<256x128xf32>
    %6 = tpu.matmul %4, %5, %cst {dimension_numbers = #tpu.dot_dimension_numbers<[1], [0], [0], [1], [0, 0, 1, 1], [], []>} : vector<256x128xbf16>, vector<128x128xbf16>, vector<256x128xf32> -> vector<256x128xf32>
    %7 = arith.addf %3, %6 : vector<256x128xf32>
    %c0_6 = arith.constant 0 : index
    %c0_7 = arith.constant 0 : index
    %8 = vector.load %arg9[%c0_6, %c0_7] : memref<256x128xf32, #tpu.memory_space<vmem>>, vector<256x128xf32>
    tpu.vector_store %arg9[%c0_6, %c0_7], %7 {strides = array<i32>} : memref<256x128xf32, #tpu.memory_space<vmem>>, vector<256x128xf32>,
    %c0_i32_8 = arith.constant 0 : i32
    %9 = arith.cmpi eq, %arg1, %c0_i32_8 : i32
    %10 = arith.extui %9 : i1 to i32
    %c0_i32_9 = arith.constant 0 : i32
    %11 = arith.cmpi ne, %10, %c0_i32_9 : i32
    scf.if %11 {
      %c0_10 = arith.constant 0 : index
      %c0_11 = arith.constant 0 : index
      %12 = vector.load %arg9[%c0_10, %c0_11] : memref<256x128xf32, #tpu.memory_space<vmem>>, vector<256x128xf32>
      %c0_12 = arith.constant 0 : index
      %c0_13 = arith.constant 0 : index
      %13 = vector.load %arg4[%c0_12, %c0_13] : memref<1x128xf32, #tpu.memory_space<vmem>>, vector<1x128xf32>
      %14 = vector.broadcast %13 : vector<1x128xf32> to vector<256x128xf32>
      %15 = arith.addf %12, %14 : vector<256x128xf32>
      %16 = arith.truncf %15 : vector<256x128xf32> to vector<256x128xbf16>
      %c0_14 = arith.constant 0 : index
      %c0_15 = arith.constant 0 : index
      %17 = vector.load %arg5[%c0_14, %c0_15] : memref<128x128xbf16, #tpu.memory_space<vmem>>, vector<128x128xbf16>
      %cst_16 = arith.constant dense<0.000000e+00> : vector<256x128xf32>
      %18 = tpu.matmul %16, %17, %cst_16 {dimension_numbers = #tpu.dot_dimension_numbers<[1], [0], [0], [1], [0, 0, 1, 1], [], []>} : vector<256x128xbf16>, vector<128x128xbf16>, vector<256x128xf32> -> vector<256x128xf32>
      %c0_17 = arith.constant 0 : index
      %c0_18 = arith.constant 0 : index
      %19 = vector.load %arg6[%c0_17, %c0_18] : memref<1x128xf32, #tpu.memory_space<vmem>>, vector<1x128xf32>
      %20 = vector.broadcast %19 : vector<1x128xf32> to vector<256x128xf32>
      %21 = arith.addf %18, %20 : vector<256x128xf32>
      %22 = arith.truncf %21 : vector<256x128xf32> to vector<256x128xbf16>
      %c0_19 = arith.constant 0 : index
      %c0_20 = arith.constant 0 : index
      %23 = vector.load %arg7[%c0_19, %c0_20] : memref<128x128xbf16, #tpu.memory_space<vmem>>, vector<128x128xbf16>
      %cst_21 = arith.constant dense<0.000000e+00> : vector<256x128xf32>
      %24 = tpu.matmul %22, %23, %cst_21 {dimension_numbers = #tpu.dot_dimension_numbers<[1], [0], [0], [1], [0, 0, 1, 1], [], []>} : vector<256x128xbf16>, vector<128x128xbf16>, vector<256x128xf32> -> vector<256x128xf32>
      %c0_22 = arith.constant 0 : index
      %c0_23 = arith.constant 0 : index
      %25 = vector.load %arg8[%c0_22, %c0_23] : memref<256x128xf32, #tpu.memory_space<vmem>>, vector<256x128xf32>
      tpu.vector_store %arg8[%c0_22, %c0_23], %24 {strides = array<i32>} : memref<256x128xf32, #tpu.memory_space<vmem>>, vector<256x128xf32>,
    } else {
    }
    return
  }
  func.func @transform_0(%arg0: i32, %arg1: i32) -> (i32, i32) {
    %c0_i32 = arith.constant 0 : i32
    return %arg0, %arg1 : i32, i32
  }
  func.func @transform_1(%arg0: i32, %arg1: i32) -> (i32, i32) {
    %c0_i32 = arith.constant 0 : i32
    %c0_i32_0 = arith.constant 0 : i32
    return %arg1, %c0_i32 : i32, i32
  }
  func.func @transform_2(%arg0: i32, %arg1: i32) -> (i32, i32) {
    %c0_i32 = arith.constant 0 : i32
    %c0_i32_0 = arith.constant 0 : i32
    %c0_i32_1 = arith.constant 0 : i32
    return %c0_i32, %c0_i32_0 : i32, i32
  }
  func.func @transform_3(%arg0: i32, %arg1: i32) -> (i32, i32) {
    %c0_i32 = arith.constant 0 : i32
    %c0_i32_0 = arith.constant 0 : i32
    %c0_i32_1 = arith.constant 0 : i32
    return %c0_i32, %c0_i32_0 : i32, i32
  }
  func.func @transform_4(%arg0: i32, %arg1: i32) -> (i32, i32) {
    %c0_i32 = arith.constant 0 : i32
    %c0_i32_0 = arith.constant 0 : i32
    %c0_i32_1 = arith.constant 0 : i32
    return %c0_i32, %c0_i32_0 : i32, i32
  }
  func.func @transform_5(%arg0: i32, %arg1: i32) -> (i32, i32) {
    %c0_i32 = arith.constant 0 : i32
    %c0_i32_0 = arith.constant 0 : i32
    %c0_i32_1 = arith.constant 0 : i32
    return %c0_i32, %c0_i32_0 : i32, i32
  }
  func.func @transform_6(%arg0: i32, %arg1: i32) -> (i32, i32) {
    %c0_i32 = arith.constant 0 : i32
    %c0_i32_0 = arith.constant 0 : i32
    return %arg0, %c0_i32 : i32, i32
  }
}

module attributes {stable_mosaic.version = 11 : i64} {
  func.func @_conv_chain_kernel(%arg0: i32, %arg1: i32, %arg2: memref<256x128xbf16, #tpu.memory_space<vmem>>, %arg3: memref<128x128xbf16, #tpu.memory_space<vmem>>, %arg4: memref<1x128xf32, #tpu.memory_space<vmem>>, %arg5: memref<128x128xbf16, #tpu.memory_space<vmem>>, %arg6: memref<1x128xf32, #tpu.memory_space<vmem>>, %arg7: memref<128x128xbf16, #tpu.memory_space<vmem>>, %arg8: memref<256x128xf32, #tpu.memory_space<vmem>>, %arg9: memref<256x128xf32, #tpu.memory_space<vmem>>) attributes {dimension_semantics = [#tpu.dimension_semantics<parallel>, #tpu.dimension_semantics<arbitrary>], iteration_bounds = array<i64: 8, 1>, scalar_prefetch = 0 : i64, scratch_operands = 1 : i64, tpu.core_type = #tpu.core_type<tc>, window_params = [{transform_indices = @transform_0, window_bounds = array<i64: 256, 128>}, {transform_indices = @transform_1, window_bounds = array<i64: 128, 128>}, {pipeline_mode = #tpu.pipeline_mode<synchronous>, transform_indices = @transform_2, window_bounds = array<i64: 1, 128>}, {pipeline_mode = #tpu.pipeline_mode<synchronous>, transform_indices = @transform_3, window_bounds = array<i64: 128, 128>}, {pipeline_mode = #tpu.pipeline_mode<synchronous>, transform_indices = @transform_4, window_bounds = array<i64: 1, 128>}, {pipeline_mode = #tpu.pipeline_mode<synchronous>, transform_indices = @transform_5, window_bounds = array<i64: 128, 128>}, {transform_indices = @transform_6, window_bounds = array<i64: 256, 128>}]} {
    %c0_i32 = arith.constant 0 : i32
    %0 = arith.cmpi eq, %arg1, %c0_i32 : i32
    %1 = arith.extui %0 : i1 to i32
    %c0_i32_0 = arith.constant 0 : i32
    %2 = arith.cmpi ne, %1, %c0_i32_0 : i32
    scf.if %2 {
      %cst_10 = arith.constant 0.000000e+00 : f32
      %12 = vector.broadcast %cst_10 : f32 to vector<256x128xf32>
      %c0_11 = arith.constant 0 : index
      %c0_12 = arith.constant 0 : index
      %13 = vector.load %arg9[%c0_11, %c0_12] : memref<256x128xf32, #tpu.memory_space<vmem>>, vector<256x128xf32>
      tpu.vector_store %arg9[%c0_11, %c0_12], %12 {strides = array<i32>} : memref<256x128xf32, #tpu.memory_space<vmem>>, vector<256x128xf32>,
    } else {
    }
    %c0 = arith.constant 0 : index
    %c0_1 = arith.constant 0 : index
    %3 = vector.load %arg9[%c0, %c0_1] : memref<256x128xf32, #tpu.memory_space<vmem>>, vector<256x128xf32>
    %c0_2 = arith.constant 0 : index
    %c0_3 = arith.constant 0 : index
    %4 = vector.load %arg2[%c0_2, %c0_3] : memref<256x128xbf16, #tpu.memory_space<vmem>>, vector<256x128xbf16>
    %c0_4 = arith.constant 0 : index
    %c0_5 = arith.constant 0 : index
    %5 = vector.load %arg3[%c0_4, %c0_5] : memref<128x128xbf16, #tpu.memory_space<vmem>>, vector<128x128xbf16>
    %cst = arith.constant dense<0.000000e+00> : vector<256x128xf32>
    %6 = tpu.matmul %4, %5, %cst {dimension_numbers = #tpu.dot_dimension_numbers<[1], [0], [0], [1], [0, 0, 1, 1], [], []>} : vector<256x128xbf16>, vector<128x128xbf16>, vector<256x128xf32> -> vector<256x128xf32>
    %7 = arith.addf %3, %6 : vector<256x128xf32>
    %c0_6 = arith.constant 0 : index
    %c0_7 = arith.constant 0 : index
    %8 = vector.load %arg9[%c0_6, %c0_7] : memref<256x128xf32, #tpu.memory_space<vmem>>, vector<256x128xf32>
    tpu.vector_store %arg9[%c0_6, %c0_7], %7 {strides = array<i32>} : memref<256x128xf32, #tpu.memory_space<vmem>>, vector<256x128xf32>,
    %c0_i32_8 = arith.constant 0 : i32
    %9 = arith.cmpi eq, %arg1, %c0_i32_8 : i32
    %10 = arith.extui %9 : i1 to i32
    %c0_i32_9 = arith.constant 0 : i32
    %11 = arith.cmpi ne, %10, %c0_i32_9 : i32
    scf.if %11 {
      %c0_10 = arith.constant 0 : index
      %c0_11 = arith.constant 0 : index
      %12 = vector.load %arg9[%c0_10, %c0_11] : memref<256x128xf32, #tpu.memory_space<vmem>>, vector<256x128xf32>
      %c0_12 = arith.constant 0 : index
      %c0_13 = arith.constant 0 : index
      %13 = vector.load %arg4[%c0_12, %c0_13] : memref<1x128xf32, #tpu.memory_space<vmem>>, vector<1x128xf32>
      %14 = vector.broadcast %13 : vector<1x128xf32> to vector<256x128xf32>
      %15 = arith.addf %12, %14 : vector<256x128xf32>
      %16 = arith.truncf %15 : vector<256x128xf32> to vector<256x128xbf16>
      %c0_14 = arith.constant 0 : index
      %c0_15 = arith.constant 0 : index
      %17 = vector.load %arg5[%c0_14, %c0_15] : memref<128x128xbf16, #tpu.memory_space<vmem>>, vector<128x128xbf16>
      %cst_16 = arith.constant dense<0.000000e+00> : vector<256x128xf32>
      %18 = tpu.matmul %16, %17, %cst_16 {dimension_numbers = #tpu.dot_dimension_numbers<[1], [0], [0], [1], [0, 0, 1, 1], [], []>} : vector<256x128xbf16>, vector<128x128xbf16>, vector<256x128xf32> -> vector<256x128xf32>
      %c0_17 = arith.constant 0 : index
      %c0_18 = arith.constant 0 : index
      %19 = vector.load %arg6[%c0_17, %c0_18] : memref<1x128xf32, #tpu.memory_space<vmem>>, vector<1x128xf32>
      %20 = vector.broadcast %19 : vector<1x128xf32> to vector<256x128xf32>
      %21 = arith.addf %18, %20 : vector<256x128xf32>
      %22 = arith.truncf %21 : vector<256x128xf32> to vector<256x128xbf16>
      %c0_19 = arith.constant 0 : index
      %c0_20 = arith.constant 0 : index
      %23 = vector.load %arg7[%c0_19, %c0_20] : memref<128x128xbf16, #tpu.memory_space<vmem>>, vector<128x128xbf16>
      %cst_21 = arith.constant dense<0.000000e+00> : vector<256x128xf32>
      %24 = tpu.matmul %22, %23, %cst_21 {dimension_numbers = #tpu.dot_dimension_numbers<[1], [0], [0], [1], [0, 0, 1, 1], [], []>} : vector<256x128xbf16>, vector<128x128xbf16>, vector<256x128xf32> -> vector<256x128xf32>
      %c0_22 = arith.constant 0 : index
      %c0_23 = arith.constant 0 : index
      %25 = vector.load %arg8[%c0_22, %c0_23] : memref<256x128xf32, #tpu.memory_space<vmem>>, vector<256x128xf32>
      tpu.vector_store %arg8[%c0_22, %c0_23], %24 {strides = array<i32>} : memref<256x128xf32, #tpu.memory_space<vmem>>, vector<256x128xf32>,
    } else {
    }
    return
  }
  func.func @transform_0(%arg0: i32, %arg1: i32) -> (i32, i32) {
    %c0_i32 = arith.constant 0 : i32
    return %arg0, %arg1 : i32, i32
  }
  func.func @transform_1(%arg0: i32, %arg1: i32) -> (i32, i32) {
    %c0_i32 = arith.constant 0 : i32
    %c0_i32_0 = arith.constant 0 : i32
    return %arg1, %c0_i32 : i32, i32
  }
  func.func @transform_2(%arg0: i32, %arg1: i32) -> (i32, i32) {
    %c0_i32 = arith.constant 0 : i32
    %c0_i32_0 = arith.constant 0 : i32
    %c0_i32_1 = arith.constant 0 : i32
    return %c0_i32, %c0_i32_0 : i32, i32
  }
  func.func @transform_3(%arg0: i32, %arg1: i32) -> (i32, i32) {
    %c0_i32 = arith.constant 0 : i32
    %c0_i32_0 = arith.constant 0 : i32
    %c0_i32_1 = arith.constant 0 : i32
    return %c0_i32, %c0_i32_0 : i32, i32
  }
  func.func @transform_4(%arg0: i32, %arg1: i32) -> (i32, i32) {
    %c0_i32 = arith.constant 0 : i32
    %c0_i32_0 = arith.constant 0 : i32
    %c0_i32_1 = arith.constant 0 : i32
    return %c0_i32, %c0_i32_0 : i32, i32
  }
  func.func @transform_5(%arg0: i32, %arg1: i32) -> (i32, i32) {
    %c0_i32 = arith.constant 0 : i32
    %c0_i32_0 = arith.constant 0 : i32
    %c0_i32_1 = arith.constant 0 : i32
    return %c0_i32, %c0_i32_0 : i32, i32
  }
  func.func @transform_6(%arg0: i32, %arg1: i32) -> (i32, i32) {
    %c0_i32 = arith.constant 0 : i32
    %c0_i32_0 = arith.constant 0 : i32
    return %arg0, %c0_i32 : i32, i32
  }
}

</mosaic_0001>

<llo_original>
// kernel: neck_forward.15
$region0: #{neck_forward.15}
  #allocation0 [shape = 'u32[]', space=smem, size = 0x4, offset = 0x4, fixed_abs, tag = 'smem constant byte address 0x4 - core index']
  #allocation1 [shape = 'u32[144,128]{1,0:T(1,128)}', space=vmem, size = 0x12000, scoped, tag = 'internal scratch']
  %s0 = inlined_call_operand.vmem [shape: f32[8,16], index: 0, kind: input, shape index: {}]
  %s1 = inlined_call_operand.vmem [shape: f32[2,16,128], index: 1, kind: input, shape index: {}]
  %s2 = inlined_call_operand.vmem [shape: f32[2,8,128], index: 2, kind: output, shape index: {}]
  %s3 = sld [smem:[#allocation0]]
  $region41: #{neck_forward.15} parent=0
    _
  %s5 = ssub.s32 1, %s3
  %s6 = scalar_select 0, %s5, %s3
  loop: start=0, step=1, limit=4
  $region2: #{neck_forward.15} parent=0 // loop_pre_header
    _
  $region3: #{neck_forward.15} parent=0 // loop_header
    %s8 = sphi 0, %s12
    %p9 = scmp.ge.s32.totalorder %s8, 4
    %s16 = sphi 0, %s16
    %s18 = sphi 0, %s16
    %s19 = sphi 0, %s18
    %s33 = sphi 0, %s19
    %s39 = sphi 0, %s41
    %s42 = sphi 0, %s39
    %s43 = sphi 0, %s42
    %s59 = sphi 0, %s43
    %s65 = sphi 0, %s67
    %s68 = sphi 0, %s65
    %s69 = sphi 0, %s68
    %s85 = sphi 0, %s69
  $region4: #{neck_forward.15} parent=0 // loop_header_branch
    %11 = sbr.rel (%p9) target = $region8
  $region5: #{neck_forward.15} parent=0 // loop_body
    %s13 = ssub.s32 %s8, 1
    %s14 = ssub.s32 %s8, 2
    %s15 = sadd.s32 %s8, 1
    %s17 = sadd.s32 %s16, 1
    %p20 = scmp.eq.s32.totalorder %s8, 1
    %p21 = scmp.ne.s32.totalorder %s16, %s18
    %p22 = scmp.eq.s32.totalorder %s8, 0
    %p23 = por %p21, %p22
    %p24 = scmp.ne.s32.totalorder %s16, %s18
    %p25 = scmp.eq.s32.totalorder %s13, 1
    %p26 = por %p24, %p25
    %p27 = scmp.ne.s32.totalorder %s18, %s19
    %p28 = scmp.eq.s32.totalorder %s13, 0
    %p29 = por %p27, %p28
    %p30 = scmp.ne.s32.totalorder %s18, %s19
    %p31 = scmp.eq.s32.totalorder %s14, 1
    %p32 = por %p30, %p31
    %p34 = scmp.ne.s32.totalorder %s19, %s33
    %p35 = scmp.eq.s32.totalorder %s14, 0
    %p36 = por %p34, %p35
    %s37 = ssub.s32 %s8, %s15
    %p38 = scmp.eq.s32.totalorder %s37, 0
    %s40 = sadd.s32 %s39, 1
    %s41 = scalar_select %p38, %s39, %s40
    %p44 = pneg %p38
    %p45 = scmp.eq.s32.totalorder %s8, 1
    %p46 = por %p44, %p45
    %p47 = scmp.ne.s32.totalorder %s39, %s42
    %p48 = scmp.eq.s32.totalorder %s8, 0
    %p49 = por %p47, %p48
    %p50 = scmp.ne.s32.totalorder %s39, %s42
    %p51 = scmp.eq.s32.totalorder %s13, 1
    %p52 = por %p50, %p51
    %p53 = scmp.ne.s32.totalorder %s42, %s43
    %p54 = scmp.eq.s32.totalorder %s13, 0
    %p55 = por %p53, %p54
    %p56 = scmp.ne.s32.totalorder %s42, %s43
    %p57 = scmp.eq.s32.totalorder %s14, 1
    %p58 = por %p56, %p57
    %p60 = scmp.ne.s32.totalorder %s43, %s59
    %p61 = scmp.eq.s32.totalorder %s14, 0
    %p62 = por %p60, %p61
    %s63 = ssub.s32 %s8, %s15
    %p64 = scmp.eq.s32.totalorder %s63, 0
    %s66 = sadd.s32 %s65, 1
    %s67 = scalar_select %p64, %s65, %s66
    %p70 = pneg %p64
    %p71 = scmp.eq.s32.totalorder %s8, 1
    %p72 = por %p70, %p71
    %p73 = scmp.ne.s32.totalorder %s65, %s68
    %p74 = scmp.eq.s32.totalorder %s8, 0
    %p75 = por %p73, %p74
    %p76 = scmp.ne.s32.totalorder %s65, %s68
    %p77 = scmp.eq.s32.totalorder %s13, 1
    %p78 = por %p76, %p77
    %p79 = scmp.ne.s32.totalorder %s68, %s69
    %p80 = scmp.eq.s32.totalorder %s13, 0
    %p81 = por %p79, %p80
    %p82 = scmp.ne.s32.totalorder %s68, %s69
    %p83 = scmp.eq.s32.totalorder %s14, 1
    %p84 = por %p82, %p83
    %p86 = scmp.ne.s32.totalorder %s69, %s85
    %p87 = scmp.eq.s32.totalorder %s14, 0
    %p88 = por %p86, %p87
    %p89 = scmp.le.s32.totalorder 1, %s8
    %p90 = scmp.lt.s32.totalorder %s8, 3
    %p91 = pnand %p89, %p90
    %p92 = pneg %p91
    // Predicated region
    $region9: #{neck_forward.15} parent=5 // pred_check
      _
    $region10: #{neck_forward.15} parent=5 // pred_check_branch
      %94 = sbr.rel (%p91) target = $region12
    $region11: #{neck_forward.15} parent=5 // pred_region
      %s95 = ssub.s32 %s8, 1
      // Predicated region
      $region13: #{neck_forward.15} parent=11 // pred_check
        %p96 = pneg %p29
      $region14: #{neck_forward.15} parent=11 // pred_check_branch
        %98 = sbr.rel (%p96) target = $region16
      $region15: #{neck_forward.15} parent=11 // pred_region
        _
      $region16: #{neck_forward.15} parent=11 // pred_fallthru
        _
    $region12: #{neck_forward.15} parent=5 // pred_fallthru
      _
    %p99 = scmp.lt.s32.totalorder %s8, 2
    // Predicated region
    $region17: #{neck_forward.15} parent=5 // pred_check
      %p100 = pneg %p99
    $region18: #{neck_forward.15} parent=5 // pred_check_branch
      %102 = sbr.rel (%p100) target = $region20
    $region19: #{neck_forward.15} parent=5 // pred_region
      // Predicated region
      $region21: #{neck_forward.15} parent=19 // pred_check
        %p103 = pneg %p49
      $region22: #{neck_forward.15} parent=19 // pred_check_branch
        %105 = sbr.rel (%p103) target = $region24
      $region23: #{neck_forward.15} parent=19 // pred_region
        %p106 = scmp.lt.s32.totalorder %s8, 1
        %s107 = scalar_select %p106, %s8, 1
        %s108 = smul.addr %s107, 2
        %s109 = smul.addr %s108, 8
        %s110 = scalar_lea.vmem %s1, %s109
      $region24: #{neck_forward.15} parent=19 // pred_fallthru
        _
    $region20: #{neck_forward.15} parent=5 // pred_fallthru
      _
    %p111 = scmp.le.s32.totalorder 1, %s8
    %p112 = scmp.lt.s32.totalorder %s8, 3
    %p113 = pnand %p111, %p112
    %p114 = pneg %p113
    // Predicated region
    $region25: #{neck_forward.15} parent=5 // pred_check
      _
    $region26: #{neck_forward.15} parent=5 // pred_check_branch
      %116 = sbr.rel (%p113) target = $region28
    $region27: #{neck_forward.15} parent=5 // pred_region
      %s117 = ssub.s32 %s8, 1
      %p118 = pneg %p29
      %p119 = pneg %p26
      %p120 = scmp.lt.s32.totalorder %s13, 1
      %s121 = scalar_select %p120, %s13, 1
      %s122 = smul.addr %s121, 2
      %s123 = smul.addr %s122, 8
      %s124 = scalar_lea.vmem %s1, %s123
      %p125 = pneg %p55
      %p126 = pneg %p52
      %p127 = pneg %p81
      %p128 = pneg %p78
      %p129 = scmp.lt.s32.totalorder %s13, 1
      %s130 = scalar_select %p129, %s13, 1
      %s131 = smul.addr %s130, 8
      %s132 = scalar_lea.vmem %s2, %s131
      %p133 = scmp.lt.s32.totalorder %s13, 1
      %s134 = scalar_select %p133, %s13, 1
      %s135 = smul.addr %s134, 2
      %s136 = smul.addr %s135, 8
      %s137 = scalar_lea.vmem %s1, %s136
      %p138 = scmp.lt.s32.totalorder %s13, 1
      %s139 = scalar_select %p138, %s13, 1
      %s140 = smul.addr %s139, 8
      %s141 = scalar_lea.vmem %s2, %s140
      %v142 = vld [vmem:[%s0] sm:$0xff]
      %v143 = vld [vmem:[%s137] sm:$0xff]
      %v144 = vld [vmem:[%s137 + $0x8] sm:$0xff]
      %vm145 = vcmask 130048
      %v147 = vsel %vm145, %v142, 0
      %149 = vmatprep.subr.mxu0 0.0
      %150 = vmatpush1.msra.mxu0 0.0
      %151 = vmatprep.subr.mxu0 0.0
      %152 = vmatpush1.msra.mxu0 0.0
      %153 = vmatprep.subr.mxu0 0.0
      %154 = vmatpush1.msra.mxu0 0.0
      %155 = vmatprep.subr.mxu0 0.0
      %156 = vmatpush1.msra.mxu0 0.0
      %157 = vmatprep.subr.mxu0 0.0
      %158 = vmatpush1.msra.mxu0 0.0
      %159 = vmatprep.subr.mxu0 0.0
      %160 = vmatpush1.msra.mxu0 0.0
      %161 = vmatprep.subr.mxu0 0.0
      %162 = vmatpush1.msra.mxu0 0.0
      %163 = vmatprep.subr.mxu0 0.0
      %164 = vmatpush1.msra.mxu0 0.0
      %165 = vmatprep.subr.mxu0 0.0
      %166 = vmatpush1.msra.mxu0 0.0
      %167 = vmatprep.subr.mxu0 0.0
      %168 = vmatpush1.msra.mxu0 0.0
      %169 = vmatprep.subr.mxu0 0.0
      %170 = vmatpush1.msra.mxu0 0.0
      %171 = vmatprep.subr.mxu0 0.0
      %172 = vmatpush1.msra.mxu0 0.0
      %173 = vmatprep.subr.mxu0 0.0
      %174 = vmatpush1.msra.mxu0 0.0
      %175 = vmatprep.subr.mxu0 0.0
      %176 = vmatpush1.msra.mxu0 0.0
      %177 = vmatprep.subr.mxu0 0.0
      %178 = vmatpush1.msra.mxu0 %v144
      %179 = vmatprep.subr.mxu0 0.0
      %180 = vmatpush1.msra.mxu0 %v143
      %181 = vmatprep.subr.mxu0 0.0
      %182 = vmatpush2.msra.mxu0 0.0
      %183 = vmatprep.subr.mxu0 0.0
      %184 = vmatpush2.msra.mxu0 0.0
      %185 = vmatprep.subr.mxu0 0.0
      %186 = vmatpush2.msra.mxu0 0.0
      %187 = vmatprep.subr.mxu0 0.0
      %188 = vmatpush2.msra.mxu0 0.0
      %189 = vmatprep.subr.mxu0 0.0
      %190 = vmatpush2.msra.mxu0 0.0
      %191 = vmatprep.subr.mxu0 0.0
      %192 = vmatpush2.msra.mxu0 0.0
      %193 = vmatprep.subr.mxu0 0.0
      %194 = vmatpush2.msra.mxu0 0.0
      %195 = vmatprep.subr.mxu0 0.0
      %196 = vmatpush2.msra.mxu0 0.0
      %197 = vmatprep.subr.mxu0 0.0
      %198 = vmatpush2.msra.mxu0 0.0
      %199 = vmatprep.subr.mxu0 0.0
      %200 = vmatpush2.msra.mxu0 0.0
      %201 = vmatprep.subr.mxu0 0.0
      %202 = vmatpush2.msra.mxu0 0.0
      %203 = vmatprep.subr.mxu0 0.0
      %204 = vmatpush2.msra.mxu0 0.0
      %205 = vmatprep.subr.mxu0 0.0
      %206 = vmatpush2.msra.mxu0 0.0
      %207 = vmatprep.subr.mxu0 0.0
      %208 = vmatpush2.msra.mxu0 0.0
      %209 = vmatprep.subr.mxu0 0.0
      %210 = vmatpush2.msra.mxu0 0.0
      %211 = vmatprep.subr.mxu0 0.0
      %212 = vmatpush2.msra.mxu0 0.0
      %213 = vmatprep.mubr.f32.mxu0 0.0
      %214 = vmatmul.mubr.f32.gmra.mxu0 %v147
      %v215 = vpop.f32.mrf.mxu0
      %v216 = vadd.f32 0.0, %v215
      %v217 = vpop.f32.mrf.mxu0
      %218 = vdwg.mxu0
      %219 = vst [vmem:[%s141] sm:$0xff] %v216
      %p220 = scmp.lt.s32.totalorder %s13, 1
      %s221 = scalar_select %p220, %s13, 1
      %s222 = smul.addr %s221, 8
      %s223 = scalar_lea.vmem %s2, %s222
      // Predicated region
      $region29: #{neck_forward.15} parent=27 // pred_check
        %p224 = pneg %p78
      $region30: #{neck_forward.15} parent=27 // pred_check_branch
        %226 = sbr.rel (%p224) target = $region32
      $region31: #{neck_forward.15} parent=27 // pred_region
        _
      $region32: #{neck_forward.15} parent=27 // pred_fallthru
        _
    $region28: #{neck_forward.15} parent=5 // pred_fallthru
      _
    %p227 = scmp.le.s32.totalorder 2, %s8
    // Predicated region
    $region33: #{neck_forward.15} parent=5 // pred_check
      %p228 = pneg %p227
    $region34: #{neck_forward.15} parent=5 // pred_check_branch
      %230 = sbr.rel (%p228) target = $region36
    $region35: #{neck_forward.15} parent=5 // pred_region
      %s231 = ssub.s32 %s8, 2
      // Predicated region
      $region37: #{neck_forward.15} parent=35 // pred_check
        %p232 = pneg %p84
      $region38: #{neck_forward.15} parent=35 // pred_check_branch
        %234 = sbr.rel (%p232) target = $region40
      $region39: #{neck_forward.15} parent=35 // pred_region
        %p235 = scmp.lt.s32.totalorder %s14, 1
        %s236 = scalar_select %p235, %s14, 1
        %s237 = smul.addr %s236, 8
        %s238 = scalar_lea.vmem %s2, %s237
      $region40: #{neck_forward.15} parent=35 // pred_fallthru
        _
    $region36: #{neck_forward.15} parent=5 // pred_fallthru
      _
  $region6: #{neck_forward.15} parent=0 // loop_footer
    %s12 = sadd.s32 1, %s8
  $region7: #{neck_forward.15} parent=0 // loop_footer_branch
    %7 = sbr.rel target = $region3
  $region8: #{neck_forward.15} parent=0 // loop_exit
    _

// kernel: neck_forward.16
$region0: #{neck_forward.16}
  #allocation0 [shape = 'u32[]', space=smem, size = 0x4, offset = 0x4, fixed_abs, tag = 'smem constant byte address 0x4 - core index']
  #allocation1 [shape = 'u32[144,128]{1,0:T(1,128)}', space=vmem, size = 0x12000, scoped, tag = 'internal scratch']
  %s0 = inlined_call_operand.vmem [shape: f32[8,16], index: 0, kind: input, shape index: {}]
  %s1 = inlined_call_operand.vmem [shape: f32[16,16,8], index: 1, kind: input, shape index: {}]
  %s2 = inlined_call_operand.vmem [shape: f32[16,8,8], index: 2, kind: output, shape index: {}]
  %s3 = sld [smem:[#allocation0]]
  $region41: #{neck_forward.16} parent=0
    _
  %s5 = ssub.s32 1, %s3
  %s6 = scalar_select 0, %s5, %s3
  loop: start=0, step=1, limit=18
  $region2: #{neck_forward.16} parent=0 // loop_pre_header
    _
  $region3: #{neck_forward.16} parent=0 // loop_header
    %s8 = sphi 0, %s12
    %p9 = scmp.ge.s32.totalorder %s8, 18
    %s16 = sphi 0, %s16
    %s18 = sphi 0, %s16
    %s19 = sphi 0, %s18
    %s33 = sphi 0, %s19
    %s39 = sphi 0, %s41
    %s42 = sphi 0, %s39
    %s43 = sphi 0, %s42
    %s59 = sphi 0, %s43
    %s65 = sphi 0, %s67
    %s68 = sphi 0, %s65
    %s69 = sphi 0, %s68
    %s85 = sphi 0, %s69
  $region4: #{neck_forward.16} parent=0 // loop_header_branch
    %11 = sbr.rel (%p9) target = $region8
  $region5: #{neck_forward.16} parent=0 // loop_body
    %s13 = ssub.s32 %s8, 1
    %s14 = ssub.s32 %s8, 2
    %s15 = sadd.s32 %s8, 1
    %s17 = sadd.s32 %s16, 1
    %p20 = scmp.eq.s32.totalorder %s8, 15
    %p21 = scmp.ne.s32.totalorder %s16, %s18
    %p22 = scmp.eq.s32.totalorder %s8, 0
    %p23 = por %p21, %p22
    %p24 = scmp.ne.s32.totalorder %s16, %s18
    %p25 = scmp.eq.s32.totalorder %s13, 15
    %p26 = por %p24, %p25
    %p27 = scmp.ne.s32.totalorder %s18, %s19
    %p28 = scmp.eq.s32.totalorder %s13, 0
    %p29 = por %p27, %p28
    %p30 = scmp.ne.s32.totalorder %s18, %s19
    %p31 = scmp.eq.s32.totalorder %s14, 15
    %p32 = por %p30, %p31
    %p34 = scmp.ne.s32.totalorder %s19, %s33
    %p35 = scmp.eq.s32.totalorder %s14, 0
    %p36 = por %p34, %p35
    %s37 = ssub.s32 %s8, %s15
    %p38 = scmp.eq.s32.totalorder %s37, 0
    %s40 = sadd.s32 %s39, 1
    %s41 = scalar_select %p38, %s39, %s40
    %p44 = pneg %p38
    %p45 = scmp.eq.s32.totalorder %s8, 15
    %p46 = por %p44, %p45
    %p47 = scmp.ne.s32.totalorder %s39, %s42
    %p48 = scmp.eq.s32.totalorder %s8, 0
    %p49 = por %p47, %p48
    %p50 = scmp.ne.s32.totalorder %s39, %s42
    %p51 = scmp.eq.s32.totalorder %s13, 15
    %p52 = por %p50, %p51
    %p53 = scmp.ne.s32.totalorder %s42, %s43
    %p54 = scmp.eq.s32.totalorder %s13, 0
    %p55 = por %p53, %p54
    %p56 = scmp.ne.s32.totalorder %s42, %s43
    %p57 = scmp.eq.s32.totalorder %s14, 15
    %p58 = por %p56, %p57
    %p60 = scmp.ne.s32.totalorder %s43, %s59
    %p61 = scmp.eq.s32.totalorder %s14, 0
    %p62 = por %p60, %p61
    %s63 = ssub.s32 %s8, %s15
    %p64 = scmp.eq.s32.totalorder %s63, 0
    %s66 = sadd.s32 %s65, 1
    %s67 = scalar_select %p64, %s65, %s66
    %p70 = pneg %p64
    %p71 = scmp.eq.s32.totalorder %s8, 15
    %p72 = por %p70, %p71
    %p73 = scmp.ne.s32.totalorder %s65, %s68
    %p74 = scmp.eq.s32.totalorder %s8, 0
    %p75 = por %p73, %p74
    %p76 = scmp.ne.s32.totalorder %s65, %s68
    %p77 = scmp.eq.s32.totalorder %s13, 15
    %p78 = por %p76, %p77
    %p79 = scmp.ne.s32.totalorder %s68, %s69
    %p80 = scmp.eq.s32.totalorder %s13, 0
    %p81 = por %p79, %p80
    %p82 = scmp.ne.s32.totalorder %s68, %s69
    %p83 = scmp.eq.s32.totalorder %s14, 15
    %p84 = por %p82, %p83
    %p86 = scmp.ne.s32.totalorder %s69, %s85
    %p87 = scmp.eq.s32.totalorder %s14, 0
    %p88 = por %p86, %p87
    %p89 = scmp.le.s32.totalorder 1, %s8
    %p90 = scmp.lt.s32.totalorder %s8, 17
    %p91 = pnand %p89, %p90
    %p92 = pneg %p91
    // Predicated region
    $region9: #{neck_forward.16} parent=5 // pred_check
      _
    $region10: #{neck_forward.16} parent=5 // pred_check_branch
      %94 = sbr.rel (%p91) target = $region12
    $region11: #{neck_forward.16} parent=5 // pred_region
      %s95 = ssub.s32 %s8, 1
      // Predicated region
      $region13: #{neck_forward.16} parent=11 // pred_check
        %p96 = pneg %p29
      $region14: #{neck_forward.16} parent=11 // pred_check_branch
        %98 = sbr.rel (%p96) target = $region16
      $region15: #{neck_forward.16} parent=11 // pred_region
        _
      $region16: #{neck_forward.16} parent=11 // pred_fallthru
        _
    $region12: #{neck_forward.16} parent=5 // pred_fallthru
      _
    %p99 = scmp.lt.s32.totalorder %s8, 16
    // Predicated region
    $region17: #{neck_forward.16} parent=5 // pred_check
      %p100 = pneg %p99
    $region18: #{neck_forward.16} parent=5 // pred_check_branch
      %102 = sbr.rel (%p100) target = $region20
    $region19: #{neck_forward.16} parent=5 // pred_region
      // Predicated region
      $region21: #{neck_forward.16} parent=19 // pred_check
        %p103 = pneg %p49
      $region22: #{neck_forward.16} parent=19 // pred_check_branch
        %105 = sbr.rel (%p103) target = $region24
      $region23: #{neck_forward.16} parent=19 // pred_region
        %p106 = scmp.lt.s32.totalorder %s8, 15
        %s107 = scalar_select %p106, %s8, 15
        %s108 = smul.addr %s107, 2
        %s109 = smul.addr %s108, 8
        %s110 = scalar_lea.vmem %s1, %s109
      $region24: #{neck_forward.16} parent=19 // pred_fallthru
        _
    $region20: #{neck_forward.16} parent=5 // pred_fallthru
      _
    %p111 = scmp.le.s32.totalorder 1, %s8
    %p112 = scmp.lt.s32.totalorder %s8, 17
    %p113 = pnand %p111, %p112
    %p114 = pneg %p113
    // Predicated region
    $region25: #{neck_forward.16} parent=5 // pred_check
      _
    $region26: #{neck_forward.16} parent=5 // pred_check_branch
      %116 = sbr.rel (%p113) target = $region28
    $region27: #{neck_forward.16} parent=5 // pred_region
      %s117 = ssub.s32 %s8, 1
      %p118 = pneg %p29
      %p119 = pneg %p26
      %p120 = scmp.lt.s32.totalorder %s13, 15
      %s121 = scalar_select %p120, %s13, 15
      %s122 = smul.addr %s121, 2
      %s123 = smul.addr %s122, 8
      %s124 = scalar_lea.vmem %s1, %s123
      %p125 = pneg %p55
      %p126 = pneg %p52
      %p127 = pneg %p81
      %p128 = pneg %p78
      %p129 = scmp.lt.s32.totalorder %s13, 15
      %s130 = scalar_select %p129, %s13, 15
      %s131 = smul.addr %s130, 8
      %s132 = scalar_lea.vmem %s2, %s131
      %p133 = scmp.lt.s32.totalorder %s13, 15
      %s134 = scalar_select %p133, %s13, 15
      %s135 = smul.addr %s134, 2
      %s136 = smul.addr %s135, 8
      %s137 = scalar_lea.vmem %s1, %s136
      %p138 = scmp.lt.s32.totalorder %s13, 15
      %s139 = scalar_select %p138, %s13, 15
      %s140 = smul.addr %s139, 8
      %s141 = scalar_lea.vmem %s2, %s140
      %v142 = vld [vmem:[%s0] sm:$0xff]
      %v143 = vld [vmem:[%s137] sm:$0xff]
      %v144 = vld [vmem:[%s137 + $0x8] sm:$0xff]
      %vm145 = vcmask 130048
      %v147 = vsel %vm145, %v142, 0
      %149 = vmatprep.subr.mxu0 0.0
      %150 = vmatpush1.msra.mxu0 0.0
      %151 = vmatprep.subr.mxu0 0.0
      %152 = vmatpush1.msra.mxu0 0.0
      %153 = vmatprep.subr.mxu0 0.0
      %154 = vmatpush1.msra.mxu0 0.0
      %155 = vmatprep.subr.mxu0 0.0
      %156 = vmatpush1.msra.mxu0 0.0
      %157 = vmatprep.subr.mxu0 0.0
      %158 = vmatpush1.msra.mxu0 0.0
      %159 = vmatprep.subr.mxu0 0.0
      %160 = vmatpush1.msra.mxu0 0.0
      %161 = vmatprep.subr.mxu0 0.0
      %162 = vmatpush1.msra.mxu0 0.0
      %163 = vmatprep.subr.mxu0 0.0
      %164 = vmatpush1.msra.mxu0 0.0
      %165 = vmatprep.subr.mxu0 0.0
      %166 = vmatpush1.msra.mxu0 0.0
      %167 = vmatprep.subr.mxu0 0.0
      %168 = vmatpush1.msra.mxu0 0.0
      %169 = vmatprep.subr.mxu0 0.0
      %170 = vmatpush1.msra.mxu0 0.0
      %171 = vmatprep.subr.mxu0 0.0
      %172 = vmatpush1.msra.mxu0 0.0
      %173 = vmatprep.subr.mxu0 0.0
      %174 = vmatpush1.msra.mxu0 0.0
      %175 = vmatprep.subr.mxu0 0.0
      %176 = vmatpush1.msra.mxu0 0.0
      %177 = vmatprep.subr.mxu0 0.0
      %178 = vmatpush1.msra.mxu0 %v144
      %179 = vmatprep.subr.mxu0 0.0
      %180 = vmatpush1.msra.mxu0 %v143
      %181 = vmatprep.subr.mxu0 0.0
      %182 = vmatpush2.msra.mxu0 0.0
      %183 = vmatprep.subr.mxu0 0.0
      %184 = vmatpush2.msra.mxu0 0.0
      %185 = vmatprep.subr.mxu0 0.0
      %186 = vmatpush2.msra.mxu0 0.0
      %187 = vmatprep.subr.mxu0 0.0
      %188 = vmatpush2.msra.mxu0 0.0
      %189 = vmatprep.subr.mxu0 0.0
      %190 = vmatpush2.msra.mxu0 0.0
      %191 = vmatprep.subr.mxu0 0.0
      %192 = vmatpush2.msra.mxu0 0.0
      %193 = vmatprep.subr.mxu0 0.0
      %194 = vmatpush2.msra.mxu0 0.0
      %195 = vmatprep.subr.mxu0 0.0
      %196 = vmatpush2.msra.mxu0 0.0
      %197 = vmatprep.subr.mxu0 0.0
      %198 = vmatpush2.msra.mxu0 0.0
      %199 = vmatprep.subr.mxu0 0.0
      %200 = vmatpush2.msra.mxu0 0.0
      %201 = vmatprep.subr.mxu0 0.0
      %202 = vmatpush2.msra.mxu0 0.0
      %203 = vmatprep.subr.mxu0 0.0
      %204 = vmatpush2.msra.mxu0 0.0
      %205 = vmatprep.subr.mxu0 0.0
      %206 = vmatpush2.msra.mxu0 0.0
      %207 = vmatprep.subr.mxu0 0.0
      %208 = vmatpush2.msra.mxu0 0.0
      %209 = vmatprep.subr.mxu0 0.0
      %210 = vmatpush2.msra.mxu0 0.0
      %211 = vmatprep.subr.mxu0 0.0
      %212 = vmatpush2.msra.mxu0 0.0
      %213 = vmatprep.mubr.f32.mxu0 0.0
      %214 = vmatmul.mubr.f32.gmra.mxu0 %v147
      %v215 = vpop.f32.mrf.mxu0
      %v216 = vadd.f32 0.0, %v215
      %v217 = vpop.f32.mrf.mxu0
      %218 = vdwg.mxu0
      %vm219 = vcmask 64512
      %220 = vst.msk [vmem:[%s141] sm:$0xff] %vm219, %v216
      %p221 = scmp.lt.s32.totalorder %s13, 15
      %s222 = scalar_select %p221, %s13, 15
      %s223 = smul.addr %s222, 8
      %s224 = scalar_lea.vmem %s2, %s223
      // Predicated region
      $region29: #{neck_forward.16} parent=27 // pred_check
        %p225 = pneg %p78
      $region30: #{neck_forward.16} parent=27 // pred_check_branch
        %227 = sbr.rel (%p225) target = $region32
      $region31: #{neck_forward.16} parent=27 // pred_region
        _
      $region32: #{neck_forward.16} parent=27 // pred_fallthru
        _
    $region28: #{neck_forward.16} parent=5 // pred_fallthru
      _
    %p228 = scmp.le.s32.totalorder 2, %s8
    // Predicated region
    $region33: #{neck_forward.16} parent=5 // pred_check
      %p229 = pneg %p228
    $region34: #{neck_forward.16} parent=5 // pred_check_branch
      %231 = sbr.rel (%p229) target = $region36
    $region35: #{neck_forward.16} parent=5 // pred_region
      %s232 = ssub.s32 %s8, 2
      // Predicated region
      $region37: #{neck_forward.16} parent=35 // pred_check
        %p233 = pneg %p84
      $region38: #{neck_forward.16} parent=35 // pred_check_branch
        %235 = sbr.rel (%p233) target = $region40
      $region39: #{neck_forward.16} parent=35 // pred_region
        %p236 = scmp.lt.s32.totalorder %s14, 15
        %s237 = scalar_select %p236, %s14, 15
        %s238 = smul.addr %s237, 8
        %s239 = scalar_lea.vmem %s2, %s238
      $region40: #{neck_forward.16} parent=35 // pred_fallthru
        _
    $region36: #{neck_forward.16} parent=5 // pred_fallthru
      _
  $region6: #{neck_forward.16} parent=0 // loop_footer
    %s12 = sadd.s32 1, %s8
  $region7: #{neck_forward.16} parent=0 // loop_footer_branch
    %7 = sbr.rel target = $region3
  $region8: #{neck_forward.16} parent=0 // loop_exit
    _

// kernel: neck_forward.19
$region0: #{neck_forward.19}
  #allocation0 [shape = 'u32[]', space=smem, size = 0x4, offset = 0x4, fixed_abs, tag = 'smem constant byte address 0x4 - core index']
  #allocation1 [shape = 'u32[144,128]{1,0:T(1,128)}', space=vmem, size = 0x12000, scoped, tag = 'internal scratch']
  %s0 = inlined_call_operand.vmem [shape: f32[16,32], index: 0, kind: input, shape index: {}]
  %s1 = inlined_call_operand.vmem [shape: f32[2,32,512], index: 1, kind: input, shape index: {}]
  %s2 = inlined_call_operand.vmem [shape: f32[2,16,512], index: 2, kind: output, shape index: {}]
  %s3 = sld [smem:[#allocation0]]
  $region41: #{neck_forward.19} parent=0
    _
  %s5 = ssub.s32 1, %s3
  %s6 = scalar_select 0, %s5, %s3
  loop: start=0, step=1, limit=4
  $region2: #{neck_forward.19} parent=0 // loop_pre_header
    _
  $region3: #{neck_forward.19} parent=0 // loop_header
    %s8 = sphi 0, %s12
    %p9 = scmp.ge.s32.totalorder %s8, 4
    %s16 = sphi 0, %s16
    %s18 = sphi 0, %s16
    %s19 = sphi 0, %s18
    %s33 = sphi 0, %s19
    %s39 = sphi 0, %s41
    %s42 = sphi 0, %s39
    %s43 = sphi 0, %s42
    %s59 = sphi 0, %s43
    %s65 = sphi 0, %s67
    %s68 = sphi 0, %s65
    %s69 = sphi 0, %s68
    %s85 = sphi 0, %s69
  $region4: #{neck_forward.19} parent=0 // loop_header_branch
    %11 = sbr.rel (%p9) target = $region8
  $region5: #{neck_forward.19} parent=0 // loop_body
    %s13 = ssub.s32 %s8, 1
    %s14 = ssub.s32 %s8, 2
    %s15 = sadd.s32 %s8, 1
    %s17 = sadd.s32 %s16, 1
    %p20 = scmp.eq.s32.totalorder %s8, 1
    %p21 = scmp.ne.s32.totalorder %s16, %s18
    %p22 = scmp.eq.s32.totalorder %s8, 0
    %p23 = por %p21, %p22
    %p24 = scmp.ne.s32.totalorder %s16, %s18
    %p25 = scmp.eq.s32.totalorder %s13, 1
    %p26 = por %p24, %p25
    %p27 = scmp.ne.s32.totalorder %s18, %s19
    %p28 = scmp.eq.s32.totalorder %s13, 0
    %p29 = por %p27, %p28
    %p30 = scmp.ne.s32.totalorder %s18, %s19
    %p31 = scmp.eq.s32.totalorder %s14, 1
    %p32 = por %p30, %p31
    %p34 = scmp.ne.s32.totalorder %s19, %s33
    %p35 = scmp.eq.s32.totalorder %s14, 0
    %p36 = por %p34, %p35
    %s37 = ssub.s32 %s8, %s15
    %p38 = scmp.eq.s32.totalorder %s37, 0
    %s40 = sadd.s32 %s39, 1
    %s41 = scalar_select %p38, %s39, %s40
    %p44 = pneg %p38
    %p45 = scmp.eq.s32.totalorder %s8, 1
    %p46 = por %p44, %p45
    %p47 = scmp.ne.s32.totalorder %s39, %s42
    %p48 = scmp.eq.s32.totalorder %s8, 0
    %p49 = por %p47, %p48
    %p50 = scmp.ne.s32.totalorder %s39, %s42
    %p51 = scmp.eq.s32.totalorder %s13, 1
    %p52 = por %p50, %p51
    %p53 = scmp.ne.s32.totalorder %s42, %s43
    %p54 = scmp.eq.s32.totalorder %s13, 0
    %p55 = por %p53, %p54
    %p56 = scmp.ne.s32.totalorder %s42, %s43
    %p57 = scmp.eq.s32.totalorder %s14, 1
    %p58 = por %p56, %p57
    %p60 = scmp.ne.s32.totalorder %s43, %s59
    %p61 = scmp.eq.s32.totalorder %s14, 0
    %p62 = por %p60, %p61
    %s63 = ssub.s32 %s8, %s15
    %p64 = scmp.eq.s32.totalorder %s63, 0
    %s66 = sadd.s32 %s65, 1
    %s67 = scalar_select %p64, %s65, %s66
    %p70 = pneg %p64
    %p71 = scmp.eq.s32.totalorder %s8, 1
    %p72 = por %p70, %p71
    %p73 = scmp.ne.s32.totalorder %s65, %s68
    %p74 = scmp.eq.s32.totalorder %s8, 0
    %p75 = por %p73, %p74
    %p76 = scmp.ne.s32.totalorder %s65, %s68
    %p77 = scmp.eq.s32.totalorder %s13, 1
    %p78 = por %p76, %p77
    %p79 = scmp.ne.s32.totalorder %s68, %s69
    %p80 = scmp.eq.s32.totalorder %s13, 0
    %p81 = por %p79, %p80
    %p82 = scmp.ne.s32.totalorder %s68, %s69
    %p83 = scmp.eq.s32.totalorder %s14, 1
    %p84 = por %p82, %p83
    %p86 = scmp.ne.s32.totalorder %s69, %s85
    %p87 = scmp.eq.s32.totalorder %s14, 0
    %p88 = por %p86, %p87
    %p89 = scmp.le.s32.totalorder 1, %s8
    %p90 = scmp.lt.s32.totalorder %s8, 3
    %p91 = pnand %p89, %p90
    %p92 = pneg %p91
    // Predicated region
    $region9: #{neck_forward.19} parent=5 // pred_check
      _
    $region10: #{neck_forward.19} parent=5 // pred_check_branch
      %94 = sbr.rel (%p91) target = $region12
    $region11: #{neck_forward.19} parent=5 // pred_region
      %s95 = ssub.s32 %s8, 1
      // Predicated region
      $region13: #{neck_forward.19} parent=11 // pred_check
        %p96 = pneg %p29
      $region14: #{neck_forward.19} parent=11 // pred_check_branch
        %98 = sbr.rel (%p96) target = $region16
      $region15: #{neck_forward.19} parent=11 // pred_region
        _
      $region16: #{neck_forward.19} parent=11 // pred_fallthru
        _
    $region12: #{neck_forward.19} parent=5 // pred_fallthru
      _
    %p99 = scmp.lt.s32.totalorder %s8, 2
    // Predicated region
    $region17: #{neck_forward.19} parent=5 // pred_check
      %p100 = pneg %p99
    $region18: #{neck_forward.19} parent=5 // pred_check_branch
      %102 = sbr.rel (%p100) target = $region20
    $region19: #{neck_forward.19} parent=5 // pred_region
      // Predicated region
      $region21: #{neck_forward.19} parent=19 // pred_check
        %p103 = pneg %p49
      $region22: #{neck_forward.19} parent=19 // pred_check_branch
        %105 = sbr.rel (%p103) target = $region24
      $region23: #{neck_forward.19} parent=19 // pred_region
        %p106 = scmp.lt.s32.totalorder %s8, 1
        %s107 = scalar_select %p106, %s8, 1
        %s108 = smul.addr %s107, 16
        %s109 = smul.addr %s108, 8
        %s110 = scalar_lea.vmem %s1, %s109
      $region24: #{neck_forward.19} parent=19 // pred_fallthru
        _
    $region20: #{neck_forward.19} parent=5 // pred_fallthru
      _
    %p111 = scmp.le.s32.totalorder 1, %s8
    %p112 = scmp.lt.s32.totalorder %s8, 3
    %p113 = pnand %p111, %p112
    %p114 = pneg %p113
    // Predicated region
    $region25: #{neck_forward.19} parent=5 // pred_check
      _
    $region26: #{neck_forward.19} parent=5 // pred_check_branch
      %116 = sbr.rel (%p113) target = $region28
    $region27: #{neck_forward.19} parent=5 // pred_region
      %s117 = ssub.s32 %s8, 1
      %p118 = pneg %p29
      %p119 = pneg %p26
      %p120 = scmp.lt.s32.totalorder %s13, 1
      %s121 = scalar_select %p120, %s13, 1
      %s122 = smul.addr %s121, 16
      %s123 = smul.addr %s122, 8
      %s124 = scalar_lea.vmem %s1, %s123
      %p125 = pneg %p55
      %p126 = pneg %p52
      %p127 = pneg %p81
      %p128 = pneg %p78
      %p129 = scmp.lt.s32.totalorder %s13, 1
      %s130 = scalar_select %p129, %s13, 1
      %s131 = smul.addr %s130, 8
      %s132 = smul.addr %s131, 8
      %s133 = scalar_lea.vmem %s2, %s132
      %p134 = scmp.lt.s32.totalorder %s13, 1
      %s135 = scalar_select %p134, %s13, 1
      %s136 = smul.addr %s135, 16
      %s137 = smul.addr %s136, 8
      %s138 = scalar_lea.vmem %s1, %s137
      %p139 = scmp.lt.s32.totalorder %s13, 1
      %s140 = scalar_select %p139, %s13, 1
      %s141 = smul.addr %s140, 8
      %s142 = smul.addr %s141, 8
      %s143 = scalar_lea.vmem %s2, %s142
      %v144 = vld [vmem:[%s0] sm:$0xff]
      %v145 = vld [vmem:[%s0 + $0x8] sm:$0xff]
      %v146 = vld [vmem:[%s138] sm:$0xff]
      %v147 = vld [vmem:[%s138 + $0x8] sm:$0xff]
      %v148 = vld [vmem:[%s138 + $0x10] sm:$0xff]
      %v149 = vld [vmem:[%s138 + $0x18] sm:$0xff]
      %v150 = vld [vmem:[%s138 + $0x20] sm:$0xff]
      %v151 = vld [vmem:[%s138 + $0x28] sm:$0xff]
      %v152 = vld [vmem:[%s138 + $0x30] sm:$0xff]
      %v153 = vld [vmem:[%s138 + $0x38] sm:$0xff]
      %v154 = vld [vmem:[%s138 + $0x40] sm:$0xff]
      %v155 = vld [vmem:[%s138 + $0x48] sm:$0xff]
      %v156 = vld [vmem:[%s138 + $0x50] sm:$0xff]
      %v157 = vld [vmem:[%s138 + $0x58] sm:$0xff]
      %v158 = vld [vmem:[%s138 + $0x60] sm:$0xff]
      %v159 = vld [vmem:[%s138 + $0x68] sm:$0xff]
      %v160 = vld [vmem:[%s138 + $0x70] sm:$0xff]
      %v161 = vld [vmem:[%s138 + $0x78] sm:$0xff]
      %vm162 = vcmask 261120
      %v164 = vsel %vm162, %v144, 0
      %v167 = vsel %vm162, %v145, 0
      %169 = vmatprep.subr.mxu0 0.0
      %170 = vmatpush1.msra.mxu0 0.0
      %171 = vmatprep.subr.mxu0 0.0
      %172 = vmatpush1.msra.mxu0 0.0
      %173 = vmatprep.subr.mxu0 0.0
      %174 = vmatpush1.msra.mxu0 0.0
      %175 = vmatprep.subr.mxu0 0.0
      %176 = vmatpush1.msra.mxu0 0.0
      %177 = vmatprep.subr.mxu0 0.0
      %178 = vmatpush1.msra.mxu0 0.0
      %179 = vmatprep.subr.mxu0 0.0
      %180 = vmatpush1.msra.mxu0 0.0
      %181 = vmatprep.subr.mxu0 0.0
      %182 = vmatpush1.msra.mxu0 0.0
      %183 = vmatprep.subr.mxu0 0.0
      %184 = vmatpush1.msra.mxu0 0.0
      %185 = vmatprep.subr.mxu0 0.0
      %186 = vmatpush1.msra.mxu0 0.0
      %187 = vmatprep.subr.mxu0 0.0
      %188 = vmatpush1.msra.mxu0 0.0
      %189 = vmatprep.subr.mxu0 0.0
      %190 = vmatpush1.msra.mxu0 0.0
      %191 = vmatprep.subr.mxu0 0.0
      %192 = vmatpush1.msra.mxu0 0.0
      %193 = vmatprep.subr.mxu0 %v159
      %194 = vmatpush1.msra.mxu0 %v158
      %195 = vmatprep.subr.mxu0 %v155
      %196 = vmatpush1.msra.mxu0 %v154
      %197 = vmatprep.subr.mxu0 %v151
      %198 = vmatpush1.msra.mxu0 %v150
      %199 = vmatprep.subr.mxu0 %v147
      %200 = vmatpush1.msra.mxu0 %v146
      %201 = vmatprep.subr.mxu0 0.0
      %202 = vmatpush2.msra.mxu0 0.0
      %203 = vmatprep.subr.mxu0 0.0
      %204 = vmatpush2.msra.mxu0 0.0
      %205 = vmatprep.subr.mxu0 0.0
      %206 = vmatpush2.msra.mxu0 0.0
      %207 = vmatprep.subr.mxu0 0.0
      %208 = vmatpush2.msra.mxu0 0.0
      %209 = vmatprep.subr.mxu0 0.0
      %210 = vmatpush2.msra.mxu0 0.0
      %211 = vmatprep.subr.mxu0 0.0
      %212 = vmatpush2.msra.mxu0 0.0
      %213 = vmatprep.subr.mxu0 0.0
      %214 = vmatpush2.msra.mxu0 0.0
      %215 = vmatprep.subr.mxu0 0.0
      %216 = vmatpush2.msra.mxu0 0.0
      %217 = vmatprep.subr.mxu0 0.0
      %218 = vmatpush2.msra.mxu0 0.0
      %219 = vmatprep.subr.mxu0 0.0
      %220 = vmatpush2.msra.mxu0 0.0
      %221 = vmatprep.subr.mxu0 0.0
      %222 = vmatpush2.msra.mxu0 0.0
      %223 = vmatprep.subr.mxu0 0.0
      %224 = vmatpush2.msra.mxu0 0.0
      %225 = vmatprep.subr.mxu0 0.0
      %226 = vmatpush2.msra.mxu0 0.0
      %227 = vmatprep.subr.mxu0 0.0
      %228 = vmatpush2.msra.mxu0 0.0
      %229 = vmatprep.subr.mxu0 0.0
      %230 = vmatpush2.msra.mxu0 0.0
      %231 = vmatprep.subr.mxu0 0.0
      %232 = vmatpush2.msra.mxu0 0.0
      %233 = vmatprep.mubr.f32.mxu0 0.0
      %234 = vmatmul.mubr.f32.gmra.mxu0 %v164
      %v235 = vpop.f32.mrf.mxu0
      %v236 = vadd.f32 0.0, %v235
      %v237 = vpop.f32.mrf.mxu0
      %v238 = vadd.f32 0.0, %v237
      %239 = vmatprep.mubr.f32.mxu0 0.0
      %240 = vmatmul.mubr.f32.gmra.mxu0 %v167
      %v241 = vpop.f32.mrf.mxu0
      %v242 = vadd.f32 0.0, %v241
      %v243 = vpop.f32.mrf.mxu0
      %v244 = vadd.f32 0.0, %v243
      %245 = vdwg.mxu0
      %246 = vmatprep.subr.mxu0 0.0
      %247 = vmatpush1.msra.mxu0 0.0
      %248 = vmatprep.subr.mxu0 0.0
      %249 = vmatpush1.msra.mxu0 0.0
      %250 = vmatprep.subr.mxu0 0.0
      %251 = vmatpush1.msra.mxu0 0.0
      %252 = vmatprep.subr.mxu0 0.0
      %253 = vmatpush1.msra.mxu0 0.0
      %254 = vmatprep.subr.mxu0 0.0
      %255 = vmatpush1.msra.mxu0 0.0
      %256 = vmatprep.subr.mxu0 0.0
      %257 = vmatpush1.msra.mxu0 0.0
      %258 = vmatprep.subr.mxu0 0.0
      %259 = vmatpush1.msra.mxu0 0.0
      %260 = vmatprep.subr.mxu0 0.0
      %261 = vmatpush1.msra.mxu0 0.0
      %262 = vmatprep.subr.mxu0 0.0
      %263 = vmatpush1.msra.mxu0 0.0
      %264 = vmatprep.subr.mxu0 0.0
      %265 = vmatpush1.msra.mxu0 0.0
      %266 = vmatprep.subr.mxu0 0.0
      %267 = vmatpush1.msra.mxu0 0.0
      %268 = vmatprep.subr.mxu0 0.0
      %269 = vmatpush1.msra.mxu0 0.0
      %270 = vmatprep.subr.mxu0 %v161
      %271 = vmatpush1.msra.mxu0 %v160
      %272 = vmatprep.subr.mxu0 %v157
      %273 = vmatpush1.msra.mxu0 %v156
      %274 = vmatprep.subr.mxu0 %v153
      %275 = vmatpush1.msra.mxu0 %v152
      %276 = vmatprep.subr.mxu0 %v149
      %277 = vmatpush1.msra.mxu0 %v148
      %278 = vmatprep.subr.mxu0 0.0
      %279 = vmatpush2.msra.mxu0 0.0
      %280 = vmatprep.subr.mxu0 0.0
      %281 = vmatpush2.msra.mxu0 0.0
      %282 = vmatprep.subr.mxu0 0.0
      %283 = vmatpush2.msra.mxu0 0.0
      %284 = vmatprep.subr.mxu0 0.0
      %285 = vmatpush2.msra.mxu0 0.0
      %286 = vmatprep.subr.mxu0 0.0
      %287 = vmatpush2.msra.mxu0 0.0
      %288 = vmatprep.subr.mxu0 0.0
      %289 = vmatpush2.msra.mxu0 0.0
      %290 = vmatprep.subr.mxu0 0.0
      %291 = vmatpush2.msra.mxu0 0.0
      %292 = vmatprep.subr.mxu0 0.0
      %293 = vmatpush2.msra.mxu0 0.0
      %294 = vmatprep.subr.mxu0 0.0
      %295 = vmatpush2.msra.mxu0 0.0
      %296 = vmatprep.subr.mxu0 0.0
      %297 = vmatpush2.msra.mxu0 0.0
      %298 = vmatprep.subr.mxu0 0.0
      %299 = vmatpush2.msra.mxu0 0.0
      %300 = vmatprep.subr.mxu0 0.0
      %301 = vmatpush2.msra.mxu0 0.0
      %302 = vmatprep.subr.mxu0 0.0
      %303 = vmatpush2.msra.mxu0 0.0
      %304 = vmatprep.subr.mxu0 0.0
      %305 = vmatpush2.msra.mxu0 0.0
      %306 = vmatprep.subr.mxu0 0.0
      %307 = vmatpush2.msra.mxu0 0.0
      %308 = vmatprep.subr.mxu0 0.0
      %309 = vmatpush2.msra.mxu0 0.0
      %310 = vmatprep.mubr.f32.mxu0 0.0
      %311 = vmatmul.mubr.f32.gmra.mxu0 %v164
      %v312 = vpop.f32.mrf.mxu0
      %v313 = vadd.f32 0.0, %v312
      %v314 = vpop.f32.mrf.mxu0
      %v315 = vadd.f32 0.0, %v314
      %316 = vmatprep.mubr.f32.mxu0 0.0
      %317 = vmatmul.mubr.f32.gmra.mxu0 %v167
      %v318 = vpop.f32.mrf.mxu0
      %v319 = vadd.f32 0.0, %v318
      %v320 = vpop.f32.mrf.mxu0
      %v321 = vadd.f32 0.0, %v320
      %322 = vdwg.mxu0
      %323 = vst [vmem:[%s143] sm:$0xff] %v236
      %324 = vst [vmem:[%s143 + $0x8] sm:$0xff] %v238
      %325 = vst [vmem:[%s143 + $0x10] sm:$0xff] %v313
      %326 = vst [vmem:[%s143 + $0x18] sm:$0xff] %v315
      %327 = vst [vmem:[%s143 + $0x20] sm:$0xff] %v242
      %328 = vst [vmem:[%s143 + $0x28] sm:$0xff] %v244
      %329 = vst [vmem:[%s143 + $0x30] sm:$0xff] %v319
      %330 = vst [vmem:[%s143 + $0x38] sm:$0xff] %v321
      %p331 = scmp.lt.s32.totalorder %s13, 1
      %s332 = scalar_select %p331, %s13, 1
      %s333 = smul.addr %s332, 8
      %s334 = smul.addr %s333, 8
      %s335 = scalar_lea.vmem %s2, %s334
      // Predicated region
      $region29: #{neck_forward.19} parent=27 // pred_check
        %p336 = pneg %p78
      $region30: #{neck_forward.19} parent=27 // pred_check_branch
        %338 = sbr.rel (%p336) target = $region32
      $region31: #{neck_forward.19} parent=27 // pred_region
        _
      $region32: #{neck_forward.19} parent=27 // pred_fallthru
        _
    $region28: #{neck_forward.19} parent=5 // pred_fallthru
      _
    %p339 = scmp.le.s32.totalorder 2, %s8
    // Predicated region
    $region33: #{neck_forward.19} parent=5 // pred_check
      %p340 = pneg %p339
    $region34: #{neck_forward.19} parent=5 // pred_check_branch
      %342 = sbr.rel (%p340) target = $region36
    $region35: #{neck_forward.19} parent=5 // pred_region
      %s343 = ssub.s32 %s8, 2
      // Predicated region
      $region37: #{neck_forward.19} parent=35 // pred_check
        %p344 = pneg %p84
      $region38: #{neck_forward.19} parent=35 // pred_check_branch
        %346 = sbr.rel (%p344) target = $region40
      $region39: #{neck_forward.19} parent=35 // pred_region
        %p347 = scmp.lt.s32.totalorder %s14, 1
        %s348 = scalar_select %p347, %s14, 1
        %s349 = smul.addr %s348, 8
        %s350 = smul.addr %s349, 8
        %s351 = scalar_lea.vmem %s2, %s350
      $region40: #{neck_forward.19} parent=35 // pred_fallthru
        _
    $region36: #{neck_forward.19} parent=5 // pred_fallthru
      _
  $region6: #{neck_forward.19} parent=0 // loop_footer
    %s12 = sadd.s32 1, %s8
  $region7: #{neck_forward.19} parent=0 // loop_footer_branch
    %7 = sbr.rel target = $region3
  $region8: #{neck_forward.19} parent=0 // loop_exit
    _

// kernel: neck_forward.17
$region0: #{neck_forward.17}
  #allocation0 [shape = 'u32[]', space=smem, size = 0x4, offset = 0x4, fixed_abs, tag = 'smem constant byte address 0x4 - core index']
  #allocation1 [shape = 'u32[144,128]{1,0:T(1,128)}', space=vmem, size = 0x12000, scoped, tag = 'internal scratch']
  %s0 = inlined_call_operand.vmem [shape: f32[16,8], index: 0, kind: input, shape index: {}]
  %s1 = inlined_call_operand.vmem [shape: f32[2,8,96], index: 1, kind: input, shape index: {}]
  %s2 = inlined_call_operand.vmem [shape: f32[2,16,96], index: 2, kind: output, shape index: {}]
  %s3 = sld [smem:[#allocation0]]
  $region41: #{neck_forward.17} parent=0
    _
  %s5 = ssub.s32 1, %s3
  %s6 = scalar_select 0, %s5, %s3
  loop: start=0, step=1, limit=4
  $region2: #{neck_forward.17} parent=0 // loop_pre_header
    _
  $region3: #{neck_forward.17} parent=0 // loop_header
    %s8 = sphi 0, %s12
    %p9 = scmp.ge.s32.totalorder %s8, 4
    %s16 = sphi 0, %s16
    %s18 = sphi 0, %s16
    %s19 = sphi 0, %s18
    %s33 = sphi 0, %s19
    %s39 = sphi 0, %s41
    %s42 = sphi 0, %s39
    %s43 = sphi 0, %s42
    %s59 = sphi 0, %s43
    %s65 = sphi 0, %s67
    %s68 = sphi 0, %s65
    %s69 = sphi 0, %s68
    %s85 = sphi 0, %s69
  $region4: #{neck_forward.17} parent=0 // loop_header_branch
    %11 = sbr.rel (%p9) target = $region8
  $region5: #{neck_forward.17} parent=0 // loop_body
    %s13 = ssub.s32 %s8, 1
    %s14 = ssub.s32 %s8, 2
    %s15 = sadd.s32 %s8, 1
    %s17 = sadd.s32 %s16, 1
    %p20 = scmp.eq.s32.totalorder %s8, 1
    %p21 = scmp.ne.s32.totalorder %s16, %s18
    %p22 = scmp.eq.s32.totalorder %s8, 0
    %p23 = por %p21, %p22
    %p24 = scmp.ne.s32.totalorder %s16, %s18
    %p25 = scmp.eq.s32.totalorder %s13, 1
    %p26 = por %p24, %p25
    %p27 = scmp.ne.s32.totalorder %s18, %s19
    %p28 = scmp.eq.s32.totalorder %s13, 0
    %p29 = por %p27, %p28
    %p30 = scmp.ne.s32.totalorder %s18, %s19
    %p31 = scmp.eq.s32.totalorder %s14, 1
    %p32 = por %p30, %p31
    %p34 = scmp.ne.s32.totalorder %s19, %s33
    %p35 = scmp.eq.s32.totalorder %s14, 0
    %p36 = por %p34, %p35
    %s37 = ssub.s32 %s8, %s15
    %p38 = scmp.eq.s32.totalorder %s37, 0
    %s40 = sadd.s32 %s39, 1
    %s41 = scalar_select %p38, %s39, %s40
    %p44 = pneg %p38
    %p45 = scmp.eq.s32.totalorder %s8, 1
    %p46 = por %p44, %p45
    %p47 = scmp.ne.s32.totalorder %s39, %s42
    %p48 = scmp.eq.s32.totalorder %s8, 0
    %p49 = por %p47, %p48
    %p50 = scmp.ne.s32.totalorder %s39, %s42
    %p51 = scmp.eq.s32.totalorder %s13, 1
    %p52 = por %p50, %p51
    %p53 = scmp.ne.s32.totalorder %s42, %s43
    %p54 = scmp.eq.s32.totalorder %s13, 0
    %p55 = por %p53, %p54
    %p56 = scmp.ne.s32.totalorder %s42, %s43
    %p57 = scmp.eq.s32.totalorder %s14, 1
    %p58 = por %p56, %p57
    %p60 = scmp.ne.s32.totalorder %s43, %s59
    %p61 = scmp.eq.s32.totalorder %s14, 0
    %p62 = por %p60, %p61
    %s63 = ssub.s32 %s8, %s15
    %p64 = scmp.eq.s32.totalorder %s63, 0
    %s66 = sadd.s32 %s65, 1
    %s67 = scalar_select %p64, %s65, %s66
    %p70 = pneg %p64
    %p71 = scmp.eq.s32.totalorder %s8, 1
    %p72 = por %p70, %p71
    %p73 = scmp.ne.s32.totalorder %s65, %s68
    %p74 = scmp.eq.s32.totalorder %s8, 0
    %p75 = por %p73, %p74
    %p76 = scmp.ne.s32.totalorder %s65, %s68
    %p77 = scmp.eq.s32.totalorder %s13, 1
    %p78 = por %p76, %p77
    %p79 = scmp.ne.s32.totalorder %s68, %s69
    %p80 = scmp.eq.s32.totalorder %s13, 0
    %p81 = por %p79, %p80
    %p82 = scmp.ne.s32.totalorder %s68, %s69
    %p83 = scmp.eq.s32.totalorder %s14, 1
    %p84 = por %p82, %p83
    %p86 = scmp.ne.s32.totalorder %s69, %s85
    %p87 = scmp.eq.s32.totalorder %s14, 0
    %p88 = por %p86, %p87
    %p89 = scmp.le.s32.totalorder 1, %s8
    %p90 = scmp.lt.s32.totalorder %s8, 3
    %p91 = pnand %p89, %p90
    %p92 = pneg %p91
    // Predicated region
    $region9: #{neck_forward.17} parent=5 // pred_check
      _
    $region10: #{neck_forward.17} parent=5 // pred_check_branch
      %94 = sbr.rel (%p91) target = $region12
    $region11: #{neck_forward.17} parent=5 // pred_region
      %s95 = ssub.s32 %s8, 1
      // Predicated region
      $region13: #{neck_forward.17} parent=11 // pred_check
        %p96 = pneg %p29
      $region14: #{neck_forward.17} parent=11 // pred_check_branch
        %98 = sbr.rel (%p96) target = $region16
      $region15: #{neck_forward.17} parent=11 // pred_region
        _
      $region16: #{neck_forward.17} parent=11 // pred_fallthru
        _
    $region12: #{neck_forward.17} parent=5 // pred_fallthru
      _
    %p99 = scmp.lt.s32.totalorder %s8, 2
    // Predicated region
    $region17: #{neck_forward.17} parent=5 // pred_check
      %p100 = pneg %p99
    $region18: #{neck_forward.17} parent=5 // pred_check_branch
      %102 = sbr.rel (%p100) target = $region20
    $region19: #{neck_forward.17} parent=5 // pred_region
      // Predicated region
      $region21: #{neck_forward.17} parent=19 // pred_check
        %p103 = pneg %p49
      $region22: #{neck_forward.17} parent=19 // pred_check_branch
        %105 = sbr.rel (%p103) target = $region24
      $region23: #{neck_forward.17} parent=19 // pred_region
        %p106 = scmp.lt.s32.totalorder %s8, 1
        %s107 = scalar_select %p106, %s8, 1
        %s108 = smul.addr %s107, 8
        %s109 = scalar_lea.vmem %s1, %s108
      $region24: #{neck_forward.17} parent=19 // pred_fallthru
        _
    $region20: #{neck_forward.17} parent=5 // pred_fallthru
      _
    %p110 = scmp.le.s32.totalorder 1, %s8
    %p111 = scmp.lt.s32.totalorder %s8, 3
    %p112 = pnand %p110, %p111
    %p113 = pneg %p112
    // Predicated region
    $region25: #{neck_forward.17} parent=5 // pred_check
      _
    $region26: #{neck_forward.17} parent=5 // pred_check_branch
      %115 = sbr.rel (%p112) target = $region28
    $region27: #{neck_forward.17} parent=5 // pred_region
      %s116 = ssub.s32 %s8, 1
      %p117 = pneg %p29
      %p118 = pneg %p26
      %p119 = scmp.lt.s32.totalorder %s13, 1
      %s120 = scalar_select %p119, %s13, 1
      %s121 = smul.addr %s120, 8
      %s122 = scalar_lea.vmem %s1, %s121
      %p123 = pneg %p55
      %p124 = pneg %p52
      %p125 = pneg %p81
      %p126 = pneg %p78
      %p127 = scmp.lt.s32.totalorder %s13, 1
      %s128 = scalar_select %p127, %s13, 1
      %s129 = smul.addr %s128, 2
      %s130 = smul.addr %s129, 8
      %s131 = scalar_lea.vmem %s2, %s130
      %p132 = scmp.lt.s32.totalorder %s13, 1
      %s133 = scalar_select %p132, %s13, 1
      %s134 = smul.addr %s133, 8
      %s135 = scalar_lea.vmem %s1, %s134
      %p136 = scmp.lt.s32.totalorder %s13, 1
      %s137 = scalar_select %p136, %s13, 1
      %s138 = smul.addr %s137, 2
      %s139 = smul.addr %s138, 8
      %s140 = scalar_lea.vmem %s2, %s139
      %v141 = vld [vmem:[%s0] sm:$0xff]
      %v142 = vld [vmem:[%s0 + $0x8] sm:$0xff]
      %v143 = vld [vmem:[%s135] sm:$0xff]
      %vm144 = vcmask 64512
      %v146 = vsel %vm144, %v141, 0
      %v149 = vsel %vm144, %v142, 0
      %151 = vmatprep.subr.mxu0 0.0
      %152 = vmatpush1.msra.mxu0 0.0
      %153 = vmatprep.subr.mxu0 0.0
      %154 = vmatpush1.msra.mxu0 0.0
      %155 = vmatprep.subr.mxu0 0.0
      %156 = vmatpush1.msra.mxu0 0.0
      %157 = vmatprep.subr.mxu0 0.0
      %158 = vmatpush1.msra.mxu0 0.0
      %159 = vmatprep.subr.mxu0 0.0
      %160 = vmatpush1.msra.mxu0 0.0
      %161 = vmatprep.subr.mxu0 0.0
      %162 = vmatpush1.msra.mxu0 0.0
      %163 = vmatprep.subr.mxu0 0.0
      %164 = vmatpush1.msra.mxu0 0.0
      %165 = vmatprep.subr.mxu0 0.0
      %166 = vmatpush1.msra.mxu0 0.0
      %167 = vmatprep.subr.mxu0 0.0
      %168 = vmatpush1.msra.mxu0 0.0
      %169 = vmatprep.subr.mxu0 0.0
      %170 = vmatpush1.msra.mxu0 0.0
      %171 = vmatprep.subr.mxu0 0.0
      %172 = vmatpush1.msra.mxu0 0.0
      %173 = vmatprep.subr.mxu0 0.0
      %174 = vmatpush1.msra.mxu0 0.0
      %175 = vmatprep.subr.mxu0 0.0
      %176 = vmatpush1.msra.mxu0 0.0
      %177 = vmatprep.subr.mxu0 0.0
      %178 = vmatpush1.msra.mxu0 0.0
      %179 = vmatprep.subr.mxu0 0.0
      %180 = vmatpush1.msra.mxu0 0.0
      %181 = vmatprep.subr.mxu0 0.0
      %182 = vmatpush1.msra.mxu0 %v143
      %183 = vmatprep.subr.mxu0 0.0
      %184 = vmatpush2.msra.mxu0 0.0
      %185 = vmatprep.subr.mxu0 0.0
      %186 = vmatpush2.msra.mxu0 0.0
      %187 = vmatprep.subr.mxu0 0.0
      %188 = vmatpush2.msra.mxu0 0.0
      %189 = vmatprep.subr.mxu0 0.0
      %190 = vmatpush2.msra.mxu0 0.0
      %191 = vmatprep.subr.mxu0 0.0
      %192 = vmatpush2.msra.mxu0 0.0
      %193 = vmatprep.subr.mxu0 0.0
      %194 = vmatpush2.msra.mxu0 0.0
      %195 = vmatprep.subr.mxu0 0.0
      %196 = vmatpush2.msra.mxu0 0.0
      %197 = vmatprep.subr.mxu0 0.0
      %198 = vmatpush2.msra.mxu0 0.0
      %199 = vmatprep.subr.mxu0 0.0
      %200 = vmatpush2.msra.mxu0 0.0
      %201 = vmatprep.subr.mxu0 0.0
      %202 = vmatpush2.msra.mxu0 0.0
      %203 = vmatprep.subr.mxu0 0.0
      %204 = vmatpush2.msra.mxu0 0.0
      %205 = vmatprep.subr.mxu0 0.0
      %206 = vmatpush2.msra.mxu0 0.0
      %207 = vmatprep.subr.mxu0 0.0
      %208 = vmatpush2.msra.mxu0 0.0
      %209 = vmatprep.subr.mxu0 0.0
      %210 = vmatpush2.msra.mxu0 0.0
      %211 = vmatprep.subr.mxu0 0.0
      %212 = vmatpush2.msra.mxu0 0.0
      %213 = vmatprep.subr.mxu0 0.0
      %214 = vmatpush2.msra.mxu0 0.0
      %215 = vmatprep.mubr.f32.mxu0 0.0
      %216 = vmatmul.mubr.f32.gmra.mxu0 %v146
      %v217 = vpop.f32.mrf.mxu0
      %v218 = vadd.f32 0.0, %v217
      %v219 = vpop.f32.mrf.mxu0
      %220 = vmatprep.mubr.f32.mxu0 0.0
      %221 = vmatmul.mubr.f32.gmra.mxu0 %v149
      %v222 = vpop.f32.mrf.mxu0
      %v223 = vadd.f32 0.0, %v222
      %v224 = vpop.f32.mrf.mxu0
      %225 = vdwg.mxu0
      %vm226 = vcmask 785408
      %227 = vst.msk [vmem:[%s140] sm:$0xff] %vm226, %v218
      %228 = vst.msk [vmem:[%s140 + $0x8] sm:$0xff] %vm226, %v223
      %p229 = scmp.lt.s32.totalorder %s13, 1
      %s230 = scalar_select %p229, %s13, 1
      %s231 = smul.addr %s230, 2
      %s232 = smul.addr %s231, 8
      %s233 = scalar_lea.vmem %s2, %s232
      // Predicated region
      $region29: #{neck_forward.17} parent=27 // pred_check
        %p234 = pneg %p78
      $region30: #{neck_forward.17} parent=27 // pred_check_branch
        %236 = sbr.rel (%p234) target = $region32
      $region31: #{neck_forward.17} parent=27 // pred_region
        _
      $region32: #{neck_forward.17} parent=27 // pred_fallthru
        _
    $region28: #{neck_forward.17} parent=5 // pred_fallthru
      _
    %p237 = scmp.le.s32.totalorder 2, %s8
    // Predicated region
    $region33: #{neck_forward.17} parent=5 // pred_check
      %p238 = pneg %p237
    $region34: #{neck_forward.17} parent=5 // pred_check_branch
      %240 = sbr.rel (%p238) target = $region36
    $region35: #{neck_forward.17} parent=5 // pred_region
      %s241 = ssub.s32 %s8, 2
      // Predicated region
      $region37: #{neck_forward.17} parent=35 // pred_check
        %p242 = pneg %p84
      $region38: #{neck_forward.17} parent=35 // pred_check_branch
        %244 = sbr.rel (%p242) target = $region40
      $region39: #{neck_forward.17} parent=35 // pred_region
        %p245 = scmp.lt.s32.totalorder %s14, 1
        %s246 = scalar_select %p245, %s14, 1
        %s247 = smul.addr %s246, 2
        %s248 = smul.addr %s247, 8
        %s249 = scalar_lea.vmem %s2, %s248
      $region40: #{neck_forward.17} parent=35 // pred_fallthru
        _
    $region36: #{neck_forward.17} parent=5 // pred_fallthru
      _
  $region6: #{neck_forward.17} parent=0 // loop_footer
    %s12 = sadd.s32 1, %s8
  $region7: #{neck_forward.17} parent=0 // loop_footer_branch
    %7 = sbr.rel target = $region3
  $region8: #{neck_forward.17} parent=0 // loop_exit
    _

// kernel: neck_forward.18
$region0: #{neck_forward.18}
  #allocation0 [shape = 'u32[]', space=smem, size = 0x4, offset = 0x4, fixed_abs, tag = 'smem constant byte address 0x4 - core index']
  #allocation1 [shape = 'u32[144,128]{1,0:T(1,128)}', space=vmem, size = 0x12000, scoped, tag = 'internal scratch']
  %s0 = inlined_call_operand.vmem [shape: f32[16,8], index: 0, kind: input, shape index: {}]
  %s1 = inlined_call_operand.vmem [shape: f32[32,8,12], index: 1, kind: input, shape index: {}]
  %s2 = inlined_call_operand.vmem [shape: f32[32,16,12], index: 2, kind: output, shape index: {}]
  %s3 = sld [smem:[#allocation0]]
  $region41: #{neck_forward.18} parent=0
    _
  %s5 = ssub.s32 1, %s3
  %s6 = scalar_select 0, %s5, %s3
  loop: start=0, step=1, limit=34
  $region2: #{neck_forward.18} parent=0 // loop_pre_header
    _
  $region3: #{neck_forward.18} parent=0 // loop_header
    %s8 = sphi 0, %s12
    %p9 = scmp.ge.s32.totalorder %s8, 34
    %s16 = sphi 0, %s16
    %s18 = sphi 0, %s16
    %s19 = sphi 0, %s18
    %s33 = sphi 0, %s19
    %s39 = sphi 0, %s41
    %s42 = sphi 0, %s39
    %s43 = sphi 0, %s42
    %s59 = sphi 0, %s43
    %s65 = sphi 0, %s67
    %s68 = sphi 0, %s65
    %s69 = sphi 0, %s68
    %s85 = sphi 0, %s69
  $region4: #{neck_forward.18} parent=0 // loop_header_branch
    %11 = sbr.rel (%p9) target = $region8
  $region5: #{neck_forward.18} parent=0 // loop_body
    %s13 = ssub.s32 %s8, 1
    %s14 = ssub.s32 %s8, 2
    %s15 = sadd.s32 %s8, 1
    %s17 = sadd.s32 %s16, 1
    %p20 = scmp.eq.s32.totalorder %s8, 31
    %p21 = scmp.ne.s32.totalorder %s16, %s18
    %p22 = scmp.eq.s32.totalorder %s8, 0
    %p23 = por %p21, %p22
    %p24 = scmp.ne.s32.totalorder %s16, %s18
    %p25 = scmp.eq.s32.totalorder %s13, 31
    %p26 = por %p24, %p25
    %p27 = scmp.ne.s32.totalorder %s18, %s19
    %p28 = scmp.eq.s32.totalorder %s13, 0
    %p29 = por %p27, %p28
    %p30 = scmp.ne.s32.totalorder %s18, %s19
    %p31 = scmp.eq.s32.totalorder %s14, 31
    %p32 = por %p30, %p31
    %p34 = scmp.ne.s32.totalorder %s19, %s33
    %p35 = scmp.eq.s32.totalorder %s14, 0
    %p36 = por %p34, %p35
    %s37 = ssub.s32 %s8, %s15
    %p38 = scmp.eq.s32.totalorder %s37, 0
    %s40 = sadd.s32 %s39, 1
    %s41 = scalar_select %p38, %s39, %s40
    %p44 = pneg %p38
    %p45 = scmp.eq.s32.totalorder %s8, 31
    %p46 = por %p44, %p45
    %p47 = scmp.ne.s32.totalorder %s39, %s42
    %p48 = scmp.eq.s32.totalorder %s8, 0
    %p49 = por %p47, %p48
    %p50 = scmp.ne.s32.totalorder %s39, %s42
    %p51 = scmp.eq.s32.totalorder %s13, 31
    %p52 = por %p50, %p51
    %p53 = scmp.ne.s32.totalorder %s42, %s43
    %p54 = scmp.eq.s32.totalorder %s13, 0
    %p55 = por %p53, %p54
    %p56 = scmp.ne.s32.totalorder %s42, %s43
    %p57 = scmp.eq.s32.totalorder %s14, 31
    %p58 = por %p56, %p57
    %p60 = scmp.ne.s32.totalorder %s43, %s59
    %p61 = scmp.eq.s32.totalorder %s14, 0
    %p62 = por %p60, %p61
    %s63 = ssub.s32 %s8, %s15
    %p64 = scmp.eq.s32.totalorder %s63, 0
    %s66 = sadd.s32 %s65, 1
    %s67 = scalar_select %p64, %s65, %s66
    %p70 = pneg %p64
    %p71 = scmp.eq.s32.totalorder %s8, 31
    %p72 = por %p70, %p71
    %p73 = scmp.ne.s32.totalorder %s65, %s68
    %p74 = scmp.eq.s32.totalorder %s8, 0
    %p75 = por %p73, %p74
    %p76 = scmp.ne.s32.totalorder %s65, %s68
    %p77 = scmp.eq.s32.totalorder %s13, 31
    %p78 = por %p76, %p77
    %p79 = scmp.ne.s32.totalorder %s68, %s69
    %p80 = scmp.eq.s32.totalorder %s13, 0
    %p81 = por %p79, %p80
    %p82 = scmp.ne.s32.totalorder %s68, %s69
    %p83 = scmp.eq.s32.totalorder %s14, 31
    %p84 = por %p82, %p83
    %p86 = scmp.ne.s32.totalorder %s69, %s85
    %p87 = scmp.eq.s32.totalorder %s14, 0
    %p88 = por %p86, %p87
    %p89 = scmp.le.s32.totalorder 1, %s8
    %p90 = scmp.lt.s32.totalorder %s8, 33
    %p91 = pnand %p89, %p90
    %p92 = pneg %p91
    // Predicated region
    $region9: #{neck_forward.18} parent=5 // pred_check
      _
    $region10: #{neck_forward.18} parent=5 // pred_check_branch
      %94 = sbr.rel (%p91) target = $region12
    $region11: #{neck_forward.18} parent=5 // pred_region
      %s95 = ssub.s32 %s8, 1
      // Predicated region
      $region13: #{neck_forward.18} parent=11 // pred_check
        %p96 = pneg %p29
      $region14: #{neck_forward.18} parent=11 // pred_check_branch
        %98 = sbr.rel (%p96) target = $region16
      $region15: #{neck_forward.18} parent=11 // pred_region
        _
      $region16: #{neck_forward.18} parent=11 // pred_fallthru
        _
    $region12: #{neck_forward.18} parent=5 // pred_fallthru
      _
    %p99 = scmp.lt.s32.totalorder %s8, 32
    // Predicated region
    $region17: #{neck_forward.18} parent=5 // pred_check
      %p100 = pneg %p99
    $region18: #{neck_forward.18} parent=5 // pred_check_branch
      %102 = sbr.rel (%p100) target = $region20
    $region19: #{neck_forward.18} parent=5 // pred_region
      // Predicated region
      $region21: #{neck_forward.18} parent=19 // pred_check
        %p103 = pneg %p49
      $region22: #{neck_forward.18} parent=19 // pred_check_branch
        %105 = sbr.rel (%p103) target = $region24
      $region23: #{neck_forward.18} parent=19 // pred_region
        %p106 = scmp.lt.s32.totalorder %s8, 31
        %s107 = scalar_select %p106, %s8, 31
        %s108 = smul.addr %s107, 8
        %s109 = scalar_lea.vmem %s1, %s108
      $region24: #{neck_forward.18} parent=19 // pred_fallthru
        _
    $region20: #{neck_forward.18} parent=5 // pred_fallthru
      _
    %p110 = scmp.le.s32.totalorder 1, %s8
    %p111 = scmp.lt.s32.totalorder %s8, 33
    %p112 = pnand %p110, %p111
    %p113 = pneg %p112
    // Predicated region
    $region25: #{neck_forward.18} parent=5 // pred_check
      _
    $region26: #{neck_forward.18} parent=5 // pred_check_branch
      %115 = sbr.rel (%p112) target = $region28
    $region27: #{neck_forward.18} parent=5 // pred_region
      %s116 = ssub.s32 %s8, 1
      %p117 = pneg %p29
      %p118 = pneg %p26
      %p119 = scmp.lt.s32.totalorder %s13, 31
      %s120 = scalar_select %p119, %s13, 31
      %s121 = smul.addr %s120, 8
      %s122 = scalar_lea.vmem %s1, %s121
      %p123 = pneg %p55
      %p124 = pneg %p52
      %p125 = pneg %p81
      %p126 = pneg %p78
      %p127 = scmp.lt.s32.totalorder %s13, 31
      %s128 = scalar_select %p127, %s13, 31
      %s129 = smul.addr %s128, 2
      %s130 = smul.addr %s129, 8
      %s131 = scalar_lea.vmem %s2, %s130
      %p132 = scmp.lt.s32.totalorder %s13, 31
      %s133 = scalar_select %p132, %s13, 31
      %s134 = smul.addr %s133, 8
      %s135 = scalar_lea.vmem %s1, %s134
      %p136 = scmp.lt.s32.totalorder %s13, 31
      %s137 = scalar_select %p136, %s13, 31
      %s138 = smul.addr %s137, 2
      %s139 = smul.addr %s138, 8
      %s140 = scalar_lea.vmem %s2, %s139
      %v141 = vld [vmem:[%s0] sm:$0xff]
      %v142 = vld [vmem:[%s0 + $0x8] sm:$0xff]
      %v143 = vld [vmem:[%s135] sm:$0xff]
      %vm144 = vcmask 64512
      %v146 = vsel %vm144, %v141, 0
      %v149 = vsel %vm144, %v142, 0
      %151 = vmatprep.subr.mxu0 0.0
      %152 = vmatpush1.msra.mxu0 0.0
      %153 = vmatprep.subr.mxu0 0.0
      %154 = vmatpush1.msra.mxu0 0.0
      %155 = vmatprep.subr.mxu0 0.0
      %156 = vmatpush1.msra.mxu0 0.0
      %157 = vmatprep.subr.mxu0 0.0
      %158 = vmatpush1.msra.mxu0 0.0
      %159 = vmatprep.subr.mxu0 0.0
      %160 = vmatpush1.msra.mxu0 0.0
      %161 = vmatprep.subr.mxu0 0.0
      %162 = vmatpush1.msra.mxu0 0.0
      %163 = vmatprep.subr.mxu0 0.0
      %164 = vmatpush1.msra.mxu0 0.0
      %165 = vmatprep.subr.mxu0 0.0
      %166 = vmatpush1.msra.mxu0 0.0
      %167 = vmatprep.subr.mxu0 0.0
      %168 = vmatpush1.msra.mxu0 0.0
      %169 = vmatprep.subr.mxu0 0.0
      %170 = vmatpush1.msra.mxu0 0.0
      %171 = vmatprep.subr.mxu0 0.0
      %172 = vmatpush1.msra.mxu0 0.0
      %173 = vmatprep.subr.mxu0 0.0
      %174 = vmatpush1.msra.mxu0 0.0
      %175 = vmatprep.subr.mxu0 0.0
      %176 = vmatpush1.msra.mxu0 0.0
      %177 = vmatprep.subr.mxu0 0.0
      %178 = vmatpush1.msra.mxu0 0.0
      %179 = vmatprep.subr.mxu0 0.0
      %180 = vmatpush1.msra.mxu0 0.0
      %181 = vmatprep.subr.mxu0 0.0
      %182 = vmatpush1.msra.mxu0 %v143
      %183 = vmatprep.subr.mxu0 0.0
      %184 = vmatpush2.msra.mxu0 0.0
      %185 = vmatprep.subr.mxu0 0.0
      %186 = vmatpush2.msra.mxu0 0.0
      %187 = vmatprep.subr.mxu0 0.0
      %188 = vmatpush2.msra.mxu0 0.0
      %189 = vmatprep.subr.mxu0 0.0
      %190 = vmatpush2.msra.mxu0 0.0
      %191 = vmatprep.subr.mxu0 0.0
      %192 = vmatpush2.msra.mxu0 0.0
      %193 = vmatprep.subr.mxu0 0.0
      %194 = vmatpush2.msra.mxu0 0.0
      %195 = vmatprep.subr.mxu0 0.0
      %196 = vmatpush2.msra.mxu0 0.0
      %197 = vmatprep.subr.mxu0 0.0
      %198 = vmatpush2.msra.mxu0 0.0
      %199 = vmatprep.subr.mxu0 0.0
      %200 = vmatpush2.msra.mxu0 0.0
      %201 = vmatprep.subr.mxu0 0.0
      %202 = vmatpush2.msra.mxu0 0.0
      %203 = vmatprep.subr.mxu0 0.0
      %204 = vmatpush2.msra.mxu0 0.0
      %205 = vmatprep.subr.mxu0 0.0
      %206 = vmatpush2.msra.mxu0 0.0
      %207 = vmatprep.subr.mxu0 0.0
      %208 = vmatpush2.msra.mxu0 0.0
      %209 = vmatprep.subr.mxu0 0.0
      %210 = vmatpush2.msra.mxu0 0.0
      %211 = vmatprep.subr.mxu0 0.0
      %212 = vmatpush2.msra.mxu0 0.0
      %213 = vmatprep.subr.mxu0 0.0
      %214 = vmatpush2.msra.mxu0 0.0
      %215 = vmatprep.mubr.f32.mxu0 0.0
      %216 = vmatmul.mubr.f32.gmra.mxu0 %v146
      %v217 = vpop.f32.mrf.mxu0
      %v218 = vadd.f32 0.0, %v217
      %v219 = vpop.f32.mrf.mxu0
      %220 = vmatprep.mubr.f32.mxu0 0.0
      %221 = vmatmul.mubr.f32.gmra.mxu0 %v149
      %v222 = vpop.f32.mrf.mxu0
      %v223 = vadd.f32 0.0, %v222
      %v224 = vpop.f32.mrf.mxu0
      %225 = vdwg.mxu0
      %vm226 = vcmask 97280
      %227 = vst.msk [vmem:[%s140] sm:$0xff] %vm226, %v218
      %228 = vst.msk [vmem:[%s140 + $0x8] sm:$0xff] %vm226, %v223
      %p229 = scmp.lt.s32.totalorder %s13, 31
      %s230 = scalar_select %p229, %s13, 31
      %s231 = smul.addr %s230, 2
      %s232 = smul.addr %s231, 8
      %s233 = scalar_lea.vmem %s2, %s232
      // Predicated region
      $region29: #{neck_forward.18} parent=27 // pred_check
        %p234 = pneg %p78
      $region30: #{neck_forward.18} parent=27 // pred_check_branch
        %236 = sbr.rel (%p234) target = $region32
      $region31: #{neck_forward.18} parent=27 // pred_region
        _
      $region32: #{neck_forward.18} parent=27 // pred_fallthru
        _
    $region28: #{neck_forward.18} parent=5 // pred_fallthru
      _
    %p237 = scmp.le.s32.totalorder 2, %s8
    // Predicated region
    $region33: #{neck_forward.18} parent=5 // pred_check
      %p238 = pneg %p237
    $region34: #{neck_forward.18} parent=5 // pred_check_branch
      %240 = sbr.rel (%p238) target = $region36
    $region35: #{neck_forward.18} parent=5 // pred_region
      %s241 = ssub.s32 %s8, 2
      // Predicated region
      $region37: #{neck_forward.18} parent=35 // pred_check
        %p242 = pneg %p84
      $region38: #{neck_forward.18} parent=35 // pred_check_branch
        %244 = sbr.rel (%p242) target = $region40
      $region39: #{neck_forward.18} parent=35 // pred_region
        %p245 = scmp.lt.s32.totalorder %s14, 31
        %s246 = scalar_select %p245, %s14, 31
        %s247 = smul.addr %s246, 2
        %s248 = smul.addr %s247, 8
        %s249 = scalar_lea.vmem %s2, %s248
      $region40: #{neck_forward.18} parent=35 // pred_fallthru
        _
    $region36: #{neck_forward.18} parent=5 // pred_fallthru
      _
  $region6: #{neck_forward.18} parent=0 // loop_footer
    %s12 = sadd.s32 1, %s8
  $region7: #{neck_forward.18} parent=0 // loop_footer_branch
    %7 = sbr.rel target = $region3
  $region8: #{neck_forward.18} parent=0 // loop_exit
    _

// kernel: neck_forward.20
$region0: #{neck_forward.20}
  #allocation0 [shape = 'u32[]', space=smem, size = 0x4, offset = 0x4, fixed_abs, tag = 'smem constant byte address 0x4 - core index']
  #allocation1 [shape = 'u32[144,128]{1,0:T(1,128)}', space=vmem, size = 0x12000, scoped, tag = 'internal scratch']
  %s0 = inlined_call_operand.vmem [shape: f32[16,32], index: 0, kind: input, shape index: {}]
  %s1 = inlined_call_operand.vmem [shape: f32[32,32,16], index: 1, kind: input, shape index: {}]
  %s2 = inlined_call_operand.vmem [shape: f32[32,16,16], index: 2, kind: output, shape index: {}]
  %s3 = sld [smem:[#allocation0]]
  $region41: #{neck_forward.20} parent=0
    _
  %s5 = ssub.s32 1, %s3
  %s6 = scalar_select 0, %s5, %s3
  loop: start=0, step=1, limit=34
  $region2: #{neck_forward.20} parent=0 // loop_pre_header
    _
  $region3: #{neck_forward.20} parent=0 // loop_header
    %s8 = sphi 0, %s12
    %p9 = scmp.ge.s32.totalorder %s8, 34
    %s16 = sphi 0, %s16
    %s18 = sphi 0, %s16
    %s19 = sphi 0, %s18
    %s33 = sphi 0, %s19
    %s39 = sphi 0, %s41
    %s42 = sphi 0, %s39
    %s43 = sphi 0, %s42
    %s59 = sphi 0, %s43
    %s65 = sphi 0, %s67
    %s68 = sphi 0, %s65
    %s69 = sphi 0, %s68
    %s85 = sphi 0, %s69
  $region4: #{neck_forward.20} parent=0 // loop_header_branch
    %11 = sbr.rel (%p9) target = $region8
  $region5: #{neck_forward.20} parent=0 // loop_body
    %s13 = ssub.s32 %s8, 1
    %s14 = ssub.s32 %s8, 2
    %s15 = sadd.s32 %s8, 1
    %s17 = sadd.s32 %s16, 1
    %p20 = scmp.eq.s32.totalorder %s8, 31
    %p21 = scmp.ne.s32.totalorder %s16, %s18
    %p22 = scmp.eq.s32.totalorder %s8, 0
    %p23 = por %p21, %p22
    %p24 = scmp.ne.s32.totalorder %s16, %s18
    %p25 = scmp.eq.s32.totalorder %s13, 31
    %p26 = por %p24, %p25
    %p27 = scmp.ne.s32.totalorder %s18, %s19
    %p28 = scmp.eq.s32.totalorder %s13, 0
    %p29 = por %p27, %p28
    %p30 = scmp.ne.s32.totalorder %s18, %s19
    %p31 = scmp.eq.s32.totalorder %s14, 31
    %p32 = por %p30, %p31
    %p34 = scmp.ne.s32.totalorder %s19, %s33
    %p35 = scmp.eq.s32.totalorder %s14, 0
    %p36 = por %p34, %p35
    %s37 = ssub.s32 %s8, %s15
    %p38 = scmp.eq.s32.totalorder %s37, 0
    %s40 = sadd.s32 %s39, 1
    %s41 = scalar_select %p38, %s39, %s40
    %p44 = pneg %p38
    %p45 = scmp.eq.s32.totalorder %s8, 31
    %p46 = por %p44, %p45
    %p47 = scmp.ne.s32.totalorder %s39, %s42
    %p48 = scmp.eq.s32.totalorder %s8, 0
    %p49 = por %p47, %p48
    %p50 = scmp.ne.s32.totalorder %s39, %s42
    %p51 = scmp.eq.s32.totalorder %s13, 31
    %p52 = por %p50, %p51
    %p53 = scmp.ne.s32.totalorder %s42, %s43
    %p54 = scmp.eq.s32.totalorder %s13, 0
    %p55 = por %p53, %p54
    %p56 = scmp.ne.s32.totalorder %s42, %s43
    %p57 = scmp.eq.s32.totalorder %s14, 31
    %p58 = por %p56, %p57
    %p60 = scmp.ne.s32.totalorder %s43, %s59
    %p61 = scmp.eq.s32.totalorder %s14, 0
    %p62 = por %p60, %p61
    %s63 = ssub.s32 %s8, %s15
    %p64 = scmp.eq.s32.totalorder %s63, 0
    %s66 = sadd.s32 %s65, 1
    %s67 = scalar_select %p64, %s65, %s66
    %p70 = pneg %p64
    %p71 = scmp.eq.s32.totalorder %s8, 31
    %p72 = por %p70, %p71
    %p73 = scmp.ne.s32.totalorder %s65, %s68
    %p74 = scmp.eq.s32.totalorder %s8, 0
    %p75 = por %p73, %p74
    %p76 = scmp.ne.s32.totalorder %s65, %s68
    %p77 = scmp.eq.s32.totalorder %s13, 31
    %p78 = por %p76, %p77
    %p79 = scmp.ne.s32.totalorder %s68, %s69
    %p80 = scmp.eq.s32.totalorder %s13, 0
    %p81 = por %p79, %p80
    %p82 = scmp.ne.s32.totalorder %s68, %s69
    %p83 = scmp.eq.s32.totalorder %s14, 31
    %p84 = por %p82, %p83
    %p86 = scmp.ne.s32.totalorder %s69, %s85
    %p87 = scmp.eq.s32.totalorder %s14, 0
    %p88 = por %p86, %p87
    %p89 = scmp.le.s32.totalorder 1, %s8
    %p90 = scmp.lt.s32.totalorder %s8, 33
    %p91 = pnand %p89, %p90
    %p92 = pneg %p91
    // Predicated region
    $region9: #{neck_forward.20} parent=5 // pred_check
      _
    $region10: #{neck_forward.20} parent=5 // pred_check_branch
      %94 = sbr.rel (%p91) target = $region12
    $region11: #{neck_forward.20} parent=5 // pred_region
      %s95 = ssub.s32 %s8, 1
      // Predicated region
      $region13: #{neck_forward.20} parent=11 // pred_check
        %p96 = pneg %p29
      $region14: #{neck_forward.20} parent=11 // pred_check_branch
        %98 = sbr.rel (%p96) target = $region16
      $region15: #{neck_forward.20} parent=11 // pred_region
        _
      $region16: #{neck_forward.20} parent=11 // pred_fallthru
        _
    $region12: #{neck_forward.20} parent=5 // pred_fallthru
      _
    %p99 = scmp.lt.s32.totalorder %s8, 32
    // Predicated region
    $region17: #{neck_forward.20} parent=5 // pred_check
      %p100 = pneg %p99
    $region18: #{neck_forward.20} parent=5 // pred_check_branch
      %102 = sbr.rel (%p100) target = $region20
    $region19: #{neck_forward.20} parent=5 // pred_region
      // Predicated region
      $region21: #{neck_forward.20} parent=19 // pred_check
        %p103 = pneg %p49
      $region22: #{neck_forward.20} parent=19 // pred_check_branch
        %105 = sbr.rel (%p103) target = $region24
      $region23: #{neck_forward.20} parent=19 // pred_region
        %p106 = scmp.lt.s32.totalorder %s8, 31
        %s107 = scalar_select %p106, %s8, 31
        %s108 = smul.addr %s107, 4
        %s109 = smul.addr %s108, 8
        %s110 = scalar_lea.vmem %s1, %s109
      $region24: #{neck_forward.20} parent=19 // pred_fallthru
        _
    $region20: #{neck_forward.20} parent=5 // pred_fallthru
      _
    %p111 = scmp.le.s32.totalorder 1, %s8
    %p112 = scmp.lt.s32.totalorder %s8, 33
    %p113 = pnand %p111, %p112
    %p114 = pneg %p113
    // Predicated region
    $region25: #{neck_forward.20} parent=5 // pred_check
      _
    $region26: #{neck_forward.20} parent=5 // pred_check_branch
      %116 = sbr.rel (%p113) target = $region28
    $region27: #{neck_forward.20} parent=5 // pred_region
      %s117 = ssub.s32 %s8, 1
      %p118 = pneg %p29
      %p119 = pneg %p26
      %p120 = scmp.lt.s32.totalorder %s13, 31
      %s121 = scalar_select %p120, %s13, 31
      %s122 = smul.addr %s121, 4
      %s123 = smul.addr %s122, 8
      %s124 = scalar_lea.vmem %s1, %s123
      %p125 = pneg %p55
      %p126 = pneg %p52
      %p127 = pneg %p81
      %p128 = pneg %p78
      %p129 = scmp.lt.s32.totalorder %s13, 31
      %s130 = scalar_select %p129, %s13, 31
      %s131 = smul.addr %s130, 2
      %s132 = smul.addr %s131, 8
      %s133 = scalar_lea.vmem %s2, %s132
      %p134 = scmp.lt.s32.totalorder %s13, 31
      %s135 = scalar_select %p134, %s13, 31
      %s136 = smul.addr %s135, 4
      %s137 = smul.addr %s136, 8
      %s138 = scalar_lea.vmem %s1, %s137
      %p139 = scmp.lt.s32.totalorder %s13, 31
      %s140 = scalar_select %p139, %s13, 31
      %s141 = smul.addr %s140, 2
      %s142 = smul.addr %s141, 8
      %s143 = scalar_lea.vmem %s2, %s142
      %v144 = vld [vmem:[%s0] sm:$0xff]
      %v145 = vld [vmem:[%s0 + $0x8] sm:$0xff]
      %v146 = vld [vmem:[%s138] sm:$0xff]
      %v147 = vld [vmem:[%s138 + $0x8] sm:$0xff]
      %v148 = vld [vmem:[%s138 + $0x10] sm:$0xff]
      %v149 = vld [vmem:[%s138 + $0x18] sm:$0xff]
      %vm150 = vcmask 261120
      %v152 = vsel %vm150, %v144, 0
      %v155 = vsel %vm150, %v145, 0
      %157 = vmatprep.subr.mxu0 0.0
      %158 = vmatpush1.msra.mxu0 0.0
      %159 = vmatprep.subr.mxu0 0.0
      %160 = vmatpush1.msra.mxu0 0.0
      %161 = vmatprep.subr.mxu0 0.0
      %162 = vmatpush1.msra.mxu0 0.0
      %163 = vmatprep.subr.mxu0 0.0
      %164 = vmatpush1.msra.mxu0 0.0
      %165 = vmatprep.subr.mxu0 0.0
      %166 = vmatpush1.msra.mxu0 0.0
      %167 = vmatprep.subr.mxu0 0.0
      %168 = vmatpush1.msra.mxu0 0.0
      %169 = vmatprep.subr.mxu0 0.0
      %170 = vmatpush1.msra.mxu0 0.0
      %171 = vmatprep.subr.mxu0 0.0
      %172 = vmatpush1.msra.mxu0 0.0
      %173 = vmatprep.subr.mxu0 0.0
      %174 = vmatpush1.msra.mxu0 0.0
      %175 = vmatprep.subr.mxu0 0.0
      %176 = vmatpush1.msra.mxu0 0.0
      %177 = vmatprep.subr.mxu0 0.0
      %178 = vmatpush1.msra.mxu0 0.0
      %179 = vmatprep.subr.mxu0 0.0
      %180 = vmatpush1.msra.mxu0 0.0
      %181 = vmatprep.subr.mxu0 0.0
      %182 = vmatpush1.msra.mxu0 %v149
      %183 = vmatprep.subr.mxu0 0.0
      %184 = vmatpush1.msra.mxu0 %v148
      %185 = vmatprep.subr.mxu0 0.0
      %186 = vmatpush1.msra.mxu0 %v147
      %187 = vmatprep.subr.mxu0 0.0
      %188 = vmatpush1.msra.mxu0 %v146
      %189 = vmatprep.subr.mxu0 0.0
      %190 = vmatpush2.msra.mxu0 0.0
      %191 = vmatprep.subr.mxu0 0.0
      %192 = vmatpush2.msra.mxu0 0.0
      %193 = vmatprep.subr.mxu0 0.0
      %194 = vmatpush2.msra.mxu0 0.0
      %195 = vmatprep.subr.mxu0 0.0
      %196 = vmatpush2.msra.mxu0 0.0
      %197 = vmatprep.subr.mxu0 0.0
      %198 = vmatpush2.msra.mxu0 0.0
      %199 = vmatprep.subr.mxu0 0.0
      %200 = vmatpush2.msra.mxu0 0.0
      %201 = vmatprep.subr.mxu0 0.0
      %202 = vmatpush2.msra.mxu0 0.0
      %203 = vmatprep.subr.mxu0 0.0
      %204 = vmatpush2.msra.mxu0 0.0
      %205 = vmatprep.subr.mxu0 0.0
      %206 = vmatpush2.msra.mxu0 0.0
      %207 = vmatprep.subr.mxu0 0.0
      %208 = vmatpush2.msra.mxu0 0.0
      %209 = vmatprep.subr.mxu0 0.0
      %210 = vmatpush2.msra.mxu0 0.0
      %211 = vmatprep.subr.mxu0 0.0
      %212 = vmatpush2.msra.mxu0 0.0
      %213 = vmatprep.subr.mxu0 0.0
      %214 = vmatpush2.msra.mxu0 0.0
      %215 = vmatprep.subr.mxu0 0.0
      %216 = vmatpush2.msra.mxu0 0.0
      %217 = vmatprep.subr.mxu0 0.0
      %218 = vmatpush2.msra.mxu0 0.0
      %219 = vmatprep.subr.mxu0 0.0
      %220 = vmatpush2.msra.mxu0 0.0
      %221 = vmatprep.mubr.f32.mxu0 0.0
      %222 = vmatmul.mubr.f32.gmra.mxu0 %v152
      %v223 = vpop.f32.mrf.mxu0
      %v224 = vadd.f32 0.0, %v223
      %v225 = vpop.f32.mrf.mxu0
      %226 = vmatprep.mubr.f32.mxu0 0.0
      %227 = vmatmul.mubr.f32.gmra.mxu0 %v155
      %v228 = vpop.f32.mrf.mxu0
      %v229 = vadd.f32 0.0, %v228
      %v230 = vpop.f32.mrf.mxu0
      %231 = vdwg.mxu0
      %vm232 = vcmask 130048
      %233 = vst.msk [vmem:[%s143] sm:$0xff] %vm232, %v224
      %234 = vst.msk [vmem:[%s143 + $0x8] sm:$0xff] %vm232, %v229
      %p235 = scmp.lt.s32.totalorder %s13, 31
      %s236 = scalar_select %p235, %s13, 31
      %s237 = smul.addr %s236, 2
      %s238 = smul.addr %s237, 8
      %s239 = scalar_lea.vmem %s2, %s238
      // Predicated region
      $region29: #{neck_forward.20} parent=27 // pred_check
        %p240 = pneg %p78
      $region30: #{neck_forward.20} parent=27 // pred_check_branch
        %242 = sbr.rel (%p240) target = $region32
      $region31: #{neck_forward.20} parent=27 // pred_region
        _
      $region32: #{neck_forward.20} parent=27 // pred_fallthru
        _
    $region28: #{neck_forward.20} parent=5 // pred_fallthru
      _
    %p243 = scmp.le.s32.totalorder 2, %s8
    // Predicated region
    $region33: #{neck_forward.20} parent=5 // pred_check
      %p244 = pneg %p243
    $region34: #{neck_forward.20} parent=5 // pred_check_branch
      %246 = sbr.rel (%p244) target = $region36
    $region35: #{neck_forward.20} parent=5 // pred_region
      %s247 = ssub.s32 %s8, 2
      // Predicated region
      $region37: #{neck_forward.20} parent=35 // pred_check
        %p248 = pneg %p84
      $region38: #{neck_forward.20} parent=35 // pred_check_branch
        %250 = sbr.rel (%p248) target = $region40
      $region39: #{neck_forward.20} parent=35 // pred_region
        %p251 = scmp.lt.s32.totalorder %s14, 31
        %s252 = scalar_select %p251, %s14, 31
        %s253 = smul.addr %s252, 2
        %s254 = smul.addr %s253, 8
        %s255 = scalar_lea.vmem %s2, %s254
      $region40: #{neck_forward.20} parent=35 // pred_fallthru
        _
    $region36: #{neck_forward.20} parent=5 // pred_fallthru
      _
  $region6: #{neck_forward.20} parent=0 // loop_footer
    %s12 = sadd.s32 1, %s8
  $region7: #{neck_forward.20} parent=0 // loop_footer_branch
    %7 = sbr.rel target = $region3
  $region8: #{neck_forward.20} parent=0 // loop_exit
    _

// kernel: neck_forward.21
$region0: #{neck_forward.21}
  #allocation0 [shape = 'u32[]', space=smem, size = 0x4, offset = 0x4, fixed_abs, tag = 'smem constant byte address 0x4 - core index']
  #allocation1 [shape = 'u32[144,128]{1,0:T(1,128)}', space=vmem, size = 0x12000, scoped, tag = 'internal scratch']
  %s0 = inlined_call_operand.vmem [shape: f32[8,16], index: 0, kind: input, shape index: {}]
  %s1 = inlined_call_operand.vmem [shape: f32[2,16,576], index: 1, kind: input, shape index: {}]
  %s2 = inlined_call_operand.vmem [shape: f32[2,8,576], index: 2, kind: output, shape index: {}]
  %s3 = sld [smem:[#allocation0]]
  $region41: #{neck_forward.21} parent=0
    _
  %s5 = ssub.s32 1, %s3
  %s6 = scalar_select 0, %s5, %s3
  loop: start=0, step=1, limit=4
  $region2: #{neck_forward.21} parent=0 // loop_pre_header
    _
  $region3: #{neck_forward.21} parent=0 // loop_header
    %s8 = sphi 0, %s12
    %p9 = scmp.ge.s32.totalorder %s8, 4
    %s16 = sphi 0, %s16
    %s18 = sphi 0, %s16
    %s19 = sphi 0, %s18
    %s33 = sphi 0, %s19
    %s39 = sphi 0, %s41
    %s42 = sphi 0, %s39
    %s43 = sphi 0, %s42
    %s59 = sphi 0, %s43
    %s65 = sphi 0, %s67
    %s68 = sphi 0, %s65
    %s69 = sphi 0, %s68
    %s85 = sphi 0, %s69
  $region4: #{neck_forward.21} parent=0 // loop_header_branch
    %11 = sbr.rel (%p9) target = $region8
  $region5: #{neck_forward.21} parent=0 // loop_body
    %s13 = ssub.s32 %s8, 1
    %s14 = ssub.s32 %s8, 2
    %s15 = sadd.s32 %s8, 1
    %s17 = sadd.s32 %s16, 1
    %p20 = scmp.eq.s32.totalorder %s8, 1
    %p21 = scmp.ne.s32.totalorder %s16, %s18
    %p22 = scmp.eq.s32.totalorder %s8, 0
    %p23 = por %p21, %p22
    %p24 = scmp.ne.s32.totalorder %s16, %s18
    %p25 = scmp.eq.s32.totalorder %s13, 1
    %p26 = por %p24, %p25
    %p27 = scmp.ne.s32.totalorder %s18, %s19
    %p28 = scmp.eq.s32.totalorder %s13, 0
    %p29 = por %p27, %p28
    %p30 = scmp.ne.s32.totalorder %s18, %s19
    %p31 = scmp.eq.s32.totalorder %s14, 1
    %p32 = por %p30, %p31
    %p34 = scmp.ne.s32.totalorder %s19, %s33
    %p35 = scmp.eq.s32.totalorder %s14, 0
    %p36 = por %p34, %p35
    %s37 = ssub.s32 %s8, %s15
    %p38 = scmp.eq.s32.totalorder %s37, 0
    %s40 = sadd.s32 %s39, 1
    %s41 = scalar_select %p38, %s39, %s40
    %p44 = pneg %p38
    %p45 = scmp.eq.s32.totalorder %s8, 1
    %p46 = por %p44, %p45
    %p47 = scmp.ne.s32.totalorder %s39, %s42
    %p48 = scmp.eq.s32.totalorder %s8, 0
    %p49 = por %p47, %p48
    %p50 = scmp.ne.s32.totalorder %s39, %s42
    %p51 = scmp.eq.s32.totalorder %s13, 1
    %p52 = por %p50, %p51
    %p53 = scmp.ne.s32.totalorder %s42, %s43
    %p54 = scmp.eq.s32.totalorder %s13, 0
    %p55 = por %p53, %p54
    %p56 = scmp.ne.s32.totalorder %s42, %s43
    %p57 = scmp.eq.s32.totalorder %s14, 1
    %p58 = por %p56, %p57
    %p60 = scmp.ne.s32.totalorder %s43, %s59
    %p61 = scmp.eq.s32.totalorder %s14, 0
    %p62 = por %p60, %p61
    %s63 = ssub.s32 %s8, %s15
    %p64 = scmp.eq.s32.totalorder %s63, 0
    %s66 = sadd.s32 %s65, 1
    %s67 = scalar_select %p64, %s65, %s66
    %p70 = pneg %p64
    %p71 = scmp.eq.s32.totalorder %s8, 1
    %p72 = por %p70, %p71
    %p73 = scmp.ne.s32.totalorder %s65, %s68
    %p74 = scmp.eq.s32.totalorder %s8, 0
    %p75 = por %p73, %p74
    %p76 = scmp.ne.s32.totalorder %s65, %s68
    %p77 = scmp.eq.s32.totalorder %s13, 1
    %p78 = por %p76, %p77
    %p79 = scmp.ne.s32.totalorder %s68, %s69
    %p80 = scmp.eq.s32.totalorder %s13, 0
    %p81 = por %p79, %p80
    %p82 = scmp.ne.s32.totalorder %s68, %s69
    %p83 = scmp.eq.s32.totalorder %s14, 1
    %p84 = por %p82, %p83
    %p86 = scmp.ne.s32.totalorder %s69, %s85
    %p87 = scmp.eq.s32.totalorder %s14, 0
    %p88 = por %p86, %p87
    %p89 = scmp.le.s32.totalorder 1, %s8
    %p90 = scmp.lt.s32.totalorder %s8, 3
    %p91 = pnand %p89, %p90
    %p92 = pneg %p91
    // Predicated region
    $region9: #{neck_forward.21} parent=5 // pred_check
      _
    $region10: #{neck_forward.21} parent=5 // pred_check_branch
      %94 = sbr.rel (%p91) target = $region12
    $region11: #{neck_forward.21} parent=5 // pred_region
      %s95 = ssub.s32 %s8, 1
      // Predicated region
      $region13: #{neck_forward.21} parent=11 // pred_check
        %p96 = pneg %p29
      $region14: #{neck_forward.21} parent=11 // pred_check_branch
        %98 = sbr.rel (%p96) target = $region16
      $region15: #{neck_forward.21} parent=11 // pred_region
        _
      $region16: #{neck_forward.21} parent=11 // pred_fallthru
        _
    $region12: #{neck_forward.21} parent=5 // pred_fallthru
      _
    %p99 = scmp.lt.s32.totalorder %s8, 2
    // Predicated region
    $region17: #{neck_forward.21} parent=5 // pred_check
      %p100 = pneg %p99
    $region18: #{neck_forward.21} parent=5 // pred_check_branch
      %102 = sbr.rel (%p100) target = $region20
    $region19: #{neck_forward.21} parent=5 // pred_region
      // Predicated region
      $region21: #{neck_forward.21} parent=19 // pred_check
        %p103 = pneg %p49
      $region22: #{neck_forward.21} parent=19 // pred_check_branch
        %105 = sbr.rel (%p103) target = $region24
      $region23: #{neck_forward.21} parent=19 // pred_region
        %p106 = scmp.lt.s32.totalorder %s8, 1
        %s107 = scalar_select %p106, %s8, 1
        %s108 = smul.addr %s107, 10
        %s109 = smul.addr %s108, 8
        %s110 = scalar_lea.vmem %s1, %s109
      $region24: #{neck_forward.21} parent=19 // pred_fallthru
        _
    $region20: #{neck_forward.21} parent=5 // pred_fallthru
      _
    %p111 = scmp.le.s32.totalorder 1, %s8
    %p112 = scmp.lt.s32.totalorder %s8, 3
    %p113 = pnand %p111, %p112
    %p114 = pneg %p113
    // Predicated region
    $region25: #{neck_forward.21} parent=5 // pred_check
      _
    $region26: #{neck_forward.21} parent=5 // pred_check_branch
      %116 = sbr.rel (%p113) target = $region28
    $region27: #{neck_forward.21} parent=5 // pred_region
      %s117 = ssub.s32 %s8, 1
      %p118 = pneg %p29
      %p119 = pneg %p26
      %p120 = scmp.lt.s32.totalorder %s13, 1
      %s121 = scalar_select %p120, %s13, 1
      %s122 = smul.addr %s121, 10
      %s123 = smul.addr %s122, 8
      %s124 = scalar_lea.vmem %s1, %s123
      %p125 = pneg %p55
      %p126 = pneg %p52
      %p127 = pneg %p81
      %p128 = pneg %p78
      %p129 = scmp.lt.s32.totalorder %s13, 1
      %s130 = scalar_select %p129, %s13, 1
      %s131 = smul.addr %s130, 5
      %s132 = smul.addr %s131, 8
      %s133 = scalar_lea.vmem %s2, %s132
      %p134 = scmp.lt.s32.totalorder %s13, 1
      %s135 = scalar_select %p134, %s13, 1
      %s136 = smul.addr %s135, 10
      %s137 = smul.addr %s136, 8
      %s138 = scalar_lea.vmem %s1, %s137
      %p139 = scmp.lt.s32.totalorder %s13, 1
      %s140 = scalar_select %p139, %s13, 1
      %s141 = smul.addr %s140, 5
      %s142 = smul.addr %s141, 8
      %s143 = scalar_lea.vmem %s2, %s142
      %v144 = vld [vmem:[%s0] sm:$0xff]
      %v145 = vld [vmem:[%s138] sm:$0xff]
      %v146 = vld [vmem:[%s138 + $0x8] sm:$0xff]
      %v147 = vld [vmem:[%s138 + $0x10] sm:$0xff]
      %v148 = vld [vmem:[%s138 + $0x18] sm:$0xff]
      %v149 = vld [vmem:[%s138 + $0x20] sm:$0xff]
      %v150 = vld [vmem:[%s138 + $0x28] sm:$0xff]
      %v151 = vld [vmem:[%s138 + $0x30] sm:$0xff]
      %v152 = vld [vmem:[%s138 + $0x38] sm:$0xff]
      %v153 = vld [vmem:[%s138 + $0x40] sm:$0xff]
      %v154 = vld [vmem:[%s138 + $0x48] sm:$0xff]
      %vm155 = vcmask 130048
      %v157 = vsel %vm155, %v144, 0
      %159 = vmatprep.subr.mxu0 0.0
      %160 = vmatpush1.msra.mxu0 0.0
      %161 = vmatprep.subr.mxu0 0.0
      %162 = vmatpush1.msra.mxu0 0.0
      %163 = vmatprep.subr.mxu0 0.0
      %164 = vmatpush1.msra.mxu0 0.0
      %165 = vmatprep.subr.mxu0 0.0
      %166 = vmatpush1.msra.mxu0 0.0
      %167 = vmatprep.subr.mxu0 0.0
      %168 = vmatpush1.msra.mxu0 0.0
      %169 = vmatprep.subr.mxu0 0.0
      %170 = vmatpush1.msra.mxu0 0.0
      %171 = vmatprep.subr.mxu0 0.0
      %172 = vmatpush1.msra.mxu0 0.0
      %173 = vmatprep.subr.mxu0 0.0
      %174 = vmatpush1.msra.mxu0 0.0
      %175 = vmatprep.subr.mxu0 0.0
      %176 = vmatpush1.msra.mxu0 0.0
      %177 = vmatprep.subr.mxu0 0.0
      %178 = vmatpush1.msra.mxu0 0.0
      %179 = vmatprep.subr.mxu0 0.0
      %180 = vmatpush1.msra.mxu0 0.0
      %181 = vmatprep.subr.mxu0 0.0
      %182 = vmatpush1.msra.mxu0 0.0
      %183 = vmatprep.subr.mxu0 0.0
      %184 = vmatpush1.msra.mxu0 0.0
      %185 = vmatprep.subr.mxu0 0.0
      %186 = vmatpush1.msra.mxu0 0.0
      %187 = vmatprep.subr.mxu0 %v151
      %188 = vmatpush1.msra.mxu0 %v150
      %189 = vmatprep.subr.mxu0 %v146
      %190 = vmatpush1.msra.mxu0 %v145
      %191 = vmatprep.subr.mxu0 0.0
      %192 = vmatpush2.msra.mxu0 0.0
      %193 = vmatprep.subr.mxu0 0.0
      %194 = vmatpush2.msra.mxu0 0.0
      %195 = vmatprep.subr.mxu0 0.0
      %196 = vmatpush2.msra.mxu0 0.0
      %197 = vmatprep.subr.mxu0 0.0
      %198 = vmatpush2.msra.mxu0 0.0
      %199 = vmatprep.subr.mxu0 0.0
      %200 = vmatpush2.msra.mxu0 0.0
      %201 = vmatprep.subr.mxu0 0.0
      %202 = vmatpush2.msra.mxu0 0.0
      %203 = vmatprep.subr.mxu0 0.0
      %204 = vmatpush2.msra.mxu0 0.0
      %205 = vmatprep.subr.mxu0 0.0
      %206 = vmatpush2.msra.mxu0 0.0
      %207 = vmatprep.subr.mxu0 0.0
      %208 = vmatpush2.msra.mxu0 0.0
      %209 = vmatprep.subr.mxu0 0.0
      %210 = vmatpush2.msra.mxu0 0.0
      %211 = vmatprep.subr.mxu0 0.0
      %212 = vmatpush2.msra.mxu0 0.0
      %213 = vmatprep.subr.mxu0 0.0
      %214 = vmatpush2.msra.mxu0 0.0
      %215 = vmatprep.subr.mxu0 0.0
      %216 = vmatpush2.msra.mxu0 0.0
      %217 = vmatprep.subr.mxu0 0.0
      %218 = vmatpush2.msra.mxu0 0.0
      %219 = vmatprep.subr.mxu0 0.0
      %220 = vmatpush2.msra.mxu0 0.0
      %221 = vmatprep.subr.mxu0 0.0
      %222 = vmatpush2.msra.mxu0 0.0
      %223 = vmatprep.mubr.f32.mxu0 0.0
      %224 = vmatmul.mubr.f32.gmra.mxu0 %v157
      %v225 = vpop.f32.mrf.mxu0
      %v226 = vadd.f32 0.0, %v225
      %v227 = vpop.f32.mrf.mxu0
      %v228 = vadd.f32 0.0, %v227
      %229 = vdwg.mxu0
      %230 = vmatprep.subr.mxu0 0.0
      %231 = vmatpush1.msra.mxu0 0.0
      %232 = vmatprep.subr.mxu0 0.0
      %233 = vmatpush1.msra.mxu0 0.0
      %234 = vmatprep.subr.mxu0 0.0
      %235 = vmatpush1.msra.mxu0 0.0
      %236 = vmatprep.subr.mxu0 0.0
      %237 = vmatpush1.msra.mxu0 0.0
      %238 = vmatprep.subr.mxu0 0.0
      %239 = vmatpush1.msra.mxu0 0.0
      %240 = vmatprep.subr.mxu0 0.0
      %241 = vmatpush1.msra.mxu0 0.0
      %242 = vmatprep.subr.mxu0 0.0
      %243 = vmatpush1.msra.mxu0 0.0
      %244 = vmatprep.subr.mxu0 0.0
      %245 = vmatpush1.msra.mxu0 0.0
      %246 = vmatprep.subr.mxu0 0.0
      %247 = vmatpush1.msra.mxu0 0.0
      %248 = vmatprep.subr.mxu0 0.0
      %249 = vmatpush1.msra.mxu0 0.0
      %250 = vmatprep.subr.mxu0 0.0
      %251 = vmatpush1.msra.mxu0 0.0
      %252 = vmatprep.subr.mxu0 0.0
      %253 = vmatpush1.msra.mxu0 0.0
      %254 = vmatprep.subr.mxu0 0.0
      %255 = vmatpush1.msra.mxu0 0.0
      %256 = vmatprep.subr.mxu0 0.0
      %257 = vmatpush1.msra.mxu0 0.0
      %258 = vmatprep.subr.mxu0 %v153
      %259 = vmatpush1.msra.mxu0 %v152
      %260 = vmatprep.subr.mxu0 %v148
      %261 = vmatpush1.msra.mxu0 %v147
      %262 = vmatprep.subr.mxu0 0.0
      %263 = vmatpush2.msra.mxu0 0.0
      %264 = vmatprep.subr.mxu0 0.0
      %265 = vmatpush2.msra.mxu0 0.0
      %266 = vmatprep.subr.mxu0 0.0
      %267 = vmatpush2.msra.mxu0 0.0
      %268 = vmatprep.subr.mxu0 0.0
      %269 = vmatpush2.msra.mxu0 0.0
      %270 = vmatprep.subr.mxu0 0.0
      %271 = vmatpush2.msra.mxu0 0.0
      %272 = vmatprep.subr.mxu0 0.0
      %273 = vmatpush2.msra.mxu0 0.0
      %274 = vmatprep.subr.mxu0 0.0
      %275 = vmatpush2.msra.mxu0 0.0
      %276 = vmatprep.subr.mxu0 0.0
      %277 = vmatpush2.msra.mxu0 0.0
      %278 = vmatprep.subr.mxu0 0.0
      %279 = vmatpush2.msra.mxu0 0.0
      %280 = vmatprep.subr.mxu0 0.0
      %281 = vmatpush2.msra.mxu0 0.0
      %282 = vmatprep.subr.mxu0 0.0
      %283 = vmatpush2.msra.mxu0 0.0
      %284 = vmatprep.subr.mxu0 0.0
      %285 = vmatpush2.msra.mxu0 0.0
      %286 = vmatprep.subr.mxu0 0.0
      %287 = vmatpush2.msra.mxu0 0.0
      %288 = vmatprep.subr.mxu0 0.0
      %289 = vmatpush2.msra.mxu0 0.0
      %290 = vmatprep.subr.mxu0 0.0
      %291 = vmatpush2.msra.mxu0 0.0
      %292 = vmatprep.subr.mxu0 0.0
      %293 = vmatpush2.msra.mxu0 0.0
      %294 = vmatprep.mubr.f32.mxu0 0.0
      %295 = vmatmul.mubr.f32.gmra.mxu0 %v157
      %v296 = vpop.f32.mrf.mxu0
      %v297 = vadd.f32 0.0, %v296
      %v298 = vpop.f32.mrf.mxu0
      %v299 = vadd.f32 0.0, %v298
      %300 = vdwg.mxu0
      %301 = vmatprep.subr.mxu0 0.0
      %302 = vmatpush1.msra.mxu0 0.0
      %303 = vmatprep.subr.mxu0 0.0
      %304 = vmatpush1.msra.mxu0 0.0
      %305 = vmatprep.subr.mxu0 0.0
      %306 = vmatpush1.msra.mxu0 0.0
      %307 = vmatprep.subr.mxu0 0.0
      %308 = vmatpush1.msra.mxu0 0.0
      %309 = vmatprep.subr.mxu0 0.0
      %310 = vmatpush1.msra.mxu0 0.0
      %311 = vmatprep.subr.mxu0 0.0
      %312 = vmatpush1.msra.mxu0 0.0
      %313 = vmatprep.subr.mxu0 0.0
      %314 = vmatpush1.msra.mxu0 0.0
      %315 = vmatprep.subr.mxu0 0.0
      %316 = vmatpush1.msra.mxu0 0.0
      %317 = vmatprep.subr.mxu0 0.0
      %318 = vmatpush1.msra.mxu0 0.0
      %319 = vmatprep.subr.mxu0 0.0
      %320 = vmatpush1.msra.mxu0 0.0
      %321 = vmatprep.subr.mxu0 0.0
      %322 = vmatpush1.msra.mxu0 0.0
      %323 = vmatprep.subr.mxu0 0.0
      %324 = vmatpush1.msra.mxu0 0.0
      %325 = vmatprep.subr.mxu0 0.0
      %326 = vmatpush1.msra.mxu0 0.0
      %327 = vmatprep.subr.mxu0 0.0
      %328 = vmatpush1.msra.mxu0 0.0
      %329 = vmatprep.subr.mxu0 0.0
      %330 = vmatpush1.msra.mxu0 %v154
      %331 = vmatprep.subr.mxu0 0.0
      %332 = vmatpush1.msra.mxu0 %v149
      %333 = vmatprep.subr.mxu0 0.0
      %334 = vmatpush2.msra.mxu0 0.0
      %335 = vmatprep.subr.mxu0 0.0
      %336 = vmatpush2.msra.mxu0 0.0
      %337 = vmatprep.subr.mxu0 0.0
      %338 = vmatpush2.msra.mxu0 0.0
      %339 = vmatprep.subr.mxu0 0.0
      %340 = vmatpush2.msra.mxu0 0.0
      %341 = vmatprep.subr.mxu0 0.0
      %342 = vmatpush2.msra.mxu0 0.0
      %343 = vmatprep.subr.mxu0 0.0
      %344 = vmatpush2.msra.mxu0 0.0
      %345 = vmatprep.subr.mxu0 0.0
      %346 = vmatpush2.msra.mxu0 0.0
      %347 = vmatprep.subr.mxu0 0.0
      %348 = vmatpush2.msra.mxu0 0.0
      %349 = vmatprep.subr.mxu0 0.0
      %350 = vmatpush2.msra.mxu0 0.0
      %351 = vmatprep.subr.mxu0 0.0
      %352 = vmatpush2.msra.mxu0 0.0
      %353 = vmatprep.subr.mxu0 0.0
      %354 = vmatpush2.msra.mxu0 0.0
      %355 = vmatprep.subr.mxu0 0.0
      %356 = vmatpush2.msra.mxu0 0.0
      %357 = vmatprep.subr.mxu0 0.0
      %358 = vmatpush2.msra.mxu0 0.0
      %359 = vmatprep.subr.mxu0 0.0
      %360 = vmatpush2.msra.mxu0 0.0
      %361 = vmatprep.subr.mxu0 0.0
      %362 = vmatpush2.msra.mxu0 0.0
      %363 = vmatprep.subr.mxu0 0.0
      %364 = vmatpush2.msra.mxu0 0.0
      %365 = vmatprep.mubr.f32.mxu0 0.0
      %366 = vmatmul.mubr.f32.gmra.mxu0 %v157
      %v367 = vpop.f32.mrf.mxu0
      %v368 = vadd.f32 0.0, %v367
      %v369 = vpop.f32.mrf.mxu0
      %370 = vdwg.mxu0
      %371 = vst [vmem:[%s143] sm:$0xff] %v226
      %372 = vst [vmem:[%s143 + $0x8] sm:$0xff] %v228
      %373 = vst [vmem:[%s143 + $0x10] sm:$0xff] %v297
      %374 = vst [vmem:[%s143 + $0x18] sm:$0xff] %v299
      %vm375 = vcmask 523264
      %376 = vst.msk [vmem:[%s143 + $0x20] sm:$0xff] %vm375, %v368
      %p377 = scmp.lt.s32.totalorder %s13, 1
      %s378 = scalar_select %p377, %s13, 1
      %s379 = smul.addr %s378, 5
      %s380 = smul.addr %s379, 8
      %s381 = scalar_lea.vmem %s2, %s380
      // Predicated region
      $region29: #{neck_forward.21} parent=27 // pred_check
        %p382 = pneg %p78
      $region30: #{neck_forward.21} parent=27 // pred_check_branch
        %384 = sbr.rel (%p382) target = $region32
      $region31: #{neck_forward.21} parent=27 // pred_region
        _
      $region32: #{neck_forward.21} parent=27 // pred_fallthru
        _
    $region28: #{neck_forward.21} parent=5 // pred_fallthru
      _
    %p385 = scmp.le.s32.totalorder 2, %s8
    // Predicated region
    $region33: #{neck_forward.21} parent=5 // pred_check
      %p386 = pneg %p385
    $region34: #{neck_forward.21} parent=5 // pred_check_branch
      %388 = sbr.rel (%p386) target = $region36
    $region35: #{neck_forward.21} parent=5 // pred_region
      %s389 = ssub.s32 %s8, 2
      // Predicated region
      $region37: #{neck_forward.21} parent=35 // pred_check
        %p390 = pneg %p84
      $region38: #{neck_forward.21} parent=35 // pred_check_branch
        %392 = sbr.rel (%p390) target = $region40
      $region39: #{neck_forward.21} parent=35 // pred_region
        %p393 = scmp.lt.s32.totalorder %s14, 1
        %s394 = scalar_select %p393, %s14, 1
        %s395 = smul.addr %s394, 5
        %s396 = smul.addr %s395, 8
        %s397 = scalar_lea.vmem %s2, %s396
      $region40: #{neck_forward.21} parent=35 // pred_fallthru
        _
    $region36: #{neck_forward.21} parent=5 // pred_fallthru
      _
  $region6: #{neck_forward.21} parent=0 // loop_footer
    %s12 = sadd.s32 1, %s8
  $region7: #{neck_forward.21} parent=0 // loop_footer_branch
    %7 = sbr.rel target = $region3
  $region8: #{neck_forward.21} parent=0 // loop_exit
    _

// kernel: neck_forward.22
$region0: #{neck_forward.22}
  #allocation0 [shape = 'u32[]', space=smem, size = 0x4, offset = 0x4, fixed_abs, tag = 'smem constant byte address 0x4 - core index']
  #allocation1 [shape = 'u32[144,128]{1,0:T(1,128)}', space=vmem, size = 0x12000, scoped, tag = 'internal scratch']
  %s0 = inlined_call_operand.vmem [shape: f32[8,16], index: 0, kind: input, shape index: {}]
  %s1 = inlined_call_operand.vmem [shape: f32[16,16,36], index: 1, kind: input, shape index: {}]
  %s2 = inlined_call_operand.vmem [shape: f32[16,8,36], index: 2, kind: output, shape index: {}]
  %s3 = sld [smem:[#allocation0]]
  $region41: #{neck_forward.22} parent=0
    _
  %s5 = ssub.s32 1, %s3
  %s6 = scalar_select 0, %s5, %s3
  loop: start=0, step=1, limit=18
  $region2: #{neck_forward.22} parent=0 // loop_pre_header
    _
  $region3: #{neck_forward.22} parent=0 // loop_header
    %s8 = sphi 0, %s12
    %p9 = scmp.ge.s32.totalorder %s8, 18
    %s16 = sphi 0, %s16
    %s18 = sphi 0, %s16
    %s19 = sphi 0, %s18
    %s33 = sphi 0, %s19
    %s39 = sphi 0, %s41
    %s42 = sphi 0, %s39
    %s43 = sphi 0, %s42
    %s59 = sphi 0, %s43
    %s65 = sphi 0, %s67
    %s68 = sphi 0, %s65
    %s69 = sphi 0, %s68
    %s85 = sphi 0, %s69
  $region4: #{neck_forward.22} parent=0 // loop_header_branch
    %11 = sbr.rel (%p9) target = $region8
  $region5: #{neck_forward.22} parent=0 // loop_body
    %s13 = ssub.s32 %s8, 1
    %s14 = ssub.s32 %s8, 2
    %s15 = sadd.s32 %s8, 1
    %s17 = sadd.s32 %s16, 1
    %p20 = scmp.eq.s32.totalorder %s8, 15
    %p21 = scmp.ne.s32.totalorder %s16, %s18
    %p22 = scmp.eq.s32.totalorder %s8, 0
    %p23 = por %p21, %p22
    %p24 = scmp.ne.s32.totalorder %s16, %s18
    %p25 = scmp.eq.s32.totalorder %s13, 15
    %p26 = por %p24, %p25
    %p27 = scmp.ne.s32.totalorder %s18, %s19
    %p28 = scmp.eq.s32.totalorder %s13, 0
    %p29 = por %p27, %p28
    %p30 = scmp.ne.s32.totalorder %s18, %s19
    %p31 = scmp.eq.s32.totalorder %s14, 15
    %p32 = por %p30, %p31
    %p34 = scmp.ne.s32.totalorder %s19, %s33
    %p35 = scmp.eq.s32.totalorder %s14, 0
    %p36 = por %p34, %p35
    %s37 = ssub.s32 %s8, %s15
    %p38 = scmp.eq.s32.totalorder %s37, 0
    %s40 = sadd.s32 %s39, 1
    %s41 = scalar_select %p38, %s39, %s40
    %p44 = pneg %p38
    %p45 = scmp.eq.s32.totalorder %s8, 15
    %p46 = por %p44, %p45
    %p47 = scmp.ne.s32.totalorder %s39, %s42
    %p48 = scmp.eq.s32.totalorder %s8, 0
    %p49 = por %p47, %p48
    %p50 = scmp.ne.s32.totalorder %s39, %s42
    %p51 = scmp.eq.s32.totalorder %s13, 15
    %p52 = por %p50, %p51
    %p53 = scmp.ne.s32.totalorder %s42, %s43
    %p54 = scmp.eq.s32.totalorder %s13, 0
    %p55 = por %p53, %p54
    %p56 = scmp.ne.s32.totalorder %s42, %s43
    %p57 = scmp.eq.s32.totalorder %s14, 15
    %p58 = por %p56, %p57
    %p60 = scmp.ne.s32.totalorder %s43, %s59
    %p61 = scmp.eq.s32.totalorder %s14, 0
    %p62 = por %p60, %p61
    %s63 = ssub.s32 %s8, %s15
    %p64 = scmp.eq.s32.totalorder %s63, 0
    %s66 = sadd.s32 %s65, 1
    %s67 = scalar_select %p64, %s65, %s66
    %p70 = pneg %p64
    %p71 = scmp.eq.s32.totalorder %s8, 15
    %p72 = por %p70, %p71
    %p73 = scmp.ne.s32.totalorder %s65, %s68
    %p74 = scmp.eq.s32.totalorder %s8, 0
    %p75 = por %p73, %p74
    %p76 = scmp.ne.s32.totalorder %s65, %s68
    %p77 = scmp.eq.s32.totalorder %s13, 15
    %p78 = por %p76, %p77
    %p79 = scmp.ne.s32.totalorder %s68, %s69
    %p80 = scmp.eq.s32.totalorder %s13, 0
    %p81 = por %p79, %p80
    %p82 = scmp.ne.s32.totalorder %s68, %s69
    %p83 = scmp.eq.s32.totalorder %s14, 15
    %p84 = por %p82, %p83
    %p86 = scmp.ne.s32.totalorder %s69, %s85
    %p87 = scmp.eq.s32.totalorder %s14, 0
    %p88 = por %p86, %p87
    %p89 = scmp.le.s32.totalorder 1, %s8
    %p90 = scmp.lt.s32.totalorder %s8, 17
    %p91 = pnand %p89, %p90
    %p92 = pneg %p91
    // Predicated region
    $region9: #{neck_forward.22} parent=5 // pred_check
      _
    $region10: #{neck_forward.22} parent=5 // pred_check_branch
      %94 = sbr.rel (%p91) target = $region12
    $region11: #{neck_forward.22} parent=5 // pred_region
      %s95 = ssub.s32 %s8, 1
      // Predicated region
      $region13: #{neck_forward.22} parent=11 // pred_check
        %p96 = pneg %p29
      $region14: #{neck_forward.22} parent=11 // pred_check_branch
        %98 = sbr.rel (%p96) target = $region16
      $region15: #{neck_forward.22} parent=11 // pred_region
        _
      $region16: #{neck_forward.22} parent=11 // pred_fallthru
        _
    $region12: #{neck_forward.22} parent=5 // pred_fallthru
      _
    %p99 = scmp.lt.s32.totalorder %s8, 16
    // Predicated region
    $region17: #{neck_forward.22} parent=5 // pred_check
      %p100 = pneg %p99
    $region18: #{neck_forward.22} parent=5 // pred_check_branch
      %102 = sbr.rel (%p100) target = $region20
    $region19: #{neck_forward.22} parent=5 // pred_region
      // Predicated region
      $region21: #{neck_forward.22} parent=19 // pred_check
        %p103 = pneg %p49
      $region22: #{neck_forward.22} parent=19 // pred_check_branch
        %105 = sbr.rel (%p103) target = $region24
      $region23: #{neck_forward.22} parent=19 // pred_region
        %p106 = scmp.lt.s32.totalorder %s8, 15
        %s107 = scalar_select %p106, %s8, 15
        %s108 = smul.addr %s107, 2
        %s109 = smul.addr %s108, 8
        %s110 = scalar_lea.vmem %s1, %s109
      $region24: #{neck_forward.22} parent=19 // pred_fallthru
        _
    $region20: #{neck_forward.22} parent=5 // pred_fallthru
      _
    %p111 = scmp.le.s32.totalorder 1, %s8
    %p112 = scmp.lt.s32.totalorder %s8, 17
    %p113 = pnand %p111, %p112
    %p114 = pneg %p113
    // Predicated region
    $region25: #{neck_forward.22} parent=5 // pred_check
      _
    $region26: #{neck_forward.22} parent=5 // pred_check_branch
      %116 = sbr.rel (%p113) target = $region28
    $region27: #{neck_forward.22} parent=5 // pred_region
      %s117 = ssub.s32 %s8, 1
      %p118 = pneg %p29
      %p119 = pneg %p26
      %p120 = scmp.lt.s32.totalorder %s13, 15
      %s121 = scalar_select %p120, %s13, 15
      %s122 = smul.addr %s121, 2
      %s123 = smul.addr %s122, 8
      %s124 = scalar_lea.vmem %s1, %s123
      %p125 = pneg %p55
      %p126 = pneg %p52
      %p127 = pneg %p81
      %p128 = pneg %p78
      %p129 = scmp.lt.s32.totalorder %s13, 15
      %s130 = scalar_select %p129, %s13, 15
      %s131 = smul.addr %s130, 8
      %s132 = scalar_lea.vmem %s2, %s131
      %p133 = scmp.lt.s32.totalorder %s13, 15
      %s134 = scalar_select %p133, %s13, 15
      %s135 = smul.addr %s134, 2
      %s136 = smul.addr %s135, 8
      %s137 = scalar_lea.vmem %s1, %s136
      %p138 = scmp.lt.s32.totalorder %s13, 15
      %s139 = scalar_select %p138, %s13, 15
      %s140 = smul.addr %s139, 8
      %s141 = scalar_lea.vmem %s2, %s140
      %v142 = vld [vmem:[%s0] sm:$0xff]
      %v143 = vld [vmem:[%s137] sm:$0xff]
      %v144 = vld [vmem:[%s137 + $0x8] sm:$0xff]
      %vm145 = vcmask 130048
      %v147 = vsel %vm145, %v142, 0
      %149 = vmatprep.subr.mxu0 0.0
      %150 = vmatpush1.msra.mxu0 0.0
      %151 = vmatprep.subr.mxu0 0.0
      %152 = vmatpush1.msra.mxu0 0.0
      %153 = vmatprep.subr.mxu0 0.0
      %154 = vmatpush1.msra.mxu0 0.0
      %155 = vmatprep.subr.mxu0 0.0
      %156 = vmatpush1.msra.mxu0 0.0
      %157 = vmatprep.subr.mxu0 0.0
      %158 = vmatpush1.msra.mxu0 0.0
      %159 = vmatprep.subr.mxu0 0.0
      %160 = vmatpush1.msra.mxu0 0.0
      %161 = vmatprep.subr.mxu0 0.0
      %162 = vmatpush1.msra.mxu0 0.0
      %163 = vmatprep.subr.mxu0 0.0
      %164 = vmatpush1.msra.mxu0 0.0
      %165 = vmatprep.subr.mxu0 0.0
      %166 = vmatpush1.msra.mxu0 0.0
      %167 = vmatprep.subr.mxu0 0.0
      %168 = vmatpush1.msra.mxu0 0.0
      %169 = vmatprep.subr.mxu0 0.0
      %170 = vmatpush1.msra.mxu0 0.0
      %171 = vmatprep.subr.mxu0 0.0
      %172 = vmatpush1.msra.mxu0 0.0
      %173 = vmatprep.subr.mxu0 0.0
      %174 = vmatpush1.msra.mxu0 0.0
      %175 = vmatprep.subr.mxu0 0.0
      %176 = vmatpush1.msra.mxu0 0.0
      %177 = vmatprep.subr.mxu0 0.0
      %178 = vmatpush1.msra.mxu0 %v144
      %179 = vmatprep.subr.mxu0 0.0
      %180 = vmatpush1.msra.mxu0 %v143
      %181 = vmatprep.subr.mxu0 0.0
      %182 = vmatpush2.msra.mxu0 0.0
      %183 = vmatprep.subr.mxu0 0.0
      %184 = vmatpush2.msra.mxu0 0.0
      %185 = vmatprep.subr.mxu0 0.0
      %186 = vmatpush2.msra.mxu0 0.0
      %187 = vmatprep.subr.mxu0 0.0
      %188 = vmatpush2.msra.mxu0 0.0
      %189 = vmatprep.subr.mxu0 0.0
      %190 = vmatpush2.msra.mxu0 0.0
      %191 = vmatprep.subr.mxu0 0.0
      %192 = vmatpush2.msra.mxu0 0.0
      %193 = vmatprep.subr.mxu0 0.0
      %194 = vmatpush2.msra.mxu0 0.0
      %195 = vmatprep.subr.mxu0 0.0
      %196 = vmatpush2.msra.mxu0 0.0
      %197 = vmatprep.subr.mxu0 0.0
      %198 = vmatpush2.msra.mxu0 0.0
      %199 = vmatprep.subr.mxu0 0.0
      %200 = vmatpush2.msra.mxu0 0.0
      %201 = vmatprep.subr.mxu0 0.0
      %202 = vmatpush2.msra.mxu0 0.0
      %203 = vmatprep.subr.mxu0 0.0
      %204 = vmatpush2.msra.mxu0 0.0
      %205 = vmatprep.subr.mxu0 0.0
      %206 = vmatpush2.msra.mxu0 0.0
      %207 = vmatprep.subr.mxu0 0.0
      %208 = vmatpush2.msra.mxu0 0.0
      %209 = vmatprep.subr.mxu0 0.0
      %210 = vmatpush2.msra.mxu0 0.0
      %211 = vmatprep.subr.mxu0 0.0
      %212 = vmatpush2.msra.mxu0 0.0
      %213 = vmatprep.mubr.f32.mxu0 0.0
      %214 = vmatmul.mubr.f32.gmra.mxu0 %v147
      %v215 = vpop.f32.mrf.mxu0
      %v216 = vadd.f32 0.0, %v215
      %v217 = vpop.f32.mrf.mxu0
      %218 = vdwg.mxu0
      %vm219 = vcmask 293888
      %220 = vst.msk [vmem:[%s141] sm:$0xff] %vm219, %v216
      %p221 = scmp.lt.s32.totalorder %s13, 15
      %s222 = scalar_select %p221, %s13, 15
      %s223 = smul.addr %s222, 8
      %s224 = scalar_lea.vmem %s2, %s223
      // Predicated region
      $region29: #{neck_forward.22} parent=27 // pred_check
        %p225 = pneg %p78
      $region30: #{neck_forward.22} parent=27 // pred_check_branch
        %227 = sbr.rel (%p225) target = $region32
      $region31: #{neck_forward.22} parent=27 // pred_region
        _
      $region32: #{neck_forward.22} parent=27 // pred_fallthru
        _
    $region28: #{neck_forward.22} parent=5 // pred_fallthru
      _
    %p228 = scmp.le.s32.totalorder 2, %s8
    // Predicated region
    $region33: #{neck_forward.22} parent=5 // pred_check
      %p229 = pneg %p228
    $region34: #{neck_forward.22} parent=5 // pred_check_branch
      %231 = sbr.rel (%p229) target = $region36
    $region35: #{neck_forward.22} parent=5 // pred_region
      %s232 = ssub.s32 %s8, 2
      // Predicated region
      $region37: #{neck_forward.22} parent=35 // pred_check
        %p233 = pneg %p84
      $region38: #{neck_forward.22} parent=35 // pred_check_branch
        %235 = sbr.rel (%p233) target = $region40
      $region39: #{neck_forward.22} parent=35 // pred_region
        %p236 = scmp.lt.s32.totalorder %s14, 15
        %s237 = scalar_select %p236, %s14, 15
        %s238 = smul.addr %s237, 8
        %s239 = scalar_lea.vmem %s2, %s238
      $region40: #{neck_forward.22} parent=35 // pred_fallthru
        _
    $region36: #{neck_forward.22} parent=5 // pred_fallthru
      _
  $region6: #{neck_forward.22} parent=0 // loop_footer
    %s12 = sadd.s32 1, %s8
  $region7: #{neck_forward.22} parent=0 // loop_footer_branch
    %7 = sbr.rel target = $region3
  $region8: #{neck_forward.22} parent=0 // loop_exit
    _

// kernel: neck_forward.24
$region0: #{neck_forward.24}
  #allocation0 [shape = 'u32[]', space=smem, size = 0x4, offset = 0x4, fixed_abs, tag = 'smem constant byte address 0x4 - core index']
  #allocation1 [shape = 'u32[144,128]{1,0:T(1,128)}', space=vmem, size = 0x12000, scoped, tag = 'internal scratch']
  %s0 = inlined_call_operand.vmem [shape: f32[32,16], index: 0, kind: input, shape index: {}]
  %s1 = inlined_call_operand.vmem [shape: f32[2,16,576], index: 1, kind: input, shape index: {}]
  %s2 = inlined_call_operand.vmem [shape: f32[2,32,576], index: 2, kind: output, shape index: {}]
  %s3 = sld [smem:[#allocation0]]
  $region41: #{neck_forward.24} parent=0
    _
  %s5 = ssub.s32 1, %s3
  %s6 = scalar_select 0, %s5, %s3
  loop: start=0, step=1, limit=4
  $region2: #{neck_forward.24} parent=0 // loop_pre_header
    _
  $region3: #{neck_forward.24} parent=0 // loop_header
    %s8 = sphi 0, %s12
    %p9 = scmp.ge.s32.totalorder %s8, 4
    %s16 = sphi 0, %s16
    %s18 = sphi 0, %s16
    %s19 = sphi 0, %s18
    %s33 = sphi 0, %s19
    %s39 = sphi 0, %s41
    %s42 = sphi 0, %s39
    %s43 = sphi 0, %s42
    %s59 = sphi 0, %s43
    %s65 = sphi 0, %s67
    %s68 = sphi 0, %s65
    %s69 = sphi 0, %s68
    %s85 = sphi 0, %s69
  $region4: #{neck_forward.24} parent=0 // loop_header_branch
    %11 = sbr.rel (%p9) target = $region8
  $region5: #{neck_forward.24} parent=0 // loop_body
    %s13 = ssub.s32 %s8, 1
    %s14 = ssub.s32 %s8, 2
    %s15 = sadd.s32 %s8, 1
    %s17 = sadd.s32 %s16, 1
    %p20 = scmp.eq.s32.totalorder %s8, 1
    %p21 = scmp.ne.s32.totalorder %s16, %s18
    %p22 = scmp.eq.s32.totalorder %s8, 0
    %p23 = por %p21, %p22
    %p24 = scmp.ne.s32.totalorder %s16, %s18
    %p25 = scmp.eq.s32.totalorder %s13, 1
    %p26 = por %p24, %p25
    %p27 = scmp.ne.s32.totalorder %s18, %s19
    %p28 = scmp.eq.s32.totalorder %s13, 0
    %p29 = por %p27, %p28
    %p30 = scmp.ne.s32.totalorder %s18, %s19
    %p31 = scmp.eq.s32.totalorder %s14, 1
    %p32 = por %p30, %p31
    %p34 = scmp.ne.s32.totalorder %s19, %s33
    %p35 = scmp.eq.s32.totalorder %s14, 0
    %p36 = por %p34, %p35
    %s37 = ssub.s32 %s8, %s15
    %p38 = scmp.eq.s32.totalorder %s37, 0
    %s40 = sadd.s32 %s39, 1
    %s41 = scalar_select %p38, %s39, %s40
    %p44 = pneg %p38
    %p45 = scmp.eq.s32.totalorder %s8, 1
    %p46 = por %p44, %p45
    %p47 = scmp.ne.s32.totalorder %s39, %s42
    %p48 = scmp.eq.s32.totalorder %s8, 0
    %p49 = por %p47, %p48
    %p50 = scmp.ne.s32.totalorder %s39, %s42
    %p51 = scmp.eq.s32.totalorder %s13, 1
    %p52 = por %p50, %p51
    %p53 = scmp.ne.s32.totalorder %s42, %s43
    %p54 = scmp.eq.s32.totalorder %s13, 0
    %p55 = por %p53, %p54
    %p56 = scmp.ne.s32.totalorder %s42, %s43
    %p57 = scmp.eq.s32.totalorder %s14, 1
    %p58 = por %p56, %p57
    %p60 = scmp.ne.s32.totalorder %s43, %s59
    %p61 = scmp.eq.s32.totalorder %s14, 0
    %p62 = por %p60, %p61
    %s63 = ssub.s32 %s8, %s15
    %p64 = scmp.eq.s32.totalorder %s63, 0
    %s66 = sadd.s32 %s65, 1
    %s67 = scalar_select %p64, %s65, %s66
    %p70 = pneg %p64
    %p71 = scmp.eq.s32.totalorder %s8, 1
    %p72 = por %p70, %p71
    %p73 = scmp.ne.s32.totalorder %s65, %s68
    %p74 = scmp.eq.s32.totalorder %s8, 0
    %p75 = por %p73, %p74
    %p76 = scmp.ne.s32.totalorder %s65, %s68
    %p77 = scmp.eq.s32.totalorder %s13, 1
    %p78 = por %p76, %p77
    %p79 = scmp.ne.s32.totalorder %s68, %s69
    %p80 = scmp.eq.s32.totalorder %s13, 0
    %p81 = por %p79, %p80
    %p82 = scmp.ne.s32.totalorder %s68, %s69
    %p83 = scmp.eq.s32.totalorder %s14, 1
    %p84 = por %p82, %p83
    %p86 = scmp.ne.s32.totalorder %s69, %s85
    %p87 = scmp.eq.s32.totalorder %s14, 0
    %p88 = por %p86, %p87
    %p89 = scmp.le.s32.totalorder 1, %s8
    %p90 = scmp.lt.s32.totalorder %s8, 3
    %p91 = pnand %p89, %p90
    %p92 = pneg %p91
    // Predicated region
    $region9: #{neck_forward.24} parent=5 // pred_check
      _
    $region10: #{neck_forward.24} parent=5 // pred_check_branch
      %94 = sbr.rel (%p91) target = $region12
    $region11: #{neck_forward.24} parent=5 // pred_region
      %s95 = ssub.s32 %s8, 1
      // Predicated region
      $region13: #{neck_forward.24} parent=11 // pred_check
        %p96 = pneg %p29
      $region14: #{neck_forward.24} parent=11 // pred_check_branch
        %98 = sbr.rel (%p96) target = $region16
      $region15: #{neck_forward.24} parent=11 // pred_region
        _
      $region16: #{neck_forward.24} parent=11 // pred_fallthru
        _
    $region12: #{neck_forward.24} parent=5 // pred_fallthru
      _
    %p99 = scmp.lt.s32.totalorder %s8, 2
    // Predicated region
    $region17: #{neck_forward.24} parent=5 // pred_check
      %p100 = pneg %p99
    $region18: #{neck_forward.24} parent=5 // pred_check_branch
      %102 = sbr.rel (%p100) target = $region20
    $region19: #{neck_forward.24} parent=5 // pred_region
      // Predicated region
      $region21: #{neck_forward.24} parent=19 // pred_check
        %p103 = pneg %p49
      $region22: #{neck_forward.24} parent=19 // pred_check_branch
        %105 = sbr.rel (%p103) target = $region24
      $region23: #{neck_forward.24} parent=19 // pred_region
        %p106 = scmp.lt.s32.totalorder %s8, 1
        %s107 = scalar_select %p106, %s8, 1
        %s108 = smul.addr %s107, 10
        %s109 = smul.addr %s108, 8
        %s110 = scalar_lea.vmem %s1, %s109
      $region24: #{neck_forward.24} parent=19 // pred_fallthru
        _
    $region20: #{neck_forward.24} parent=5 // pred_fallthru
      _
    %p111 = scmp.le.s32.totalorder 1, %s8
    %p112 = scmp.lt.s32.totalorder %s8, 3
    %p113 = pnand %p111, %p112
    %p114 = pneg %p113
    // Predicated region
    $region25: #{neck_forward.24} parent=5 // pred_check
      _
    $region26: #{neck_forward.24} parent=5 // pred_check_branch
      %116 = sbr.rel (%p113) target = $region28
    $region27: #{neck_forward.24} parent=5 // pred_region
      %s117 = ssub.s32 %s8, 1
      %p118 = pneg %p29
      %p119 = pneg %p26
      %p120 = scmp.lt.s32.totalorder %s13, 1
      %s121 = scalar_select %p120, %s13, 1
      %s122 = smul.addr %s121, 10
      %s123 = smul.addr %s122, 8
      %s124 = scalar_lea.vmem %s1, %s123
      %p125 = pneg %p55
      %p126 = pneg %p52
      %p127 = pneg %p81
      %p128 = pneg %p78
      %p129 = scmp.lt.s32.totalorder %s13, 1
      %s130 = scalar_select %p129, %s13, 1
      %s131 = smul.addr %s130, 20
      %s132 = smul.addr %s131, 8
      %s133 = scalar_lea.vmem %s2, %s132
      %p134 = scmp.lt.s32.totalorder %s13, 1
      %s135 = scalar_select %p134, %s13, 1
      %s136 = smul.addr %s135, 10
      %s137 = smul.addr %s136, 8
      %s138 = scalar_lea.vmem %s1, %s137
      %p139 = scmp.lt.s32.totalorder %s13, 1
      %s140 = scalar_select %p139, %s13, 1
      %s141 = smul.addr %s140, 20
      %s142 = smul.addr %s141, 8
      %s143 = scalar_lea.vmem %s2, %s142
      %v144 = vld [vmem:[%s0] sm:$0xff]
      %v145 = vld [vmem:[%s0 + $0x8] sm:$0xff]
      %v146 = vld [vmem:[%s0 + $0x10] sm:$0xff]
      %v147 = vld [vmem:[%s0 + $0x18] sm:$0xff]
      %v148 = vld [vmem:[%s138] sm:$0xff]
      %v149 = vld [vmem:[%s138 + $0x8] sm:$0xff]
      %v150 = vld [vmem:[%s138 + $0x10] sm:$0xff]
      %v151 = vld [vmem:[%s138 + $0x18] sm:$0xff]
      %v152 = vld [vmem:[%s138 + $0x20] sm:$0xff]
      %v153 = vld [vmem:[%s138 + $0x28] sm:$0xff]
      %v154 = vld [vmem:[%s138 + $0x30] sm:$0xff]
      %v155 = vld [vmem:[%s138 + $0x38] sm:$0xff]
      %v156 = vld [vmem:[%s138 + $0x40] sm:$0xff]
      %v157 = vld [vmem:[%s138 + $0x48] sm:$0xff]
      %vm158 = vcmask 130048
      %v160 = vsel %vm158, %v144, 0
      %v163 = vsel %vm158, %v145, 0
      %v166 = vsel %vm158, %v146, 0
      %v169 = vsel %vm158, %v147, 0
      %171 = vmatprep.subr.mxu0 0.0
      %172 = vmatpush1.msra.mxu0 0.0
      %173 = vmatprep.subr.mxu0 0.0
      %174 = vmatpush1.msra.mxu0 0.0
      %175 = vmatprep.subr.mxu0 0.0
      %176 = vmatpush1.msra.mxu0 0.0
      %177 = vmatprep.subr.mxu0 0.0
      %178 = vmatpush1.msra.mxu0 0.0
      %179 = vmatprep.subr.mxu0 0.0
      %180 = vmatpush1.msra.mxu0 0.0
      %181 = vmatprep.subr.mxu0 0.0
      %182 = vmatpush1.msra.mxu0 0.0
      %183 = vmatprep.subr.mxu0 0.0
      %184 = vmatpush1.msra.mxu0 0.0
      %185 = vmatprep.subr.mxu0 0.0
      %186 = vmatpush1.msra.mxu0 0.0
      %187 = vmatprep.subr.mxu0 0.0
      %188 = vmatpush1.msra.mxu0 0.0
      %189 = vmatprep.subr.mxu0 0.0
      %190 = vmatpush1.msra.mxu0 0.0
      %191 = vmatprep.subr.mxu0 0.0
      %192 = vmatpush1.msra.mxu0 0.0
      %193 = vmatprep.subr.mxu0 0.0
      %194 = vmatpush1.msra.mxu0 0.0
      %195 = vmatprep.subr.mxu0 0.0
      %196 = vmatpush1.msra.mxu0 0.0
      %197 = vmatprep.subr.mxu0 0.0
      %198 = vmatpush1.msra.mxu0 0.0
      %199 = vmatprep.subr.mxu0 %v154
      %200 = vmatpush1.msra.mxu0 %v153
      %201 = vmatprep.subr.mxu0 %v149
      %202 = vmatpush1.msra.mxu0 %v148
      %203 = vmatprep.subr.mxu0 0.0
      %204 = vmatpush2.msra.mxu0 0.0
      %205 = vmatprep.subr.mxu0 0.0
      %206 = vmatpush2.msra.mxu0 0.0
      %207 = vmatprep.subr.mxu0 0.0
      %208 = vmatpush2.msra.mxu0 0.0
      %209 = vmatprep.subr.mxu0 0.0
      %210 = vmatpush2.msra.mxu0 0.0
      %211 = vmatprep.subr.mxu0 0.0
      %212 = vmatpush2.msra.mxu0 0.0
      %213 = vmatprep.subr.mxu0 0.0
      %214 = vmatpush2.msra.mxu0 0.0
      %215 = vmatprep.subr.mxu0 0.0
      %216 = vmatpush2.msra.mxu0 0.0
      %217 = vmatprep.subr.mxu0 0.0
      %218 = vmatpush2.msra.mxu0 0.0
      %219 = vmatprep.subr.mxu0 0.0
      %220 = vmatpush2.msra.mxu0 0.0
      %221 = vmatprep.subr.mxu0 0.0
      %222 = vmatpush2.msra.mxu0 0.0
      %223 = vmatprep.subr.mxu0 0.0
      %224 = vmatpush2.msra.mxu0 0.0
      %225 = vmatprep.subr.mxu0 0.0
      %226 = vmatpush2.msra.mxu0 0.0
      %227 = vmatprep.subr.mxu0 0.0
      %228 = vmatpush2.msra.mxu0 0.0
      %229 = vmatprep.subr.mxu0 0.0
      %230 = vmatpush2.msra.mxu0 0.0
      %231 = vmatprep.subr.mxu0 0.0
      %232 = vmatpush2.msra.mxu0 0.0
      %233 = vmatprep.subr.mxu0 0.0
      %234 = vmatpush2.msra.mxu0 0.0
      %235 = vmatprep.mubr.f32.mxu0 0.0
      %236 = vmatmul.mubr.f32.gmra.mxu0 %v160
      %v237 = vpop.f32.mrf.mxu0
      %v238 = vadd.f32 0.0, %v237
      %v239 = vpop.f32.mrf.mxu0
      %v240 = vadd.f32 0.0, %v239
      %241 = vmatprep.mubr.f32.mxu0 0.0
      %242 = vmatmul.mubr.f32.gmra.mxu0 %v163
      %v243 = vpop.f32.mrf.mxu0
      %v244 = vadd.f32 0.0, %v243
      %v245 = vpop.f32.mrf.mxu0
      %v246 = vadd.f32 0.0, %v245
      %247 = vmatprep.mubr.f32.mxu0 0.0
      %248 = vmatmul.mubr.f32.gmra.mxu0 %v166
      %v249 = vpop.f32.mrf.mxu0
      %v250 = vadd.f32 0.0, %v249
      %v251 = vpop.f32.mrf.mxu0
      %v252 = vadd.f32 0.0, %v251
      %253 = vmatprep.mubr.f32.mxu0 0.0
      %254 = vmatmul.mubr.f32.gmra.mxu0 %v169
      %v255 = vpop.f32.mrf.mxu0
      %v256 = vadd.f32 0.0, %v255
      %v257 = vpop.f32.mrf.mxu0
      %v258 = vadd.f32 0.0, %v257
      %259 = vdwg.mxu0
      %260 = vmatprep.subr.mxu0 0.0
      %261 = vmatpush1.msra.mxu0 0.0
      %262 = vmatprep.subr.mxu0 0.0
      %263 = vmatpush1.msra.mxu0 0.0
      %264 = vmatprep.subr.mxu0 0.0
      %265 = vmatpush1.msra.mxu0 0.0
      %266 = vmatprep.subr.mxu0 0.0
      %267 = vmatpush1.msra.mxu0 0.0
      %268 = vmatprep.subr.mxu0 0.0
      %269 = vmatpush1.msra.mxu0 0.0
      %270 = vmatprep.subr.mxu0 0.0
      %271 = vmatpush1.msra.mxu0 0.0
      %272 = vmatprep.subr.mxu0 0.0
      %273 = vmatpush1.msra.mxu0 0.0
      %274 = vmatprep.subr.mxu0 0.0
      %275 = vmatpush1.msra.mxu0 0.0
      %276 = vmatprep.subr.mxu0 0.0
      %277 = vmatpush1.msra.mxu0 0.0
      %278 = vmatprep.subr.mxu0 0.0
      %279 = vmatpush1.msra.mxu0 0.0
      %280 = vmatprep.subr.mxu0 0.0
      %281 = vmatpush1.msra.mxu0 0.0
      %282 = vmatprep.subr.mxu0 0.0
      %283 = vmatpush1.msra.mxu0 0.0
      %284 = vmatprep.subr.mxu0 0.0
      %285 = vmatpush1.msra.mxu0 0.0
      %286 = vmatprep.subr.mxu0 0.0
      %287 = vmatpush1.msra.mxu0 0.0
      %288 = vmatprep.subr.mxu0 %v156
      %289 = vmatpush1.msra.mxu0 %v155
      %290 = vmatprep.subr.mxu0 %v151
      %291 = vmatpush1.msra.mxu0 %v150
      %292 = vmatprep.subr.mxu0 0.0
      %293 = vmatpush2.msra.mxu0 0.0
      %294 = vmatprep.subr.mxu0 0.0
      %295 = vmatpush2.msra.mxu0 0.0
      %296 = vmatprep.subr.mxu0 0.0
      %297 = vmatpush2.msra.mxu0 0.0
      %298 = vmatprep.subr.mxu0 0.0
      %299 = vmatpush2.msra.mxu0 0.0
      %300 = vmatprep.subr.mxu0 0.0
      %301 = vmatpush2.msra.mxu0 0.0
      %302 = vmatprep.subr.mxu0 0.0
      %303 = vmatpush2.msra.mxu0 0.0
      %304 = vmatprep.subr.mxu0 0.0
      %305 = vmatpush2.msra.mxu0 0.0
      %306 = vmatprep.subr.mxu0 0.0
      %307 = vmatpush2.msra.mxu0 0.0
      %308 = vmatprep.subr.mxu0 0.0
      %309 = vmatpush2.msra.mxu0 0.0
      %310 = vmatprep.subr.mxu0 0.0
      %311 = vmatpush2.msra.mxu0 0.0
      %312 = vmatprep.subr.mxu0 0.0
      %313 = vmatpush2.msra.mxu0 0.0
      %314 = vmatprep.subr.mxu0 0.0
      %315 = vmatpush2.msra.mxu0 0.0
      %316 = vmatprep.subr.mxu0 0.0
      %317 = vmatpush2.msra.mxu0 0.0
      %318 = vmatprep.subr.mxu0 0.0
      %319 = vmatpush2.msra.mxu0 0.0
      %320 = vmatprep.subr.mxu0 0.0
      %321 = vmatpush2.msra.mxu0 0.0
      %322 = vmatprep.subr.mxu0 0.0
      %323 = vmatpush2.msra.mxu0 0.0
      %324 = vmatprep.mubr.f32.mxu0 0.0
      %325 = vmatmul.mubr.f32.gmra.mxu0 %v160
      %v326 = vpop.f32.mrf.mxu0
      %v327 = vadd.f32 0.0, %v326
      %v328 = vpop.f32.mrf.mxu0
      %v329 = vadd.f32 0.0, %v328
      %330 = vmatprep.mubr.f32.mxu0 0.0
      %331 = vmatmul.mubr.f32.gmra.mxu0 %v163
      %v332 = vpop.f32.mrf.mxu0
      %v333 = vadd.f32 0.0, %v332
      %v334 = vpop.f32.mrf.mxu0
      %v335 = vadd.f32 0.0, %v334
      %336 = vmatprep.mubr.f32.mxu0 0.0
      %337 = vmatmul.mubr.f32.gmra.mxu0 %v166
      %v338 = vpop.f32.mrf.mxu0
      %v339 = vadd.f32 0.0, %v338
      %v340 = vpop.f32.mrf.mxu0
      %v341 = vadd.f32 0.0, %v340
      %342 = vmatprep.mubr.f32.mxu0 0.0
      %343 = vmatmul.mubr.f32.gmra.mxu0 %v169
      %v344 = vpop.f32.mrf.mxu0
      %v345 = vadd.f32 0.0, %v344
      %v346 = vpop.f32.mrf.mxu0
      %v347 = vadd.f32 0.0, %v346
      %348 = vdwg.mxu0
      %349 = vmatprep.subr.mxu0 0.0
      %350 = vmatpush1.msra.mxu0 0.0
      %351 = vmatprep.subr.mxu0 0.0
      %352 = vmatpush1.msra.mxu0 0.0
      %353 = vmatprep.subr.mxu0 0.0
      %354 = vmatpush1.msra.mxu0 0.0
      %355 = vmatprep.subr.mxu0 0.0
      %356 = vmatpush1.msra.mxu0 0.0
      %357 = vmatprep.subr.mxu0 0.0
      %358 = vmatpush1.msra.mxu0 0.0
      %359 = vmatprep.subr.mxu0 0.0
      %360 = vmatpush1.msra.mxu0 0.0
      %361 = vmatprep.subr.mxu0 0.0
      %362 = vmatpush1.msra.mxu0 0.0
      %363 = vmatprep.subr.mxu0 0.0
      %364 = vmatpush1.msra.mxu0 0.0
      %365 = vmatprep.subr.mxu0 0.0
      %366 = vmatpush1.msra.mxu0 0.0
      %367 = vmatprep.subr.mxu0 0.0
      %368 = vmatpush1.msra.mxu0 0.0
      %369 = vmatprep.subr.mxu0 0.0
      %370 = vmatpush1.msra.mxu0 0.0
      %371 = vmatprep.subr.mxu0 0.0
      %372 = vmatpush1.msra.mxu0 0.0
      %373 = vmatprep.subr.mxu0 0.0
      %374 = vmatpush1.msra.mxu0 0.0
      %375 = vmatprep.subr.mxu0 0.0
      %376 = vmatpush1.msra.mxu0 0.0
      %377 = vmatprep.subr.mxu0 0.0
      %378 = vmatpush1.msra.mxu0 %v157
      %379 = vmatprep.subr.mxu0 0.0
      %380 = vmatpush1.msra.mxu0 %v152
      %381 = vmatprep.subr.mxu0 0.0
      %382 = vmatpush2.msra.mxu0 0.0
      %383 = vmatprep.subr.mxu0 0.0
      %384 = vmatpush2.msra.mxu0 0.0
      %385 = vmatprep.subr.mxu0 0.0
      %386 = vmatpush2.msra.mxu0 0.0
      %387 = vmatprep.subr.mxu0 0.0
      %388 = vmatpush2.msra.mxu0 0.0
      %389 = vmatprep.subr.mxu0 0.0
      %390 = vmatpush2.msra.mxu0 0.0
      %391 = vmatprep.subr.mxu0 0.0
      %392 = vmatpush2.msra.mxu0 0.0
      %393 = vmatprep.subr.mxu0 0.0
      %394 = vmatpush2.msra.mxu0 0.0
      %395 = vmatprep.subr.mxu0 0.0
      %396 = vmatpush2.msra.mxu0 0.0
      %397 = vmatprep.subr.mxu0 0.0
      %398 = vmatpush2.msra.mxu0 0.0
      %399 = vmatprep.subr.mxu0 0.0
      %400 = vmatpush2.msra.mxu0 0.0
      %401 = vmatprep.subr.mxu0 0.0
      %402 = vmatpush2.msra.mxu0 0.0
      %403 = vmatprep.subr.mxu0 0.0
      %404 = vmatpush2.msra.mxu0 0.0
      %405 = vmatprep.subr.mxu0 0.0
      %406 = vmatpush2.msra.mxu0 0.0
      %407 = vmatprep.subr.mxu0 0.0
      %408 = vmatpush2.msra.mxu0 0.0
      %409 = vmatprep.subr.mxu0 0.0
      %410 = vmatpush2.msra.mxu0 0.0
      %411 = vmatprep.subr.mxu0 0.0
      %412 = vmatpush2.msra.mxu0 0.0
      %413 = vmatprep.mubr.f32.mxu0 0.0
      %414 = vmatmul.mubr.f32.gmra.mxu0 %v160
      %v415 = vpop.f32.mrf.mxu0
      %v416 = vadd.f32 0.0, %v415
      %v417 = vpop.f32.mrf.mxu0
      %418 = vmatprep.mubr.f32.mxu0 0.0
      %419 = vmatmul.mubr.f32.gmra.mxu0 %v163
      %v420 = vpop.f32.mrf.mxu0
      %v421 = vadd.f32 0.0, %v420
      %v422 = vpop.f32.mrf.mxu0
      %423 = vmatprep.mubr.f32.mxu0 0.0
      %424 = vmatmul.mubr.f32.gmra.mxu0 %v166
      %v425 = vpop.f32.mrf.mxu0
      %v426 = vadd.f32 0.0, %v425
      %v427 = vpop.f32.mrf.mxu0
      %428 = vmatprep.mubr.f32.mxu0 0.0
      %429 = vmatmul.mubr.f32.gmra.mxu0 %v169
      %v430 = vpop.f32.mrf.mxu0
      %v431 = vadd.f32 0.0, %v430
      %v432 = vpop.f32.mrf.mxu0
      %433 = vdwg.mxu0
      %434 = vst [vmem:[%s143] sm:$0xff] %v238
      %435 = vst [vmem:[%s143 + $0x8] sm:$0xff] %v240
      %436 = vst [vmem:[%s143 + $0x10] sm:$0xff] %v327
      %437 = vst [vmem:[%s143 + $0x18] sm:$0xff] %v329
      %vm438 = vcmask 523264
      %439 = vst.msk [vmem:[%s143 + $0x20] sm:$0xff] %vm438, %v416
      %440 = vst [vmem:[%s143 + $0x28] sm:$0xff] %v244
      %441 = vst [vmem:[%s143 + $0x30] sm:$0xff] %v246
      %442 = vst [vmem:[%s143 + $0x38] sm:$0xff] %v333
      %443 = vst [vmem:[%s143 + $0x40] sm:$0xff] %v335
      %444 = vst.msk [vmem:[%s143 + $0x48] sm:$0xff] %vm438, %v421
      %445 = vst [vmem:[%s143 + $0x50] sm:$0xff] %v250
      %446 = vst [vmem:[%s143 + $0x58] sm:$0xff] %v252
      %447 = vst [vmem:[%s143 + $0x60] sm:$0xff] %v339
      %448 = vst [vmem:[%s143 + $0x68] sm:$0xff] %v341
      %449 = vst.msk [vmem:[%s143 + $0x70] sm:$0xff] %vm438, %v426
      %450 = vst [vmem:[%s143 + $0x78] sm:$0xff] %v256
      %451 = vst [vmem:[%s143 + $0x80] sm:$0xff] %v258
      %452 = vst [vmem:[%s143 + $0x88] sm:$0xff] %v345
      %453 = vst [vmem:[%s143 + $0x90] sm:$0xff] %v347
      %454 = vst.msk [vmem:[%s143 + $0x98] sm:$0xff] %vm438, %v431
      %p455 = scmp.lt.s32.totalorder %s13, 1
      %s456 = scalar_select %p455, %s13, 1
      %s457 = smul.addr %s456, 20
      %s458 = smul.addr %s457, 8
      %s459 = scalar_lea.vmem %s2, %s458
      // Predicated region
      $region29: #{neck_forward.24} parent=27 // pred_check
        %p460 = pneg %p78
      $region30: #{neck_forward.24} parent=27 // pred_check_branch
        %462 = sbr.rel (%p460) target = $region32
      $region31: #{neck_forward.24} parent=27 // pred_region
        _
      $region32: #{neck_forward.24} parent=27 // pred_fallthru
        _
    $region28: #{neck_forward.24} parent=5 // pred_fallthru
      _
    %p463 = scmp.le.s32.totalorder 2, %s8
    // Predicated region
    $region33: #{neck_forward.24} parent=5 // pred_check
      %p464 = pneg %p463
    $region34: #{neck_forward.24} parent=5 // pred_check_branch
      %466 = sbr.rel (%p464) target = $region36
    $region35: #{neck_forward.24} parent=5 // pred_region
      %s467 = ssub.s32 %s8, 2
      // Predicated region
      $region37: #{neck_forward.24} parent=35 // pred_check
        %p468 = pneg %p84
      $region38: #{neck_forward.24} parent=35 // pred_check_branch
        %470 = sbr.rel (%p468) target = $region40
      $region39: #{neck_forward.24} parent=35 // pred_region
        %p471 = scmp.lt.s32.totalorder %s14, 1
        %s472 = scalar_select %p471, %s14, 1
        %s473 = smul.addr %s472, 20
        %s474 = smul.addr %s473, 8
        %s475 = scalar_lea.vmem %s2, %s474
      $region40: #{neck_forward.24} parent=35 // pred_fallthru
        _
    $region36: #{neck_forward.24} parent=5 // pred_fallthru
      _
  $region6: #{neck_forward.24} parent=0 // loop_footer
    %s12 = sadd.s32 1, %s8
  $region7: #{neck_forward.24} parent=0 // loop_footer_branch
    %7 = sbr.rel target = $region3
  $region8: #{neck_forward.24} parent=0 // loop_exit
    _

// kernel: neck_forward.23
$region0: #{neck_forward.23}
  #allocation0 [shape = 'u32[]', space=smem, size = 0x4, offset = 0x4, fixed_abs, tag = 'smem constant byte address 0x4 - core index']
  #allocation1 [shape = 'u32[144,128]{1,0:T(1,128)}', space=vmem, size = 0x12000, scoped, tag = 'internal scratch']
  #allocation2 [shape = 'f32[128,128]{1,0:T(8,128)}', space=vmem, size = 0x10000, scoped, tag = 'scratch operand']
  %s0 = inlined_call_operand.vmem [shape: bf16[128,128], index: 0, kind: input, shape index: {}]
  %s1 = inlined_call_operand.vmem [shape: bf16[128,128], index: 1, kind: input, shape index: {}]
  %s2 = inlined_call_operand.vmem [shape: f32[1,128], index: 2, kind: input, shape index: {}]
  %s3 = inlined_call_operand.vmem [shape: bf16[128,128], index: 3, kind: input, shape index: {}]
  %s4 = inlined_call_operand.vmem [shape: f32[1,128], index: 4, kind: input, shape index: {}]
  %s5 = inlined_call_operand.vmem [shape: bf16[128,128], index: 5, kind: input, shape index: {}]
  %s6 = inlined_call_operand.vmem [shape: f32[128,128], index: 6, kind: output, shape index: {}]
  %s7 = sld [smem:[#allocation0]]
  $region42: #{neck_forward.23} parent=0
    _
  %s9 = ssub.s32 1, %s7
  %s10 = scalar_select 0, %s9, %s7
  // Predicated region
  $region2: #{neck_forward.23} parent=0 // pred_check
    _
  $region3: #{neck_forward.23} parent=0 // pred_check_branch
    %12 = sbr.rel (0) target = $region5
  $region4: #{neck_forward.23} parent=0 // pred_region
    _
  $region5: #{neck_forward.23} parent=0 // pred_fallthru
    _
  // Predicated region
  $region6: #{neck_forward.23} parent=0 // pred_check
    _
  $region7: #{neck_forward.23} parent=0 // pred_check_branch
    %14 = sbr.rel (0) target = $region9
  $region8: #{neck_forward.23} parent=0 // pred_region
    _
  $region9: #{neck_forward.23} parent=0 // pred_fallthru
    _
  // Predicated region
  $region10: #{neck_forward.23} parent=0 // pred_check
    _
  $region11: #{neck_forward.23} parent=0 // pred_check_branch
    %16 = sbr.rel (0) target = $region13
  $region12: #{neck_forward.23} parent=0 // pred_region
    _
  $region13: #{neck_forward.23} parent=0 // pred_fallthru
    _
  // Predicated region
  $region14: #{neck_forward.23} parent=0 // pred_check
    _
  $region15: #{neck_forward.23} parent=0 // pred_check_branch
    %18 = sbr.rel (0) target = $region17
  $region16: #{neck_forward.23} parent=0 // pred_region
    _
  $region17: #{neck_forward.23} parent=0 // pred_fallthru
    _
  // Predicated region
  $region18: #{neck_forward.23} parent=0 // pred_check
    _
  $region19: #{neck_forward.23} parent=0 // pred_check_branch
    %20 = sbr.rel (0) target = $region21
  $region20: #{neck_forward.23} parent=0 // pred_region
    _
  $region21: #{neck_forward.23} parent=0 // pred_fallthru
    _
  // Predicated region
  $region22: #{neck_forward.23} parent=0 // pred_check
    _
  $region23: #{neck_forward.23} parent=0 // pred_check_branch
    %22 = sbr.rel (0) target = $region25
  $region24: #{neck_forward.23} parent=0 // pred_region
    _
  $region25: #{neck_forward.23} parent=0 // pred_fallthru
    _
  %p24 = scmp.eq.s32.totalorder 0, 0
  // Predicated region
  $region26: #{neck_forward.23} parent=0 // pred_check
    %p25 = pneg %p24
  $region27: #{neck_forward.23} parent=0 // pred_check_branch
    %27 = sbr.rel (%p25) target = $region29
  $region28: #{neck_forward.23} parent=0 // pred_region
    %28 = vst [vmem:[#allocation2] sm:$0xff] 0.0
    %29 = vst [vmem:[#allocation2 + $0x8] sm:$0xff] 0.0
    %30 = vst [vmem:[#allocation2 + $0x10] sm:$0xff] 0.0
    %31 = vst [vmem:[#allocation2 + $0x18] sm:$0xff] 0.0
    %32 = vst [vmem:[#allocation2 + $0x20] sm:$0xff] 0.0
    %33 = vst [vmem:[#allocation2 + $0x28] sm:$0xff] 0.0
    %34 = vst [vmem:[#allocation2 + $0x30] sm:$0xff] 0.0
    %35 = vst [vmem:[#allocation2 + $0x38] sm:$0xff] 0.0
    %36 = vst [vmem:[#allocation2 + $0x40] sm:$0xff] 0.0
    %37 = vst [vmem:[#allocation2 + $0x48] sm:$0xff] 0.0
    %38 = vst [vmem:[#allocation2 + $0x50] sm:$0xff] 0.0
    %39 = vst [vmem:[#allocation2 + $0x58] sm:$0xff] 0.0
    %40 = vst [vmem:[#allocation2 + $0x60] sm:$0xff] 0.0
    %41 = vst [vmem:[#allocation2 + $0x68] sm:$0xff] 0.0
    %42 = vst [vmem:[#allocation2 + $0x70] sm:$0xff] 0.0
    %43 = vst [vmem:[#allocation2 + $0x78] sm:$0xff] 0.0
  $region29: #{neck_forward.23} parent=0 // pred_fallthru
    _
  %v44 = vld [vmem:[#allocation2] sm:$0xff]
  %v45 = vld [vmem:[#allocation2 + $0x8] sm:$0xff]
  %v46 = vld [vmem:[#allocation2 + $0x10] sm:$0xff]
  %v47 = vld [vmem:[#allocation2 + $0x18] sm:$0xff]
  %v48 = vld [vmem:[#allocation2 + $0x20] sm:$0xff]
  %v49 = vld [vmem:[#allocation2 + $0x28] sm:$0xff]
  %v50 = vld [vmem:[#allocation2 + $0x30] sm:$0xff]
  %v51 = vld [vmem:[#allocation2 + $0x38] sm:$0xff]
  %v52 = vld [vmem:[#allocation2 + $0x40] sm:$0xff]
  %v53 = vld [vmem:[#allocation2 + $0x48] sm:$0xff]
  %v54 = vld [vmem:[#allocation2 + $0x50] sm:$0xff]
  %v55 = vld [vmem:[#allocation2 + $0x58] sm:$0xff]
  %v56 = vld [vmem:[#allocation2 + $0x60] sm:$0xff]
  %v57 = vld [vmem:[#allocation2 + $0x68] sm:$0xff]
  %v58 = vld [vmem:[#allocation2 + $0x70] sm:$0xff]
  %v59 = vld [vmem:[#allocation2 + $0x78] sm:$0xff]
  %v60 = vld [vmem:[%s0] sm:$0xf]
  %v61 = vld [vmem:[%s0 + $0x4] sm:$0xf]
  %v62 = vld [vmem:[%s0 + $0x8] sm:$0xf]
  %v63 = vld [vmem:[%s0 + $0xc] sm:$0xf]
  %v64 = vld [vmem:[%s0 + $0x10] sm:$0xf]
  %v65 = vld [vmem:[%s0 + $0x14] sm:$0xf]
  %v66 = vld [vmem:[%s0 + $0x18] sm:$0xf]
  %v67 = vld [vmem:[%s0 + $0x1c] sm:$0xf]
  %v68 = vld [vmem:[%s0 + $0x20] sm:$0xf]
  %v69 = vld [vmem:[%s0 + $0x24] sm:$0xf]
  %v70 = vld [vmem:[%s0 + $0x28] sm:$0xf]
  %v71 = vld [vmem:[%s0 + $0x2c] sm:$0xf]
  %v72 = vld [vmem:[%s0 + $0x30] sm:$0xf]
  %v73 = vld [vmem:[%s0 + $0x34] sm:$0xf]
  %v74 = vld [vmem:[%s0 + $0x38] sm:$0xf]
  %v75 = vld [vmem:[%s0 + $0x3c] sm:$0xf]
  %v76 = vld [vmem:[%s1] sm:$0xf]
  %v77 = vld [vmem:[%s1 + $0x4] sm:$0xf]
  %v78 = vld [vmem:[%s1 + $0x8] sm:$0xf]
  %v79 = vld [vmem:[%s1 + $0xc] sm:$0xf]
  %v80 = vld [vmem:[%s1 + $0x10] sm:$0xf]
  %v81 = vld [vmem:[%s1 + $0x14] sm:$0xf]
  %v82 = vld [vmem:[%s1 + $0x18] sm:$0xf]
  %v83 = vld [vmem:[%s1 + $0x1c] sm:$0xf]
  %v84 = vld [vmem:[%s1 + $0x20] sm:$0xf]
  %v85 = vld [vmem:[%s1 + $0x24] sm:$0xf]
  %v86 = vld [vmem:[%s1 + $0x28] sm:$0xf]
  %v87 = vld [vmem:[%s1 + $0x2c] sm:$0xf]
  %v88 = vld [vmem:[%s1 + $0x30] sm:$0xf]
  %v89 = vld [vmem:[%s1 + $0x34] sm:$0xf]
  %v90 = vld [vmem:[%s1 + $0x38] sm:$0xf]
  %v91 = vld [vmem:[%s1 + $0x3c] sm:$0xf]
  %v108 = vunpack.c.l.b16 %v60
  %v109 = vunpack.c.l.b16 %v61
  %v110 = vunpack.c.l.b16 %v62
  %v111 = vunpack.c.l.b16 %v63
  %v112 = vunpack.c.l.b16 %v64
  %v113 = vunpack.c.l.b16 %v65
  %v114 = vunpack.c.l.b16 %v66
  %v115 = vunpack.c.l.b16 %v67
  %v116 = vunpack.c.l.b16 %v68
  %v117 = vunpack.c.l.b16 %v69
  %v118 = vunpack.c.l.b16 %v70
  %v119 = vunpack.c.l.b16 %v71
  %v120 = vunpack.c.l.b16 %v72
  %v121 = vunpack.c.l.b16 %v73
  %v122 = vunpack.c.l.b16 %v74
  %v123 = vunpack.c.l.b16 %v75
  %v124 = vpack.c.b16 %v109, %v108
  %v125 = vpack.c.b16 %v111, %v110
  %v126 = vpack.c.b16 %v113, %v112
  %v127 = vpack.c.b16 %v115, %v114
  %v128 = vpack.c.b16 %v117, %v116
  %v129 = vpack.c.b16 %v119, %v118
  %v130 = vpack.c.b16 %v121, %v120
  %v131 = vpack.c.b16 %v123, %v122
  %v156 = vunpack.c.l.b16 %v76
  %v157 = vunpack.c.l.b16 %v77
  %v158 = vunpack.c.l.b16 %v78
  %v159 = vunpack.c.l.b16 %v79
  %v160 = vunpack.c.l.b16 %v80
  %v161 = vunpack.c.l.b16 %v81
  %v162 = vunpack.c.l.b16 %v82
  %v163 = vunpack.c.l.b16 %v83
  %v164 = vunpack.c.l.b16 %v84
  %v165 = vunpack.c.l.b16 %v85
  %v166 = vunpack.c.l.b16 %v86
  %v167 = vunpack.c.l.b16 %v87
  %v168 = vunpack.c.l.b16 %v88
  %v169 = vunpack.c.l.b16 %v89
  %v170 = vunpack.c.l.b16 %v90
  %v171 = vunpack.c.l.b16 %v91
  %v172 = vpack.c.b16 %v157, %v156
  %v173 = vpack.c.b16 %v159, %v158
  %v174 = vpack.c.b16 %v161, %v160
  %v175 = vpack.c.b16 %v163, %v162
  %v176 = vpack.c.b16 %v165, %v164
  %v177 = vpack.c.b16 %v167, %v166
  %v178 = vpack.c.b16 %v169, %v168
  %v179 = vpack.c.b16 %v171, %v170
  %188 = vmatprep.subr.bf16.mxu0 0
  %189 = vmatpush1.bf16.msra.mxu0 %v179
  %190 = vmatprep.subr.bf16.mxu0 0
  %191 = vmatpush1.bf16.msra.mxu0 %v178
  %192 = vmatprep.subr.bf16.mxu0 0
  %193 = vmatpush1.bf16.msra.mxu0 %v177
  %194 = vmatprep.subr.bf16.mxu0 0
  %195 = vmatpush1.bf16.msra.mxu0 %v176
  %196 = vmatprep.subr.bf16.mxu0 0
  %197 = vmatpush1.bf16.msra.mxu0 %v175
  %198 = vmatprep.subr.bf16.mxu0 0
  %199 = vmatpush1.bf16.msra.mxu0 %v174
  %200 = vmatprep.subr.bf16.mxu0 0
  %201 = vmatpush1.bf16.msra.mxu0 %v173
  %202 = vmatprep.subr.bf16.mxu0 0
  %203 = vmatpush1.bf16.msra.mxu0 %v172
  %204 = vmatprep.subr.bf16.mxu0 0
  %205 = vmatpush2.bf16.msra.mxu0 0
  %206 = vmatprep.subr.bf16.mxu0 0
  %207 = vmatpush2.bf16.msra.mxu0 0
  %208 = vmatprep.subr.bf16.mxu0 0
  %209 = vmatpush2.bf16.msra.mxu0 0
  %210 = vmatprep.subr.bf16.mxu0 0
  %211 = vmatpush2.bf16.msra.mxu0 0
  %212 = vmatprep.subr.bf16.mxu0 0
  %213 = vmatpush2.bf16.msra.mxu0 0
  %214 = vmatprep.subr.bf16.mxu0 0
  %215 = vmatpush2.bf16.msra.mxu0 0
  %216 = vmatprep.subr.bf16.mxu0 0
  %217 = vmatpush2.bf16.msra.mxu0 0
  %218 = vmatprep.subr.bf16.mxu0 0
  %219 = vmatpush2.bf16.msra.mxu0 0
  %220 = vmatprep.mubr.bf16.mxu0 0
  %221 = vmatmul.mubr.bf16.gmra.mxu0 %v124
  %v222 = vpop.f32.mrf.mxu0
  %v223 = vadd.f32 0.0, %v222
  %v224 = vpop.f32.mrf.mxu0
  %v225 = vpop.f32.mrf.mxu0
  %v226 = vadd.f32 0.0, %v225
  %v227 = vpop.f32.mrf.mxu0
  %228 = vmatprep.mubr.bf16.mxu0 0
  %229 = vmatmul.mubr.bf16.gmra.mxu0 %v125
  %v230 = vpop.f32.mrf.mxu0
  %v231 = vadd.f32 0.0, %v230
  %v232 = vpop.f32.mrf.mxu0
  %v233 = vpop.f32.mrf.mxu0
  %v234 = vadd.f32 0.0, %v233
  %v235 = vpop.f32.mrf.mxu0
  %236 = vmatprep.mubr.bf16.mxu0 0
  %237 = vmatmul.mubr.bf16.gmra.mxu0 %v126
  %v238 = vpop.f32.mrf.mxu0
  %v239 = vadd.f32 0.0, %v238
  %v240 = vpop.f32.mrf.mxu0
  %v241 = vpop.f32.mrf.mxu0
  %v242 = vadd.f32 0.0, %v241
  %v243 = vpop.f32.mrf.mxu0
  %244 = vmatprep.mubr.bf16.mxu0 0
  %245 = vmatmul.mubr.bf16.gmra.mxu0 %v127
  %v246 = vpop.f32.mrf.mxu0
  %v247 = vadd.f32 0.0, %v246
  %v248 = vpop.f32.mrf.mxu0
  %v249 = vpop.f32.mrf.mxu0
  %v250 = vadd.f32 0.0, %v249
  %v251 = vpop.f32.mrf.mxu0
  %252 = vmatprep.mubr.bf16.mxu0 0
  %253 = vmatmul.mubr.bf16.gmra.mxu0 %v128
  %v254 = vpop.f32.mrf.mxu0
  %v255 = vadd.f32 0.0, %v254
  %v256 = vpop.f32.mrf.mxu0
  %v257 = vpop.f32.mrf.mxu0
  %v258 = vadd.f32 0.0, %v257
  %v259 = vpop.f32.mrf.mxu0
  %260 = vmatprep.mubr.bf16.mxu0 0
  %261 = vmatmul.mubr.bf16.gmra.mxu0 %v129
  %v262 = vpop.f32.mrf.mxu0
  %v263 = vadd.f32 0.0, %v262
  %v264 = vpop.f32.mrf.mxu0
  %v265 = vpop.f32.mrf.mxu0
  %v266 = vadd.f32 0.0, %v265
  %v267 = vpop.f32.mrf.mxu0
  %268 = vmatprep.mubr.bf16.mxu0 0
  %269 = vmatmul.mubr.bf16.gmra.mxu0 %v130
  %v270 = vpop.f32.mrf.mxu0
  %v271 = vadd.f32 0.0, %v270
  %v272 = vpop.f32.mrf.mxu0
  %v273 = vpop.f32.mrf.mxu0
  %v274 = vadd.f32 0.0, %v273
  %v275 = vpop.f32.mrf.mxu0
  %276 = vmatprep.mubr.bf16.mxu0 0
  %277 = vmatmul.mubr.bf16.gmra.mxu0 %v131
  %v278 = vpop.f32.mrf.mxu0
  %v279 = vadd.f32 0.0, %v278
  %v280 = vpop.f32.mrf.mxu0
  %v281 = vpop.f32.mrf.mxu0
  %v282 = vadd.f32 0.0, %v281
  %v283 = vpop.f32.mrf.mxu0
  %284 = vdwg.mxu0
  %v285 = vadd.f32 %v44, %v223
  %v286 = vadd.f32 %v45, %v226
  %v287 = vadd.f32 %v46, %v231
  %v288 = vadd.f32 %v47, %v234
  %v289 = vadd.f32 %v48, %v239
  %v290 = vadd.f32 %v49, %v242
  %v291 = vadd.f32 %v50, %v247
  %v292 = vadd.f32 %v51, %v250
  %v293 = vadd.f32 %v52, %v255
  %v294 = vadd.f32 %v53, %v258
  %v295 = vadd.f32 %v54, %v263
  %v296 = vadd.f32 %v55, %v266
  %v297 = vadd.f32 %v56, %v271
  %v298 = vadd.f32 %v57, %v274
  %v299 = vadd.f32 %v58, %v279
  %v300 = vadd.f32 %v59, %v282
  %301 = vst [vmem:[#allocation2] sm:$0xff] %v285
  %302 = vst [vmem:[#allocation2 + $0x8] sm:$0xff] %v286
  %303 = vst [vmem:[#allocation2 + $0x10] sm:$0xff] %v287
  %304 = vst [vmem:[#allocation2 + $0x18] sm:$0xff] %v288
  %305 = vst [vmem:[#allocation2 + $0x20] sm:$0xff] %v289
  %306 = vst [vmem:[#allocation2 + $0x28] sm:$0xff] %v290
  %307 = vst [vmem:[#allocation2 + $0x30] sm:$0xff] %v291
  %308 = vst [vmem:[#allocation2 + $0x38] sm:$0xff] %v292
  %309 = vst [vmem:[#allocation2 + $0x40] sm:$0xff] %v293
  %310 = vst [vmem:[#allocation2 + $0x48] sm:$0xff] %v294
  %311 = vst [vmem:[#allocation2 + $0x50] sm:$0xff] %v295
  %312 = vst [vmem:[#allocation2 + $0x58] sm:$0xff] %v296
  %313 = vst [vmem:[#allocation2 + $0x60] sm:$0xff] %v297
  %314 = vst [vmem:[#allocation2 + $0x68] sm:$0xff] %v298
  %315 = vst [vmem:[#allocation2 + $0x70] sm:$0xff] %v299
  %316 = vst [vmem:[#allocation2 + $0x78] sm:$0xff] %v300
  // Predicated region
  $region30: #{neck_forward.23} parent=0 // pred_check
    %p317 = pneg %p24
  $region31: #{neck_forward.23} parent=0 // pred_check_branch
    %319 = sbr.rel (%p317) target = $region33
  $region32: #{neck_forward.23} parent=0 // pred_region
    %v320 = vld [vmem:[#allocation2] sm:$0xff]
    %v321 = vld [vmem:[#allocation2 + $0x8] sm:$0xff]
    %v322 = vld [vmem:[#allocation2 + $0x10] sm:$0xff]
    %v323 = vld [vmem:[#allocation2 + $0x18] sm:$0xff]
    %v324 = vld [vmem:[#allocation2 + $0x20] sm:$0xff]
    %v325 = vld [vmem:[#allocation2 + $0x28] sm:$0xff]
    %v326 = vld [vmem:[#allocation2 + $0x30] sm:$0xff]
    %v327 = vld [vmem:[#allocation2 + $0x38] sm:$0xff]
    %v328 = vld [vmem:[#allocation2 + $0x40] sm:$0xff]
    %v329 = vld [vmem:[#allocation2 + $0x48] sm:$0xff]
    %v330 = vld [vmem:[#allocation2 + $0x50] sm:$0xff]
    %v331 = vld [vmem:[#allocation2 + $0x58] sm:$0xff]
    %v332 = vld [vmem:[#allocation2 + $0x60] sm:$0xff]
    %v333 = vld [vmem:[#allocation2 + $0x68] sm:$0xff]
    %v334 = vld [vmem:[#allocation2 + $0x70] sm:$0xff]
    %v335 = vld [vmem:[#allocation2 + $0x78] sm:$0xff]
    %v336 = vld [vmem:[%s2] sm:$0x1]
    %v338 = vlaneseq
    %v339 = vshrl.u32 %v338, 7
    %v340 = vsub.s32 0, %v339
    %v341 = vrot.slane %v336, %v340
    %v343 = vadd.f32 %v320, %v341
    %v344 = vadd.f32 %v321, %v341
    %v345 = vadd.f32 %v322, %v341
    %v346 = vadd.f32 %v323, %v341
    %v347 = vadd.f32 %v324, %v341
    %v348 = vadd.f32 %v325, %v341
    %v349 = vadd.f32 %v326, %v341
    %v350 = vadd.f32 %v327, %v341
    %v351 = vadd.f32 %v328, %v341
    %v352 = vadd.f32 %v329, %v341
    %v353 = vadd.f32 %v330, %v341
    %v354 = vadd.f32 %v331, %v341
    %v355 = vadd.f32 %v332, %v341
    %v356 = vadd.f32 %v333, %v341
    %v357 = vadd.f32 %v334, %v341
    %v358 = vadd.f32 %v335, %v341
    %v359 = vpack.c.bf16 %v344, %v343
    %v360 = vpack.c.bf16 %v346, %v345
    %v361 = vpack.c.bf16 %v348, %v347
    %v362 = vpack.c.bf16 %v350, %v349
    %v363 = vpack.c.bf16 %v352, %v351
    %v364 = vpack.c.bf16 %v354, %v353
    %v365 = vpack.c.bf16 %v356, %v355
    %v366 = vpack.c.bf16 %v358, %v357
    %v367 = vld [vmem:[%s3] sm:$0xf]
    %v368 = vld [vmem:[%s3 + $0x4] sm:$0xf]
    %v369 = vld [vmem:[%s3 + $0x8] sm:$0xf]
    %v370 = vld [vmem:[%s3 + $0xc] sm:$0xf]
    %v371 = vld [vmem:[%s3 + $0x10] sm:$0xf]
    %v372 = vld [vmem:[%s3 + $0x14] sm:$0xf]
    %v373 = vld [vmem:[%s3 + $0x18] sm:$0xf]
    %v374 = vld [vmem:[%s3 + $0x1c] sm:$0xf]
    %v375 = vld [vmem:[%s3 + $0x20] sm:$0xf]
    %v376 = vld [vmem:[%s3 + $0x24] sm:$0xf]
    %v377 = vld [vmem:[%s3 + $0x28] sm:$0xf]
    %v378 = vld [vmem:[%s3 + $0x2c] sm:$0xf]
    %v379 = vld [vmem:[%s3 + $0x30] sm:$0xf]
    %v380 = vld [vmem:[%s3 + $0x34] sm:$0xf]
    %v381 = vld [vmem:[%s3 + $0x38] sm:$0xf]
    %v382 = vld [vmem:[%s3 + $0x3c] sm:$0xf]
    %v383 = vld [vmem:[%s4] sm:$0x1]
    %v385 = vlaneseq
    %v386 = vshrl.u32 %v385, 7
    %v387 = vsub.s32 0, %v386
    %v388 = vrot.slane %v383, %v387
    %v406 = vunpack.c.l.b16 %v367
    %v407 = vunpack.c.l.b16 %v368
    %v408 = vunpack.c.l.b16 %v369
    %v409 = vunpack.c.l.b16 %v370
    %v410 = vunpack.c.l.b16 %v371
    %v411 = vunpack.c.l.b16 %v372
    %v412 = vunpack.c.l.b16 %v373
    %v413 = vunpack.c.l.b16 %v374
    %v414 = vunpack.c.l.b16 %v375
    %v415 = vunpack.c.l.b16 %v376
    %v416 = vunpack.c.l.b16 %v377
    %v417 = vunpack.c.l.b16 %v378
    %v418 = vunpack.c.l.b16 %v379
    %v419 = vunpack.c.l.b16 %v380
    %v420 = vunpack.c.l.b16 %v381
    %v421 = vunpack.c.l.b16 %v382
    %v422 = vpack.c.b16 %v407, %v406
    %v423 = vpack.c.b16 %v409, %v408
    %v424 = vpack.c.b16 %v411, %v410
    %v425 = vpack.c.b16 %v413, %v412
    %v426 = vpack.c.b16 %v415, %v414
    %v427 = vpack.c.b16 %v417, %v416
    %v428 = vpack.c.b16 %v419, %v418
    %v429 = vpack.c.b16 %v421, %v420
    %438 = vmatprep.subr.bf16.mxu0 0
    %439 = vmatpush1.bf16.msra.mxu0 %v429
    %440 = vmatprep.subr.bf16.mxu0 0
    %441 = vmatpush1.bf16.msra.mxu0 %v428
    %442 = vmatprep.subr.bf16.mxu0 0
    %443 = vmatpush1.bf16.msra.mxu0 %v427
    %444 = vmatprep.subr.bf16.mxu0 0
    %445 = vmatpush1.bf16.msra.mxu0 %v426
    %446 = vmatprep.subr.bf16.mxu0 0
    %447 = vmatpush1.bf16.msra.mxu0 %v425
    %448 = vmatprep.subr.bf16.mxu0 0
    %449 = vmatpush1.bf16.msra.mxu0 %v424
    %450 = vmatprep.subr.bf16.mxu0 0
    %451 = vmatpush1.bf16.msra.mxu0 %v423
    %452 = vmatprep.subr.bf16.mxu0 0
    %453 = vmatpush1.bf16.msra.mxu0 %v422
    %454 = vmatprep.subr.bf16.mxu0 0
    %455 = vmatpush2.bf16.msra.mxu0 0
    %456 = vmatprep.subr.bf16.mxu0 0
    %457 = vmatpush2.bf16.msra.mxu0 0
    %458 = vmatprep.subr.bf16.mxu0 0
    %459 = vmatpush2.bf16.msra.mxu0 0
    %460 = vmatprep.subr.bf16.mxu0 0
    %461 = vmatpush2.bf16.msra.mxu0 0
    %462 = vmatprep.subr.bf16.mxu0 0
    %463 = vmatpush2.bf16.msra.mxu0 0
    %464 = vmatprep.subr.bf16.mxu0 0
    %465 = vmatpush2.bf16.msra.mxu0 0
    %466 = vmatprep.subr.bf16.mxu0 0
    %467 = vmatpush2.bf16.msra.mxu0 0
    %468 = vmatprep.subr.bf16.mxu0 0
    %469 = vmatpush2.bf16.msra.mxu0 0
    %470 = vmatprep.mubr.bf16.mxu0 0
    %471 = vmatmul.mubr.bf16.gmra.mxu0 %v359
    %v472 = vpop.f32.mrf.mxu0
    %v473 = vadd.f32 %v388, %v472
    %v474 = vpop.f32.mrf.mxu0
    %v475 = vpop.f32.mrf.mxu0
    %v476 = vadd.f32 %v388, %v475
    %v477 = vpop.f32.mrf.mxu0
    %478 = vmatprep.mubr.bf16.mxu0 0
    %479 = vmatmul.mubr.bf16.gmra.mxu0 %v360
    %v480 = vpop.f32.mrf.mxu0
    %v481 = vadd.f32 %v388, %v480
    %v482 = vpop.f32.mrf.mxu0
    %v483 = vpop.f32.mrf.mxu0
    %v484 = vadd.f32 %v388, %v483
    %v485 = vpop.f32.mrf.mxu0
    %486 = vmatprep.mubr.bf16.mxu0 0
    %487 = vmatmul.mubr.bf16.gmra.mxu0 %v361
    %v488 = vpop.f32.mrf.mxu0
    %v489 = vadd.f32 %v388, %v488
    %v490 = vpop.f32.mrf.mxu0
    %v491 = vpop.f32.mrf.mxu0
    %v492 = vadd.f32 %v388, %v491
    %v493 = vpop.f32.mrf.mxu0
    %494 = vmatprep.mubr.bf16.mxu0 0
    %495 = vmatmul.mubr.bf16.gmra.mxu0 %v362
    %v496 = vpop.f32.mrf.mxu0
    %v497 = vadd.f32 %v388, %v496
    %v498 = vpop.f32.mrf.mxu0
    %v499 = vpop.f32.mrf.mxu0
    %v500 = vadd.f32 %v388, %v499
    %v501 = vpop.f32.mrf.mxu0
    %502 = vmatprep.mubr.bf16.mxu0 0
    %503 = vmatmul.mubr.bf16.gmra.mxu0 %v363
    %v504 = vpop.f32.mrf.mxu0
    %v505 = vadd.f32 %v388, %v504
    %v506 = vpop.f32.mrf.mxu0
    %v507 = vpop.f32.mrf.mxu0
    %v508 = vadd.f32 %v388, %v507
    %v509 = vpop.f32.mrf.mxu0
    %510 = vmatprep.mubr.bf16.mxu0 0
    %511 = vmatmul.mubr.bf16.gmra.mxu0 %v364
    %v512 = vpop.f32.mrf.mxu0
    %v513 = vadd.f32 %v388, %v512
    %v514 = vpop.f32.mrf.mxu0
    %v515 = vpop.f32.mrf.mxu0
    %v516 = vadd.f32 %v388, %v515
    %v517 = vpop.f32.mrf.mxu0
    %518 = vmatprep.mubr.bf16.mxu0 0
    %519 = vmatmul.mubr.bf16.gmra.mxu0 %v365
    %v520 = vpop.f32.mrf.mxu0
    %v521 = vadd.f32 %v388, %v520
    %v522 = vpop.f32.mrf.mxu0
    %v523 = vpop.f32.mrf.mxu0
    %v524 = vadd.f32 %v388, %v523
    %v525 = vpop.f32.mrf.mxu0
    %526 = vmatprep.mubr.bf16.mxu0 0
    %527 = vmatmul.mubr.bf16.gmra.mxu0 %v366
    %v528 = vpop.f32.mrf.mxu0
    %v529 = vadd.f32 %v388, %v528
    %v530 = vpop.f32.mrf.mxu0
    %v531 = vpop.f32.mrf.mxu0
    %v532 = vadd.f32 %v388, %v531
    %v533 = vpop.f32.mrf.mxu0
    %534 = vdwg.mxu0
    %v535 = vpack.c.bf16 %v476, %v473
    %v536 = vpack.c.bf16 %v484, %v481
    %v537 = vpack.c.bf16 %v492, %v489
    %v538 = vpack.c.bf16 %v500, %v497
    %v539 = vpack.c.bf16 %v508, %v505
    %v540 = vpack.c.bf16 %v516, %v513
    %v541 = vpack.c.bf16 %v524, %v521
    %v542 = vpack.c.bf16 %v532, %v529
    %v543 = vld [vmem:[%s5] sm:$0xf]
    %v544 = vld [vmem:[%s5 + $0x4] sm:$0xf]
    %v545 = vld [vmem:[%s5 + $0x8] sm:$0xf]
    %v546 = vld [vmem:[%s5 + $0xc] sm:$0xf]
    %v547 = vld [vmem:[%s5 + $0x10] sm:$0xf]
    %v548 = vld [vmem:[%s5 + $0x14] sm:$0xf]
    %v549 = vld [vmem:[%s5 + $0x18] sm:$0xf]
    %v550 = vld [vmem:[%s5 + $0x1c] sm:$0xf]
    %v551 = vld [vmem:[%s5 + $0x20] sm:$0xf]
    %v552 = vld [vmem:[%s5 + $0x24] sm:$0xf]
    %v553 = vld [vmem:[%s5 + $0x28] sm:$0xf]
    %v554 = vld [vmem:[%s5 + $0x2c] sm:$0xf]
    %v555 = vld [vmem:[%s5 + $0x30] sm:$0xf]
    %v556 = vld [vmem:[%s5 + $0x34] sm:$0xf]
    %v557 = vld [vmem:[%s5 + $0x38] sm:$0xf]
    %v558 = vld [vmem:[%s5 + $0x3c] sm:$0xf]
    %v575 = vunpack.c.l.b16 %v543
    %v576 = vunpack.c.l.b16 %v544
    %v577 = vunpack.c.l.b16 %v545
    %v578 = vunpack.c.l.b16 %v546
    %v579 = vunpack.c.l.b16 %v547
    %v580 = vunpack.c.l.b16 %v548
    %v581 = vunpack.c.l.b16 %v549
    %v582 = vunpack.c.l.b16 %v550
    %v583 = vunpack.c.l.b16 %v551
    %v584 = vunpack.c.l.b16 %v552
    %v585 = vunpack.c.l.b16 %v553
    %v586 = vunpack.c.l.b16 %v554
    %v587 = vunpack.c.l.b16 %v555
    %v588 = vunpack.c.l.b16 %v556
    %v589 = vunpack.c.l.b16 %v557
    %v590 = vunpack.c.l.b16 %v558
    %v591 = vpack.c.b16 %v576, %v575
    %v592 = vpack.c.b16 %v578, %v577
    %v593 = vpack.c.b16 %v580, %v579
    %v594 = vpack.c.b16 %v582, %v581
    %v595 = vpack.c.b16 %v584, %v583
    %v596 = vpack.c.b16 %v586, %v585
    %v597 = vpack.c.b16 %v588, %v587
    %v598 = vpack.c.b16 %v590, %v589
    %607 = vmatprep.subr.bf16.mxu0 0
    %608 = vmatpush1.bf16.msra.mxu0 %v598
    %609 = vmatprep.subr.bf16.mxu0 0
    %610 = vmatpush1.bf16.msra.mxu0 %v597
    %611 = vmatprep.subr.bf16.mxu0 0
    %612 = vmatpush1.bf16.msra.mxu0 %v596
    %613 = vmatprep.subr.bf16.mxu0 0
    %614 = vmatpush1.bf16.msra.mxu0 %v595
    %615 = vmatprep.subr.bf16.mxu0 0
    %616 = vmatpush1.bf16.msra.mxu0 %v594
    %617 = vmatprep.subr.bf16.mxu0 0
    %618 = vmatpush1.bf16.msra.mxu0 %v593
    %619 = vmatprep.subr.bf16.mxu0 0
    %620 = vmatpush1.bf16.msra.mxu0 %v592
    %621 = vmatprep.subr.bf16.mxu0 0
    %622 = vmatpush1.bf16.msra.mxu0 %v591
    %623 = vmatprep.subr.bf16.mxu0 0
    %624 = vmatpush2.bf16.msra.mxu0 0
    %625 = vmatprep.subr.bf16.mxu0 0
    %626 = vmatpush2.bf16.msra.mxu0 0
    %627 = vmatprep.subr.bf16.mxu0 0
    %628 = vmatpush2.bf16.msra.mxu0 0
    %629 = vmatprep.subr.bf16.mxu0 0
    %630 = vmatpush2.bf16.msra.mxu0 0
    %631 = vmatprep.subr.bf16.mxu0 0
    %632 = vmatpush2.bf16.msra.mxu0 0
    %633 = vmatprep.subr.bf16.mxu0 0
    %634 = vmatpush2.bf16.msra.mxu0 0
    %635 = vmatprep.subr.bf16.mxu0 0
    %636 = vmatpush2.bf16.msra.mxu0 0
    %637 = vmatprep.subr.bf16.mxu0 0
    %638 = vmatpush2.bf16.msra.mxu0 0
    %639 = vmatprep.mubr.bf16.mxu0 0
    %640 = vmatmul.mubr.bf16.gmra.mxu0 %v535
    %v641 = vpop.f32.mrf.mxu0
    %v642 = vadd.f32 0.0, %v641
    %v643 = vpop.f32.mrf.mxu0
    %v644 = vpop.f32.mrf.mxu0
    %v645 = vadd.f32 0.0, %v644
    %v646 = vpop.f32.mrf.mxu0
    %647 = vmatprep.mubr.bf16.mxu0 0
    %648 = vmatmul.mubr.bf16.gmra.mxu0 %v536
    %v649 = vpop.f32.mrf.mxu0
    %v650 = vadd.f32 0.0, %v649
    %v651 = vpop.f32.mrf.mxu0
    %v652 = vpop.f32.mrf.mxu0
    %v653 = vadd.f32 0.0, %v652
    %v654 = vpop.f32.mrf.mxu0
    %655 = vmatprep.mubr.bf16.mxu0 0
    %656 = vmatmul.mubr.bf16.gmra.mxu0 %v537
    %v657 = vpop.f32.mrf.mxu0
    %v658 = vadd.f32 0.0, %v657
    %v659 = vpop.f32.mrf.mxu0
    %v660 = vpop.f32.mrf.mxu0
    %v661 = vadd.f32 0.0, %v660
    %v662 = vpop.f32.mrf.mxu0
    %663 = vmatprep.mubr.bf16.mxu0 0
    %664 = vmatmul.mubr.bf16.gmra.mxu0 %v538
    %v665 = vpop.f32.mrf.mxu0
    %v666 = vadd.f32 0.0, %v665
    %v667 = vpop.f32.mrf.mxu0
    %v668 = vpop.f32.mrf.mxu0
    %v669 = vadd.f32 0.0, %v668
    %v670 = vpop.f32.mrf.mxu0
    %671 = vmatprep.mubr.bf16.mxu0 0
    %672 = vmatmul.mubr.bf16.gmra.mxu0 %v539
    %v673 = vpop.f32.mrf.mxu0
    %v674 = vadd.f32 0.0, %v673
    %v675 = vpop.f32.mrf.mxu0
    %v676 = vpop.f32.mrf.mxu0
    %v677 = vadd.f32 0.0, %v676
    %v678 = vpop.f32.mrf.mxu0
    %679 = vmatprep.mubr.bf16.mxu0 0
    %680 = vmatmul.mubr.bf16.gmra.mxu0 %v540
    %v681 = vpop.f32.mrf.mxu0
    %v682 = vadd.f32 0.0, %v681
    %v683 = vpop.f32.mrf.mxu0
    %v684 = vpop.f32.mrf.mxu0
    %v685 = vadd.f32 0.0, %v684
    %v686 = vpop.f32.mrf.mxu0
    %687 = vmatprep.mubr.bf16.mxu0 0
    %688 = vmatmul.mubr.bf16.gmra.mxu0 %v541
    %v689 = vpop.f32.mrf.mxu0
    %v690 = vadd.f32 0.0, %v689
    %v691 = vpop.f32.mrf.mxu0
    %v692 = vpop.f32.mrf.mxu0
    %v693 = vadd.f32 0.0, %v692
    %v694 = vpop.f32.mrf.mxu0
    %695 = vmatprep.mubr.bf16.mxu0 0
    %696 = vmatmul.mubr.bf16.gmra.mxu0 %v542
    %v697 = vpop.f32.mrf.mxu0
    %v698 = vadd.f32 0.0, %v697
    %v699 = vpop.f32.mrf.mxu0
    %v700 = vpop.f32.mrf.mxu0
    %v701 = vadd.f32 0.0, %v700
    %v702 = vpop.f32.mrf.mxu0
    %703 = vdwg.mxu0
    %704 = vst [vmem:[%s6] sm:$0xff] %v642
    %705 = vst [vmem:[%s6 + $0x8] sm:$0xff] %v645
    %706 = vst [vmem:[%s6 + $0x10] sm:$0xff] %v650
    %707 = vst [vmem:[%s6 + $0x18] sm:$0xff] %v653
    %708 = vst [vmem:[%s6 + $0x20] sm:$0xff] %v658
    %709 = vst [vmem:[%s6 + $0x28] sm:$0xff] %v661
    %710 = vst [vmem:[%s6 + $0x30] sm:$0xff] %v666
    %711 = vst [vmem:[%s6 + $0x38] sm:$0xff] %v669
    %712 = vst [vmem:[%s6 + $0x40] sm:$0xff] %v674
    %713 = vst [vmem:[%s6 + $0x48] sm:$0xff] %v677
    %714 = vst [vmem:[%s6 + $0x50] sm:$0xff] %v682
    %715 = vst [vmem:[%s6 + $0x58] sm:$0xff] %v685
    %716 = vst [vmem:[%s6 + $0x60] sm:$0xff] %v690
    %717 = vst [vmem:[%s6 + $0x68] sm:$0xff] %v693
    %718 = vst [vmem:[%s6 + $0x70] sm:$0xff] %v698
    %719 = vst [vmem:[%s6 + $0x78] sm:$0xff] %v701
  $region33: #{neck_forward.23} parent=0 // pred_fallthru
    _
  // Predicated region
  $region34: #{neck_forward.23} parent=0 // pred_check
    _
  $region35: #{neck_forward.23} parent=0 // pred_check_branch
    %721 = sbr.rel (0) target = $region37
  $region36: #{neck_forward.23} parent=0 // pred_region
    _
  $region37: #{neck_forward.23} parent=0 // pred_fallthru
    _
  // Predicated region
  $region38: #{neck_forward.23} parent=0 // pred_check
    _
  $region39: #{neck_forward.23} parent=0 // pred_check_branch
    %723 = sbr.rel (0) target = $region41
  $region40: #{neck_forward.23} parent=0 // pred_region
    _
  $region41: #{neck_forward.23} parent=0 // pred_fallthru
    _

// kernel: neck_forward.25
$region0: #{neck_forward.25}
  #allocation0 [shape = 'u32[]', space=smem, size = 0x4, offset = 0x4, fixed_abs, tag = 'smem constant byte address 0x4 - core index']
  #allocation1 [shape = 'u32[144,128]{1,0:T(1,128)}', space=vmem, size = 0x12000, scoped, tag = 'internal scratch']
  %s0 = inlined_call_operand.vmem [shape: f32[32,16], index: 0, kind: input, shape index: {}]
  %s1 = inlined_call_operand.vmem [shape: f32[64,16,36], index: 1, kind: input, shape index: {}]
  %s2 = inlined_call_operand.vmem [shape: f32[64,32,36], index: 2, kind: output, shape index: {}]
  %s3 = sld [smem:[#allocation0]]
  $region41: #{neck_forward.25} parent=0
    _
  %s5 = ssub.s32 1, %s3
  %s6 = scalar_select 0, %s5, %s3
  loop: start=0, step=1, limit=66
  $region2: #{neck_forward.25} parent=0 // loop_pre_header
    _
  $region3: #{neck_forward.25} parent=0 // loop_header
    %s8 = sphi 0, %s12
    %p9 = scmp.ge.s32.totalorder %s8, 66
    %s16 = sphi 0, %s16
    %s18 = sphi 0, %s16
    %s19 = sphi 0, %s18
    %s33 = sphi 0, %s19
    %s39 = sphi 0, %s41
    %s42 = sphi 0, %s39
    %s43 = sphi 0, %s42
    %s59 = sphi 0, %s43
    %s65 = sphi 0, %s67
    %s68 = sphi 0, %s65
    %s69 = sphi 0, %s68
    %s85 = sphi 0, %s69
  $region4: #{neck_forward.25} parent=0 // loop_header_branch
    %11 = sbr.rel (%p9) target = $region8
  $region5: #{neck_forward.25} parent=0 // loop_body
    %s13 = ssub.s32 %s8, 1
    %s14 = ssub.s32 %s8, 2
    %s15 = sadd.s32 %s8, 1
    %s17 = sadd.s32 %s16, 1
    %p20 = scmp.eq.s32.totalorder %s8, 63
    %p21 = scmp.ne.s32.totalorder %s16, %s18
    %p22 = scmp.eq.s32.totalorder %s8, 0
    %p23 = por %p21, %p22
    %p24 = scmp.ne.s32.totalorder %s16, %s18
    %p25 = scmp.eq.s32.totalorder %s13, 63
    %p26 = por %p24, %p25
    %p27 = scmp.ne.s32.totalorder %s18, %s19
    %p28 = scmp.eq.s32.totalorder %s13, 0
    %p29 = por %p27, %p28
    %p30 = scmp.ne.s32.totalorder %s18, %s19
    %p31 = scmp.eq.s32.totalorder %s14, 63
    %p32 = por %p30, %p31
    %p34 = scmp.ne.s32.totalorder %s19, %s33
    %p35 = scmp.eq.s32.totalorder %s14, 0
    %p36 = por %p34, %p35
    %s37 = ssub.s32 %s8, %s15
    %p38 = scmp.eq.s32.totalorder %s37, 0
    %s40 = sadd.s32 %s39, 1
    %s41 = scalar_select %p38, %s39, %s40
    %p44 = pneg %p38
    %p45 = scmp.eq.s32.totalorder %s8, 63
    %p46 = por %p44, %p45
    %p47 = scmp.ne.s32.totalorder %s39, %s42
    %p48 = scmp.eq.s32.totalorder %s8, 0
    %p49 = por %p47, %p48
    %p50 = scmp.ne.s32.totalorder %s39, %s42
    %p51 = scmp.eq.s32.totalorder %s13, 63
    %p52 = por %p50, %p51
    %p53 = scmp.ne.s32.totalorder %s42, %s43
    %p54 = scmp.eq.s32.totalorder %s13, 0
    %p55 = por %p53, %p54
    %p56 = scmp.ne.s32.totalorder %s42, %s43
    %p57 = scmp.eq.s32.totalorder %s14, 63
    %p58 = por %p56, %p57
    %p60 = scmp.ne.s32.totalorder %s43, %s59
    %p61 = scmp.eq.s32.totalorder %s14, 0
    %p62 = por %p60, %p61
    %s63 = ssub.s32 %s8, %s15
    %p64 = scmp.eq.s32.totalorder %s63, 0
    %s66 = sadd.s32 %s65, 1
    %s67 = scalar_select %p64, %s65, %s66
    %p70 = pneg %p64
    %p71 = scmp.eq.s32.totalorder %s8, 63
    %p72 = por %p70, %p71
    %p73 = scmp.ne.s32.totalorder %s65, %s68
    %p74 = scmp.eq.s32.totalorder %s8, 0
    %p75 = por %p73, %p74
    %p76 = scmp.ne.s32.totalorder %s65, %s68
    %p77 = scmp.eq.s32.totalorder %s13, 63
    %p78 = por %p76, %p77
    %p79 = scmp.ne.s32.totalorder %s68, %s69
    %p80 = scmp.eq.s32.totalorder %s13, 0
    %p81 = por %p79, %p80
    %p82 = scmp.ne.s32.totalorder %s68, %s69
    %p83 = scmp.eq.s32.totalorder %s14, 63
    %p84 = por %p82, %p83
    %p86 = scmp.ne.s32.totalorder %s69, %s85
    %p87 = scmp.eq.s32.totalorder %s14, 0
    %p88 = por %p86, %p87
    %p89 = scmp.le.s32.totalorder 1, %s8
    %p90 = scmp.lt.s32.totalorder %s8, 65
    %p91 = pnand %p89, %p90
    %p92 = pneg %p91
    // Predicated region
    $region9: #{neck_forward.25} parent=5 // pred_check
      _
    $region10: #{neck_forward.25} parent=5 // pred_check_branch
      %94 = sbr.rel (%p91) target = $region12
    $region11: #{neck_forward.25} parent=5 // pred_region
      %s95 = ssub.s32 %s8, 1
      // Predicated region
      $region13: #{neck_forward.25} parent=11 // pred_check
        %p96 = pneg %p29
      $region14: #{neck_forward.25} parent=11 // pred_check_branch
        %98 = sbr.rel (%p96) target = $region16
      $region15: #{neck_forward.25} parent=11 // pred_region
        _
      $region16: #{neck_forward.25} parent=11 // pred_fallthru
        _
    $region12: #{neck_forward.25} parent=5 // pred_fallthru
      _
    %p99 = scmp.lt.s32.totalorder %s8, 64
    // Predicated region
    $region17: #{neck_forward.25} parent=5 // pred_check
      %p100 = pneg %p99
    $region18: #{neck_forward.25} parent=5 // pred_check_branch
      %102 = sbr.rel (%p100) target = $region20
    $region19: #{neck_forward.25} parent=5 // pred_region
      // Predicated region
      $region21: #{neck_forward.25} parent=19 // pred_check
        %p103 = pneg %p49
      $region22: #{neck_forward.25} parent=19 // pred_check_branch
        %105 = sbr.rel (%p103) target = $region24
      $region23: #{neck_forward.25} parent=19 // pred_region
        %p106 = scmp.lt.s32.totalorder %s8, 63
        %s107 = scalar_select %p106, %s8, 63
        %s108 = smul.addr %s107, 2
        %s109 = smul.addr %s108, 8
        %s110 = scalar_lea.vmem %s1, %s109
      $region24: #{neck_forward.25} parent=19 // pred_fallthru
        _
    $region20: #{neck_forward.25} parent=5 // pred_fallthru
      _
    %p111 = scmp.le.s32.totalorder 1, %s8
    %p112 = scmp.lt.s32.totalorder %s8, 65
    %p113 = pnand %p111, %p112
    %p114 = pneg %p113
    // Predicated region
    $region25: #{neck_forward.25} parent=5 // pred_check
      _
    $region26: #{neck_forward.25} parent=5 // pred_check_branch
      %116 = sbr.rel (%p113) target = $region28
    $region27: #{neck_forward.25} parent=5 // pred_region
      %s117 = ssub.s32 %s8, 1
      %p118 = pneg %p29
      %p119 = pneg %p26
      %p120 = scmp.lt.s32.totalorder %s13, 63
      %s121 = scalar_select %p120, %s13, 63
      %s122 = smul.addr %s121, 2
      %s123 = smul.addr %s122, 8
      %s124 = scalar_lea.vmem %s1, %s123
      %p125 = pneg %p55
      %p126 = pneg %p52
      %p127 = pneg %p81
      %p128 = pneg %p78
      %p129 = scmp.lt.s32.totalorder %s13, 63
      %s130 = scalar_select %p129, %s13, 63
      %s131 = smul.addr %s130, 4
      %s132 = smul.addr %s131, 8
      %s133 = scalar_lea.vmem %s2, %s132
      %p134 = scmp.lt.s32.totalorder %s13, 63
      %s135 = scalar_select %p134, %s13, 63
      %s136 = smul.addr %s135, 2
      %s137 = smul.addr %s136, 8
      %s138 = scalar_lea.vmem %s1, %s137
      %p139 = scmp.lt.s32.totalorder %s13, 63
      %s140 = scalar_select %p139, %s13, 63
      %s141 = smul.addr %s140, 4
      %s142 = smul.addr %s141, 8
      %s143 = scalar_lea.vmem %s2, %s142
      %v144 = vld [vmem:[%s0] sm:$0xff]
      %v145 = vld [vmem:[%s0 + $0x8] sm:$0xff]
      %v146 = vld [vmem:[%s0 + $0x10] sm:$0xff]
      %v147 = vld [vmem:[%s0 + $0x18] sm:$0xff]
      %v148 = vld [vmem:[%s138] sm:$0xff]
      %v149 = vld [vmem:[%s138 + $0x8] sm:$0xff]
      %vm150 = vcmask 130048
      %v152 = vsel %vm150, %v144, 0
      %v155 = vsel %vm150, %v145, 0
      %v158 = vsel %vm150, %v146, 0
      %v161 = vsel %vm150, %v147, 0
      %163 = vmatprep.subr.mxu0 0.0
      %164 = vmatpush1.msra.mxu0 0.0
      %165 = vmatprep.subr.mxu0 0.0
      %166 = vmatpush1.msra.mxu0 0.0
      %167 = vmatprep.subr.mxu0 0.0
      %168 = vmatpush1.msra.mxu0 0.0
      %169 = vmatprep.subr.mxu0 0.0
      %170 = vmatpush1.msra.mxu0 0.0
      %171 = vmatprep.subr.mxu0 0.0
      %172 = vmatpush1.msra.mxu0 0.0
      %173 = vmatprep.subr.mxu0 0.0
      %174 = vmatpush1.msra.mxu0 0.0
      %175 = vmatprep.subr.mxu0 0.0
      %176 = vmatpush1.msra.mxu0 0.0
      %177 = vmatprep.subr.mxu0 0.0
      %178 = vmatpush1.msra.mxu0 0.0
      %179 = vmatprep.subr.mxu0 0.0
      %180 = vmatpush1.msra.mxu0 0.0
      %181 = vmatprep.subr.mxu0 0.0
      %182 = vmatpush1.msra.mxu0 0.0
      %183 = vmatprep.subr.mxu0 0.0
      %184 = vmatpush1.msra.mxu0 0.0
      %185 = vmatprep.subr.mxu0 0.0
      %186 = vmatpush1.msra.mxu0 0.0
      %187 = vmatprep.subr.mxu0 0.0
      %188 = vmatpush1.msra.mxu0 0.0
      %189 = vmatprep.subr.mxu0 0.0
      %190 = vmatpush1.msra.mxu0 0.0
      %191 = vmatprep.subr.mxu0 0.0
      %192 = vmatpush1.msra.mxu0 %v149
      %193 = vmatprep.subr.mxu0 0.0
      %194 = vmatpush1.msra.mxu0 %v148
      %195 = vmatprep.subr.mxu0 0.0
      %196 = vmatpush2.msra.mxu0 0.0
      %197 = vmatprep.subr.mxu0 0.0
      %198 = vmatpush2.msra.mxu0 0.0
      %199 = vmatprep.subr.mxu0 0.0
      %200 = vmatpush2.msra.mxu0 0.0
      %201 = vmatprep.subr.mxu0 0.0
      %202 = vmatpush2.msra.mxu0 0.0
      %203 = vmatprep.subr.mxu0 0.0
      %204 = vmatpush2.msra.mxu0 0.0
      %205 = vmatprep.subr.mxu0 0.0
      %206 = vmatpush2.msra.mxu0 0.0
      %207 = vmatprep.subr.mxu0 0.0
      %208 = vmatpush2.msra.mxu0 0.0
      %209 = vmatprep.subr.mxu0 0.0
      %210 = vmatpush2.msra.mxu0 0.0
      %211 = vmatprep.subr.mxu0 0.0
      %212 = vmatpush2.msra.mxu0 0.0
      %213 = vmatprep.subr.mxu0 0.0
      %214 = vmatpush2.msra.mxu0 0.0
      %215 = vmatprep.subr.mxu0 0.0
      %216 = vmatpush2.msra.mxu0 0.0
      %217 = vmatprep.subr.mxu0 0.0
      %218 = vmatpush2.msra.mxu0 0.0
      %219 = vmatprep.subr.mxu0 0.0
      %220 = vmatpush2.msra.mxu0 0.0
      %221 = vmatprep.subr.mxu0 0.0
      %222 = vmatpush2.msra.mxu0 0.0
      %223 = vmatprep.subr.mxu0 0.0
      %224 = vmatpush2.msra.mxu0 0.0
      %225 = vmatprep.subr.mxu0 0.0
      %226 = vmatpush2.msra.mxu0 0.0
      %227 = vmatprep.mubr.f32.mxu0 0.0
      %228 = vmatmul.mubr.f32.gmra.mxu0 %v152
      %v229 = vpop.f32.mrf.mxu0
      %v230 = vadd.f32 0.0, %v229
      %v231 = vpop.f32.mrf.mxu0
      %232 = vmatprep.mubr.f32.mxu0 0.0
      %233 = vmatmul.mubr.f32.gmra.mxu0 %v155
      %v234 = vpop.f32.mrf.mxu0
      %v235 = vadd.f32 0.0, %v234
      %v236 = vpop.f32.mrf.mxu0
      %237 = vmatprep.mubr.f32.mxu0 0.0
      %238 = vmatmul.mubr.f32.gmra.mxu0 %v158
      %v239 = vpop.f32.mrf.mxu0
      %v240 = vadd.f32 0.0, %v239
      %v241 = vpop.f32.mrf.mxu0
      %242 = vmatprep.mubr.f32.mxu0 0.0
      %243 = vmatmul.mubr.f32.gmra.mxu0 %v161
      %v244 = vpop.f32.mrf.mxu0
      %v245 = vadd.f32 0.0, %v244
      %v246 = vpop.f32.mrf.mxu0
      %247 = vdwg.mxu0
      %vm248 = vcmask 293888
      %249 = vst.msk [vmem:[%s143] sm:$0xff] %vm248, %v230
      %250 = vst.msk [vmem:[%s143 + $0x8] sm:$0xff] %vm248, %v235
      %251 = vst.msk [vmem:[%s143 + $0x10] sm:$0xff] %vm248, %v240
      %252 = vst.msk [vmem:[%s143 + $0x18] sm:$0xff] %vm248, %v245
      %p253 = scmp.lt.s32.totalorder %s13, 63
      %s254 = scalar_select %p253, %s13, 63
      %s255 = smul.addr %s254, 4
      %s256 = smul.addr %s255, 8
      %s257 = scalar_lea.vmem %s2, %s256
      // Predicated region
      $region29: #{neck_forward.25} parent=27 // pred_check
        %p258 = pneg %p78
      $region30: #{neck_forward.25} parent=27 // pred_check_branch
        %260 = sbr.rel (%p258) target = $region32
      $region31: #{neck_forward.25} parent=27 // pred_region
        _
      $region32: #{neck_forward.25} parent=27 // pred_fallthru
        _
    $region28: #{neck_forward.25} parent=5 // pred_fallthru
      _
    %p261 = scmp.le.s32.totalorder 2, %s8
    // Predicated region
    $region33: #{neck_forward.25} parent=5 // pred_check
      %p262 = pneg %p261
    $region34: #{neck_forward.25} parent=5 // pred_check_branch
      %264 = sbr.rel (%p262) target = $region36
    $region35: #{neck_forward.25} parent=5 // pred_region
      %s265 = ssub.s32 %s8, 2
      // Predicated region
      $region37: #{neck_forward.25} parent=35 // pred_check
        %p266 = pneg %p84
      $region38: #{neck_forward.25} parent=35 // pred_check_branch
        %268 = sbr.rel (%p266) target = $region40
      $region39: #{neck_forward.25} parent=35 // pred_region
        %p269 = scmp.lt.s32.totalorder %s14, 63
        %s270 = scalar_select %p269, %s14, 63
        %s271 = smul.addr %s270, 4
        %s272 = smul.addr %s271, 8
        %s273 = scalar_lea.vmem %s2, %s272
      $region40: #{neck_forward.25} parent=35 // pred_fallthru
        _
    $region36: #{neck_forward.25} parent=5 // pred_fallthru
      _
  $region6: #{neck_forward.25} parent=0 // loop_footer
    %s12 = sadd.s32 1, %s8
  $region7: #{neck_forward.25} parent=0 // loop_footer_branch
    %7 = sbr.rel target = $region3
  $region8: #{neck_forward.25} parent=0 // loop_exit
    _

// kernel: neck_forward.26
$region0: #{neck_forward.26}
  #allocation0 [shape = 'u32[]', space=smem, size = 0x4, offset = 0x4, fixed_abs, tag = 'smem constant byte address 0x4 - core index']
  #allocation1 [shape = 'u32[144,128]{1,0:T(1,128)}', space=vmem, size = 0x12000, scoped, tag = 'internal scratch']
  %s0 = inlined_call_operand.vmem [shape: f32[16,32], index: 0, kind: input, shape index: {}]
  %s1 = inlined_call_operand.vmem [shape: f32[2,32,1664], index: 1, kind: input, shape index: {}]
  %s2 = inlined_call_operand.vmem [shape: f32[2,16,1664], index: 2, kind: output, shape index: {}]
  %s3 = sld [smem:[#allocation0]]
  $region41: #{neck_forward.26} parent=0
    _
  %s5 = ssub.s32 1, %s3
  %s6 = scalar_select 0, %s5, %s3
  loop: start=0, step=1, limit=4
  $region2: #{neck_forward.26} parent=0 // loop_pre_header
    _
  $region3: #{neck_forward.26} parent=0 // loop_header
    %s8 = sphi 0, %s12
    %p9 = scmp.ge.s32.totalorder %s8, 4
    %s16 = sphi 0, %s16
    %s18 = sphi 0, %s16
    %s19 = sphi 0, %s18
    %s33 = sphi 0, %s19
    %s39 = sphi 0, %s41
    %s42 = sphi 0, %s39
    %s43 = sphi 0, %s42
    %s59 = sphi 0, %s43
    %s65 = sphi 0, %s67
    %s68 = sphi 0, %s65
    %s69 = sphi 0, %s68
    %s85 = sphi 0, %s69
  $region4: #{neck_forward.26} parent=0 // loop_header_branch
    %11 = sbr.rel (%p9) target = $region8
  $region5: #{neck_forward.26} parent=0 // loop_body
    %s13 = ssub.s32 %s8, 1
    %s14 = ssub.s32 %s8, 2
    %s15 = sadd.s32 %s8, 1
    %s17 = sadd.s32 %s16, 1
    %p20 = scmp.eq.s32.totalorder %s8, 1
    %p21 = scmp.ne.s32.totalorder %s16, %s18
    %p22 = scmp.eq.s32.totalorder %s8, 0
    %p23 = por %p21, %p22
    %p24 = scmp.ne.s32.totalorder %s16, %s18
    %p25 = scmp.eq.s32.totalorder %s13, 1
    %p26 = por %p24, %p25
    %p27 = scmp.ne.s32.totalorder %s18, %s19
    %p28 = scmp.eq.s32.totalorder %s13, 0
    %p29 = por %p27, %p28
    %p30 = scmp.ne.s32.totalorder %s18, %s19
    %p31 = scmp.eq.s32.totalorder %s14, 1
    %p32 = por %p30, %p31
    %p34 = scmp.ne.s32.totalorder %s19, %s33
    %p35 = scmp.eq.s32.totalorder %s14, 0
    %p36 = por %p34, %p35
    %s37 = ssub.s32 %s8, %s15
    %p38 = scmp.eq.s32.totalorder %s37, 0
    %s40 = sadd.s32 %s39, 1
    %s41 = scalar_select %p38, %s39, %s40
    %p44 = pneg %p38
    %p45 = scmp.eq.s32.totalorder %s8, 1
    %p46 = por %p44, %p45
    %p47 = scmp.ne.s32.totalorder %s39, %s42
    %p48 = scmp.eq.s32.totalorder %s8, 0
    %p49 = por %p47, %p48
    %p50 = scmp.ne.s32.totalorder %s39, %s42
    %p51 = scmp.eq.s32.totalorder %s13, 1
    %p52 = por %p50, %p51
    %p53 = scmp.ne.s32.totalorder %s42, %s43
    %p54 = scmp.eq.s32.totalorder %s13, 0
    %p55 = por %p53, %p54
    %p56 = scmp.ne.s32.totalorder %s42, %s43
    %p57 = scmp.eq.s32.totalorder %s14, 1
    %p58 = por %p56, %p57
    %p60 = scmp.ne.s32.totalorder %s43, %s59
    %p61 = scmp.eq.s32.totalorder %s14, 0
    %p62 = por %p60, %p61
    %s63 = ssub.s32 %s8, %s15
    %p64 = scmp.eq.s32.totalorder %s63, 0
    %s66 = sadd.s32 %s65, 1
    %s67 = scalar_select %p64, %s65, %s66
    %p70 = pneg %p64
    %p71 = scmp.eq.s32.totalorder %s8, 1
    %p72 = por %p70, %p71
    %p73 = scmp.ne.s32.totalorder %s65, %s68
    %p74 = scmp.eq.s32.totalorder %s8, 0
    %p75 = por %p73, %p74
    %p76 = scmp.ne.s32.totalorder %s65, %s68
    %p77 = scmp.eq.s32.totalorder %s13, 1
    %p78 = por %p76, %p77
    %p79 = scmp.ne.s32.totalorder %s68, %s69
    %p80 = scmp.eq.s32.totalorder %s13, 0
    %p81 = por %p79, %p80
    %p82 = scmp.ne.s32.totalorder %s68, %s69
    %p83 = scmp.eq.s32.totalorder %s14, 1
    %p84 = por %p82, %p83
    %p86 = scmp.ne.s32.totalorder %s69, %s85
    %p87 = scmp.eq.s32.totalorder %s14, 0
    %p88 = por %p86, %p87
    %p89 = scmp.le.s32.totalorder 1, %s8
    %p90 = scmp.lt.s32.totalorder %s8, 3
    %p91 = pnand %p89, %p90
    %p92 = pneg %p91
    // Predicated region
    $region9: #{neck_forward.26} parent=5 // pred_check
      _
    $region10: #{neck_forward.26} parent=5 // pred_check_branch
      %94 = sbr.rel (%p91) target = $region12
    $region11: #{neck_forward.26} parent=5 // pred_region
      %s95 = ssub.s32 %s8, 1
      // Predicated region
      $region13: #{neck_forward.26} parent=11 // pred_check
        %p96 = pneg %p29
      $region14: #{neck_forward.26} parent=11 // pred_check_branch
        %98 = sbr.rel (%p96) target = $region16
      $region15: #{neck_forward.26} parent=11 // pred_region
        _
      $region16: #{neck_forward.26} parent=11 // pred_fallthru
        _
    $region12: #{neck_forward.26} parent=5 // pred_fallthru
      _
    %p99 = scmp.lt.s32.totalorder %s8, 2
    // Predicated region
    $region17: #{neck_forward.26} parent=5 // pred_check
      %p100 = pneg %p99
    $region18: #{neck_forward.26} parent=5 // pred_check_branch
      %102 = sbr.rel (%p100) target = $region20
    $region19: #{neck_forward.26} parent=5 // pred_region
      // Predicated region
      $region21: #{neck_forward.26} parent=19 // pred_check
        %p103 = pneg %p49
      $region22: #{neck_forward.26} parent=19 // pred_check_branch
        %105 = sbr.rel (%p103) target = $region24
      $region23: #{neck_forward.26} parent=19 // pred_region
        %p106 = scmp.lt.s32.totalorder %s8, 1
        %s107 = scalar_select %p106, %s8, 1
        %s108 = smul.addr %s107, 52
        %s109 = smul.addr %s108, 8
        %s110 = scalar_lea.vmem %s1, %s109
      $region24: #{neck_forward.26} parent=19 // pred_fallthru
        _
    $region20: #{neck_forward.26} parent=5 // pred_fallthru
      _
    %p111 = scmp.le.s32.totalorder 1, %s8
    %p112 = scmp.lt.s32.totalorder %s8, 3
    %p113 = pnand %p111, %p112
    %p114 = pneg %p113
    // Predicated region
    $region25: #{neck_forward.26} parent=5 // pred_check
      _
    $region26: #{neck_forward.26} parent=5 // pred_check_branch
      %116 = sbr.rel (%p113) target = $region28
    $region27: #{neck_forward.26} parent=5 // pred_region
      %s117 = ssub.s32 %s8, 1
      %p118 = pneg %p29
      %p119 = pneg %p26
      %p120 = scmp.lt.s32.totalorder %s13, 1
      %s121 = scalar_select %p120, %s13, 1
      %s122 = smul.addr %s121, 52
      %s123 = smul.addr %s122, 8
      %s124 = scalar_lea.vmem %s1, %s123
      %p125 = pneg %p55
      %p126 = pneg %p52
      %p127 = pneg %p81
      %p128 = pneg %p78
      %p129 = scmp.lt.s32.totalorder %s13, 1
      %s130 = scalar_select %p129, %s13, 1
      %s131 = smul.addr %s130, 26
      %s132 = smul.addr %s131, 8
      %s133 = scalar_lea.vmem %s2, %s132
      %p134 = scmp.lt.s32.totalorder %s13, 1
      %s135 = scalar_select %p134, %s13, 1
      %s136 = smul.addr %s135, 52
      %s137 = smul.addr %s136, 8
      %s138 = scalar_lea.vmem %s1, %s137
      %p139 = scmp.lt.s32.totalorder %s13, 1
      %s140 = scalar_select %p139, %s13, 1
      %s141 = smul.addr %s140, 26
      %s142 = smul.addr %s141, 8
      %s143 = scalar_lea.vmem %s2, %s142
      %v144 = vld [vmem:[%s0] sm:$0xff]
      %v145 = vld [vmem:[%s0 + $0x8] sm:$0xff]
      %v146 = vld [vmem:[%s138] sm:$0xff]
      %v147 = vld [vmem:[%s138 + $0x8] sm:$0xff]
      %v148 = vld [vmem:[%s138 + $0x10] sm:$0xff]
      %v149 = vld [vmem:[%s138 + $0x18] sm:$0xff]
      %v150 = vld [vmem:[%s138 + $0x20] sm:$0xff]
      %v151 = vld [vmem:[%s138 + $0x28] sm:$0xff]
      %v152 = vld [vmem:[%s138 + $0x30] sm:$0xff]
      %v153 = vld [vmem:[%s138 + $0x38] sm:$0xff]
      %v154 = vld [vmem:[%s138 + $0x40] sm:$0xff]
      %v155 = vld [vmem:[%s138 + $0x48] sm:$0xff]
      %v156 = vld [vmem:[%s138 + $0x50] sm:$0xff]
      %v157 = vld [vmem:[%s138 + $0x58] sm:$0xff]
      %v158 = vld [vmem:[%s138 + $0x60] sm:$0xff]
      %v159 = vld [vmem:[%s138 + $0x68] sm:$0xff]
      %v160 = vld [vmem:[%s138 + $0x70] sm:$0xff]
      %v161 = vld [vmem:[%s138 + $0x78] sm:$0xff]
      %v162 = vld [vmem:[%s138 + $0x80] sm:$0xff]
      %v163 = vld [vmem:[%s138 + $0x88] sm:$0xff]
      %v164 = vld [vmem:[%s138 + $0x90] sm:$0xff]
      %v165 = vld [vmem:[%s138 + $0x98] sm:$0xff]
      %v166 = vld [vmem:[%s138 + $0xa0] sm:$0xff]
      %v167 = vld [vmem:[%s138 + $0xa8] sm:$0xff]
      %v168 = vld [vmem:[%s138 + $0xb0] sm:$0xff]
      %v169 = vld [vmem:[%s138 + $0xb8] sm:$0xff]
      %v170 = vld [vmem:[%s138 + $0xc0] sm:$0xff]
      %v171 = vld [vmem:[%s138 + $0xc8] sm:$0xff]
      %v172 = vld [vmem:[%s138 + $0xd0] sm:$0xff]
      %v173 = vld [vmem:[%s138 + $0xd8] sm:$0xff]
      %v174 = vld [vmem:[%s138 + $0xe0] sm:$0xff]
      %v175 = vld [vmem:[%s138 + $0xe8] sm:$0xff]
      %v176 = vld [vmem:[%s138 + $0xf0] sm:$0xff]
      %v177 = vld [vmem:[%s138 + $0xf8] sm:$0xff]
      %v178 = vld [vmem:[%s138 + $0x100] sm:$0xff]
      %v179 = vld [vmem:[%s138 + $0x108] sm:$0xff]
      %v180 = vld [vmem:[%s138 + $0x110] sm:$0xff]
      %v181 = vld [vmem:[%s138 + $0x118] sm:$0xff]
      %v182 = vld [vmem:[%s138 + $0x120] sm:$0xff]
      %v183 = vld [vmem:[%s138 + $0x128] sm:$0xff]
      %v184 = vld [vmem:[%s138 + $0x130] sm:$0xff]
      %v185 = vld [vmem:[%s138 + $0x138] sm:$0xff]
      %v186 = vld [vmem:[%s138 + $0x140] sm:$0xff]
      %v187 = vld [vmem:[%s138 + $0x148] sm:$0xff]
      %v188 = vld [vmem:[%s138 + $0x150] sm:$0xff]
      %v189 = vld [vmem:[%s138 + $0x158] sm:$0xff]
      %v190 = vld [vmem:[%s138 + $0x160] sm:$0xff]
      %v191 = vld [vmem:[%s138 + $0x168] sm:$0xff]
      %v192 = vld [vmem:[%s138 + $0x170] sm:$0xff]
      %v193 = vld [vmem:[%s138 + $0x178] sm:$0xff]
      %v194 = vld [vmem:[%s138 + $0x180] sm:$0xff]
      %v195 = vld [vmem:[%s138 + $0x188] sm:$0xff]
      %v196 = vld [vmem:[%s138 + $0x190] sm:$0xff]
      %v197 = vld [vmem:[%s138 + $0x198] sm:$0xff]
      %vm198 = vcmask 261120
      %v200 = vsel %vm198, %v144, 0
      %v203 = vsel %vm198, %v145, 0
      %205 = vmatprep.subr.mxu0 0.0
      %206 = vmatpush1.msra.mxu0 0.0
      %207 = vmatprep.subr.mxu0 0.0
      %208 = vmatpush1.msra.mxu0 0.0
      %209 = vmatprep.subr.mxu0 0.0
      %210 = vmatpush1.msra.mxu0 0.0
      %211 = vmatprep.subr.mxu0 0.0
      %212 = vmatpush1.msra.mxu0 0.0
      %213 = vmatprep.subr.mxu0 0.0
      %214 = vmatpush1.msra.mxu0 0.0
      %215 = vmatprep.subr.mxu0 0.0
      %216 = vmatpush1.msra.mxu0 0.0
      %217 = vmatprep.subr.mxu0 0.0
      %218 = vmatpush1.msra.mxu0 0.0
      %219 = vmatprep.subr.mxu0 0.0
      %220 = vmatpush1.msra.mxu0 0.0
      %221 = vmatprep.subr.mxu0 0.0
      %222 = vmatpush1.msra.mxu0 0.0
      %223 = vmatprep.subr.mxu0 0.0
      %224 = vmatpush1.msra.mxu0 0.0
      %225 = vmatprep.subr.mxu0 0.0
      %226 = vmatpush1.msra.mxu0 0.0
      %227 = vmatprep.subr.mxu0 0.0
      %228 = vmatpush1.msra.mxu0 0.0
      %229 = vmatprep.subr.mxu0 %v186
      %230 = vmatpush1.msra.mxu0 %v185
      %231 = vmatprep.subr.mxu0 %v173
      %232 = vmatpush1.msra.mxu0 %v172
      %233 = vmatprep.subr.mxu0 %v160
      %234 = vmatpush1.msra.mxu0 %v159
      %235 = vmatprep.subr.mxu0 %v147
      %236 = vmatpush1.msra.mxu0 %v146
      %237 = vmatprep.subr.mxu0 0.0
      %238 = vmatpush2.msra.mxu0 0.0
      %239 = vmatprep.subr.mxu0 0.0
      %240 = vmatpush2.msra.mxu0 0.0
      %241 = vmatprep.subr.mxu0 0.0
      %242 = vmatpush2.msra.mxu0 0.0
      %243 = vmatprep.subr.mxu0 0.0
      %244 = vmatpush2.msra.mxu0 0.0
      %245 = vmatprep.subr.mxu0 0.0
      %246 = vmatpush2.msra.mxu0 0.0
      %247 = vmatprep.subr.mxu0 0.0
      %248 = vmatpush2.msra.mxu0 0.0
      %249 = vmatprep.subr.mxu0 0.0
      %250 = vmatpush2.msra.mxu0 0.0
      %251 = vmatprep.subr.mxu0 0.0
      %252 = vmatpush2.msra.mxu0 0.0
      %253 = vmatprep.subr.mxu0 0.0
      %254 = vmatpush2.msra.mxu0 0.0
      %255 = vmatprep.subr.mxu0 0.0
      %256 = vmatpush2.msra.mxu0 0.0
      %257 = vmatprep.subr.mxu0 0.0
      %258 = vmatpush2.msra.mxu0 0.0
      %259 = vmatprep.subr.mxu0 0.0
      %260 = vmatpush2.msra.mxu0 0.0
      %261 = vmatprep.subr.mxu0 0.0
      %262 = vmatpush2.msra.mxu0 0.0
      %263 = vmatprep.subr.mxu0 0.0
      %264 = vmatpush2.msra.mxu0 0.0
      %265 = vmatprep.subr.mxu0 0.0
      %266 = vmatpush2.msra.mxu0 0.0
      %267 = vmatprep.subr.mxu0 0.0
      %268 = vmatpush2.msra.mxu0 0.0
      %269 = vmatprep.mubr.f32.mxu0 0.0
      %270 = vmatmul.mubr.f32.gmra.mxu0 %v200
      %v271 = vpop.f32.mrf.mxu0
      %v272 = vadd.f32 0.0, %v271
      %v273 = vpop.f32.mrf.mxu0
      %v274 = vadd.f32 0.0, %v273
      %275 = vmatprep.mubr.f32.mxu0 0.0
      %276 = vmatmul.mubr.f32.gmra.mxu0 %v203
      %v277 = vpop.f32.mrf.mxu0
      %v278 = vadd.f32 0.0, %v277
      %v279 = vpop.f32.mrf.mxu0
      %v280 = vadd.f32 0.0, %v279
      %281 = vdwg.mxu0
      %282 = vmatprep.subr.mxu0 0.0
      %283 = vmatpush1.msra.mxu0 0.0
      %284 = vmatprep.subr.mxu0 0.0
      %285 = vmatpush1.msra.mxu0 0.0
      %286 = vmatprep.subr.mxu0 0.0
      %287 = vmatpush1.msra.mxu0 0.0
      %288 = vmatprep.subr.mxu0 0.0
      %289 = vmatpush1.msra.mxu0 0.0
      %290 = vmatprep.subr.mxu0 0.0
      %291 = vmatpush1.msra.mxu0 0.0
      %292 = vmatprep.subr.mxu0 0.0
      %293 = vmatpush1.msra.mxu0 0.0
      %294 = vmatprep.subr.mxu0 0.0
      %295 = vmatpush1.msra.mxu0 0.0
      %296 = vmatprep.subr.mxu0 0.0
      %297 = vmatpush1.msra.mxu0 0.0
      %298 = vmatprep.subr.mxu0 0.0
      %299 = vmatpush1.msra.mxu0 0.0
      %300 = vmatprep.subr.mxu0 0.0
      %301 = vmatpush1.msra.mxu0 0.0
      %302 = vmatprep.subr.mxu0 0.0
      %303 = vmatpush1.msra.mxu0 0.0
      %304 = vmatprep.subr.mxu0 0.0
      %305 = vmatpush1.msra.mxu0 0.0
      %306 = vmatprep.subr.mxu0 %v188
      %307 = vmatpush1.msra.mxu0 %v187
      %308 = vmatprep.subr.mxu0 %v175
      %309 = vmatpush1.msra.mxu0 %v174
      %310 = vmatprep.subr.mxu0 %v162
      %311 = vmatpush1.msra.mxu0 %v161
      %312 = vmatprep.subr.mxu0 %v149
      %313 = vmatpush1.msra.mxu0 %v148
      %314 = vmatprep.subr.mxu0 0.0
      %315 = vmatpush2.msra.mxu0 0.0
      %316 = vmatprep.subr.mxu0 0.0
      %317 = vmatpush2.msra.mxu0 0.0
      %318 = vmatprep.subr.mxu0 0.0
      %319 = vmatpush2.msra.mxu0 0.0
      %320 = vmatprep.subr.mxu0 0.0
      %321 = vmatpush2.msra.mxu0 0.0
      %322 = vmatprep.subr.mxu0 0.0
      %323 = vmatpush2.msra.mxu0 0.0
      %324 = vmatprep.subr.mxu0 0.0
      %325 = vmatpush2.msra.mxu0 0.0
      %326 = vmatprep.subr.mxu0 0.0
      %327 = vmatpush2.msra.mxu0 0.0
      %328 = vmatprep.subr.mxu0 0.0
      %329 = vmatpush2.msra.mxu0 0.0
      %330 = vmatprep.subr.mxu0 0.0
      %331 = vmatpush2.msra.mxu0 0.0
      %332 = vmatprep.subr.mxu0 0.0
      %333 = vmatpush2.msra.mxu0 0.0
      %334 = vmatprep.subr.mxu0 0.0
      %335 = vmatpush2.msra.mxu0 0.0
      %336 = vmatprep.subr.mxu0 0.0
      %337 = vmatpush2.msra.mxu0 0.0
      %338 = vmatprep.subr.mxu0 0.0
      %339 = vmatpush2.msra.mxu0 0.0
      %340 = vmatprep.subr.mxu0 0.0
      %341 = vmatpush2.msra.mxu0 0.0
      %342 = vmatprep.subr.mxu0 0.0
      %343 = vmatpush2.msra.mxu0 0.0
      %344 = vmatprep.subr.mxu0 0.0
      %345 = vmatpush2.msra.mxu0 0.0
      %346 = vmatprep.mubr.f32.mxu0 0.0
      %347 = vmatmul.mubr.f32.gmra.mxu0 %v200
      %v348 = vpop.f32.mrf.mxu0
      %v349 = vadd.f32 0.0, %v348
      %v350 = vpop.f32.mrf.mxu0
      %v351 = vadd.f32 0.0, %v350
      %352 = vmatprep.mubr.f32.mxu0 0.0
      %353 = vmatmul.mubr.f32.gmra.mxu0 %v203
      %v354 = vpop.f32.mrf.mxu0
      %v355 = vadd.f32 0.0, %v354
      %v356 = vpop.f32.mrf.mxu0
      %v357 = vadd.f32 0.0, %v356
      %358 = vdwg.mxu0
      %359 = vmatprep.subr.mxu0 0.0
      %360 = vmatpush1.msra.mxu0 0.0
      %361 = vmatprep.subr.mxu0 0.0
      %362 = vmatpush1.msra.mxu0 0.0
      %363 = vmatprep.subr.mxu0 0.0
      %364 = vmatpush1.msra.mxu0 0.0
      %365 = vmatprep.subr.mxu0 0.0
      %366 = vmatpush1.msra.mxu0 0.0
      %367 = vmatprep.subr.mxu0 0.0
      %368 = vmatpush1.msra.mxu0 0.0
      %369 = vmatprep.subr.mxu0 0.0
      %370 = vmatpush1.msra.mxu0 0.0
      %371 = vmatprep.subr.mxu0 0.0
      %372 = vmatpush1.msra.mxu0 0.0
      %373 = vmatprep.subr.mxu0 0.0
      %374 = vmatpush1.msra.mxu0 0.0
      %375 = vmatprep.subr.mxu0 0.0
      %376 = vmatpush1.msra.mxu0 0.0
      %377 = vmatprep.subr.mxu0 0.0
      %378 = vmatpush1.msra.mxu0 0.0
      %379 = vmatprep.subr.mxu0 0.0
      %380 = vmatpush1.msra.mxu0 0.0
      %381 = vmatprep.subr.mxu0 0.0
      %382 = vmatpush1.msra.mxu0 0.0
      %383 = vmatprep.subr.mxu0 %v190
      %384 = vmatpush1.msra.mxu0 %v189
      %385 = vmatprep.subr.mxu0 %v177
      %386 = vmatpush1.msra.mxu0 %v176
      %387 = vmatprep.subr.mxu0 %v164
      %388 = vmatpush1.msra.mxu0 %v163
      %389 = vmatprep.subr.mxu0 %v151
      %390 = vmatpush1.msra.mxu0 %v150
      %391 = vmatprep.subr.mxu0 0.0
      %392 = vmatpush2.msra.mxu0 0.0
      %393 = vmatprep.subr.mxu0 0.0
      %394 = vmatpush2.msra.mxu0 0.0
      %395 = vmatprep.subr.mxu0 0.0
      %396 = vmatpush2.msra.mxu0 0.0
      %397 = vmatprep.subr.mxu0 0.0
      %398 = vmatpush2.msra.mxu0 0.0
      %399 = vmatprep.subr.mxu0 0.0
      %400 = vmatpush2.msra.mxu0 0.0
      %401 = vmatprep.subr.mxu0 0.0
      %402 = vmatpush2.msra.mxu0 0.0
      %403 = vmatprep.subr.mxu0 0.0
      %404 = vmatpush2.msra.mxu0 0.0
      %405 = vmatprep.subr.mxu0 0.0
      %406 = vmatpush2.msra.mxu0 0.0
      %407 = vmatprep.subr.mxu0 0.0
      %408 = vmatpush2.msra.mxu0 0.0
      %409 = vmatprep.subr.mxu0 0.0
      %410 = vmatpush2.msra.mxu0 0.0
      %411 = vmatprep.subr.mxu0 0.0
      %412 = vmatpush2.msra.mxu0 0.0
      %413 = vmatprep.subr.mxu0 0.0
      %414 = vmatpush2.msra.mxu0 0.0
      %415 = vmatprep.subr.mxu0 0.0
      %416 = vmatpush2.msra.mxu0 0.0
      %417 = vmatprep.subr.mxu0 0.0
      %418 = vmatpush2.msra.mxu0 0.0
      %419 = vmatprep.subr.mxu0 0.0
      %420 = vmatpush2.msra.mxu0 0.0
      %421 = vmatprep.subr.mxu0 0.0
      %422 = vmatpush2.msra.mxu0 0.0
      %423 = vmatprep.mubr.f32.mxu0 0.0
      %424 = vmatmul.mubr.f32.gmra.mxu0 %v200
      %v425 = vpop.f32.mrf.mxu0
      %v426 = vadd.f32 0.0, %v425
      %v427 = vpop.f32.mrf.mxu0
      %v428 = vadd.f32 0.0, %v427
      %429 = vmatprep.mubr.f32.mxu0 0.0
      %430 = vmatmul.mubr.f32.gmra.mxu0 %v203
      %v431 = vpop.f32.mrf.mxu0
      %v432 = vadd.f32 0.0, %v431
      %v433 = vpop.f32.mrf.mxu0
      %v434 = vadd.f32 0.0, %v433
      %435 = vdwg.mxu0
      %436 = vmatprep.subr.mxu0 0.0
      %437 = vmatpush1.msra.mxu0 0.0
      %438 = vmatprep.subr.mxu0 0.0
      %439 = vmatpush1.msra.mxu0 0.0
      %440 = vmatprep.subr.mxu0 0.0
      %441 = vmatpush1.msra.mxu0 0.0
      %442 = vmatprep.subr.mxu0 0.0
      %443 = vmatpush1.msra.mxu0 0.0
      %444 = vmatprep.subr.mxu0 0.0
      %445 = vmatpush1.msra.mxu0 0.0
      %446 = vmatprep.subr.mxu0 0.0
      %447 = vmatpush1.msra.mxu0 0.0
      %448 = vmatprep.subr.mxu0 0.0
      %449 = vmatpush1.msra.mxu0 0.0
      %450 = vmatprep.subr.mxu0 0.0
      %451 = vmatpush1.msra.mxu0 0.0
      %452 = vmatprep.subr.mxu0 0.0
      %453 = vmatpush1.msra.mxu0 0.0
      %454 = vmatprep.subr.mxu0 0.0
      %455 = vmatpush1.msra.mxu0 0.0
      %456 = vmatprep.subr.mxu0 0.0
      %457 = vmatpush1.msra.mxu0 0.0
      %458 = vmatprep.subr.mxu0 0.0
      %459 = vmatpush1.msra.mxu0 0.0
      %460 = vmatprep.subr.mxu0 %v192
      %461 = vmatpush1.msra.mxu0 %v191
      %462 = vmatprep.subr.mxu0 %v179
      %463 = vmatpush1.msra.mxu0 %v178
      %464 = vmatprep.subr.mxu0 %v166
      %465 = vmatpush1.msra.mxu0 %v165
      %466 = vmatprep.subr.mxu0 %v153
      %467 = vmatpush1.msra.mxu0 %v152
      %468 = vmatprep.subr.mxu0 0.0
      %469 = vmatpush2.msra.mxu0 0.0
      %470 = vmatprep.subr.mxu0 0.0
      %471 = vmatpush2.msra.mxu0 0.0
      %472 = vmatprep.subr.mxu0 0.0
      %473 = vmatpush2.msra.mxu0 0.0
      %474 = vmatprep.subr.mxu0 0.0
      %475 = vmatpush2.msra.mxu0 0.0
      %476 = vmatprep.subr.mxu0 0.0
      %477 = vmatpush2.msra.mxu0 0.0
      %478 = vmatprep.subr.mxu0 0.0
      %479 = vmatpush2.msra.mxu0 0.0
      %480 = vmatprep.subr.mxu0 0.0
      %481 = vmatpush2.msra.mxu0 0.0
      %482 = vmatprep.subr.mxu0 0.0
      %483 = vmatpush2.msra.mxu0 0.0
      %484 = vmatprep.subr.mxu0 0.0
      %485 = vmatpush2.msra.mxu0 0.0
      %486 = vmatprep.subr.mxu0 0.0
      %487 = vmatpush2.msra.mxu0 0.0
      %488 = vmatprep.subr.mxu0 0.0
      %489 = vmatpush2.msra.mxu0 0.0
      %490 = vmatprep.subr.mxu0 0.0
      %491 = vmatpush2.msra.mxu0 0.0
      %492 = vmatprep.subr.mxu0 0.0
      %493 = vmatpush2.msra.mxu0 0.0
      %494 = vmatprep.subr.mxu0 0.0
      %495 = vmatpush2.msra.mxu0 0.0
      %496 = vmatprep.subr.mxu0 0.0
      %497 = vmatpush2.msra.mxu0 0.0
      %498 = vmatprep.subr.mxu0 0.0
      %499 = vmatpush2.msra.mxu0 0.0
      %500 = vmatprep.mubr.f32.mxu0 0.0
      %501 = vmatmul.mubr.f32.gmra.mxu0 %v200
      %v502 = vpop.f32.mrf.mxu0
      %v503 = vadd.f32 0.0, %v502
      %v504 = vpop.f32.mrf.mxu0
      %v505 = vadd.f32 0.0, %v504
      %506 = vmatprep.mubr.f32.mxu0 0.0
      %507 = vmatmul.mubr.f32.gmra.mxu0 %v203
      %v508 = vpop.f32.mrf.mxu0
      %v509 = vadd.f32 0.0, %v508
      %v510 = vpop.f32.mrf.mxu0
      %v511 = vadd.f32 0.0, %v510
      %512 = vdwg.mxu0
      %513 = vmatprep.subr.mxu0 0.0
      %514 = vmatpush1.msra.mxu0 0.0
      %515 = vmatprep.subr.mxu0 0.0
      %516 = vmatpush1.msra.mxu0 0.0
      %517 = vmatprep.subr.mxu0 0.0
      %518 = vmatpush1.msra.mxu0 0.0
      %519 = vmatprep.subr.mxu0 0.0
      %520 = vmatpush1.msra.mxu0 0.0
      %521 = vmatprep.subr.mxu0 0.0
      %522 = vmatpush1.msra.mxu0 0.0
      %523 = vmatprep.subr.mxu0 0.0
      %524 = vmatpush1.msra.mxu0 0.0
      %525 = vmatprep.subr.mxu0 0.0
      %526 = vmatpush1.msra.mxu0 0.0
      %527 = vmatprep.subr.mxu0 0.0
      %528 = vmatpush1.msra.mxu0 0.0
      %529 = vmatprep.subr.mxu0 0.0
      %530 = vmatpush1.msra.mxu0 0.0
      %531 = vmatprep.subr.mxu0 0.0
      %532 = vmatpush1.msra.mxu0 0.0
      %533 = vmatprep.subr.mxu0 0.0
      %534 = vmatpush1.msra.mxu0 0.0
      %535 = vmatprep.subr.mxu0 0.0
      %536 = vmatpush1.msra.mxu0 0.0
      %537 = vmatprep.subr.mxu0 %v194
      %538 = vmatpush1.msra.mxu0 %v193
      %539 = vmatprep.subr.mxu0 %v181
      %540 = vmatpush1.msra.mxu0 %v180
      %541 = vmatprep.subr.mxu0 %v168
      %542 = vmatpush1.msra.mxu0 %v167
      %543 = vmatprep.subr.mxu0 %v155
      %544 = vmatpush1.msra.mxu0 %v154
      %545 = vmatprep.subr.mxu0 0.0
      %546 = vmatpush2.msra.mxu0 0.0
      %547 = vmatprep.subr.mxu0 0.0
      %548 = vmatpush2.msra.mxu0 0.0
      %549 = vmatprep.subr.mxu0 0.0
      %550 = vmatpush2.msra.mxu0 0.0
      %551 = vmatprep.subr.mxu0 0.0
      %552 = vmatpush2.msra.mxu0 0.0
      %553 = vmatprep.subr.mxu0 0.0
      %554 = vmatpush2.msra.mxu0 0.0
      %555 = vmatprep.subr.mxu0 0.0
      %556 = vmatpush2.msra.mxu0 0.0
      %557 = vmatprep.subr.mxu0 0.0
      %558 = vmatpush2.msra.mxu0 0.0
      %559 = vmatprep.subr.mxu0 0.0
      %560 = vmatpush2.msra.mxu0 0.0
      %561 = vmatprep.subr.mxu0 0.0
      %562 = vmatpush2.msra.mxu0 0.0
      %563 = vmatprep.subr.mxu0 0.0
      %564 = vmatpush2.msra.mxu0 0.0
      %565 = vmatprep.subr.mxu0 0.0
      %566 = vmatpush2.msra.mxu0 0.0
      %567 = vmatprep.subr.mxu0 0.0
      %568 = vmatpush2.msra.mxu0 0.0
      %569 = vmatprep.subr.mxu0 0.0
      %570 = vmatpush2.msra.mxu0 0.0
      %571 = vmatprep.subr.mxu0 0.0
      %572 = vmatpush2.msra.mxu0 0.0
      %573 = vmatprep.subr.mxu0 0.0
      %574 = vmatpush2.msra.mxu0 0.0
      %575 = vmatprep.subr.mxu0 0.0
      %576 = vmatpush2.msra.mxu0 0.0
      %577 = vmatprep.mubr.f32.mxu0 0.0
      %578 = vmatmul.mubr.f32.gmra.mxu0 %v200
      %v579 = vpop.f32.mrf.mxu0
      %v580 = vadd.f32 0.0, %v579
      %v581 = vpop.f32.mrf.mxu0
      %v582 = vadd.f32 0.0, %v581
      %583 = vmatprep.mubr.f32.mxu0 0.0
      %584 = vmatmul.mubr.f32.gmra.mxu0 %v203
      %v585 = vpop.f32.mrf.mxu0
      %v586 = vadd.f32 0.0, %v585
      %v587 = vpop.f32.mrf.mxu0
      %v588 = vadd.f32 0.0, %v587
      %589 = vdwg.mxu0
      %590 = vmatprep.subr.mxu0 0.0
      %591 = vmatpush1.msra.mxu0 0.0
      %592 = vmatprep.subr.mxu0 0.0
      %593 = vmatpush1.msra.mxu0 0.0
      %594 = vmatprep.subr.mxu0 0.0
      %595 = vmatpush1.msra.mxu0 0.0
      %596 = vmatprep.subr.mxu0 0.0
      %597 = vmatpush1.msra.mxu0 0.0
      %598 = vmatprep.subr.mxu0 0.0
      %599 = vmatpush1.msra.mxu0 0.0
      %600 = vmatprep.subr.mxu0 0.0
      %601 = vmatpush1.msra.mxu0 0.0
      %602 = vmatprep.subr.mxu0 0.0
      %603 = vmatpush1.msra.mxu0 0.0
      %604 = vmatprep.subr.mxu0 0.0
      %605 = vmatpush1.msra.mxu0 0.0
      %606 = vmatprep.subr.mxu0 0.0
      %607 = vmatpush1.msra.mxu0 0.0
      %608 = vmatprep.subr.mxu0 0.0
      %609 = vmatpush1.msra.mxu0 0.0
      %610 = vmatprep.subr.mxu0 0.0
      %611 = vmatpush1.msra.mxu0 0.0
      %612 = vmatprep.subr.mxu0 0.0
      %613 = vmatpush1.msra.mxu0 0.0
      %614 = vmatprep.subr.mxu0 %v196
      %615 = vmatpush1.msra.mxu0 %v195
      %616 = vmatprep.subr.mxu0 %v183
      %617 = vmatpush1.msra.mxu0 %v182
      %618 = vmatprep.subr.mxu0 %v170
      %619 = vmatpush1.msra.mxu0 %v169
      %620 = vmatprep.subr.mxu0 %v157
      %621 = vmatpush1.msra.mxu0 %v156
      %622 = vmatprep.subr.mxu0 0.0
      %623 = vmatpush2.msra.mxu0 0.0
      %624 = vmatprep.subr.mxu0 0.0
      %625 = vmatpush2.msra.mxu0 0.0
      %626 = vmatprep.subr.mxu0 0.0
      %627 = vmatpush2.msra.mxu0 0.0
      %628 = vmatprep.subr.mxu0 0.0
      %629 = vmatpush2.msra.mxu0 0.0
      %630 = vmatprep.subr.mxu0 0.0
      %631 = vmatpush2.msra.mxu0 0.0
      %632 = vmatprep.subr.mxu0 0.0
      %633 = vmatpush2.msra.mxu0 0.0
      %634 = vmatprep.subr.mxu0 0.0
      %635 = vmatpush2.msra.mxu0 0.0
      %636 = vmatprep.subr.mxu0 0.0
      %637 = vmatpush2.msra.mxu0 0.0
      %638 = vmatprep.subr.mxu0 0.0
      %639 = vmatpush2.msra.mxu0 0.0
      %640 = vmatprep.subr.mxu0 0.0
      %641 = vmatpush2.msra.mxu0 0.0
      %642 = vmatprep.subr.mxu0 0.0
      %643 = vmatpush2.msra.mxu0 0.0
      %644 = vmatprep.subr.mxu0 0.0
      %645 = vmatpush2.msra.mxu0 0.0
      %646 = vmatprep.subr.mxu0 0.0
      %647 = vmatpush2.msra.mxu0 0.0
      %648 = vmatprep.subr.mxu0 0.0
      %649 = vmatpush2.msra.mxu0 0.0
      %650 = vmatprep.subr.mxu0 0.0
      %651 = vmatpush2.msra.mxu0 0.0
      %652 = vmatprep.subr.mxu0 0.0
      %653 = vmatpush2.msra.mxu0 0.0
      %654 = vmatprep.mubr.f32.mxu0 0.0
      %655 = vmatmul.mubr.f32.gmra.mxu0 %v200
      %v656 = vpop.f32.mrf.mxu0
      %v657 = vadd.f32 0.0, %v656
      %v658 = vpop.f32.mrf.mxu0
      %v659 = vadd.f32 0.0, %v658
      %660 = vmatprep.mubr.f32.mxu0 0.0
      %661 = vmatmul.mubr.f32.gmra.mxu0 %v203
      %v662 = vpop.f32.mrf.mxu0
      %v663 = vadd.f32 0.0, %v662
      %v664 = vpop.f32.mrf.mxu0
      %v665 = vadd.f32 0.0, %v664
      %666 = vdwg.mxu0
      %667 = vmatprep.subr.mxu0 0.0
      %668 = vmatpush1.msra.mxu0 0.0
      %669 = vmatprep.subr.mxu0 0.0
      %670 = vmatpush1.msra.mxu0 0.0
      %671 = vmatprep.subr.mxu0 0.0
      %672 = vmatpush1.msra.mxu0 0.0
      %673 = vmatprep.subr.mxu0 0.0
      %674 = vmatpush1.msra.mxu0 0.0
      %675 = vmatprep.subr.mxu0 0.0
      %676 = vmatpush1.msra.mxu0 0.0
      %677 = vmatprep.subr.mxu0 0.0
      %678 = vmatpush1.msra.mxu0 0.0
      %679 = vmatprep.subr.mxu0 0.0
      %680 = vmatpush1.msra.mxu0 0.0
      %681 = vmatprep.subr.mxu0 0.0
      %682 = vmatpush1.msra.mxu0 0.0
      %683 = vmatprep.subr.mxu0 0.0
      %684 = vmatpush1.msra.mxu0 0.0
      %685 = vmatprep.subr.mxu0 0.0
      %686 = vmatpush1.msra.mxu0 0.0
      %687 = vmatprep.subr.mxu0 0.0
      %688 = vmatpush1.msra.mxu0 0.0
      %689 = vmatprep.subr.mxu0 0.0
      %690 = vmatpush1.msra.mxu0 0.0
      %691 = vmatprep.subr.mxu0 0.0
      %692 = vmatpush1.msra.mxu0 %v197
      %693 = vmatprep.subr.mxu0 0.0
      %694 = vmatpush1.msra.mxu0 %v184
      %695 = vmatprep.subr.mxu0 0.0
      %696 = vmatpush1.msra.mxu0 %v171
      %697 = vmatprep.subr.mxu0 0.0
      %698 = vmatpush1.msra.mxu0 %v158
      %699 = vmatprep.subr.mxu0 0.0
      %700 = vmatpush2.msra.mxu0 0.0
      %701 = vmatprep.subr.mxu0 0.0
      %702 = vmatpush2.msra.mxu0 0.0
      %703 = vmatprep.subr.mxu0 0.0
      %704 = vmatpush2.msra.mxu0 0.0
      %705 = vmatprep.subr.mxu0 0.0
      %706 = vmatpush2.msra.mxu0 0.0
      %707 = vmatprep.subr.mxu0 0.0
      %708 = vmatpush2.msra.mxu0 0.0
      %709 = vmatprep.subr.mxu0 0.0
      %710 = vmatpush2.msra.mxu0 0.0
      %711 = vmatprep.subr.mxu0 0.0
      %712 = vmatpush2.msra.mxu0 0.0
      %713 = vmatprep.subr.mxu0 0.0
      %714 = vmatpush2.msra.mxu0 0.0
      %715 = vmatprep.subr.mxu0 0.0
      %716 = vmatpush2.msra.mxu0 0.0
      %717 = vmatprep.subr.mxu0 0.0
      %718 = vmatpush2.msra.mxu0 0.0
      %719 = vmatprep.subr.mxu0 0.0
      %720 = vmatpush2.msra.mxu0 0.0
      %721 = vmatprep.subr.mxu0 0.0
      %722 = vmatpush2.msra.mxu0 0.0
      %723 = vmatprep.subr.mxu0 0.0
      %724 = vmatpush2.msra.mxu0 0.0
      %725 = vmatprep.subr.mxu0 0.0
      %726 = vmatpush2.msra.mxu0 0.0
      %727 = vmatprep.subr.mxu0 0.0
      %728 = vmatpush2.msra.mxu0 0.0
      %729 = vmatprep.subr.mxu0 0.0
      %730 = vmatpush2.msra.mxu0 0.0
      %731 = vmatprep.mubr.f32.mxu0 0.0
      %732 = vmatmul.mubr.f32.gmra.mxu0 %v200
      %v733 = vpop.f32.mrf.mxu0
      %v734 = vadd.f32 0.0, %v733
      %v735 = vpop.f32.mrf.mxu0
      %736 = vmatprep.mubr.f32.mxu0 0.0
      %737 = vmatmul.mubr.f32.gmra.mxu0 %v203
      %v738 = vpop.f32.mrf.mxu0
      %v739 = vadd.f32 0.0, %v738
      %v740 = vpop.f32.mrf.mxu0
      %741 = vdwg.mxu0
      %742 = vst [vmem:[%s143] sm:$0xff] %v272
      %743 = vst [vmem:[%s143 + $0x8] sm:$0xff] %v274
      %744 = vst [vmem:[%s143 + $0x10] sm:$0xff] %v349
      %745 = vst [vmem:[%s143 + $0x18] sm:$0xff] %v351
      %746 = vst [vmem:[%s143 + $0x20] sm:$0xff] %v426
      %747 = vst [vmem:[%s143 + $0x28] sm:$0xff] %v428
      %748 = vst [vmem:[%s143 + $0x30] sm:$0xff] %v503
      %749 = vst [vmem:[%s143 + $0x38] sm:$0xff] %v505
      %750 = vst [vmem:[%s143 + $0x40] sm:$0xff] %v580
      %751 = vst [vmem:[%s143 + $0x48] sm:$0xff] %v582
      %752 = vst [vmem:[%s143 + $0x50] sm:$0xff] %v657
      %753 = vst [vmem:[%s143 + $0x58] sm:$0xff] %v659
      %754 = vst [vmem:[%s143 + $0x60] sm:$0xff] %v734
      %755 = vst [vmem:[%s143 + $0x68] sm:$0xff] %v278
      %756 = vst [vmem:[%s143 + $0x70] sm:$0xff] %v280
      %757 = vst [vmem:[%s143 + $0x78] sm:$0xff] %v355
      %758 = vst [vmem:[%s143 + $0x80] sm:$0xff] %v357
      %759 = vst [vmem:[%s143 + $0x88] sm:$0xff] %v432
      %760 = vst [vmem:[%s143 + $0x90] sm:$0xff] %v434
      %761 = vst [vmem:[%s143 + $0x98] sm:$0xff] %v509
      %762 = vst [vmem:[%s143 + $0xa0] sm:$0xff] %v511
      %763 = vst [vmem:[%s143 + $0xa8] sm:$0xff] %v586
      %764 = vst [vmem:[%s143 + $0xb0] sm:$0xff] %v588
      %765 = vst [vmem:[%s143 + $0xb8] sm:$0xff] %v663
      %766 = vst [vmem:[%s143 + $0xc0] sm:$0xff] %v665
      %767 = vst [vmem:[%s143 + $0xc8] sm:$0xff] %v739
      %p768 = scmp.lt.s32.totalorder %s13, 1
      %s769 = scalar_select %p768, %s13, 1
      %s770 = smul.addr %s769, 26
      %s771 = smul.addr %s770, 8
      %s772 = scalar_lea.vmem %s2, %s771
      // Predicated region
      $region29: #{neck_forward.26} parent=27 // pred_check
        %p773 = pneg %p78
      $region30: #{neck_forward.26} parent=27 // pred_check_branch
        %775 = sbr.rel (%p773) target = $region32
      $region31: #{neck_forward.26} parent=27 // pred_region
        _
      $region32: #{neck_forward.26} parent=27 // pred_fallthru
        _
    $region28: #{neck_forward.26} parent=5 // pred_fallthru
      _
    %p776 = scmp.le.s32.totalorder 2, %s8
    // Predicated region
    $region33: #{neck_forward.26} parent=5 // pred_check
      %p777 = pneg %p776
    $region34: #{neck_forward.26} parent=5 // pred_check_branch
      %779 = sbr.rel (%p777) target = $region36
    $region35: #{neck_forward.26} parent=5 // pred_region
      %s780 = ssub.s32 %s8, 2
      // Predicated region
      $region37: #{neck_forward.26} parent=35 // pred_check
        %p781 = pneg %p84
      $region38: #{neck_forward.26} parent=35 // pred_check_branch
        %783 = sbr.rel (%p781) target = $region40
      $region39: #{neck_forward.26} parent=35 // pred_region
        %p784 = scmp.lt.s32.totalorder %s14, 1
        %s785 = scalar_select %p784, %s14, 1
        %s786 = smul.addr %s785, 26
        %s787 = smul.addr %s786, 8
        %s788 = scalar_lea.vmem %s2, %s787
      $region40: #{neck_forward.26} parent=35 // pred_fallthru
        _
    $region36: #{neck_forward.26} parent=5 // pred_fallthru
      _
  $region6: #{neck_forward.26} parent=0 // loop_footer
    %s12 = sadd.s32 1, %s8
  $region7: #{neck_forward.26} parent=0 // loop_footer_branch
    %7 = sbr.rel target = $region3
  $region8: #{neck_forward.26} parent=0 // loop_exit
    _

// kernel: neck_forward.27
$region0: #{neck_forward.27}
  #allocation0 [shape = 'u32[]', space=smem, size = 0x4, offset = 0x4, fixed_abs, tag = 'smem constant byte address 0x4 - core index']
  #allocation1 [shape = 'u32[144,128]{1,0:T(1,128)}', space=vmem, size = 0x12000, scoped, tag = 'internal scratch']
  %s0 = inlined_call_operand.vmem [shape: f32[16,32], index: 0, kind: input, shape index: {}]
  %s1 = inlined_call_operand.vmem [shape: f32[32,32,52], index: 1, kind: input, shape index: {}]
  %s2 = inlined_call_operand.vmem [shape: f32[32,16,52], index: 2, kind: output, shape index: {}]
  %s3 = sld [smem:[#allocation0]]
  $region41: #{neck_forward.27} parent=0
    _
  %s5 = ssub.s32 1, %s3
  %s6 = scalar_select 0, %s5, %s3
  loop: start=0, step=1, limit=34
  $region2: #{neck_forward.27} parent=0 // loop_pre_header
    _
  $region3: #{neck_forward.27} parent=0 // loop_header
    %s8 = sphi 0, %s12
    %p9 = scmp.ge.s32.totalorder %s8, 34
    %s16 = sphi 0, %s16
    %s18 = sphi 0, %s16
    %s19 = sphi 0, %s18
    %s33 = sphi 0, %s19
    %s39 = sphi 0, %s41
    %s42 = sphi 0, %s39
    %s43 = sphi 0, %s42
    %s59 = sphi 0, %s43
    %s65 = sphi 0, %s67
    %s68 = sphi 0, %s65
    %s69 = sphi 0, %s68
    %s85 = sphi 0, %s69
  $region4: #{neck_forward.27} parent=0 // loop_header_branch
    %11 = sbr.rel (%p9) target = $region8
  $region5: #{neck_forward.27} parent=0 // loop_body
    %s13 = ssub.s32 %s8, 1
    %s14 = ssub.s32 %s8, 2
    %s15 = sadd.s32 %s8, 1
    %s17 = sadd.s32 %s16, 1
    %p20 = scmp.eq.s32.totalorder %s8, 31
    %p21 = scmp.ne.s32.totalorder %s16, %s18
    %p22 = scmp.eq.s32.totalorder %s8, 0
    %p23 = por %p21, %p22
    %p24 = scmp.ne.s32.totalorder %s16, %s18
    %p25 = scmp.eq.s32.totalorder %s13, 31
    %p26 = por %p24, %p25
    %p27 = scmp.ne.s32.totalorder %s18, %s19
    %p28 = scmp.eq.s32.totalorder %s13, 0
    %p29 = por %p27, %p28
    %p30 = scmp.ne.s32.totalorder %s18, %s19
    %p31 = scmp.eq.s32.totalorder %s14, 31
    %p32 = por %p30, %p31
    %p34 = scmp.ne.s32.totalorder %s19, %s33
    %p35 = scmp.eq.s32.totalorder %s14, 0
    %p36 = por %p34, %p35
    %s37 = ssub.s32 %s8, %s15
    %p38 = scmp.eq.s32.totalorder %s37, 0
    %s40 = sadd.s32 %s39, 1
    %s41 = scalar_select %p38, %s39, %s40
    %p44 = pneg %p38
    %p45 = scmp.eq.s32.totalorder %s8, 31
    %p46 = por %p44, %p45
    %p47 = scmp.ne.s32.totalorder %s39, %s42
    %p48 = scmp.eq.s32.totalorder %s8, 0
    %p49 = por %p47, %p48
    %p50 = scmp.ne.s32.totalorder %s39, %s42
    %p51 = scmp.eq.s32.totalorder %s13, 31
    %p52 = por %p50, %p51
    %p53 = scmp.ne.s32.totalorder %s42, %s43
    %p54 = scmp.eq.s32.totalorder %s13, 0
    %p55 = por %p53, %p54
    %p56 = scmp.ne.s32.totalorder %s42, %s43
    %p57 = scmp.eq.s32.totalorder %s14, 31
    %p58 = por %p56, %p57
    %p60 = scmp.ne.s32.totalorder %s43, %s59
    %p61 = scmp.eq.s32.totalorder %s14, 0
    %p62 = por %p60, %p61
    %s63 = ssub.s32 %s8, %s15
    %p64 = scmp.eq.s32.totalorder %s63, 0
    %s66 = sadd.s32 %s65, 1
    %s67 = scalar_select %p64, %s65, %s66
    %p70 = pneg %p64
    %p71 = scmp.eq.s32.totalorder %s8, 31
    %p72 = por %p70, %p71
    %p73 = scmp.ne.s32.totalorder %s65, %s68
    %p74 = scmp.eq.s32.totalorder %s8, 0
    %p75 = por %p73, %p74
    %p76 = scmp.ne.s32.totalorder %s65, %s68
    %p77 = scmp.eq.s32.totalorder %s13, 31
    %p78 = por %p76, %p77
    %p79 = scmp.ne.s32.totalorder %s68, %s69
    %p80 = scmp.eq.s32.totalorder %s13, 0
    %p81 = por %p79, %p80
    %p82 = scmp.ne.s32.totalorder %s68, %s69
    %p83 = scmp.eq.s32.totalorder %s14, 31
    %p84 = por %p82, %p83
    %p86 = scmp.ne.s32.totalorder %s69, %s85
    %p87 = scmp.eq.s32.totalorder %s14, 0
    %p88 = por %p86, %p87
    %p89 = scmp.le.s32.totalorder 1, %s8
    %p90 = scmp.lt.s32.totalorder %s8, 33
    %p91 = pnand %p89, %p90
    %p92 = pneg %p91
    // Predicated region
    $region9: #{neck_forward.27} parent=5 // pred_check
      _
    $region10: #{neck_forward.27} parent=5 // pred_check_branch
      %94 = sbr.rel (%p91) target = $region12
    $region11: #{neck_forward.27} parent=5 // pred_region
      %s95 = ssub.s32 %s8, 1
      // Predicated region
      $region13: #{neck_forward.27} parent=11 // pred_check
        %p96 = pneg %p29
      $region14: #{neck_forward.27} parent=11 // pred_check_branch
        %98 = sbr.rel (%p96) target = $region16
      $region15: #{neck_forward.27} parent=11 // pred_region
        _
      $region16: #{neck_forward.27} parent=11 // pred_fallthru
        _
    $region12: #{neck_forward.27} parent=5 // pred_fallthru
      _
    %p99 = scmp.lt.s32.totalorder %s8, 32
    // Predicated region
    $region17: #{neck_forward.27} parent=5 // pred_check
      %p100 = pneg %p99
    $region18: #{neck_forward.27} parent=5 // pred_check_branch
      %102 = sbr.rel (%p100) target = $region20
    $region19: #{neck_forward.27} parent=5 // pred_region
      // Predicated region
      $region21: #{neck_forward.27} parent=19 // pred_check
        %p103 = pneg %p49
      $region22: #{neck_forward.27} parent=19 // pred_check_branch
        %105 = sbr.rel (%p103) target = $region24
      $region23: #{neck_forward.27} parent=19 // pred_region
        %p106 = scmp.lt.s32.totalorder %s8, 31
        %s107 = scalar_select %p106, %s8, 31
        %s108 = smul.addr %s107, 4
        %s109 = smul.addr %s108, 8
        %s110 = scalar_lea.vmem %s1, %s109
      $region24: #{neck_forward.27} parent=19 // pred_fallthru
        _
    $region20: #{neck_forward.27} parent=5 // pred_fallthru
      _
    %p111 = scmp.le.s32.totalorder 1, %s8
    %p112 = scmp.lt.s32.totalorder %s8, 33
    %p113 = pnand %p111, %p112
    %p114 = pneg %p113
    // Predicated region
    $region25: #{neck_forward.27} parent=5 // pred_check
      _
    $region26: #{neck_forward.27} parent=5 // pred_check_branch
      %116 = sbr.rel (%p113) target = $region28
    $region27: #{neck_forward.27} parent=5 // pred_region
      %s117 = ssub.s32 %s8, 1
      %p118 = pneg %p29
      %p119 = pneg %p26
      %p120 = scmp.lt.s32.totalorder %s13, 31
      %s121 = scalar_select %p120, %s13, 31
      %s122 = smul.addr %s121, 4
      %s123 = smul.addr %s122, 8
      %s124 = scalar_lea.vmem %s1, %s123
      %p125 = pneg %p55
      %p126 = pneg %p52
      %p127 = pneg %p81
      %p128 = pneg %p78
      %p129 = scmp.lt.s32.totalorder %s13, 31
      %s130 = scalar_select %p129, %s13, 31
      %s131 = smul.addr %s130, 2
      %s132 = smul.addr %s131, 8
      %s133 = scalar_lea.vmem %s2, %s132
      %p134 = scmp.lt.s32.totalorder %s13, 31
      %s135 = scalar_select %p134, %s13, 31
      %s136 = smul.addr %s135, 4
      %s137 = smul.addr %s136, 8
      %s138 = scalar_lea.vmem %s1, %s137
      %p139 = scmp.lt.s32.totalorder %s13, 31
      %s140 = scalar_select %p139, %s13, 31
      %s141 = smul.addr %s140, 2
      %s142 = smul.addr %s141, 8
      %s143 = scalar_lea.vmem %s2, %s142
      %v144 = vld [vmem:[%s0] sm:$0xff]
      %v145 = vld [vmem:[%s0 + $0x8] sm:$0xff]
      %v146 = vld [vmem:[%s138] sm:$0xff]
      %v147 = vld [vmem:[%s138 + $0x8] sm:$0xff]
      %v148 = vld [vmem:[%s138 + $0x10] sm:$0xff]
      %v149 = vld [vmem:[%s138 + $0x18] sm:$0xff]
      %vm150 = vcmask 261120
      %v152 = vsel %vm150, %v144, 0
      %v155 = vsel %vm150, %v145, 0
      %157 = vmatprep.subr.mxu0 0.0
      %158 = vmatpush1.msra.mxu0 0.0
      %159 = vmatprep.subr.mxu0 0.0
      %160 = vmatpush1.msra.mxu0 0.0
      %161 = vmatprep.subr.mxu0 0.0
      %162 = vmatpush1.msra.mxu0 0.0
      %163 = vmatprep.subr.mxu0 0.0
      %164 = vmatpush1.msra.mxu0 0.0
      %165 = vmatprep.subr.mxu0 0.0
      %166 = vmatpush1.msra.mxu0 0.0
      %167 = vmatprep.subr.mxu0 0.0
      %168 = vmatpush1.msra.mxu0 0.0
      %169 = vmatprep.subr.mxu0 0.0
      %170 = vmatpush1.msra.mxu0 0.0
      %171 = vmatprep.subr.mxu0 0.0
      %172 = vmatpush1.msra.mxu0 0.0
      %173 = vmatprep.subr.mxu0 0.0
      %174 = vmatpush1.msra.mxu0 0.0
      %175 = vmatprep.subr.mxu0 0.0
      %176 = vmatpush1.msra.mxu0 0.0
      %177 = vmatprep.subr.mxu0 0.0
      %178 = vmatpush1.msra.mxu0 0.0
      %179 = vmatprep.subr.mxu0 0.0
      %180 = vmatpush1.msra.mxu0 0.0
      %181 = vmatprep.subr.mxu0 0.0
      %182 = vmatpush1.msra.mxu0 %v149
      %183 = vmatprep.subr.mxu0 0.0
      %184 = vmatpush1.msra.mxu0 %v148
      %185 = vmatprep.subr.mxu0 0.0
      %186 = vmatpush1.msra.mxu0 %v147
      %187 = vmatprep.subr.mxu0 0.0
      %188 = vmatpush1.msra.mxu0 %v146
      %189 = vmatprep.subr.mxu0 0.0
      %190 = vmatpush2.msra.mxu0 0.0
      %191 = vmatprep.subr.mxu0 0.0
      %192 = vmatpush2.msra.mxu0 0.0
      %193 = vmatprep.subr.mxu0 0.0
      %194 = vmatpush2.msra.mxu0 0.0
      %195 = vmatprep.subr.mxu0 0.0
      %196 = vmatpush2.msra.mxu0 0.0
      %197 = vmatprep.subr.mxu0 0.0
      %198 = vmatpush2.msra.mxu0 0.0
      %199 = vmatprep.subr.mxu0 0.0
      %200 = vmatpush2.msra.mxu0 0.0
      %201 = vmatprep.subr.mxu0 0.0
      %202 = vmatpush2.msra.mxu0 0.0
      %203 = vmatprep.subr.mxu0 0.0
      %204 = vmatpush2.msra.mxu0 0.0
      %205 = vmatprep.subr.mxu0 0.0
      %206 = vmatpush2.msra.mxu0 0.0
      %207 = vmatprep.subr.mxu0 0.0
      %208 = vmatpush2.msra.mxu0 0.0
      %209 = vmatprep.subr.mxu0 0.0
      %210 = vmatpush2.msra.mxu0 0.0
      %211 = vmatprep.subr.mxu0 0.0
      %212 = vmatpush2.msra.mxu0 0.0
      %213 = vmatprep.subr.mxu0 0.0
      %214 = vmatpush2.msra.mxu0 0.0
      %215 = vmatprep.subr.mxu0 0.0
      %216 = vmatpush2.msra.mxu0 0.0
      %217 = vmatprep.subr.mxu0 0.0
      %218 = vmatpush2.msra.mxu0 0.0
      %219 = vmatprep.subr.mxu0 0.0
      %220 = vmatpush2.msra.mxu0 0.0
      %221 = vmatprep.mubr.f32.mxu0 0.0
      %222 = vmatmul.mubr.f32.gmra.mxu0 %v152
      %v223 = vpop.f32.mrf.mxu0
      %v224 = vadd.f32 0.0, %v223
      %v225 = vpop.f32.mrf.mxu0
      %226 = vmatprep.mubr.f32.mxu0 0.0
      %227 = vmatmul.mubr.f32.gmra.mxu0 %v155
      %v228 = vpop.f32.mrf.mxu0
      %v229 = vadd.f32 0.0, %v228
      %v230 = vpop.f32.mrf.mxu0
      %231 = vdwg.mxu0
      %vm232 = vcmask 424960
      %233 = vst.msk [vmem:[%s143] sm:$0xff] %vm232, %v224
      %234 = vst.msk [vmem:[%s143 + $0x8] sm:$0xff] %vm232, %v229
      %p235 = scmp.lt.s32.totalorder %s13, 31
      %s236 = scalar_select %p235, %s13, 31
      %s237 = smul.addr %s236, 2
      %s238 = smul.addr %s237, 8
      %s239 = scalar_lea.vmem %s2, %s238
      // Predicated region
      $region29: #{neck_forward.27} parent=27 // pred_check
        %p240 = pneg %p78
      $region30: #{neck_forward.27} parent=27 // pred_check_branch
        %242 = sbr.rel (%p240) target = $region32
      $region31: #{neck_forward.27} parent=27 // pred_region
        _
      $region32: #{neck_forward.27} parent=27 // pred_fallthru
        _
    $region28: #{neck_forward.27} parent=5 // pred_fallthru
      _
    %p243 = scmp.le.s32.totalorder 2, %s8
    // Predicated region
    $region33: #{neck_forward.27} parent=5 // pred_check
      %p244 = pneg %p243
    $region34: #{neck_forward.27} parent=5 // pred_check_branch
      %246 = sbr.rel (%p244) target = $region36
    $region35: #{neck_forward.27} parent=5 // pred_region
      %s247 = ssub.s32 %s8, 2
      // Predicated region
      $region37: #{neck_forward.27} parent=35 // pred_check
        %p248 = pneg %p84
      $region38: #{neck_forward.27} parent=35 // pred_check_branch
        %250 = sbr.rel (%p248) target = $region40
      $region39: #{neck_forward.27} parent=35 // pred_region
        %p251 = scmp.lt.s32.totalorder %s14, 31
        %s252 = scalar_select %p251, %s14, 31
        %s253 = smul.addr %s252, 2
        %s254 = smul.addr %s253, 8
        %s255 = scalar_lea.vmem %s2, %s254
      $region40: #{neck_forward.27} parent=35 // pred_fallthru
        _
    $region36: #{neck_forward.27} parent=5 // pred_fallthru
      _
  $region6: #{neck_forward.27} parent=0 // loop_footer
    %s12 = sadd.s32 1, %s8
  $region7: #{neck_forward.27} parent=0 // loop_footer_branch
    %7 = sbr.rel target = $region3
  $region8: #{neck_forward.27} parent=0 // loop_exit
    _

// kernel: neck_forward.28
$region0: #{neck_forward.28}
  #allocation0 [shape = 'u32[]', space=smem, size = 0x4, offset = 0x4, fixed_abs, tag = 'smem constant byte address 0x4 - core index']
  #allocation1 [shape = 'u32[144,128]{1,0:T(1,128)}', space=vmem, size = 0x12000, scoped, tag = 'internal scratch']
  #allocation2 [shape = 'f32[256,128]{1,0:T(8,128)}', space=vmem, size = 0x20000, scoped, tag = 'scratch operand']
  %s0 = inlined_call_operand.vmem [shape: bf16[512,128], index: 0, kind: input, shape index: {}]
  %s1 = inlined_call_operand.vmem [shape: bf16[128,128], index: 1, kind: input, shape index: {}]
  %s2 = inlined_call_operand.vmem [shape: f32[1,128], index: 2, kind: input, shape index: {}]
  %s3 = inlined_call_operand.vmem [shape: bf16[128,128], index: 3, kind: input, shape index: {}]
  %s4 = inlined_call_operand.vmem [shape: f32[1,128], index: 4, kind: input, shape index: {}]
  %s5 = inlined_call_operand.vmem [shape: bf16[128,128], index: 5, kind: input, shape index: {}]
  %s6 = inlined_call_operand.vmem [shape: f32[512,128], index: 6, kind: output, shape index: {}]
  %s7 = sld [smem:[#allocation0]]
  $region65: #{neck_forward.28} parent=0
    _
  %s9 = ssub.s32 1, %s7
  %s10 = scalar_select 0, %s9, %s7
  loop: start=0, step=1, limit=4
  $region2: #{neck_forward.28} parent=0 // loop_pre_header
    _
  $region3: #{neck_forward.28} parent=0 // loop_header
    %s12 = sphi 0, %s16
    %p13 = scmp.ge.s32.totalorder %s12, 4
    %s19 = sphi 0, %s31
    %s20 = sphi 0, %s27
    %s21 = sphi 0, %s19
    %s22 = sphi 0, %s20
    %s23 = sphi 0, %s21
    %s24 = sphi 0, %s22
    %s36 = sphi 0, %s38
    %s39 = sphi 0, %s36
    %s40 = sphi 0, %s39
    %s56 = sphi 0, %s40
    %s62 = sphi 0, %s64
    %s65 = sphi 0, %s62
    %s66 = sphi 0, %s65
    %s82 = sphi 0, %s66
    %s86 = sphi 0, %s86
    %s88 = sphi 0, %s86
    %s89 = sphi 0, %s88
    %s103 = sphi 0, %s89
    %s107 = sphi 0, %s107
    %s109 = sphi 0, %s107
    %s110 = sphi 0, %s109
    %s124 = sphi 0, %s110
    %s128 = sphi 0, %s128
    %s130 = sphi 0, %s128
    %s131 = sphi 0, %s130
    %s145 = sphi 0, %s131
    %s149 = sphi 0, %s149
    %s151 = sphi 0, %s149
    %s152 = sphi 0, %s151
    %s166 = sphi 0, %s152
    %s172 = sphi 0, %s174
    %s175 = sphi 0, %s172
    %s176 = sphi 0, %s175
    %s192 = sphi 0, %s176
  $region4: #{neck_forward.28} parent=0 // loop_header_branch
    %15 = sbr.rel (%p13) target = $region8
  $region5: #{neck_forward.28} parent=0 // loop_body
    %s17 = ssub.s32 %s12, 1
    %s18 = ssub.s32 %s12, 2
    %s25 = sadd.s32 1, %s20
    %p26 = scmp.ge.s32.totalorder %s25, 1
    %s27 = scalar_select %p26, 0, %s25
    %s28 = sadd.s32 1, %s19
    %s29 = scalar_select %p26, %s28, %s19
    %p30 = scmp.ge.s32.totalorder %s29, 2
    %s31 = scalar_select %p30, 0, %s29
    %s32 = ssub.s32 %s19, %s31
    %s33 = ssub.s32 %s20, %s27
    %s34 = sor.u32 %s32, %s33
    %p35 = scmp.eq.s32.totalorder %s34, 0
    %s37 = sadd.s32 %s36, 1
    %s38 = scalar_select %p35, %s36, %s37
    %p41 = pneg %p35
    %p42 = scmp.eq.s32.totalorder %s12, 1
    %p43 = por %p41, %p42
    %p44 = scmp.ne.s32.totalorder %s36, %s39
    %p45 = scmp.eq.s32.totalorder %s12, 0
    %p46 = por %p44, %p45
    %p47 = scmp.ne.s32.totalorder %s36, %s39
    %p48 = scmp.eq.s32.totalorder %s17, 1
    %p49 = por %p47, %p48
    %p50 = scmp.ne.s32.totalorder %s39, %s40
    %p51 = scmp.eq.s32.totalorder %s17, 0
    %p52 = por %p50, %p51
    %p53 = scmp.ne.s32.totalorder %s39, %s40
    %p54 = scmp.eq.s32.totalorder %s18, 1
    %p55 = por %p53, %p54
    %p57 = scmp.ne.s32.totalorder %s40, %s56
    %p58 = scmp.eq.s32.totalorder %s18, 0
    %p59 = por %p57, %p58
    %s60 = ssub.s32 %s20, %s27
    %p61 = scmp.eq.s32.totalorder %s60, 0
    %s63 = sadd.s32 %s62, 1
    %s64 = scalar_select %p61, %s62, %s63
    %p67 = pneg %p61
    %p68 = scmp.eq.s32.totalorder %s12, 1
    %p69 = por %p67, %p68
    %p70 = scmp.ne.s32.totalorder %s62, %s65
    %p71 = scmp.eq.s32.totalorder %s12, 0
    %p72 = por %p70, %p71
    %p73 = scmp.ne.s32.totalorder %s62, %s65
    %p74 = scmp.eq.s32.totalorder %s17, 1
    %p75 = por %p73, %p74
    %p76 = scmp.ne.s32.totalorder %s65, %s66
    %p77 = scmp.eq.s32.totalorder %s17, 0
    %p78 = por %p76, %p77
    %p79 = scmp.ne.s32.totalorder %s65, %s66
    %p80 = scmp.eq.s32.totalorder %s18, 1
    %p81 = por %p79, %p80
    %p83 = scmp.ne.s32.totalorder %s66, %s82
    %p84 = scmp.eq.s32.totalorder %s18, 0
    %p85 = por %p83, %p84
    %s87 = sadd.s32 %s86, 1
    %p90 = scmp.eq.s32.totalorder %s12, 1
    %p91 = scmp.ne.s32.totalorder %s86, %s88
    %p92 = scmp.eq.s32.totalorder %s12, 0
    %p93 = por %p91, %p92
    %p94 = scmp.ne.s32.totalorder %s86, %s88
    %p95 = scmp.eq.s32.totalorder %s17, 1
    %p96 = por %p94, %p95
    %p97 = scmp.ne.s32.totalorder %s88, %s89
    %p98 = scmp.eq.s32.totalorder %s17, 0
    %p99 = por %p97, %p98
    %p100 = scmp.ne.s32.totalorder %s88, %s89
    %p101 = scmp.eq.s32.totalorder %s18, 1
    %p102 = por %p100, %p101
    %p104 = scmp.ne.s32.totalorder %s89, %s103
    %p105 = scmp.eq.s32.totalorder %s18, 0
    %p106 = por %p104, %p105
    %s108 = sadd.s32 %s107, 1
    %p111 = scmp.eq.s32.totalorder %s12, 1
    %p112 = scmp.ne.s32.totalorder %s107, %s109
    %p113 = scmp.eq.s32.totalorder %s12, 0
    %p114 = por %p112, %p113
    %p115 = scmp.ne.s32.totalorder %s107, %s109
    %p116 = scmp.eq.s32.totalorder %s17, 1
    %p117 = por %p115, %p116
    %p118 = scmp.ne.s32.totalorder %s109, %s110
    %p119 = scmp.eq.s32.totalorder %s17, 0
    %p120 = por %p118, %p119
    %p121 = scmp.ne.s32.totalorder %s109, %s110
    %p122 = scmp.eq.s32.totalorder %s18, 1
    %p123 = por %p121, %p122
    %p125 = scmp.ne.s32.totalorder %s110, %s124
    %p126 = scmp.eq.s32.totalorder %s18, 0
    %p127 = por %p125, %p126
    %s129 = sadd.s32 %s128, 1
    %p132 = scmp.eq.s32.totalorder %s12, 1
    %p133 = scmp.ne.s32.totalorder %s128, %s130
    %p134 = scmp.eq.s32.totalorder %s12, 0
    %p135 = por %p133, %p134
    %p136 = scmp.ne.s32.totalorder %s128, %s130
    %p137 = scmp.eq.s32.totalorder %s17, 1
    %p138 = por %p136, %p137
    %p139 = scmp.ne.s32.totalorder %s130, %s131
    %p140 = scmp.eq.s32.totalorder %s17, 0
    %p141 = por %p139, %p140
    %p142 = scmp.ne.s32.totalorder %s130, %s131
    %p143 = scmp.eq.s32.totalorder %s18, 1
    %p144 = por %p142, %p143
    %p146 = scmp.ne.s32.totalorder %s131, %s145
    %p147 = scmp.eq.s32.totalorder %s18, 0
    %p148 = por %p146, %p147
    %s150 = sadd.s32 %s149, 1
    %p153 = scmp.eq.s32.totalorder %s12, 1
    %p154 = scmp.ne.s32.totalorder %s149, %s151
    %p155 = scmp.eq.s32.totalorder %s12, 0
    %p156 = por %p154, %p155
    %p157 = scmp.ne.s32.totalorder %s149, %s151
    %p158 = scmp.eq.s32.totalorder %s17, 1
    %p159 = por %p157, %p158
    %p160 = scmp.ne.s32.totalorder %s151, %s152
    %p161 = scmp.eq.s32.totalorder %s17, 0
    %p162 = por %p160, %p161
    %p163 = scmp.ne.s32.totalorder %s151, %s152
    %p164 = scmp.eq.s32.totalorder %s18, 1
    %p165 = por %p163, %p164
    %p167 = scmp.ne.s32.totalorder %s152, %s166
    %p168 = scmp.eq.s32.totalorder %s18, 0
    %p169 = por %p167, %p168
    %s170 = ssub.s32 %s19, %s31
    %p171 = scmp.eq.s32.totalorder %s170, 0
    %s173 = sadd.s32 %s172, 1
    %s174 = scalar_select %p171, %s172, %s173
    %p177 = pneg %p171
    %p178 = scmp.eq.s32.totalorder %s12, 1
    %p179 = por %p177, %p178
    %p180 = scmp.ne.s32.totalorder %s172, %s175
    %p181 = scmp.eq.s32.totalorder %s12, 0
    %p182 = por %p180, %p181
    %p183 = scmp.ne.s32.totalorder %s172, %s175
    %p184 = scmp.eq.s32.totalorder %s17, 1
    %p185 = por %p183, %p184
    %p186 = scmp.ne.s32.totalorder %s175, %s176
    %p187 = scmp.eq.s32.totalorder %s17, 0
    %p188 = por %p186, %p187
    %p189 = scmp.ne.s32.totalorder %s175, %s176
    %p190 = scmp.eq.s32.totalorder %s18, 1
    %p191 = por %p189, %p190
    %p193 = scmp.ne.s32.totalorder %s176, %s192
    %p194 = scmp.eq.s32.totalorder %s18, 0
    %p195 = por %p193, %p194
    %p196 = scmp.le.s32.totalorder 1, %s12
    %p197 = scmp.lt.s32.totalorder %s12, 3
    %p198 = pnand %p196, %p197
    %p199 = pneg %p198
    // Predicated region
    $region9: #{neck_forward.28} parent=5 // pred_check
      _
    $region10: #{neck_forward.28} parent=5 // pred_check_branch
      %201 = sbr.rel (%p198) target = $region12
    $region11: #{neck_forward.28} parent=5 // pred_region
      %s202 = ssub.s32 %s12, 1
      // Predicated region
      $region13: #{neck_forward.28} parent=11 // pred_check
        %p203 = pneg %p78
      $region14: #{neck_forward.28} parent=11 // pred_check_branch
        %205 = sbr.rel (%p203) target = $region16
      $region15: #{neck_forward.28} parent=11 // pred_region
        %s206 = smul.u32 16, %s22
        %p207 = scmp.lt.s32.totalorder %s206, 15
        %s208 = scalar_select %p207, %s206, 15
        %s209 = smul.addr %s208, 4
        %s210 = scalar_lea.vmem %s1, %s209
        %s211 = smul.u32 16, %s22
      $region16: #{neck_forward.28} parent=11 // pred_fallthru
        _
      // Predicated region
      $region17: #{neck_forward.28} parent=11 // pred_check
        %p212 = pneg %p99
      $region18: #{neck_forward.28} parent=11 // pred_check_branch
        %214 = sbr.rel (%p212) target = $region20
      $region19: #{neck_forward.28} parent=11 // pred_region
        _
      $region20: #{neck_forward.28} parent=11 // pred_fallthru
        _
      // Predicated region
      $region21: #{neck_forward.28} parent=11 // pred_check
        %p215 = pneg %p120
      $region22: #{neck_forward.28} parent=11 // pred_check_branch
        %217 = sbr.rel (%p215) target = $region24
      $region23: #{neck_forward.28} parent=11 // pred_region
        _
      $region24: #{neck_forward.28} parent=11 // pred_fallthru
        _
      // Predicated region
      $region25: #{neck_forward.28} parent=11 // pred_check
        %p218 = pneg %p141
      $region26: #{neck_forward.28} parent=11 // pred_check_branch
        %220 = sbr.rel (%p218) target = $region28
      $region27: #{neck_forward.28} parent=11 // pred_region
        _
      $region28: #{neck_forward.28} parent=11 // pred_fallthru
        _
      // Predicated region
      $region29: #{neck_forward.28} parent=11 // pred_check
        %p221 = pneg %p162
      $region30: #{neck_forward.28} parent=11 // pred_check_branch
        %223 = sbr.rel (%p221) target = $region32
      $region31: #{neck_forward.28} parent=11 // pred_region
        _
      $region32: #{neck_forward.28} parent=11 // pred_fallthru
        _
    $region12: #{neck_forward.28} parent=5 // pred_fallthru
      _
    %p224 = scmp.lt.s32.totalorder %s12, 2
    // Predicated region
    $region33: #{neck_forward.28} parent=5 // pred_check
      %p225 = pneg %p224
    $region34: #{neck_forward.28} parent=5 // pred_check_branch
      %227 = sbr.rel (%p225) target = $region36
    $region35: #{neck_forward.28} parent=5 // pred_region
      // Predicated region
      $region37: #{neck_forward.28} parent=35 // pred_check
        %p228 = pneg %p46
      $region38: #{neck_forward.28} parent=35 // pred_check_branch
        %230 = sbr.rel (%p228) target = $region40
      $region39: #{neck_forward.28} parent=35 // pred_region
        %s231 = smul.u32 32, %s19
        %p232 = scmp.lt.s32.totalorder %s231, 63
        %s233 = scalar_select %p232, %s231, 63
        %p234 = scmp.lt.s32.totalorder %s20, 0
        %s235 = scalar_select %p234, %s20, 0
        %s236 = sadd.s32 %s235, %s233
        %s237 = smul.addr %s236, 4
        %s238 = scalar_lea.vmem %s0, %s237
        %s239 = smul.u32 32, %s19
      $region40: #{neck_forward.28} parent=35 // pred_fallthru
        _
    $region36: #{neck_forward.28} parent=5 // pred_fallthru
      _
    %p240 = scmp.le.s32.totalorder 1, %s12
    %p241 = scmp.lt.s32.totalorder %s12, 3
    %p242 = pnand %p240, %p241
    %p243 = pneg %p242
    // Predicated region
    $region41: #{neck_forward.28} parent=5 // pred_check
      _
    $region42: #{neck_forward.28} parent=5 // pred_check_branch
      %245 = sbr.rel (%p242) target = $region44
    $region43: #{neck_forward.28} parent=5 // pred_region
      %s246 = ssub.s32 %s12, 1
      %s247 = smul.u32 32, %s21
      %p248 = scmp.lt.s32.totalorder %s247, 63
      %s249 = scalar_select %p248, %s247, 63
      %p250 = scmp.lt.s32.totalorder %s22, 0
      %s251 = scalar_select %p250, %s22, 0
      %s252 = sadd.s32 %s251, %s249
      %s253 = smul.addr %s252, 4
      %s254 = scalar_lea.vmem %s0, %s253
      %p255 = pneg %p52
      %p256 = pneg %p49
      %s257 = smul.u32 16, %s22
      %p258 = scmp.lt.s32.totalorder %s257, 15
      %s259 = scalar_select %p258, %s257, 15
      %s260 = smul.addr %s259, 4
      %s261 = scalar_lea.vmem %s1, %s260
      %p262 = pneg %p78
      %p263 = pneg %p75
      %p264 = pneg %p99
      %p265 = pneg %p96
      %p266 = pneg %p120
      %p267 = pneg %p117
      %p268 = pneg %p141
      %p269 = pneg %p138
      %p270 = pneg %p162
      %p271 = pneg %p159
      %p272 = pneg %p188
      %p273 = pneg %p185
      %s274 = smul.u32 32, %s21
      %p275 = scmp.lt.s32.totalorder %s274, 63
      %s276 = scalar_select %p275, %s274, 63
      %s277 = smul.addr %s276, 8
      %s278 = scalar_lea.vmem %s6, %s277
      %s279 = smul.u32 32, %s21
      %p280 = scmp.lt.s32.totalorder %s279, 63
      %s281 = scalar_select %p280, %s279, 63
      %p282 = scmp.lt.s32.totalorder %s22, 0
      %s283 = scalar_select %p282, %s22, 0
      %s284 = sadd.s32 %s283, %s281
      %s285 = smul.addr %s284, 4
      %s286 = scalar_lea.vmem %s0, %s285
      %s287 = smul.u32 32, %s21
      %s288 = smul.u32 16, %s22
      %p289 = scmp.lt.s32.totalorder %s288, 15
      %s290 = scalar_select %p289, %s288, 15
      %s291 = smul.addr %s290, 4
      %s292 = scalar_lea.vmem %s1, %s291
      %s293 = smul.u32 16, %s22
      %s294 = smul.u32 32, %s21
      %p295 = scmp.lt.s32.totalorder %s294, 63
      %s296 = scalar_select %p295, %s294, 63
      %s297 = smul.addr %s296, 8
      %s298 = scalar_lea.vmem %s6, %s297
      %s299 = smul.u32 32, %s21
      %p301 = scmp.eq.s32.totalorder %s22, 0
      // Predicated region
      $region45: #{neck_forward.28} parent=43 // pred_check
        %p302 = pneg %p301
      $region46: #{neck_forward.28} parent=43 // pred_check_branch
        %304 = sbr.rel (%p302) target = $region48
      $region47: #{neck_forward.28} parent=43 // pred_region
        %305 = vst [vmem:[#allocation2] sm:$0xff] 0.0
        %306 = vst [vmem:[#allocation2 + $0x8] sm:$0xff] 0.0
        %307 = vst [vmem:[#allocation2 + $0x10] sm:$0xff] 0.0
        %308 = vst [vmem:[#allocation2 + $0x18] sm:$0xff] 0.0
        %309 = vst [vmem:[#allocation2 + $0x20] sm:$0xff] 0.0
        %310 = vst [vmem:[#allocation2 + $0x28] sm:$0xff] 0.0
        %311 = vst [vmem:[#allocation2 + $0x30] sm:$0xff] 0.0
        %312 = vst [vmem:[#allocation2 + $0x38] sm:$0xff] 0.0
        %313 = vst [vmem:[#allocation2 + $0x40] sm:$0xff] 0.0
        %314 = vst [vmem:[#allocation2 + $0x48] sm:$0xff] 0.0
        %315 = vst [vmem:[#allocation2 + $0x50] sm:$0xff] 0.0
        %316 = vst [vmem:[#allocation2 + $0x58] sm:$0xff] 0.0
        %317 = vst [vmem:[#allocation2 + $0x60] sm:$0xff] 0.0
        %318 = vst [vmem:[#allocation2 + $0x68] sm:$0xff] 0.0
        %319 = vst [vmem:[#allocation2 + $0x70] sm:$0xff] 0.0
        %320 = vst [vmem:[#allocation2 + $0x78] sm:$0xff] 0.0
        %321 = vst [vmem:[#allocation2 + $0x80] sm:$0xff] 0.0
        %322 = vst [vmem:[#allocation2 + $0x88] sm:$0xff] 0.0
        %323 = vst [vmem:[#allocation2 + $0x90] sm:$0xff] 0.0
        %324 = vst [vmem:[#allocation2 + $0x98] sm:$0xff] 0.0
        %325 = vst [vmem:[#allocation2 + $0xa0] sm:$0xff] 0.0
        %326 = vst [vmem:[#allocation2 + $0xa8] sm:$0xff] 0.0
        %327 = vst [vmem:[#allocation2 + $0xb0] sm:$0xff] 0.0
        %328 = vst [vmem:[#allocation2 + $0xb8] sm:$0xff] 0.0
        %329 = vst [vmem:[#allocation2 + $0xc0] sm:$0xff] 0.0
        %330 = vst [vmem:[#allocation2 + $0xc8] sm:$0xff] 0.0
        %331 = vst [vmem:[#allocation2 + $0xd0] sm:$0xff] 0.0
        %332 = vst [vmem:[#allocation2 + $0xd8] sm:$0xff] 0.0
        %333 = vst [vmem:[#allocation2 + $0xe0] sm:$0xff] 0.0
        %334 = vst [vmem:[#allocation2 + $0xe8] sm:$0xff] 0.0
        %335 = vst [vmem:[#allocation2 + $0xf0] sm:$0xff] 0.0
        %336 = vst [vmem:[#allocation2 + $0xf8] sm:$0xff] 0.0
      $region48: #{neck_forward.28} parent=43 // pred_fallthru
        _
      %v337 = vld [vmem:[#allocation2] sm:$0xff]
      %v338 = vld [vmem:[#allocation2 + $0x8] sm:$0xff]
      %v339 = vld [vmem:[#allocation2 + $0x10] sm:$0xff]
      %v340 = vld [vmem:[#allocation2 + $0x18] sm:$0xff]
      %v341 = vld [vmem:[#allocation2 + $0x20] sm:$0xff]
      %v342 = vld [vmem:[#allocation2 + $0x28] sm:$0xff]
      %v343 = vld [vmem:[#allocation2 + $0x30] sm:$0xff]
      %v344 = vld [vmem:[#allocation2 + $0x38] sm:$0xff]
      %v345 = vld [vmem:[#allocation2 + $0x40] sm:$0xff]
      %v346 = vld [vmem:[#allocation2 + $0x48] sm:$0xff]
      %v347 = vld [vmem:[#allocation2 + $0x50] sm:$0xff]
      %v348 = vld [vmem:[#allocation2 + $0x58] sm:$0xff]
      %v349 = vld [vmem:[#allocation2 + $0x60] sm:$0xff]
      %v350 = vld [vmem:[#allocation2 + $0x68] sm:$0xff]
      %v351 = vld [vmem:[#allocation2 + $0x70] sm:$0xff]
      %v352 = vld [vmem:[#allocation2 + $0x78] sm:$0xff]
      %v353 = vld [vmem:[#allocation2 + $0x80] sm:$0xff]
      %v354 = vld [vmem:[#allocation2 + $0x88] sm:$0xff]
      %v355 = vld [vmem:[#allocation2 + $0x90] sm:$0xff]
      %v356 = vld [vmem:[#allocation2 + $0x98] sm:$0xff]
      %v357 = vld [vmem:[#allocation2 + $0xa0] sm:$0xff]
      %v358 = vld [vmem:[#allocation2 + $0xa8] sm:$0xff]
      %v359 = vld [vmem:[#allocation2 + $0xb0] sm:$0xff]
      %v360 = vld [vmem:[#allocation2 + $0xb8] sm:$0xff]
      %v361 = vld [vmem:[#allocation2 + $0xc0] sm:$0xff]
      %v362 = vld [vmem:[#allocation2 + $0xc8] sm:$0xff]
      %v363 = vld [vmem:[#allocation2 + $0xd0] sm:$0xff]
      %v364 = vld [vmem:[#allocation2 + $0xd8] sm:$0xff]
      %v365 = vld [vmem:[#allocation2 + $0xe0] sm:$0xff]
      %v366 = vld [vmem:[#allocation2 + $0xe8] sm:$0xff]
      %v367 = vld [vmem:[#allocation2 + $0xf0] sm:$0xff]
      %v368 = vld [vmem:[#allocation2 + $0xf8] sm:$0xff]
      %v369 = vld [vmem:[%s286] sm:$0xf]
      %v370 = vld [vmem:[%s286 + $0x4] sm:$0xf]
      %v371 = vld [vmem:[%s286 + $0x8] sm:$0xf]
      %v372 = vld [vmem:[%s286 + $0xc] sm:$0xf]
      %v373 = vld [vmem:[%s286 + $0x10] sm:$0xf]
      %v374 = vld [vmem:[%s286 + $0x14] sm:$0xf]
      %v375 = vld [vmem:[%s286 + $0x18] sm:$0xf]
      %v376 = vld [vmem:[%s286 + $0x1c] sm:$0xf]
      %v377 = vld [vmem:[%s286 + $0x20] sm:$0xf]
      %v378 = vld [vmem:[%s286 + $0x24] sm:$0xf]
      %v379 = vld [vmem:[%s286 + $0x28] sm:$0xf]
      %v380 = vld [vmem:[%s286 + $0x2c] sm:$0xf]
      %v381 = vld [vmem:[%s286 + $0x30] sm:$0xf]
      %v382 = vld [vmem:[%s286 + $0x34] sm:$0xf]
      %v383 = vld [vmem:[%s286 + $0x38] sm:$0xf]
      %v384 = vld [vmem:[%s286 + $0x3c] sm:$0xf]
      %v385 = vld [vmem:[%s286 + $0x40] sm:$0xf]
      %v386 = vld [vmem:[%s286 + $0x44] sm:$0xf]
      %v387 = vld [vmem:[%s286 + $0x48] sm:$0xf]
      %v388 = vld [vmem:[%s286 + $0x4c] sm:$0xf]
      %v389 = vld [vmem:[%s286 + $0x50] sm:$0xf]
      %v390 = vld [vmem:[%s286 + $0x54] sm:$0xf]
      %v391 = vld [vmem:[%s286 + $0x58] sm:$0xf]
      %v392 = vld [vmem:[%s286 + $0x5c] sm:$0xf]
      %v393 = vld [vmem:[%s286 + $0x60] sm:$0xf]
      %v394 = vld [vmem:[%s286 + $0x64] sm:$0xf]
      %v395 = vld [vmem:[%s286 + $0x68] sm:$0xf]
      %v396 = vld [vmem:[%s286 + $0x6c] sm:$0xf]
      %v397 = vld [vmem:[%s286 + $0x70] sm:$0xf]
      %v398 = vld [vmem:[%s286 + $0x74] sm:$0xf]
      %v399 = vld [vmem:[%s286 + $0x78] sm:$0xf]
      %v400 = vld [vmem:[%s286 + $0x7c] sm:$0xf]
      %v401 = vld [vmem:[%s292] sm:$0xf]
      %v402 = vld [vmem:[%s292 + $0x4] sm:$0xf]
      %v403 = vld [vmem:[%s292 + $0x8] sm:$0xf]
      %v404 = vld [vmem:[%s292 + $0xc] sm:$0xf]
      %v405 = vld [vmem:[%s292 + $0x10] sm:$0xf]
      %v406 = vld [vmem:[%s292 + $0x14] sm:$0xf]
      %v407 = vld [vmem:[%s292 + $0x18] sm:$0xf]
      %v408 = vld [vmem:[%s292 + $0x1c] sm:$0xf]
      %v409 = vld [vmem:[%s292 + $0x20] sm:$0xf]
      %v410 = vld [vmem:[%s292 + $0x24] sm:$0xf]
      %v411 = vld [vmem:[%s292 + $0x28] sm:$0xf]
      %v412 = vld [vmem:[%s292 + $0x2c] sm:$0xf]
      %v413 = vld [vmem:[%s292 + $0x30] sm:$0xf]
      %v414 = vld [vmem:[%s292 + $0x34] sm:$0xf]
      %v415 = vld [vmem:[%s292 + $0x38] sm:$0xf]
      %v416 = vld [vmem:[%s292 + $0x3c] sm:$0xf]
      %v449 = vunpack.c.l.b16 %v369
      %v450 = vunpack.c.l.b16 %v370
      %v451 = vunpack.c.l.b16 %v371
      %v452 = vunpack.c.l.b16 %v372
      %v453 = vunpack.c.l.b16 %v373
      %v454 = vunpack.c.l.b16 %v374
      %v455 = vunpack.c.l.b16 %v375
      %v456 = vunpack.c.l.b16 %v376
      %v457 = vunpack.c.l.b16 %v377
      %v458 = vunpack.c.l.b16 %v378
      %v459 = vunpack.c.l.b16 %v379
      %v460 = vunpack.c.l.b16 %v380
      %v461 = vunpack.c.l.b16 %v381
      %v462 = vunpack.c.l.b16 %v382
      %v463 = vunpack.c.l.b16 %v383
      %v464 = vunpack.c.l.b16 %v384
      %v465 = vunpack.c.l.b16 %v385
      %v466 = vunpack.c.l.b16 %v386
      %v467 = vunpack.c.l.b16 %v387
      %v468 = vunpack.c.l.b16 %v388
      %v469 = vunpack.c.l.b16 %v389
      %v470 = vunpack.c.l.b16 %v390
      %v471 = vunpack.c.l.b16 %v391
      %v472 = vunpack.c.l.b16 %v392
      %v473 = vunpack.c.l.b16 %v393
      %v474 = vunpack.c.l.b16 %v394
      %v475 = vunpack.c.l.b16 %v395
      %v476 = vunpack.c.l.b16 %v396
      %v477 = vunpack.c.l.b16 %v397
      %v478 = vunpack.c.l.b16 %v398
      %v479 = vunpack.c.l.b16 %v399
      %v480 = vunpack.c.l.b16 %v400
      %v481 = vpack.c.b16 %v450, %v449
      %v482 = vpack.c.b16 %v452, %v451
      %v483 = vpack.c.b16 %v454, %v453
      %v484 = vpack.c.b16 %v456, %v455
      %v485 = vpack.c.b16 %v458, %v457
      %v486 = vpack.c.b16 %v460, %v459
      %v487 = vpack.c.b16 %v462, %v461
      %v488 = vpack.c.b16 %v464, %v463
      %v489 = vpack.c.b16 %v466, %v465
      %v490 = vpack.c.b16 %v468, %v467
      %v491 = vpack.c.b16 %v470, %v469
      %v492 = vpack.c.b16 %v472, %v471
      %v493 = vpack.c.b16 %v474, %v473
      %v494 = vpack.c.b16 %v476, %v475
      %v495 = vpack.c.b16 %v478, %v477
      %v496 = vpack.c.b16 %v480, %v479
      %v529 = vunpack.c.l.b16 %v401
      %v530 = vunpack.c.l.b16 %v402
      %v531 = vunpack.c.l.b16 %v403
      %v532 = vunpack.c.l.b16 %v404
      %v533 = vunpack.c.l.b16 %v405
      %v534 = vunpack.c.l.b16 %v406
      %v535 = vunpack.c.l.b16 %v407
      %v536 = vunpack.c.l.b16 %v408
      %v537 = vunpack.c.l.b16 %v409
      %v538 = vunpack.c.l.b16 %v410
      %v539 = vunpack.c.l.b16 %v411
      %v540 = vunpack.c.l.b16 %v412
      %v541 = vunpack.c.l.b16 %v413
      %v542 = vunpack.c.l.b16 %v414
      %v543 = vunpack.c.l.b16 %v415
      %v544 = vunpack.c.l.b16 %v416
      %v545 = vpack.c.b16 %v530, %v529
      %v546 = vpack.c.b16 %v532, %v531
      %v547 = vpack.c.b16 %v534, %v533
      %v548 = vpack.c.b16 %v536, %v535
      %v549 = vpack.c.b16 %v538, %v537
      %v550 = vpack.c.b16 %v540, %v539
      %v551 = vpack.c.b16 %v542, %v541
      %v552 = vpack.c.b16 %v544, %v543
      %561 = vmatprep.subr.bf16.mxu0 0
      %562 = vmatpush1.bf16.msra.mxu0 %v552
      %563 = vmatprep.subr.bf16.mxu0 0
      %564 = vmatpush1.bf16.msra.mxu0 %v551
      %565 = vmatprep.subr.bf16.mxu0 0
      %566 = vmatpush1.bf16.msra.mxu0 %v550
      %567 = vmatprep.subr.bf16.mxu0 0
      %568 = vmatpush1.bf16.msra.mxu0 %v549
      %569 = vmatprep.subr.bf16.mxu0 0
      %570 = vmatpush1.bf16.msra.mxu0 %v548
      %571 = vmatprep.subr.bf16.mxu0 0
      %572 = vmatpush1.bf16.msra.mxu0 %v547
      %573 = vmatprep.subr.bf16.mxu0 0
      %574 = vmatpush1.bf16.msra.mxu0 %v546
      %575 = vmatprep.subr.bf16.mxu0 0
      %576 = vmatpush1.bf16.msra.mxu0 %v545
      %577 = vmatprep.subr.bf16.mxu0 0
      %578 = vmatpush2.bf16.msra.mxu0 0
      %579 = vmatprep.subr.bf16.mxu0 0
      %580 = vmatpush2.bf16.msra.mxu0 0
      %581 = vmatprep.subr.bf16.mxu0 0
      %582 = vmatpush2.bf16.msra.mxu0 0
      %583 = vmatprep.subr.bf16.mxu0 0
      %584 = vmatpush2.bf16.msra.mxu0 0
      %585 = vmatprep.subr.bf16.mxu0 0
      %586 = vmatpush2.bf16.msra.mxu0 0
      %587 = vmatprep.subr.bf16.mxu0 0
      %588 = vmatpush2.bf16.msra.mxu0 0
      %589 = vmatprep.subr.bf16.mxu0 0
      %590 = vmatpush2.bf16.msra.mxu0 0
      %591 = vmatprep.subr.bf16.mxu0 0
      %592 = vmatpush2.bf16.msra.mxu0 0
      %593 = vmatprep.mubr.bf16.mxu0 0
      %594 = vmatmul.mubr.bf16.gmra.mxu0 %v481
      %v595 = vpop.f32.mrf.mxu0
      %v596 = vadd.f32 0.0, %v595
      %v597 = vpop.f32.mrf.mxu0
      %v598 = vpop.f32.mrf.mxu0
      %v599 = vadd.f32 0.0, %v598
      %v600 = vpop.f32.mrf.mxu0
      %601 = vmatprep.mubr.bf16.mxu0 0
      %602 = vmatmul.mubr.bf16.gmra.mxu0 %v482
      %v603 = vpop.f32.mrf.mxu0
      %v604 = vadd.f32 0.0, %v603
      %v605 = vpop.f32.mrf.mxu0
      %v606 = vpop.f32.mrf.mxu0
      %v607 = vadd.f32 0.0, %v606
      %v608 = vpop.f32.mrf.mxu0
      %609 = vmatprep.mubr.bf16.mxu0 0
      %610 = vmatmul.mubr.bf16.gmra.mxu0 %v483
      %v611 = vpop.f32.mrf.mxu0
      %v612 = vadd.f32 0.0, %v611
      %v613 = vpop.f32.mrf.mxu0
      %v614 = vpop.f32.mrf.mxu0
      %v615 = vadd.f32 0.0, %v614
      %v616 = vpop.f32.mrf.mxu0
      %617 = vmatprep.mubr.bf16.mxu0 0
      %618 = vmatmul.mubr.bf16.gmra.mxu0 %v484
      %v619 = vpop.f32.mrf.mxu0
      %v620 = vadd.f32 0.0, %v619
      %v621 = vpop.f32.mrf.mxu0
      %v622 = vpop.f32.mrf.mxu0
      %v623 = vadd.f32 0.0, %v622
      %v624 = vpop.f32.mrf.mxu0
      %625 = vmatprep.mubr.bf16.mxu0 0
      %626 = vmatmul.mubr.bf16.gmra.mxu0 %v485
      %v627 = vpop.f32.mrf.mxu0
      %v628 = vadd.f32 0.0, %v627
      %v629 = vpop.f32.mrf.mxu0
      %v630 = vpop.f32.mrf.mxu0
      %v631 = vadd.f32 0.0, %v630
      %v632 = vpop.f32.mrf.mxu0
      %633 = vmatprep.mubr.bf16.mxu0 0
      %634 = vmatmul.mubr.bf16.gmra.mxu0 %v486
      %v635 = vpop.f32.mrf.mxu0
      %v636 = vadd.f32 0.0, %v635
      %v637 = vpop.f32.mrf.mxu0
      %v638 = vpop.f32.mrf.mxu0
      %v639 = vadd.f32 0.0, %v638
      %v640 = vpop.f32.mrf.mxu0
      %641 = vmatprep.mubr.bf16.mxu0 0
      %642 = vmatmul.mubr.bf16.gmra.mxu0 %v487
      %v643 = vpop.f32.mrf.mxu0
      %v644 = vadd.f32 0.0, %v643
      %v645 = vpop.f32.mrf.mxu0
      %v646 = vpop.f32.mrf.mxu0
      %v647 = vadd.f32 0.0, %v646
      %v648 = vpop.f32.mrf.mxu0
      %649 = vmatprep.mubr.bf16.mxu0 0
      %650 = vmatmul.mubr.bf16.gmra.mxu0 %v488
      %v651 = vpop.f32.mrf.mxu0
      %v652 = vadd.f32 0.0, %v651
      %v653 = vpop.f32.mrf.mxu0
      %v654 = vpop.f32.mrf.mxu0
      %v655 = vadd.f32 0.0, %v654
      %v656 = vpop.f32.mrf.mxu0
      %657 = vmatprep.mubr.bf16.mxu0 0
      %658 = vmatmul.mubr.bf16.gmra.mxu0 %v489
      %v659 = vpop.f32.mrf.mxu0
      %v660 = vadd.f32 0.0, %v659
      %v661 = vpop.f32.mrf.mxu0
      %v662 = vpop.f32.mrf.mxu0
      %v663 = vadd.f32 0.0, %v662
      %v664 = vpop.f32.mrf.mxu0
      %665 = vmatprep.mubr.bf16.mxu0 0
      %666 = vmatmul.mubr.bf16.gmra.mxu0 %v490
      %v667 = vpop.f32.mrf.mxu0
      %v668 = vadd.f32 0.0, %v667
      %v669 = vpop.f32.mrf.mxu0
      %v670 = vpop.f32.mrf.mxu0
      %v671 = vadd.f32 0.0, %v670
      %v672 = vpop.f32.mrf.mxu0
      %673 = vmatprep.mubr.bf16.mxu0 0
      %674 = vmatmul.mubr.bf16.gmra.mxu0 %v491
      %v675 = vpop.f32.mrf.mxu0
      %v676 = vadd.f32 0.0, %v675
      %v677 = vpop.f32.mrf.mxu0
      %v678 = vpop.f32.mrf.mxu0
      %v679 = vadd.f32 0.0, %v678
      %v680 = vpop.f32.mrf.mxu0
      %681 = vmatprep.mubr.bf16.mxu0 0
      %682 = vmatmul.mubr.bf16.gmra.mxu0 %v492
      %v683 = vpop.f32.mrf.mxu0
      %v684 = vadd.f32 0.0, %v683
      %v685 = vpop.f32.mrf.mxu0
      %v686 = vpop.f32.mrf.mxu0
      %v687 = vadd.f32 0.0, %v686
      %v688 = vpop.f32.mrf.mxu0
      %689 = vmatprep.mubr.bf16.mxu0 0
      %690 = vmatmul.mubr.bf16.gmra.mxu0 %v493
      %v691 = vpop.f32.mrf.mxu0
      %v692 = vadd.f32 0.0, %v691
      %v693 = vpop.f32.mrf.mxu0
      %v694 = vpop.f32.mrf.mxu0
      %v695 = vadd.f32 0.0, %v694
      %v696 = vpop.f32.mrf.mxu0
      %697 = vmatprep.mubr.bf16.mxu0 0
      %698 = vmatmul.mubr.bf16.gmra.mxu0 %v494
      %v699 = vpop.f32.mrf.mxu0
      %v700 = vadd.f32 0.0, %v699
      %v701 = vpop.f32.mrf.mxu0
      %v702 = vpop.f32.mrf.mxu0
      %v703 = vadd.f32 0.0, %v702
      %v704 = vpop.f32.mrf.mxu0
      %705 = vmatprep.mubr.bf16.mxu0 0
      %706 = vmatmul.mubr.bf16.gmra.mxu0 %v495
      %v707 = vpop.f32.mrf.mxu0
      %v708 = vadd.f32 0.0, %v707
      %v709 = vpop.f32.mrf.mxu0
      %v710 = vpop.f32.mrf.mxu0
      %v711 = vadd.f32 0.0, %v710
      %v712 = vpop.f32.mrf.mxu0
      %713 = vmatprep.mubr.bf16.mxu0 0
      %714 = vmatmul.mubr.bf16.gmra.mxu0 %v496
      %v715 = vpop.f32.mrf.mxu0
      %v716 = vadd.f32 0.0, %v715
      %v717 = vpop.f32.mrf.mxu0
      %v718 = vpop.f32.mrf.mxu0
      %v719 = vadd.f32 0.0, %v718
      %v720 = vpop.f32.mrf.mxu0
      %721 = vdwg.mxu0
      %v722 = vadd.f32 %v337, %v596
      %v723 = vadd.f32 %v338, %v599
      %v724 = vadd.f32 %v339, %v604
      %v725 = vadd.f32 %v340, %v607
      %v726 = vadd.f32 %v341, %v612
      %v727 = vadd.f32 %v342, %v615
      %v728 = vadd.f32 %v343, %v620
      %v729 = vadd.f32 %v344, %v623
      %v730 = vadd.f32 %v345, %v628
      %v731 = vadd.f32 %v346, %v631
      %v732 = vadd.f32 %v347, %v636
      %v733 = vadd.f32 %v348, %v639
      %v734 = vadd.f32 %v349, %v644
      %v735 = vadd.f32 %v350, %v647
      %v736 = vadd.f32 %v351, %v652
      %v737 = vadd.f32 %v352, %v655
      %v738 = vadd.f32 %v353, %v660
      %v739 = vadd.f32 %v354, %v663
      %v740 = vadd.f32 %v355, %v668
      %v741 = vadd.f32 %v356, %v671
      %v742 = vadd.f32 %v357, %v676
      %v743 = vadd.f32 %v358, %v679
      %v744 = vadd.f32 %v359, %v684
      %v745 = vadd.f32 %v360, %v687
      %v746 = vadd.f32 %v361, %v692
      %v747 = vadd.f32 %v362, %v695
      %v748 = vadd.f32 %v363, %v700
      %v749 = vadd.f32 %v364, %v703
      %v750 = vadd.f32 %v365, %v708
      %v751 = vadd.f32 %v366, %v711
      %v752 = vadd.f32 %v367, %v716
      %v753 = vadd.f32 %v368, %v719
      %754 = vst [vmem:[#allocation2] sm:$0xff] %v722
      %755 = vst [vmem:[#allocation2 + $0x8] sm:$0xff] %v723
      %756 = vst [vmem:[#allocation2 + $0x10] sm:$0xff] %v724
      %757 = vst [vmem:[#allocation2 + $0x18] sm:$0xff] %v725
      %758 = vst [vmem:[#allocation2 + $0x20] sm:$0xff] %v726
      %759 = vst [vmem:[#allocation2 + $0x28] sm:$0xff] %v727
      %760 = vst [vmem:[#allocation2 + $0x30] sm:$0xff] %v728
      %761 = vst [vmem:[#allocation2 + $0x38] sm:$0xff] %v729
      %762 = vst [vmem:[#allocation2 + $0x40] sm:$0xff] %v730
      %763 = vst [vmem:[#allocation2 + $0x48] sm:$0xff] %v731
      %764 = vst [vmem:[#allocation2 + $0x50] sm:$0xff] %v732
      %765 = vst [vmem:[#allocation2 + $0x58] sm:$0xff] %v733
      %766 = vst [vmem:[#allocation2 + $0x60] sm:$0xff] %v734
      %767 = vst [vmem:[#allocation2 + $0x68] sm:$0xff] %v735
      %768 = vst [vmem:[#allocation2 + $0x70] sm:$0xff] %v736
      %769 = vst [vmem:[#allocation2 + $0x78] sm:$0xff] %v737
      %770 = vst [vmem:[#allocation2 + $0x80] sm:$0xff] %v738
      %771 = vst [vmem:[#allocation2 + $0x88] sm:$0xff] %v739
      %772 = vst [vmem:[#allocation2 + $0x90] sm:$0xff] %v740
      %773 = vst [vmem:[#allocation2 + $0x98] sm:$0xff] %v741
      %774 = vst [vmem:[#allocation2 + $0xa0] sm:$0xff] %v742
      %775 = vst [vmem:[#allocation2 + $0xa8] sm:$0xff] %v743
      %776 = vst [vmem:[#allocation2 + $0xb0] sm:$0xff] %v744
      %777 = vst [vmem:[#allocation2 + $0xb8] sm:$0xff] %v745
      %778 = vst [vmem:[#allocation2 + $0xc0] sm:$0xff] %v746
      %779 = vst [vmem:[#allocation2 + $0xc8] sm:$0xff] %v747
      %780 = vst [vmem:[#allocation2 + $0xd0] sm:$0xff] %v748
      %781 = vst [vmem:[#allocation2 + $0xd8] sm:$0xff] %v749
      %782 = vst [vmem:[#allocation2 + $0xe0] sm:$0xff] %v750
      %783 = vst [vmem:[#allocation2 + $0xe8] sm:$0xff] %v751
      %784 = vst [vmem:[#allocation2 + $0xf0] sm:$0xff] %v752
      %785 = vst [vmem:[#allocation2 + $0xf8] sm:$0xff] %v753
      // Predicated region
      $region49: #{neck_forward.28} parent=43 // pred_check
        %p786 = pneg %p301
      $region50: #{neck_forward.28} parent=43 // pred_check_branch
        %788 = sbr.rel (%p786) target = $region52
      $region51: #{neck_forward.28} parent=43 // pred_region
        %v789 = vld [vmem:[#allocation2] sm:$0xff]
        %v790 = vld [vmem:[#allocation2 + $0x8] sm:$0xff]
        %v791 = vld [vmem:[#allocation2 + $0x10] sm:$0xff]
        %v792 = vld [vmem:[#allocation2 + $0x18] sm:$0xff]
        %v793 = vld [vmem:[#allocation2 + $0x20] sm:$0xff]
        %v794 = vld [vmem:[#allocation2 + $0x28] sm:$0xff]
        %v795 = vld [vmem:[#allocation2 + $0x30] sm:$0xff]
        %v796 = vld [vmem:[#allocation2 + $0x38] sm:$0xff]
        %v797 = vld [vmem:[#allocation2 + $0x40] sm:$0xff]
        %v798 = vld [vmem:[#allocation2 + $0x48] sm:$0xff]
        %v799 = vld [vmem:[#allocation2 + $0x50] sm:$0xff]
        %v800 = vld [vmem:[#allocation2 + $0x58] sm:$0xff]
        %v801 = vld [vmem:[#allocation2 + $0x60] sm:$0xff]
        %v802 = vld [vmem:[#allocation2 + $0x68] sm:$0xff]
        %v803 = vld [vmem:[#allocation2 + $0x70] sm:$0xff]
        %v804 = vld [vmem:[#allocation2 + $0x78] sm:$0xff]
        %v805 = vld [vmem:[#allocation2 + $0x80] sm:$0xff]
        %v806 = vld [vmem:[#allocation2 + $0x88] sm:$0xff]
        %v807 = vld [vmem:[#allocation2 + $0x90] sm:$0xff]
        %v808 = vld [vmem:[#allocation2 + $0x98] sm:$0xff]
        %v809 = vld [vmem:[#allocation2 + $0xa0] sm:$0xff]
        %v810 = vld [vmem:[#allocation2 + $0xa8] sm:$0xff]
        %v811 = vld [vmem:[#allocation2 + $0xb0] sm:$0xff]
        %v812 = vld [vmem:[#allocation2 + $0xb8] sm:$0xff]
        %v813 = vld [vmem:[#allocation2 + $0xc0] sm:$0xff]
        %v814 = vld [vmem:[#allocation2 + $0xc8] sm:$0xff]
        %v815 = vld [vmem:[#allocation2 + $0xd0] sm:$0xff]
        %v816 = vld [vmem:[#allocation2 + $0xd8] sm:$0xff]
        %v817 = vld [vmem:[#allocation2 + $0xe0] sm:$0xff]
        %v818 = vld [vmem:[#allocation2 + $0xe8] sm:$0xff]
        %v819 = vld [vmem:[#allocation2 + $0xf0] sm:$0xff]
        %v820 = vld [vmem:[#allocation2 + $0xf8] sm:$0xff]
        %v821 = vld [vmem:[%s2] sm:$0x1]
        %v823 = vlaneseq
        %v824 = vshrl.u32 %v823, 7
        %v825 = vsub.s32 0, %v824
        %v826 = vrot.slane %v821, %v825
        %v828 = vadd.f32 %v789, %v826
        %v829 = vadd.f32 %v790, %v826
        %v830 = vadd.f32 %v791, %v826
        %v831 = vadd.f32 %v792, %v826
        %v832 = vadd.f32 %v793, %v826
        %v833 = vadd.f32 %v794, %v826
        %v834 = vadd.f32 %v795, %v826
        %v835 = vadd.f32 %v796, %v826
        %v836 = vadd.f32 %v797, %v826
        %v837 = vadd.f32 %v798, %v826
        %v838 = vadd.f32 %v799, %v826
        %v839 = vadd.f32 %v800, %v826
        %v840 = vadd.f32 %v801, %v826
        %v841 = vadd.f32 %v802, %v826
        %v842 = vadd.f32 %v803, %v826
        %v843 = vadd.f32 %v804, %v826
        %v844 = vadd.f32 %v805, %v826
        %v845 = vadd.f32 %v806, %v826
        %v846 = vadd.f32 %v807, %v826
        %v847 = vadd.f32 %v808, %v826
        %v848 = vadd.f32 %v809, %v826
        %v849 = vadd.f32 %v810, %v826
        %v850 = vadd.f32 %v811, %v826
        %v851 = vadd.f32 %v812, %v826
        %v852 = vadd.f32 %v813, %v826
        %v853 = vadd.f32 %v814, %v826
        %v854 = vadd.f32 %v815, %v826
        %v855 = vadd.f32 %v816, %v826
        %v856 = vadd.f32 %v817, %v826
        %v857 = vadd.f32 %v818, %v826
        %v858 = vadd.f32 %v819, %v826
        %v859 = vadd.f32 %v820, %v826
        %v860 = vpack.c.bf16 %v829, %v828
        %v861 = vpack.c.bf16 %v831, %v830
        %v862 = vpack.c.bf16 %v833, %v832
        %v863 = vpack.c.bf16 %v835, %v834
        %v864 = vpack.c.bf16 %v837, %v836
        %v865 = vpack.c.bf16 %v839, %v838
        %v866 = vpack.c.bf16 %v841, %v840
        %v867 = vpack.c.bf16 %v843, %v842
        %v868 = vpack.c.bf16 %v845, %v844
        %v869 = vpack.c.bf16 %v847, %v846
        %v870 = vpack.c.bf16 %v849, %v848
        %v871 = vpack.c.bf16 %v851, %v850
        %v872 = vpack.c.bf16 %v853, %v852
        %v873 = vpack.c.bf16 %v855, %v854
        %v874 = vpack.c.bf16 %v857, %v856
        %v875 = vpack.c.bf16 %v859, %v858
        %v876 = vld [vmem:[%s3] sm:$0xf]
        %v877 = vld [vmem:[%s3 + $0x4] sm:$0xf]
        %v878 = vld [vmem:[%s3 + $0x8] sm:$0xf]
        %v879 = vld [vmem:[%s3 + $0xc] sm:$0xf]
        %v880 = vld [vmem:[%s3 + $0x10] sm:$0xf]
        %v881 = vld [vmem:[%s3 + $0x14] sm:$0xf]
        %v882 = vld [vmem:[%s3 + $0x18] sm:$0xf]
        %v883 = vld [vmem:[%s3 + $0x1c] sm:$0xf]
        %v884 = vld [vmem:[%s3 + $0x20] sm:$0xf]
        %v885 = vld [vmem:[%s3 + $0x24] sm:$0xf]
        %v886 = vld [vmem:[%s3 + $0x28] sm:$0xf]
        %v887 = vld [vmem:[%s3 + $0x2c] sm:$0xf]
        %v888 = vld [vmem:[%s3 + $0x30] sm:$0xf]
        %v889 = vld [vmem:[%s3 + $0x34] sm:$0xf]
        %v890 = vld [vmem:[%s3 + $0x38] sm:$0xf]
        %v891 = vld [vmem:[%s3 + $0x3c] sm:$0xf]
        %v892 = vld [vmem:[%s4] sm:$0x1]
        %v894 = vlaneseq
        %v895 = vshrl.u32 %v894, 7
        %v896 = vsub.s32 0, %v895
        %v897 = vrot.slane %v892, %v896
        %v915 = vunpack.c.l.b16 %v876
        %v916 = vunpack.c.l.b16 %v877
        %v917 = vunpack.c.l.b16 %v878
        %v918 = vunpack.c.l.b16 %v879
        %v919 = vunpack.c.l.b16 %v880
        %v920 = vunpack.c.l.b16 %v881
        %v921 = vunpack.c.l.b16 %v882
        %v922 = vunpack.c.l.b16 %v883
        %v923 = vunpack.c.l.b16 %v884
        %v924 = vunpack.c.l.b16 %v885
        %v925 = vunpack.c.l.b16 %v886
        %v926 = vunpack.c.l.b16 %v887
        %v927 = vunpack.c.l.b16 %v888
        %v928 = vunpack.c.l.b16 %v889
        %v929 = vunpack.c.l.b16 %v890
        %v930 = vunpack.c.l.b16 %v891
        %v931 = vpack.c.b16 %v916, %v915
        %v932 = vpack.c.b16 %v918, %v917
        %v933 = vpack.c.b16 %v920, %v919
        %v934 = vpack.c.b16 %v922, %v921
        %v935 = vpack.c.b16 %v924, %v923
        %v936 = vpack.c.b16 %v926, %v925
        %v937 = vpack.c.b16 %v928, %v927
        %v938 = vpack.c.b16 %v930, %v929
        %947 = vmatprep.subr.bf16.mxu0 0
        %948 = vmatpush1.bf16.msra.mxu0 %v938
        %949 = vmatprep.subr.bf16.mxu0 0
        %950 = vmatpush1.bf16.msra.mxu0 %v937
        %951 = vmatprep.subr.bf16.mxu0 0
        %952 = vmatpush1.bf16.msra.mxu0 %v936
        %953 = vmatprep.subr.bf16.mxu0 0
        %954 = vmatpush1.bf16.msra.mxu0 %v935
        %955 = vmatprep.subr.bf16.mxu0 0
        %956 = vmatpush1.bf16.msra.mxu0 %v934
        %957 = vmatprep.subr.bf16.mxu0 0
        %958 = vmatpush1.bf16.msra.mxu0 %v933
        %959 = vmatprep.subr.bf16.mxu0 0
        %960 = vmatpush1.bf16.msra.mxu0 %v932
        %961 = vmatprep.subr.bf16.mxu0 0
        %962 = vmatpush1.bf16.msra.mxu0 %v931
        %963 = vmatprep.subr.bf16.mxu0 0
        %964 = vmatpush2.bf16.msra.mxu0 0
        %965 = vmatprep.subr.bf16.mxu0 0
        %966 = vmatpush2.bf16.msra.mxu0 0
        %967 = vmatprep.subr.bf16.mxu0 0
        %968 = vmatpush2.bf16.msra.mxu0 0
        %969 = vmatprep.subr.bf16.mxu0 0
        %970 = vmatpush2.bf16.msra.mxu0 0
        %971 = vmatprep.subr.bf16.mxu0 0
        %972 = vmatpush2.bf16.msra.mxu0 0
        %973 = vmatprep.subr.bf16.mxu0 0
        %974 = vmatpush2.bf16.msra.mxu0 0
        %975 = vmatprep.subr.bf16.mxu0 0
        %976 = vmatpush2.bf16.msra.mxu0 0
        %977 = vmatprep.subr.bf16.mxu0 0
        %978 = vmatpush2.bf16.msra.mxu0 0
        %979 = vmatprep.mubr.bf16.mxu0 0
        %980 = vmatmul.mubr.bf16.gmra.mxu0 %v860
        %v981 = vpop.f32.mrf.mxu0
        %v982 = vadd.f32 %v897, %v981
        %v983 = vpop.f32.mrf.mxu0
        %v984 = vpop.f32.mrf.mxu0
        %v985 = vadd.f32 %v897, %v984
        %v986 = vpop.f32.mrf.mxu0
        %987 = vmatprep.mubr.bf16.mxu0 0
        %988 = vmatmul.mubr.bf16.gmra.mxu0 %v861
        %v989 = vpop.f32.mrf.mxu0
        %v990 = vadd.f32 %v897, %v989
        %v991 = vpop.f32.mrf.mxu0
        %v992 = vpop.f32.mrf.mxu0
        %v993 = vadd.f32 %v897, %v992
        %v994 = vpop.f32.mrf.mxu0
        %995 = vmatprep.mubr.bf16.mxu0 0
        %996 = vmatmul.mubr.bf16.gmra.mxu0 %v862
        %v997 = vpop.f32.mrf.mxu0
        %v998 = vadd.f32 %v897, %v997
        %v999 = vpop.f32.mrf.mxu0
        %v1000 = vpop.f32.mrf.mxu0
        %v1001 = vadd.f32 %v897, %v1000
        %v1002 = vpop.f32.mrf.mxu0
        %1003 = vmatprep.mubr.bf16.mxu0 0
        %1004 = vmatmul.mubr.bf16.gmra.mxu0 %v863
        %v1005 = vpop.f32.mrf.mxu0
        %v1006 = vadd.f32 %v897, %v1005
        %v1007 = vpop.f32.mrf.mxu0
        %v1008 = vpop.f32.mrf.mxu0
        %v1009 = vadd.f32 %v897, %v1008
        %v1010 = vpop.f32.mrf.mxu0
        %1011 = vmatprep.mubr.bf16.mxu0 0
        %1012 = vmatmul.mubr.bf16.gmra.mxu0 %v864
        %v1013 = vpop.f32.mrf.mxu0
        %v1014 = vadd.f32 %v897, %v1013
        %v1015 = vpop.f32.mrf.mxu0
        %v1016 = vpop.f32.mrf.mxu0
        %v1017 = vadd.f32 %v897, %v1016
        %v1018 = vpop.f32.mrf.mxu0
        %1019 = vmatprep.mubr.bf16.mxu0 0
        %1020 = vmatmul.mubr.bf16.gmra.mxu0 %v865
        %v1021 = vpop.f32.mrf.mxu0
        %v1022 = vadd.f32 %v897, %v1021
        %v1023 = vpop.f32.mrf.mxu0
        %v1024 = vpop.f32.mrf.mxu0
        %v1025 = vadd.f32 %v897, %v1024
        %v1026 = vpop.f32.mrf.mxu0
        %1027 = vmatprep.mubr.bf16.mxu0 0
        %1028 = vmatmul.mubr.bf16.gmra.mxu0 %v866
        %v1029 = vpop.f32.mrf.mxu0
        %v1030 = vadd.f32 %v897, %v1029
        %v1031 = vpop.f32.mrf.mxu0
        %v1032 = vpop.f32.mrf.mxu0
        %v1033 = vadd.f32 %v897, %v1032
        %v1034 = vpop.f32.mrf.mxu0
        %1035 = vmatprep.mubr.bf16.mxu0 0
        %1036 = vmatmul.mubr.bf16.gmra.mxu0 %v867
        %v1037 = vpop.f32.mrf.mxu0
        %v1038 = vadd.f32 %v897, %v1037
        %v1039 = vpop.f32.mrf.mxu0
        %v1040 = vpop.f32.mrf.mxu0
        %v1041 = vadd.f32 %v897, %v1040
        %v1042 = vpop.f32.mrf.mxu0
        %1043 = vmatprep.mubr.bf16.mxu0 0
        %1044 = vmatmul.mubr.bf16.gmra.mxu0 %v868
        %v1045 = vpop.f32.mrf.mxu0
        %v1046 = vadd.f32 %v897, %v1045
        %v1047 = vpop.f32.mrf.mxu0
        %v1048 = vpop.f32.mrf.mxu0
        %v1049 = vadd.f32 %v897, %v1048
        %v1050 = vpop.f32.mrf.mxu0
        %1051 = vmatprep.mubr.bf16.mxu0 0
        %1052 = vmatmul.mubr.bf16.gmra.mxu0 %v869
        %v1053 = vpop.f32.mrf.mxu0
        %v1054 = vadd.f32 %v897, %v1053
        %v1055 = vpop.f32.mrf.mxu0
        %v1056 = vpop.f32.mrf.mxu0
        %v1057 = vadd.f32 %v897, %v1056
        %v1058 = vpop.f32.mrf.mxu0
        %1059 = vmatprep.mubr.bf16.mxu0 0
        %1060 = vmatmul.mubr.bf16.gmra.mxu0 %v870
        %v1061 = vpop.f32.mrf.mxu0
        %v1062 = vadd.f32 %v897, %v1061
        %v1063 = vpop.f32.mrf.mxu0
        %v1064 = vpop.f32.mrf.mxu0
        %v1065 = vadd.f32 %v897, %v1064
        %v1066 = vpop.f32.mrf.mxu0
        %1067 = vmatprep.mubr.bf16.mxu0 0
        %1068 = vmatmul.mubr.bf16.gmra.mxu0 %v871
        %v1069 = vpop.f32.mrf.mxu0
        %v1070 = vadd.f32 %v897, %v1069
        %v1071 = vpop.f32.mrf.mxu0
        %v1072 = vpop.f32.mrf.mxu0
        %v1073 = vadd.f32 %v897, %v1072
        %v1074 = vpop.f32.mrf.mxu0
        %1075 = vmatprep.mubr.bf16.mxu0 0
        %1076 = vmatmul.mubr.bf16.gmra.mxu0 %v872
        %v1077 = vpop.f32.mrf.mxu0
        %v1078 = vadd.f32 %v897, %v1077
        %v1079 = vpop.f32.mrf.mxu0
        %v1080 = vpop.f32.mrf.mxu0
        %v1081 = vadd.f32 %v897, %v1080
        %v1082 = vpop.f32.mrf.mxu0
        %1083 = vmatprep.mubr.bf16.mxu0 0
        %1084 = vmatmul.mubr.bf16.gmra.mxu0 %v873
        %v1085 = vpop.f32.mrf.mxu0
        %v1086 = vadd.f32 %v897, %v1085
        %v1087 = vpop.f32.mrf.mxu0
        %v1088 = vpop.f32.mrf.mxu0
        %v1089 = vadd.f32 %v897, %v1088
        %v1090 = vpop.f32.mrf.mxu0
        %1091 = vmatprep.mubr.bf16.mxu0 0
        %1092 = vmatmul.mubr.bf16.gmra.mxu0 %v874
        %v1093 = vpop.f32.mrf.mxu0
        %v1094 = vadd.f32 %v897, %v1093
        %v1095 = vpop.f32.mrf.mxu0
        %v1096 = vpop.f32.mrf.mxu0
        %v1097 = vadd.f32 %v897, %v1096
        %v1098 = vpop.f32.mrf.mxu0
        %1099 = vmatprep.mubr.bf16.mxu0 0
        %1100 = vmatmul.mubr.bf16.gmra.mxu0 %v875
        %v1101 = vpop.f32.mrf.mxu0
        %v1102 = vadd.f32 %v897, %v1101
        %v1103 = vpop.f32.mrf.mxu0
        %v1104 = vpop.f32.mrf.mxu0
        %v1105 = vadd.f32 %v897, %v1104
        %v1106 = vpop.f32.mrf.mxu0
        %1107 = vdwg.mxu0
        %v1108 = vpack.c.bf16 %v985, %v982
        %v1109 = vpack.c.bf16 %v993, %v990
        %v1110 = vpack.c.bf16 %v1001, %v998
        %v1111 = vpack.c.bf16 %v1009, %v1006
        %v1112 = vpack.c.bf16 %v1017, %v1014
        %v1113 = vpack.c.bf16 %v1025, %v1022
        %v1114 = vpack.c.bf16 %v1033, %v1030
        %v1115 = vpack.c.bf16 %v1041, %v1038
        %v1116 = vpack.c.bf16 %v1049, %v1046
        %v1117 = vpack.c.bf16 %v1057, %v1054
        %v1118 = vpack.c.bf16 %v1065, %v1062
        %v1119 = vpack.c.bf16 %v1073, %v1070
        %v1120 = vpack.c.bf16 %v1081, %v1078
        %v1121 = vpack.c.bf16 %v1089, %v1086
        %v1122 = vpack.c.bf16 %v1097, %v1094
        %v1123 = vpack.c.bf16 %v1105, %v1102
        %v1124 = vld [vmem:[%s5] sm:$0xf]
        %v1125 = vld [vmem:[%s5 + $0x4] sm:$0xf]
        %v1126 = vld [vmem:[%s5 + $0x8] sm:$0xf]
        %v1127 = vld [vmem:[%s5 + $0xc] sm:$0xf]
        %v1128 = vld [vmem:[%s5 + $0x10] sm:$0xf]
        %v1129 = vld [vmem:[%s5 + $0x14] sm:$0xf]
        %v1130 = vld [vmem:[%s5 + $0x18] sm:$0xf]
        %v1131 = vld [vmem:[%s5 + $0x1c] sm:$0xf]
        %v1132 = vld [vmem:[%s5 + $0x20] sm:$0xf]
        %v1133 = vld [vmem:[%s5 + $0x24] sm:$0xf]
        %v1134 = vld [vmem:[%s5 + $0x28] sm:$0xf]
        %v1135 = vld [vmem:[%s5 + $0x2c] sm:$0xf]
        %v1136 = vld [vmem:[%s5 + $0x30] sm:$0xf]
        %v1137 = vld [vmem:[%s5 + $0x34] sm:$0xf]
        %v1138 = vld [vmem:[%s5 + $0x38] sm:$0xf]
        %v1139 = vld [vmem:[%s5 + $0x3c] sm:$0xf]
        %v1156 = vunpack.c.l.b16 %v1124
        %v1157 = vunpack.c.l.b16 %v1125
        %v1158 = vunpack.c.l.b16 %v1126
        %v1159 = vunpack.c.l.b16 %v1127
        %v1160 = vunpack.c.l.b16 %v1128
        %v1161 = vunpack.c.l.b16 %v1129
        %v1162 = vunpack.c.l.b16 %v1130
        %v1163 = vunpack.c.l.b16 %v1131
        %v1164 = vunpack.c.l.b16 %v1132
        %v1165 = vunpack.c.l.b16 %v1133
        %v1166 = vunpack.c.l.b16 %v1134
        %v1167 = vunpack.c.l.b16 %v1135
        %v1168 = vunpack.c.l.b16 %v1136
        %v1169 = vunpack.c.l.b16 %v1137
        %v1170 = vunpack.c.l.b16 %v1138
        %v1171 = vunpack.c.l.b16 %v1139
        %v1172 = vpack.c.b16 %v1157, %v1156
        %v1173 = vpack.c.b16 %v1159, %v1158
        %v1174 = vpack.c.b16 %v1161, %v1160
        %v1175 = vpack.c.b16 %v1163, %v1162
        %v1176 = vpack.c.b16 %v1165, %v1164
        %v1177 = vpack.c.b16 %v1167, %v1166
        %v1178 = vpack.c.b16 %v1169, %v1168
        %v1179 = vpack.c.b16 %v1171, %v1170
        %1188 = vmatprep.subr.bf16.mxu0 0
        %1189 = vmatpush1.bf16.msra.mxu0 %v1179
        %1190 = vmatprep.subr.bf16.mxu0 0
        %1191 = vmatpush1.bf16.msra.mxu0 %v1178
        %1192 = vmatprep.subr.bf16.mxu0 0
        %1193 = vmatpush1.bf16.msra.mxu0 %v1177
        %1194 = vmatprep.subr.bf16.mxu0 0
        %1195 = vmatpush1.bf16.msra.mxu0 %v1176
        %1196 = vmatprep.subr.bf16.mxu0 0
        %1197 = vmatpush1.bf16.msra.mxu0 %v1175
        %1198 = vmatprep.subr.bf16.mxu0 0
        %1199 = vmatpush1.bf16.msra.mxu0 %v1174
        %1200 = vmatprep.subr.bf16.mxu0 0
        %1201 = vmatpush1.bf16.msra.mxu0 %v1173
        %1202 = vmatprep.subr.bf16.mxu0 0
        %1203 = vmatpush1.bf16.msra.mxu0 %v1172
        %1204 = vmatprep.subr.bf16.mxu0 0
        %1205 = vmatpush2.bf16.msra.mxu0 0
        %1206 = vmatprep.subr.bf16.mxu0 0
        %1207 = vmatpush2.bf16.msra.mxu0 0
        %1208 = vmatprep.subr.bf16.mxu0 0
        %1209 = vmatpush2.bf16.msra.mxu0 0
        %1210 = vmatprep.subr.bf16.mxu0 0
        %1211 = vmatpush2.bf16.msra.mxu0 0
        %1212 = vmatprep.subr.bf16.mxu0 0
        %1213 = vmatpush2.bf16.msra.mxu0 0
        %1214 = vmatprep.subr.bf16.mxu0 0
        %1215 = vmatpush2.bf16.msra.mxu0 0
        %1216 = vmatprep.subr.bf16.mxu0 0
        %1217 = vmatpush2.bf16.msra.mxu0 0
        %1218 = vmatprep.subr.bf16.mxu0 0
        %1219 = vmatpush2.bf16.msra.mxu0 0
        %1220 = vmatprep.mubr.bf16.mxu0 0
        %1221 = vmatmul.mubr.bf16.gmra.mxu0 %v1108
        %v1222 = vpop.f32.mrf.mxu0
        %v1223 = vadd.f32 0.0, %v1222
        %v1224 = vpop.f32.mrf.mxu0
        %v1225 = vpop.f32.mrf.mxu0
        %v1226 = vadd.f32 0.0, %v1225
        %v1227 = vpop.f32.mrf.mxu0
        %1228 = vmatprep.mubr.bf16.mxu0 0
        %1229 = vmatmul.mubr.bf16.gmra.mxu0 %v1109
        %v1230 = vpop.f32.mrf.mxu0
        %v1231 = vadd.f32 0.0, %v1230
        %v1232 = vpop.f32.mrf.mxu0
        %v1233 = vpop.f32.mrf.mxu0
        %v1234 = vadd.f32 0.0, %v1233
        %v1235 = vpop.f32.mrf.mxu0
        %1236 = vmatprep.mubr.bf16.mxu0 0
        %1237 = vmatmul.mubr.bf16.gmra.mxu0 %v1110
        %v1238 = vpop.f32.mrf.mxu0
        %v1239 = vadd.f32 0.0, %v1238
        %v1240 = vpop.f32.mrf.mxu0
        %v1241 = vpop.f32.mrf.mxu0
        %v1242 = vadd.f32 0.0, %v1241
        %v1243 = vpop.f32.mrf.mxu0
        %1244 = vmatprep.mubr.bf16.mxu0 0
        %1245 = vmatmul.mubr.bf16.gmra.mxu0 %v1111
        %v1246 = vpop.f32.mrf.mxu0
        %v1247 = vadd.f32 0.0, %v1246
        %v1248 = vpop.f32.mrf.mxu0
        %v1249 = vpop.f32.mrf.mxu0
        %v1250 = vadd.f32 0.0, %v1249
        %v1251 = vpop.f32.mrf.mxu0
        %1252 = vmatprep.mubr.bf16.mxu0 0
        %1253 = vmatmul.mubr.bf16.gmra.mxu0 %v1112
        %v1254 = vpop.f32.mrf.mxu0
        %v1255 = vadd.f32 0.0, %v1254
        %v1256 = vpop.f32.mrf.mxu0
        %v1257 = vpop.f32.mrf.mxu0
        %v1258 = vadd.f32 0.0, %v1257
        %v1259 = vpop.f32.mrf.mxu0
        %1260 = vmatprep.mubr.bf16.mxu0 0
        %1261 = vmatmul.mubr.bf16.gmra.mxu0 %v1113
        %v1262 = vpop.f32.mrf.mxu0
        %v1263 = vadd.f32 0.0, %v1262
        %v1264 = vpop.f32.mrf.mxu0
        %v1265 = vpop.f32.mrf.mxu0
        %v1266 = vadd.f32 0.0, %v1265
        %v1267 = vpop.f32.mrf.mxu0
        %1268 = vmatprep.mubr.bf16.mxu0 0
        %1269 = vmatmul.mubr.bf16.gmra.mxu0 %v1114
        %v1270 = vpop.f32.mrf.mxu0
        %v1271 = vadd.f32 0.0, %v1270
        %v1272 = vpop.f32.mrf.mxu0
        %v1273 = vpop.f32.mrf.mxu0
        %v1274 = vadd.f32 0.0, %v1273
        %v1275 = vpop.f32.mrf.mxu0
        %1276 = vmatprep.mubr.bf16.mxu0 0
        %1277 = vmatmul.mubr.bf16.gmra.mxu0 %v1115
        %v1278 = vpop.f32.mrf.mxu0
        %v1279 = vadd.f32 0.0, %v1278
        %v1280 = vpop.f32.mrf.mxu0
        %v1281 = vpop.f32.mrf.mxu0
        %v1282 = vadd.f32 0.0, %v1281
        %v1283 = vpop.f32.mrf.mxu0
        %1284 = vmatprep.mubr.bf16.mxu0 0
        %1285 = vmatmul.mubr.bf16.gmra.mxu0 %v1116
        %v1286 = vpop.f32.mrf.mxu0
        %v1287 = vadd.f32 0.0, %v1286
        %v1288 = vpop.f32.mrf.mxu0
        %v1289 = vpop.f32.mrf.mxu0
        %v1290 = vadd.f32 0.0, %v1289
        %v1291 = vpop.f32.mrf.mxu0
        %1292 = vmatprep.mubr.bf16.mxu0 0
        %1293 = vmatmul.mubr.bf16.gmra.mxu0 %v1117
        %v1294 = vpop.f32.mrf.mxu0
        %v1295 = vadd.f32 0.0, %v1294
        %v1296 = vpop.f32.mrf.mxu0
        %v1297 = vpop.f32.mrf.mxu0
        %v1298 = vadd.f32 0.0, %v1297
        %v1299 = vpop.f32.mrf.mxu0
        %1300 = vmatprep.mubr.bf16.mxu0 0
        %1301 = vmatmul.mubr.bf16.gmra.mxu0 %v1118
        %v1302 = vpop.f32.mrf.mxu0
        %v1303 = vadd.f32 0.0, %v1302
        %v1304 = vpop.f32.mrf.mxu0
        %v1305 = vpop.f32.mrf.mxu0
        %v1306 = vadd.f32 0.0, %v1305
        %v1307 = vpop.f32.mrf.mxu0
        %1308 = vmatprep.mubr.bf16.mxu0 0
        %1309 = vmatmul.mubr.bf16.gmra.mxu0 %v1119
        %v1310 = vpop.f32.mrf.mxu0
        %v1311 = vadd.f32 0.0, %v1310
        %v1312 = vpop.f32.mrf.mxu0
        %v1313 = vpop.f32.mrf.mxu0
        %v1314 = vadd.f32 0.0, %v1313
        %v1315 = vpop.f32.mrf.mxu0
        %1316 = vmatprep.mubr.bf16.mxu0 0
        %1317 = vmatmul.mubr.bf16.gmra.mxu0 %v1120
        %v1318 = vpop.f32.mrf.mxu0
        %v1319 = vadd.f32 0.0, %v1318
        %v1320 = vpop.f32.mrf.mxu0
        %v1321 = vpop.f32.mrf.mxu0
        %v1322 = vadd.f32 0.0, %v1321
        %v1323 = vpop.f32.mrf.mxu0
        %1324 = vmatprep.mubr.bf16.mxu0 0
        %1325 = vmatmul.mubr.bf16.gmra.mxu0 %v1121
        %v1326 = vpop.f32.mrf.mxu0
        %v1327 = vadd.f32 0.0, %v1326
        %v1328 = vpop.f32.mrf.mxu0
        %v1329 = vpop.f32.mrf.mxu0
        %v1330 = vadd.f32 0.0, %v1329
        %v1331 = vpop.f32.mrf.mxu0
        %1332 = vmatprep.mubr.bf16.mxu0 0
        %1333 = vmatmul.mubr.bf16.gmra.mxu0 %v1122
        %v1334 = vpop.f32.mrf.mxu0
        %v1335 = vadd.f32 0.0, %v1334
        %v1336 = vpop.f32.mrf.mxu0
        %v1337 = vpop.f32.mrf.mxu0
        %v1338 = vadd.f32 0.0, %v1337
        %v1339 = vpop.f32.mrf.mxu0
        %1340 = vmatprep.mubr.bf16.mxu0 0
        %1341 = vmatmul.mubr.bf16.gmra.mxu0 %v1123
        %v1342 = vpop.f32.mrf.mxu0
        %v1343 = vadd.f32 0.0, %v1342
        %v1344 = vpop.f32.mrf.mxu0
        %v1345 = vpop.f32.mrf.mxu0
        %v1346 = vadd.f32 0.0, %v1345
        %v1347 = vpop.f32.mrf.mxu0
        %1348 = vdwg.mxu0
        %1349 = vst [vmem:[%s298] sm:$0xff] %v1223
        %1350 = vst [vmem:[%s298 + $0x8] sm:$0xff] %v1226
        %1351 = vst [vmem:[%s298 + $0x10] sm:$0xff] %v1231
        %1352 = vst [vmem:[%s298 + $0x18] sm:$0xff] %v1234
        %1353 = vst [vmem:[%s298 + $0x20] sm:$0xff] %v1239
        %1354 = vst [vmem:[%s298 + $0x28] sm:$0xff] %v1242
        %1355 = vst [vmem:[%s298 + $0x30] sm:$0xff] %v1247
        %1356 = vst [vmem:[%s298 + $0x38] sm:$0xff] %v1250
        %1357 = vst [vmem:[%s298 + $0x40] sm:$0xff] %v1255
        %1358 = vst [vmem:[%s298 + $0x48] sm:$0xff] %v1258
        %1359 = vst [vmem:[%s298 + $0x50] sm:$0xff] %v1263
        %1360 = vst [vmem:[%s298 + $0x58] sm:$0xff] %v1266
        %1361 = vst [vmem:[%s298 + $0x60] sm:$0xff] %v1271
        %1362 = vst [vmem:[%s298 + $0x68] sm:$0xff] %v1274
        %1363 = vst [vmem:[%s298 + $0x70] sm:$0xff] %v1279
        %1364 = vst [vmem:[%s298 + $0x78] sm:$0xff] %v1282
        %1365 = vst [vmem:[%s298 + $0x80] sm:$0xff] %v1287
        %1366 = vst [vmem:[%s298 + $0x88] sm:$0xff] %v1290
        %1367 = vst [vmem:[%s298 + $0x90] sm:$0xff] %v1295
        %1368 = vst [vmem:[%s298 + $0x98] sm:$0xff] %v1298
        %1369 = vst [vmem:[%s298 + $0xa0] sm:$0xff] %v1303
        %1370 = vst [vmem:[%s298 + $0xa8] sm:$0xff] %v1306
        %1371 = vst [vmem:[%s298 + $0xb0] sm:$0xff] %v1311
        %1372 = vst [vmem:[%s298 + $0xb8] sm:$0xff] %v1314
        %1373 = vst [vmem:[%s298 + $0xc0] sm:$0xff] %v1319
        %1374 = vst [vmem:[%s298 + $0xc8] sm:$0xff] %v1322
        %1375 = vst [vmem:[%s298 + $0xd0] sm:$0xff] %v1327
        %1376 = vst [vmem:[%s298 + $0xd8] sm:$0xff] %v1330
        %1377 = vst [vmem:[%s298 + $0xe0] sm:$0xff] %v1335
        %1378 = vst [vmem:[%s298 + $0xe8] sm:$0xff] %v1338
        %1379 = vst [vmem:[%s298 + $0xf0] sm:$0xff] %v1343
        %1380 = vst [vmem:[%s298 + $0xf8] sm:$0xff] %v1346
      $region52: #{neck_forward.28} parent=43 // pred_fallthru
        _
      %s1381 = smul.u32 32, %s21
      %p1382 = scmp.lt.s32.totalorder %s1381, 63
      %s1383 = scalar_select %p1382, %s1381, 63
      %s1384 = smul.addr %s1383, 8
      %s1385 = scalar_lea.vmem %s6, %s1384
      // Predicated region
      $region53: #{neck_forward.28} parent=43 // pred_check
        %p1386 = pneg %p185
      $region54: #{neck_forward.28} parent=43 // pred_check_branch
        %1388 = sbr.rel (%p1386) target = $region56
      $region55: #{neck_forward.28} parent=43 // pred_region
        %s1389 = smul.u32 32, %s21
      $region56: #{neck_forward.28} parent=43 // pred_fallthru
        _
    $region44: #{neck_forward.28} parent=5 // pred_fallthru
      _
    %p1390 = scmp.le.s32.totalorder 2, %s12
    // Predicated region
    $region57: #{neck_forward.28} parent=5 // pred_check
      %p1391 = pneg %p1390
    $region58: #{neck_forward.28} parent=5 // pred_check_branch
      %1393 = sbr.rel (%p1391) target = $region60
    $region59: #{neck_forward.28} parent=5 // pred_region
      %s1394 = ssub.s32 %s12, 2
      // Predicated region
      $region61: #{neck_forward.28} parent=59 // pred_check
        %p1395 = pneg %p191
      $region62: #{neck_forward.28} parent=59 // pred_check_branch
        %1397 = sbr.rel (%p1395) target = $region64
      $region63: #{neck_forward.28} parent=59 // pred_region
        %s1398 = smul.u32 32, %s23
        %p1399 = scmp.lt.s32.totalorder %s1398, 63
        %s1400 = scalar_select %p1399, %s1398, 63
        %s1401 = smul.addr %s1400, 8
        %s1402 = scalar_lea.vmem %s6, %s1401
      $region64: #{neck_forward.28} parent=59 // pred_fallthru
        _
    $region60: #{neck_forward.28} parent=5 // pred_fallthru
      _
  $region6: #{neck_forward.28} parent=0 // loop_footer
    %s16 = sadd.s32 1, %s12
  $region7: #{neck_forward.28} parent=0 // loop_footer_branch
    %11 = sbr.rel target = $region3
  $region8: #{neck_forward.28} parent=0 // loop_exit
    _

// kernel: neck_forward.29
$region0: #{neck_forward.29}
  #allocation0 [shape = 'u32[]', space=smem, size = 0x4, offset = 0x4, fixed_abs, tag = 'smem constant byte address 0x4 - core index']
  #allocation1 [shape = 'u32[144,128]{1,0:T(1,128)}', space=vmem, size = 0x12000, scoped, tag = 'internal scratch']
  #allocation2 [shape = 'f32[256,128]{1,0:T(8,128)}', space=vmem, size = 0x20000, scoped, tag = 'scratch operand']
  %s0 = inlined_call_operand.vmem [shape: bf16[2048,128], index: 0, kind: input, shape index: {}]
  %s1 = inlined_call_operand.vmem [shape: bf16[128,128], index: 1, kind: input, shape index: {}]
  %s2 = inlined_call_operand.vmem [shape: f32[1,128], index: 2, kind: input, shape index: {}]
  %s3 = inlined_call_operand.vmem [shape: bf16[128,128], index: 3, kind: input, shape index: {}]
  %s4 = inlined_call_operand.vmem [shape: f32[1,128], index: 4, kind: input, shape index: {}]
  %s5 = inlined_call_operand.vmem [shape: bf16[128,128], index: 5, kind: input, shape index: {}]
  %s6 = inlined_call_operand.vmem [shape: f32[2048,128], index: 6, kind: output, shape index: {}]
  %s7 = sld [smem:[#allocation0]]
  $region65: #{neck_forward.29} parent=0
    _
  %s9 = ssub.s32 1, %s7
  %s10 = scalar_select 0, %s9, %s7
  loop: start=0, step=1, limit=10
  $region2: #{neck_forward.29} parent=0 // loop_pre_header
    _
  $region3: #{neck_forward.29} parent=0 // loop_header
    %s12 = sphi 0, %s16
    %p13 = scmp.ge.s32.totalorder %s12, 10
    %s19 = sphi 0, %s31
    %s20 = sphi 0, %s27
    %s21 = sphi 0, %s19
    %s22 = sphi 0, %s20
    %s23 = sphi 0, %s21
    %s24 = sphi 0, %s22
    %s36 = sphi 0, %s38
    %s39 = sphi 0, %s36
    %s40 = sphi 0, %s39
    %s56 = sphi 0, %s40
    %s62 = sphi 0, %s64
    %s65 = sphi 0, %s62
    %s66 = sphi 0, %s65
    %s82 = sphi 0, %s66
    %s86 = sphi 0, %s86
    %s88 = sphi 0, %s86
    %s89 = sphi 0, %s88
    %s103 = sphi 0, %s89
    %s107 = sphi 0, %s107
    %s109 = sphi 0, %s107
    %s110 = sphi 0, %s109
    %s124 = sphi 0, %s110
    %s128 = sphi 0, %s128
    %s130 = sphi 0, %s128
    %s131 = sphi 0, %s130
    %s145 = sphi 0, %s131
    %s149 = sphi 0, %s149
    %s151 = sphi 0, %s149
    %s152 = sphi 0, %s151
    %s166 = sphi 0, %s152
    %s172 = sphi 0, %s174
    %s175 = sphi 0, %s172
    %s176 = sphi 0, %s175
    %s192 = sphi 0, %s176
  $region4: #{neck_forward.29} parent=0 // loop_header_branch
    %15 = sbr.rel (%p13) target = $region8
  $region5: #{neck_forward.29} parent=0 // loop_body
    %s17 = ssub.s32 %s12, 1
    %s18 = ssub.s32 %s12, 2
    %s25 = sadd.s32 1, %s20
    %p26 = scmp.ge.s32.totalorder %s25, 1
    %s27 = scalar_select %p26, 0, %s25
    %s28 = sadd.s32 1, %s19
    %s29 = scalar_select %p26, %s28, %s19
    %p30 = scmp.ge.s32.totalorder %s29, 8
    %s31 = scalar_select %p30, 0, %s29
    %s32 = ssub.s32 %s19, %s31
    %s33 = ssub.s32 %s20, %s27
    %s34 = sor.u32 %s32, %s33
    %p35 = scmp.eq.s32.totalorder %s34, 0
    %s37 = sadd.s32 %s36, 1
    %s38 = scalar_select %p35, %s36, %s37
    %p41 = pneg %p35
    %p42 = scmp.eq.s32.totalorder %s12, 7
    %p43 = por %p41, %p42
    %p44 = scmp.ne.s32.totalorder %s36, %s39
    %p45 = scmp.eq.s32.totalorder %s12, 0
    %p46 = por %p44, %p45
    %p47 = scmp.ne.s32.totalorder %s36, %s39
    %p48 = scmp.eq.s32.totalorder %s17, 7
    %p49 = por %p47, %p48
    %p50 = scmp.ne.s32.totalorder %s39, %s40
    %p51 = scmp.eq.s32.totalorder %s17, 0
    %p52 = por %p50, %p51
    %p53 = scmp.ne.s32.totalorder %s39, %s40
    %p54 = scmp.eq.s32.totalorder %s18, 7
    %p55 = por %p53, %p54
    %p57 = scmp.ne.s32.totalorder %s40, %s56
    %p58 = scmp.eq.s32.totalorder %s18, 0
    %p59 = por %p57, %p58
    %s60 = ssub.s32 %s20, %s27
    %p61 = scmp.eq.s32.totalorder %s60, 0
    %s63 = sadd.s32 %s62, 1
    %s64 = scalar_select %p61, %s62, %s63
    %p67 = pneg %p61
    %p68 = scmp.eq.s32.totalorder %s12, 7
    %p69 = por %p67, %p68
    %p70 = scmp.ne.s32.totalorder %s62, %s65
    %p71 = scmp.eq.s32.totalorder %s12, 0
    %p72 = por %p70, %p71
    %p73 = scmp.ne.s32.totalorder %s62, %s65
    %p74 = scmp.eq.s32.totalorder %s17, 7
    %p75 = por %p73, %p74
    %p76 = scmp.ne.s32.totalorder %s65, %s66
    %p77 = scmp.eq.s32.totalorder %s17, 0
    %p78 = por %p76, %p77
    %p79 = scmp.ne.s32.totalorder %s65, %s66
    %p80 = scmp.eq.s32.totalorder %s18, 7
    %p81 = por %p79, %p80
    %p83 = scmp.ne.s32.totalorder %s66, %s82
    %p84 = scmp.eq.s32.totalorder %s18, 0
    %p85 = por %p83, %p84
    %s87 = sadd.s32 %s86, 1
    %p90 = scmp.eq.s32.totalorder %s12, 7
    %p91 = scmp.ne.s32.totalorder %s86, %s88
    %p92 = scmp.eq.s32.totalorder %s12, 0
    %p93 = por %p91, %p92
    %p94 = scmp.ne.s32.totalorder %s86, %s88
    %p95 = scmp.eq.s32.totalorder %s17, 7
    %p96 = por %p94, %p95
    %p97 = scmp.ne.s32.totalorder %s88, %s89
    %p98 = scmp.eq.s32.totalorder %s17, 0
    %p99 = por %p97, %p98
    %p100 = scmp.ne.s32.totalorder %s88, %s89
    %p101 = scmp.eq.s32.totalorder %s18, 7
    %p102 = por %p100, %p101
    %p104 = scmp.ne.s32.totalorder %s89, %s103
    %p105 = scmp.eq.s32.totalorder %s18, 0
    %p106 = por %p104, %p105
    %s108 = sadd.s32 %s107, 1
    %p111 = scmp.eq.s32.totalorder %s12, 7
    %p112 = scmp.ne.s32.totalorder %s107, %s109
    %p113 = scmp.eq.s32.totalorder %s12, 0
    %p114 = por %p112, %p113
    %p115 = scmp.ne.s32.totalorder %s107, %s109
    %p116 = scmp.eq.s32.totalorder %s17, 7
    %p117 = por %p115, %p116
    %p118 = scmp.ne.s32.totalorder %s109, %s110
    %p119 = scmp.eq.s32.totalorder %s17, 0
    %p120 = por %p118, %p119
    %p121 = scmp.ne.s32.totalorder %s109, %s110
    %p122 = scmp.eq.s32.totalorder %s18, 7
    %p123 = por %p121, %p122
    %p125 = scmp.ne.s32.totalorder %s110, %s124
    %p126 = scmp.eq.s32.totalorder %s18, 0
    %p127 = por %p125, %p126
    %s129 = sadd.s32 %s128, 1
    %p132 = scmp.eq.s32.totalorder %s12, 7
    %p133 = scmp.ne.s32.totalorder %s128, %s130
    %p134 = scmp.eq.s32.totalorder %s12, 0
    %p135 = por %p133, %p134
    %p136 = scmp.ne.s32.totalorder %s128, %s130
    %p137 = scmp.eq.s32.totalorder %s17, 7
    %p138 = por %p136, %p137
    %p139 = scmp.ne.s32.totalorder %s130, %s131
    %p140 = scmp.eq.s32.totalorder %s17, 0
    %p141 = por %p139, %p140
    %p142 = scmp.ne.s32.totalorder %s130, %s131
    %p143 = scmp.eq.s32.totalorder %s18, 7
    %p144 = por %p142, %p143
    %p146 = scmp.ne.s32.totalorder %s131, %s145
    %p147 = scmp.eq.s32.totalorder %s18, 0
    %p148 = por %p146, %p147
    %s150 = sadd.s32 %s149, 1
    %p153 = scmp.eq.s32.totalorder %s12, 7
    %p154 = scmp.ne.s32.totalorder %s149, %s151
    %p155 = scmp.eq.s32.totalorder %s12, 0
    %p156 = por %p154, %p155
    %p157 = scmp.ne.s32.totalorder %s149, %s151
    %p158 = scmp.eq.s32.totalorder %s17, 7
    %p159 = por %p157, %p158
    %p160 = scmp.ne.s32.totalorder %s151, %s152
    %p161 = scmp.eq.s32.totalorder %s17, 0
    %p162 = por %p160, %p161
    %p163 = scmp.ne.s32.totalorder %s151, %s152
    %p164 = scmp.eq.s32.totalorder %s18, 7
    %p165 = por %p163, %p164
    %p167 = scmp.ne.s32.totalorder %s152, %s166
    %p168 = scmp.eq.s32.totalorder %s18, 0
    %p169 = por %p167, %p168
    %s170 = ssub.s32 %s19, %s31
    %p171 = scmp.eq.s32.totalorder %s170, 0
    %s173 = sadd.s32 %s172, 1
    %s174 = scalar_select %p171, %s172, %s173
    %p177 = pneg %p171
    %p178 = scmp.eq.s32.totalorder %s12, 7
    %p179 = por %p177, %p178
    %p180 = scmp.ne.s32.totalorder %s172, %s175
    %p181 = scmp.eq.s32.totalorder %s12, 0
    %p182 = por %p180, %p181
    %p183 = scmp.ne.s32.totalorder %s172, %s175
    %p184 = scmp.eq.s32.totalorder %s17, 7
    %p185 = por %p183, %p184
    %p186 = scmp.ne.s32.totalorder %s175, %s176
    %p187 = scmp.eq.s32.totalorder %s17, 0
    %p188 = por %p186, %p187
    %p189 = scmp.ne.s32.totalorder %s175, %s176
    %p190 = scmp.eq.s32.totalorder %s18, 7
    %p191 = por %p189, %p190
    %p193 = scmp.ne.s32.totalorder %s176, %s192
    %p194 = scmp.eq.s32.totalorder %s18, 0
    %p195 = por %p193, %p194
    %p196 = scmp.le.s32.totalorder 1, %s12
    %p197 = scmp.lt.s32.totalorder %s12, 9
    %p198 = pnand %p196, %p197
    %p199 = pneg %p198
    // Predicated region
    $region9: #{neck_forward.29} parent=5 // pred_check
      _
    $region10: #{neck_forward.29} parent=5 // pred_check_branch
      %201 = sbr.rel (%p198) target = $region12
    $region11: #{neck_forward.29} parent=5 // pred_region
      %s202 = ssub.s32 %s12, 1
      // Predicated region
      $region13: #{neck_forward.29} parent=11 // pred_check
        %p203 = pneg %p78
      $region14: #{neck_forward.29} parent=11 // pred_check_branch
        %205 = sbr.rel (%p203) target = $region16
      $region15: #{neck_forward.29} parent=11 // pred_region
        %s206 = smul.u32 16, %s22
        %p207 = scmp.lt.s32.totalorder %s206, 15
        %s208 = scalar_select %p207, %s206, 15
        %s209 = smul.addr %s208, 4
        %s210 = scalar_lea.vmem %s1, %s209
        %s211 = smul.u32 16, %s22
      $region16: #{neck_forward.29} parent=11 // pred_fallthru
        _
      // Predicated region
      $region17: #{neck_forward.29} parent=11 // pred_check
        %p212 = pneg %p99
      $region18: #{neck_forward.29} parent=11 // pred_check_branch
        %214 = sbr.rel (%p212) target = $region20
      $region19: #{neck_forward.29} parent=11 // pred_region
        _
      $region20: #{neck_forward.29} parent=11 // pred_fallthru
        _
      // Predicated region
      $region21: #{neck_forward.29} parent=11 // pred_check
        %p215 = pneg %p120
      $region22: #{neck_forward.29} parent=11 // pred_check_branch
        %217 = sbr.rel (%p215) target = $region24
      $region23: #{neck_forward.29} parent=11 // pred_region
        _
      $region24: #{neck_forward.29} parent=11 // pred_fallthru
        _
      // Predicated region
      $region25: #{neck_forward.29} parent=11 // pred_check
        %p218 = pneg %p141
      $region26: #{neck_forward.29} parent=11 // pred_check_branch
        %220 = sbr.rel (%p218) target = $region28
      $region27: #{neck_forward.29} parent=11 // pred_region
        _
      $region28: #{neck_forward.29} parent=11 // pred_fallthru
        _
      // Predicated region
      $region29: #{neck_forward.29} parent=11 // pred_check
        %p221 = pneg %p162
      $region30: #{neck_forward.29} parent=11 // pred_check_branch
        %223 = sbr.rel (%p221) target = $region32
      $region31: #{neck_forward.29} parent=11 // pred_region
        _
      $region32: #{neck_forward.29} parent=11 // pred_fallthru
        _
    $region12: #{neck_forward.29} parent=5 // pred_fallthru
      _
    %p224 = scmp.lt.s32.totalorder %s12, 8
    // Predicated region
    $region33: #{neck_forward.29} parent=5 // pred_check
      %p225 = pneg %p224
    $region34: #{neck_forward.29} parent=5 // pred_check_branch
      %227 = sbr.rel (%p225) target = $region36
    $region35: #{neck_forward.29} parent=5 // pred_region
      // Predicated region
      $region37: #{neck_forward.29} parent=35 // pred_check
        %p228 = pneg %p46
      $region38: #{neck_forward.29} parent=35 // pred_check_branch
        %230 = sbr.rel (%p228) target = $region40
      $region39: #{neck_forward.29} parent=35 // pred_region
        %s231 = smul.u32 32, %s19
        %p232 = scmp.lt.s32.totalorder %s231, 255
        %s233 = scalar_select %p232, %s231, 255
        %p234 = scmp.lt.s32.totalorder %s20, 0
        %s235 = scalar_select %p234, %s20, 0
        %s236 = sadd.s32 %s235, %s233
        %s237 = smul.addr %s236, 4
        %s238 = scalar_lea.vmem %s0, %s237
        %s239 = smul.u32 32, %s19
      $region40: #{neck_forward.29} parent=35 // pred_fallthru
        _
    $region36: #{neck_forward.29} parent=5 // pred_fallthru
      _
    %p240 = scmp.le.s32.totalorder 1, %s12
    %p241 = scmp.lt.s32.totalorder %s12, 9
    %p242 = pnand %p240, %p241
    %p243 = pneg %p242
    // Predicated region
    $region41: #{neck_forward.29} parent=5 // pred_check
      _
    $region42: #{neck_forward.29} parent=5 // pred_check_branch
      %245 = sbr.rel (%p242) target = $region44
    $region43: #{neck_forward.29} parent=5 // pred_region
      %s246 = ssub.s32 %s12, 1
      %s247 = smul.u32 32, %s21
      %p248 = scmp.lt.s32.totalorder %s247, 255
      %s249 = scalar_select %p248, %s247, 255
      %p250 = scmp.lt.s32.totalorder %s22, 0
      %s251 = scalar_select %p250, %s22, 0
      %s252 = sadd.s32 %s251, %s249
      %s253 = smul.addr %s252, 4
      %s254 = scalar_lea.vmem %s0, %s253
      %p255 = pneg %p52
      %p256 = pneg %p49
      %s257 = smul.u32 16, %s22
      %p258 = scmp.lt.s32.totalorder %s257, 15
      %s259 = scalar_select %p258, %s257, 15
      %s260 = smul.addr %s259, 4
      %s261 = scalar_lea.vmem %s1, %s260
      %p262 = pneg %p78
      %p263 = pneg %p75
      %p264 = pneg %p99
      %p265 = pneg %p96
      %p266 = pneg %p120
      %p267 = pneg %p117
      %p268 = pneg %p141
      %p269 = pneg %p138
      %p270 = pneg %p162
      %p271 = pneg %p159
      %p272 = pneg %p188
      %p273 = pneg %p185
      %s274 = smul.u32 32, %s21
      %p275 = scmp.lt.s32.totalorder %s274, 255
      %s276 = scalar_select %p275, %s274, 255
      %s277 = smul.addr %s276, 8
      %s278 = scalar_lea.vmem %s6, %s277
      %s279 = smul.u32 32, %s21
      %p280 = scmp.lt.s32.totalorder %s279, 255
      %s281 = scalar_select %p280, %s279, 255
      %p282 = scmp.lt.s32.totalorder %s22, 0
      %s283 = scalar_select %p282, %s22, 0
      %s284 = sadd.s32 %s283, %s281
      %s285 = smul.addr %s284, 4
      %s286 = scalar_lea.vmem %s0, %s285
      %s287 = smul.u32 32, %s21
      %s288 = smul.u32 16, %s22
      %p289 = scmp.lt.s32.totalorder %s288, 15
      %s290 = scalar_select %p289, %s288, 15
      %s291 = smul.addr %s290, 4
      %s292 = scalar_lea.vmem %s1, %s291
      %s293 = smul.u32 16, %s22
      %s294 = smul.u32 32, %s21
      %p295 = scmp.lt.s32.totalorder %s294, 255
      %s296 = scalar_select %p295, %s294, 255
      %s297 = smul.addr %s296, 8
      %s298 = scalar_lea.vmem %s6, %s297
      %s299 = smul.u32 32, %s21
      %p301 = scmp.eq.s32.totalorder %s22, 0
      // Predicated region
      $region45: #{neck_forward.29} parent=43 // pred_check
        %p302 = pneg %p301
      $region46: #{neck_forward.29} parent=43 // pred_check_branch
        %304 = sbr.rel (%p302) target = $region48
      $region47: #{neck_forward.29} parent=43 // pred_region
        %305 = vst [vmem:[#allocation2] sm:$0xff] 0.0
        %306 = vst [vmem:[#allocation2 + $0x8] sm:$0xff] 0.0
        %307 = vst [vmem:[#allocation2 + $0x10] sm:$0xff] 0.0
        %308 = vst [vmem:[#allocation2 + $0x18] sm:$0xff] 0.0
        %309 = vst [vmem:[#allocation2 + $0x20] sm:$0xff] 0.0
        %310 = vst [vmem:[#allocation2 + $0x28] sm:$0xff] 0.0
        %311 = vst [vmem:[#allocation2 + $0x30] sm:$0xff] 0.0
        %312 = vst [vmem:[#allocation2 + $0x38] sm:$0xff] 0.0
        %313 = vst [vmem:[#allocation2 + $0x40] sm:$0xff] 0.0
        %314 = vst [vmem:[#allocation2 + $0x48] sm:$0xff] 0.0
        %315 = vst [vmem:[#allocation2 + $0x50] sm:$0xff] 0.0
        %316 = vst [vmem:[#allocation2 + $0x58] sm:$0xff] 0.0
        %317 = vst [vmem:[#allocation2 + $0x60] sm:$0xff] 0.0
        %318 = vst [vmem:[#allocation2 + $0x68] sm:$0xff] 0.0
        %319 = vst [vmem:[#allocation2 + $0x70] sm:$0xff] 0.0
        %320 = vst [vmem:[#allocation2 + $0x78] sm:$0xff] 0.0
        %321 = vst [vmem:[#allocation2 + $0x80] sm:$0xff] 0.0
        %322 = vst [vmem:[#allocation2 + $0x88] sm:$0xff] 0.0
        %323 = vst [vmem:[#allocation2 + $0x90] sm:$0xff] 0.0
        %324 = vst [vmem:[#allocation2 + $0x98] sm:$0xff] 0.0
        %325 = vst [vmem:[#allocation2 + $0xa0] sm:$0xff] 0.0
        %326 = vst [vmem:[#allocation2 + $0xa8] sm:$0xff] 0.0
        %327 = vst [vmem:[#allocation2 + $0xb0] sm:$0xff] 0.0
        %328 = vst [vmem:[#allocation2 + $0xb8] sm:$0xff] 0.0
        %329 = vst [vmem:[#allocation2 + $0xc0] sm:$0xff] 0.0
        %330 = vst [vmem:[#allocation2 + $0xc8] sm:$0xff] 0.0
        %331 = vst [vmem:[#allocation2 + $0xd0] sm:$0xff] 0.0
        %332 = vst [vmem:[#allocation2 + $0xd8] sm:$0xff] 0.0
        %333 = vst [vmem:[#allocation2 + $0xe0] sm:$0xff] 0.0
        %334 = vst [vmem:[#allocation2 + $0xe8] sm:$0xff] 0.0
        %335 = vst [vmem:[#allocation2 + $0xf0] sm:$0xff] 0.0
        %336 = vst [vmem:[#allocation2 + $0xf8] sm:$0xff] 0.0
      $region48: #{neck_forward.29} parent=43 // pred_fallthru
        _
      %v337 = vld [vmem:[#allocation2] sm:$0xff]
      %v338 = vld [vmem:[#allocation2 + $0x8] sm:$0xff]
      %v339 = vld [vmem:[#allocation2 + $0x10] sm:$0xff]
      %v340 = vld [vmem:[#allocation2 + $0x18] sm:$0xff]
      %v341 = vld [vmem:[#allocation2 + $0x20] sm:$0xff]
      %v342 = vld [vmem:[#allocation2 + $0x28] sm:$0xff]
      %v343 = vld [vmem:[#allocation2 + $0x30] sm:$0xff]
      %v344 = vld [vmem:[#allocation2 + $0x38] sm:$0xff]
      %v345 = vld [vmem:[#allocation2 + $0x40] sm:$0xff]
      %v346 = vld [vmem:[#allocation2 + $0x48] sm:$0xff]
      %v347 = vld [vmem:[#allocation2 + $0x50] sm:$0xff]
      %v348 = vld [vmem:[#allocation2 + $0x58] sm:$0xff]
      %v349 = vld [vmem:[#allocation2 + $0x60] sm:$0xff]
      %v350 = vld [vmem:[#allocation2 + $0x68] sm:$0xff]
      %v351 = vld [vmem:[#allocation2 + $0x70] sm:$0xff]
      %v352 = vld [vmem:[#allocation2 + $0x78] sm:$0xff]
      %v353 = vld [vmem:[#allocation2 + $0x80] sm:$0xff]
      %v354 = vld [vmem:[#allocation2 + $0x88] sm:$0xff]
      %v355 = vld [vmem:[#allocation2 + $0x90] sm:$0xff]
      %v356 = vld [vmem:[#allocation2 + $0x98] sm:$0xff]
      %v357 = vld [vmem:[#allocation2 + $0xa0] sm:$0xff]
      %v358 = vld [vmem:[#allocation2 + $0xa8] sm:$0xff]
      %v359 = vld [vmem:[#allocation2 + $0xb0] sm:$0xff]
      %v360 = vld [vmem:[#allocation2 + $0xb8] sm:$0xff]
      %v361 = vld [vmem:[#allocation2 + $0xc0] sm:$0xff]
      %v362 = vld [vmem:[#allocation2 + $0xc8] sm:$0xff]
      %v363 = vld [vmem:[#allocation2 + $0xd0] sm:$0xff]
      %v364 = vld [vmem:[#allocation2 + $0xd8] sm:$0xff]
      %v365 = vld [vmem:[#allocation2 + $0xe0] sm:$0xff]
      %v366 = vld [vmem:[#allocation2 + $0xe8] sm:$0xff]
      %v367 = vld [vmem:[#allocation2 + $0xf0] sm:$0xff]
      %v368 = vld [vmem:[#allocation2 + $0xf8] sm:$0xff]
      %v369 = vld [vmem:[%s286] sm:$0xf]
      %v370 = vld [vmem:[%s286 + $0x4] sm:$0xf]
      %v371 = vld [vmem:[%s286 + $0x8] sm:$0xf]
      %v372 = vld [vmem:[%s286 + $0xc] sm:$0xf]
      %v373 = vld [vmem:[%s286 + $0x10] sm:$0xf]
      %v374 = vld [vmem:[%s286 + $0x14] sm:$0xf]
      %v375 = vld [vmem:[%s286 + $0x18] sm:$0xf]
      %v376 = vld [vmem:[%s286 + $0x1c] sm:$0xf]
      %v377 = vld [vmem:[%s286 + $0x20] sm:$0xf]
      %v378 = vld [vmem:[%s286 + $0x24] sm:$0xf]
      %v379 = vld [vmem:[%s286 + $0x28] sm:$0xf]
      %v380 = vld [vmem:[%s286 + $0x2c] sm:$0xf]
      %v381 = vld [vmem:[%s286 + $0x30] sm:$0xf]
      %v382 = vld [vmem:[%s286 + $0x34] sm:$0xf]
      %v383 = vld [vmem:[%s286 + $0x38] sm:$0xf]
      %v384 = vld [vmem:[%s286 + $0x3c] sm:$0xf]
      %v385 = vld [vmem:[%s286 + $0x40] sm:$0xf]
      %v386 = vld [vmem:[%s286 + $0x44] sm:$0xf]
      %v387 = vld [vmem:[%s286 + $0x48] sm:$0xf]
      %v388 = vld [vmem:[%s286 + $0x4c] sm:$0xf]
      %v389 = vld [vmem:[%s286 + $0x50] sm:$0xf]
      %v390 = vld [vmem:[%s286 + $0x54] sm:$0xf]
      %v391 = vld [vmem:[%s286 + $0x58] sm:$0xf]
      %v392 = vld [vmem:[%s286 + $0x5c] sm:$0xf]
      %v393 = vld [vmem:[%s286 + $0x60] sm:$0xf]
      %v394 = vld [vmem:[%s286 + $0x64] sm:$0xf]
      %v395 = vld [vmem:[%s286 + $0x68] sm:$0xf]
      %v396 = vld [vmem:[%s286 + $0x6c] sm:$0xf]
      %v397 = vld [vmem:[%s286 + $0x70] sm:$0xf]
      %v398 = vld [vmem:[%s286 + $0x74] sm:$0xf]
      %v399 = vld [vmem:[%s286 + $0x78] sm:$0xf]
      %v400 = vld [vmem:[%s286 + $0x7c] sm:$0xf]
      %v401 = vld [vmem:[%s292] sm:$0xf]
      %v402 = vld [vmem:[%s292 + $0x4] sm:$0xf]
      %v403 = vld [vmem:[%s292 + $0x8] sm:$0xf]
      %v404 = vld [vmem:[%s292 + $0xc] sm:$0xf]
      %v405 = vld [vmem:[%s292 + $0x10] sm:$0xf]
      %v406 = vld [vmem:[%s292 + $0x14] sm:$0xf]
      %v407 = vld [vmem:[%s292 + $0x18] sm:$0xf]
      %v408 = vld [vmem:[%s292 + $0x1c] sm:$0xf]
      %v409 = vld [vmem:[%s292 + $0x20] sm:$0xf]
      %v410 = vld [vmem:[%s292 + $0x24] sm:$0xf]
      %v411 = vld [vmem:[%s292 + $0x28] sm:$0xf]
      %v412 = vld [vmem:[%s292 + $0x2c] sm:$0xf]
      %v413 = vld [vmem:[%s292 + $0x30] sm:$0xf]
      %v414 = vld [vmem:[%s292 + $0x34] sm:$0xf]
      %v415 = vld [vmem:[%s292 + $0x38] sm:$0xf]
      %v416 = vld [vmem:[%s292 + $0x3c] sm:$0xf]
      %v449 = vunpack.c.l.b16 %v369
      %v450 = vunpack.c.l.b16 %v370
      %v451 = vunpack.c.l.b16 %v371
      %v452 = vunpack.c.l.b16 %v372
      %v453 = vunpack.c.l.b16 %v373
      %v454 = vunpack.c.l.b16 %v374
      %v455 = vunpack.c.l.b16 %v375
      %v456 = vunpack.c.l.b16 %v376
      %v457 = vunpack.c.l.b16 %v377
      %v458 = vunpack.c.l.b16 %v378
      %v459 = vunpack.c.l.b16 %v379
      %v460 = vunpack.c.l.b16 %v380
      %v461 = vunpack.c.l.b16 %v381
      %v462 = vunpack.c.l.b16 %v382
      %v463 = vunpack.c.l.b16 %v383
      %v464 = vunpack.c.l.b16 %v384
      %v465 = vunpack.c.l.b16 %v385
      %v466 = vunpack.c.l.b16 %v386
      %v467 = vunpack.c.l.b16 %v387
      %v468 = vunpack.c.l.b16 %v388
      %v469 = vunpack.c.l.b16 %v389
      %v470 = vunpack.c.l.b16 %v390
      %v471 = vunpack.c.l.b16 %v391
      %v472 = vunpack.c.l.b16 %v392
      %v473 = vunpack.c.l.b16 %v393
      %v474 = vunpack.c.l.b16 %v394
      %v475 = vunpack.c.l.b16 %v395
      %v476 = vunpack.c.l.b16 %v396
      %v477 = vunpack.c.l.b16 %v397
      %v478 = vunpack.c.l.b16 %v398
      %v479 = vunpack.c.l.b16 %v399
      %v480 = vunpack.c.l.b16 %v400
      %v481 = vpack.c.b16 %v450, %v449
      %v482 = vpack.c.b16 %v452, %v451
      %v483 = vpack.c.b16 %v454, %v453
      %v484 = vpack.c.b16 %v456, %v455
      %v485 = vpack.c.b16 %v458, %v457
      %v486 = vpack.c.b16 %v460, %v459
      %v487 = vpack.c.b16 %v462, %v461
      %v488 = vpack.c.b16 %v464, %v463
      %v489 = vpack.c.b16 %v466, %v465
      %v490 = vpack.c.b16 %v468, %v467
      %v491 = vpack.c.b16 %v470, %v469
      %v492 = vpack.c.b16 %v472, %v471
      %v493 = vpack.c.b16 %v474, %v473
      %v494 = vpack.c.b16 %v476, %v475
      %v495 = vpack.c.b16 %v478, %v477
      %v496 = vpack.c.b16 %v480, %v479
      %v529 = vunpack.c.l.b16 %v401
      %v530 = vunpack.c.l.b16 %v402
      %v531 = vunpack.c.l.b16 %v403
      %v532 = vunpack.c.l.b16 %v404
      %v533 = vunpack.c.l.b16 %v405
      %v534 = vunpack.c.l.b16 %v406
      %v535 = vunpack.c.l.b16 %v407
      %v536 = vunpack.c.l.b16 %v408
      %v537 = vunpack.c.l.b16 %v409
      %v538 = vunpack.c.l.b16 %v410
      %v539 = vunpack.c.l.b16 %v411
      %v540 = vunpack.c.l.b16 %v412
      %v541 = vunpack.c.l.b16 %v413
      %v542 = vunpack.c.l.b16 %v414
      %v543 = vunpack.c.l.b16 %v415
      %v544 = vunpack.c.l.b16 %v416
      %v545 = vpack.c.b16 %v530, %v529
      %v546 = vpack.c.b16 %v532, %v531
      %v547 = vpack.c.b16 %v534, %v533
      %v548 = vpack.c.b16 %v536, %v535
      %v549 = vpack.c.b16 %v538, %v537
      %v550 = vpack.c.b16 %v540, %v539
      %v551 = vpack.c.b16 %v542, %v541
      %v552 = vpack.c.b16 %v544, %v543
      %561 = vmatprep.subr.bf16.mxu0 0
      %562 = vmatpush1.bf16.msra.mxu0 %v552
      %563 = vmatprep.subr.bf16.mxu0 0
      %564 = vmatpush1.bf16.msra.mxu0 %v551
      %565 = vmatprep.subr.bf16.mxu0 0
      %566 = vmatpush1.bf16.msra.mxu0 %v550
      %567 = vmatprep.subr.bf16.mxu0 0
      %568 = vmatpush1.bf16.msra.mxu0 %v549
      %569 = vmatprep.subr.bf16.mxu0 0
      %570 = vmatpush1.bf16.msra.mxu0 %v548
      %571 = vmatprep.subr.bf16.mxu0 0
      %572 = vmatpush1.bf16.msra.mxu0 %v547
      %573 = vmatprep.subr.bf16.mxu0 0
      %574 = vmatpush1.bf16.msra.mxu0 %v546
      %575 = vmatprep.subr.bf16.mxu0 0
      %576 = vmatpush1.bf16.msra.mxu0 %v545
      %577 = vmatprep.subr.bf16.mxu0 0
      %578 = vmatpush2.bf16.msra.mxu0 0
      %579 = vmatprep.subr.bf16.mxu0 0
      %580 = vmatpush2.bf16.msra.mxu0 0
      %581 = vmatprep.subr.bf16.mxu0 0
      %582 = vmatpush2.bf16.msra.mxu0 0
      %583 = vmatprep.subr.bf16.mxu0 0
      %584 = vmatpush2.bf16.msra.mxu0 0
      %585 = vmatprep.subr.bf16.mxu0 0
      %586 = vmatpush2.bf16.msra.mxu0 0
      %587 = vmatprep.subr.bf16.mxu0 0
      %588 = vmatpush2.bf16.msra.mxu0 0
      %589 = vmatprep.subr.bf16.mxu0 0
      %590 = vmatpush2.bf16.msra.mxu0 0
      %591 = vmatprep.subr.bf16.mxu0 0
      %592 = vmatpush2.bf16.msra.mxu0 0
      %593 = vmatprep.mubr.bf16.mxu0 0
      %594 = vmatmul.mubr.bf16.gmra.mxu0 %v481
      %v595 = vpop.f32.mrf.mxu0
      %v596 = vadd.f32 0.0, %v595
      %v597 = vpop.f32.mrf.mxu0
      %v598 = vpop.f32.mrf.mxu0
      %v599 = vadd.f32 0.0, %v598
      %v600 = vpop.f32.mrf.mxu0
      %601 = vmatprep.mubr.bf16.mxu0 0
      %602 = vmatmul.mubr.bf16.gmra.mxu0 %v482
      %v603 = vpop.f32.mrf.mxu0
      %v604 = vadd.f32 0.0, %v603
      %v605 = vpop.f32.mrf.mxu0
      %v606 = vpop.f32.mrf.mxu0
      %v607 = vadd.f32 0.0, %v606
      %v608 = vpop.f32.mrf.mxu0
      %609 = vmatprep.mubr.bf16.mxu0 0
      %610 = vmatmul.mubr.bf16.gmra.mxu0 %v483
      %v611 = vpop.f32.mrf.mxu0
      %v612 = vadd.f32 0.0, %v611
      %v613 = vpop.f32.mrf.mxu0
      %v614 = vpop.f32.mrf.mxu0
      %v615 = vadd.f32 0.0, %v614
      %v616 = vpop.f32.mrf.mxu0
      %617 = vmatprep.mubr.bf16.mxu0 0
      %618 = vmatmul.mubr.bf16.gmra.mxu0 %v484
      %v619 = vpop.f32.mrf.mxu0
      %v620 = vadd.f32 0.0, %v619
      %v621 = vpop.f32.mrf.mxu0
      %v622 = vpop.f32.mrf.mxu0
      %v623 = vadd.f32 0.0, %v622
      %v624 = vpop.f32.mrf.mxu0
      %625 = vmatprep.mubr.bf16.mxu0 0
      %626 = vmatmul.mubr.bf16.gmra.mxu0 %v485
      %v627 = vpop.f32.mrf.mxu0
      %v628 = vadd.f32 0.0, %v627
      %v629 = vpop.f32.mrf.mxu0
      %v630 = vpop.f32.mrf.mxu0
      %v631 = vadd.f32 0.0, %v630
      %v632 = vpop.f32.mrf.mxu0
      %633 = vmatprep.mubr.bf16.mxu0 0
      %634 = vmatmul.mubr.bf16.gmra.mxu0 %v486
      %v635 = vpop.f32.mrf.mxu0
      %v636 = vadd.f32 0.0, %v635
      %v637 = vpop.f32.mrf.mxu0
      %v638 = vpop.f32.mrf.mxu0
      %v639 = vadd.f32 0.0, %v638
      %v640 = vpop.f32.mrf.mxu0
      %641 = vmatprep.mubr.bf16.mxu0 0
      %642 = vmatmul.mubr.bf16.gmra.mxu0 %v487
      %v643 = vpop.f32.mrf.mxu0
      %v644 = vadd.f32 0.0, %v643
      %v645 = vpop.f32.mrf.mxu0
      %v646 = vpop.f32.mrf.mxu0
      %v647 = vadd.f32 0.0, %v646
      %v648 = vpop.f32.mrf.mxu0
      %649 = vmatprep.mubr.bf16.mxu0 0
      %650 = vmatmul.mubr.bf16.gmra.mxu0 %v488
      %v651 = vpop.f32.mrf.mxu0
      %v652 = vadd.f32 0.0, %v651
      %v653 = vpop.f32.mrf.mxu0
      %v654 = vpop.f32.mrf.mxu0
      %v655 = vadd.f32 0.0, %v654
      %v656 = vpop.f32.mrf.mxu0
      %657 = vmatprep.mubr.bf16.mxu0 0
      %658 = vmatmul.mubr.bf16.gmra.mxu0 %v489
      %v659 = vpop.f32.mrf.mxu0
      %v660 = vadd.f32 0.0, %v659
      %v661 = vpop.f32.mrf.mxu0
      %v662 = vpop.f32.mrf.mxu0
      %v663 = vadd.f32 0.0, %v662
      %v664 = vpop.f32.mrf.mxu0
      %665 = vmatprep.mubr.bf16.mxu0 0
      %666 = vmatmul.mubr.bf16.gmra.mxu0 %v490
      %v667 = vpop.f32.mrf.mxu0
      %v668 = vadd.f32 0.0, %v667
      %v669 = vpop.f32.mrf.mxu0
      %v670 = vpop.f32.mrf.mxu0
      %v671 = vadd.f32 0.0, %v670
      %v672 = vpop.f32.mrf.mxu0
      %673 = vmatprep.mubr.bf16.mxu0 0
      %674 = vmatmul.mubr.bf16.gmra.mxu0 %v491
      %v675 = vpop.f32.mrf.mxu0
      %v676 = vadd.f32 0.0, %v675
      %v677 = vpop.f32.mrf.mxu0
      %v678 = vpop.f32.mrf.mxu0
      %v679 = vadd.f32 0.0, %v678
      %v680 = vpop.f32.mrf.mxu0
      %681 = vmatprep.mubr.bf16.mxu0 0
      %682 = vmatmul.mubr.bf16.gmra.mxu0 %v492
      %v683 = vpop.f32.mrf.mxu0
      %v684 = vadd.f32 0.0, %v683
      %v685 = vpop.f32.mrf.mxu0
      %v686 = vpop.f32.mrf.mxu0
      %v687 = vadd.f32 0.0, %v686
      %v688 = vpop.f32.mrf.mxu0
      %689 = vmatprep.mubr.bf16.mxu0 0
      %690 = vmatmul.mubr.bf16.gmra.mxu0 %v493
      %v691 = vpop.f32.mrf.mxu0
      %v692 = vadd.f32 0.0, %v691
      %v693 = vpop.f32.mrf.mxu0
      %v694 = vpop.f32.mrf.mxu0
      %v695 = vadd.f32 0.0, %v694
      %v696 = vpop.f32.mrf.mxu0
      %697 = vmatprep.mubr.bf16.mxu0 0
      %698 = vmatmul.mubr.bf16.gmra.mxu0 %v494
      %v699 = vpop.f32.mrf.mxu0
      %v700 = vadd.f32 0.0, %v699
      %v701 = vpop.f32.mrf.mxu0
      %v702 = vpop.f32.mrf.mxu0
      %v703 = vadd.f32 0.0, %v702
      %v704 = vpop.f32.mrf.mxu0
      %705 = vmatprep.mubr.bf16.mxu0 0
      %706 = vmatmul.mubr.bf16.gmra.mxu0 %v495
      %v707 = vpop.f32.mrf.mxu0
      %v708 = vadd.f32 0.0, %v707
      %v709 = vpop.f32.mrf.mxu0
      %v710 = vpop.f32.mrf.mxu0
      %v711 = vadd.f32 0.0, %v710
      %v712 = vpop.f32.mrf.mxu0
      %713 = vmatprep.mubr.bf16.mxu0 0
      %714 = vmatmul.mubr.bf16.gmra.mxu0 %v496
      %v715 = vpop.f32.mrf.mxu0
      %v716 = vadd.f32 0.0, %v715
      %v717 = vpop.f32.mrf.mxu0
      %v718 = vpop.f32.mrf.mxu0
      %v719 = vadd.f32 0.0, %v718
      %v720 = vpop.f32.mrf.mxu0
      %721 = vdwg.mxu0
      %v722 = vadd.f32 %v337, %v596
      %v723 = vadd.f32 %v338, %v599
      %v724 = vadd.f32 %v339, %v604
      %v725 = vadd.f32 %v340, %v607
      %v726 = vadd.f32 %v341, %v612
      %v727 = vadd.f32 %v342, %v615
      %v728 = vadd.f32 %v343, %v620
      %v729 = vadd.f32 %v344, %v623
      %v730 = vadd.f32 %v345, %v628
      %v731 = vadd.f32 %v346, %v631
      %v732 = vadd.f32 %v347, %v636
      %v733 = vadd.f32 %v348, %v639
      %v734 = vadd.f32 %v349, %v644
      %v735 = vadd.f32 %v350, %v647
      %v736 = vadd.f32 %v351, %v652
      %v737 = vadd.f32 %v352, %v655
      %v738 = vadd.f32 %v353, %v660
      %v739 = vadd.f32 %v354, %v663
      %v740 = vadd.f32 %v355, %v668
      %v741 = vadd.f32 %v356, %v671
      %v742 = vadd.f32 %v357, %v676
      %v743 = vadd.f32 %v358, %v679
      %v744 = vadd.f32 %v359, %v684
      %v745 = vadd.f32 %v360, %v687
      %v746 = vadd.f32 %v361, %v692
      %v747 = vadd.f32 %v362, %v695
      %v748 = vadd.f32 %v363, %v700
      %v749 = vadd.f32 %v364, %v703
      %v750 = vadd.f32 %v365, %v708
      %v751 = vadd.f32 %v366, %v711
      %v752 = vadd.f32 %v367, %v716
      %v753 = vadd.f32 %v368, %v719
      %754 = vst [vmem:[#allocation2] sm:$0xff] %v722
      %755 = vst [vmem:[#allocation2 + $0x8] sm:$0xff] %v723
      %756 = vst [vmem:[#allocation2 + $0x10] sm:$0xff] %v724
      %757 = vst [vmem:[#allocation2 + $0x18] sm:$0xff] %v725
      %758 = vst [vmem:[#allocation2 + $0x20] sm:$0xff] %v726
      %759 = vst [vmem:[#allocation2 + $0x28] sm:$0xff] %v727
      %760 = vst [vmem:[#allocation2 + $0x30] sm:$0xff] %v728
      %761 = vst [vmem:[#allocation2 + $0x38] sm:$0xff] %v729
      %762 = vst [vmem:[#allocation2 + $0x40] sm:$0xff] %v730
      %763 = vst [vmem:[#allocation2 + $0x48] sm:$0xff] %v731
      %764 = vst [vmem:[#allocation2 + $0x50] sm:$0xff] %v732
      %765 = vst [vmem:[#allocation2 + $0x58] sm:$0xff] %v733
      %766 = vst [vmem:[#allocation2 + $0x60] sm:$0xff] %v734
      %767 = vst [vmem:[#allocation2 + $0x68] sm:$0xff] %v735
      %768 = vst [vmem:[#allocation2 + $0x70] sm:$0xff] %v736
      %769 = vst [vmem:[#allocation2 + $0x78] sm:$0xff] %v737
      %770 = vst [vmem:[#allocation2 + $0x80] sm:$0xff] %v738
      %771 = vst [vmem:[#allocation2 + $0x88] sm:$0xff] %v739
      %772 = vst [vmem:[#allocation2 + $0x90] sm:$0xff] %v740
      %773 = vst [vmem:[#allocation2 + $0x98] sm:$0xff] %v741
      %774 = vst [vmem:[#allocation2 + $0xa0] sm:$0xff] %v742
      %775 = vst [vmem:[#allocation2 + $0xa8] sm:$0xff] %v743
      %776 = vst [vmem:[#allocation2 + $0xb0] sm:$0xff] %v744
      %777 = vst [vmem:[#allocation2 + $0xb8] sm:$0xff] %v745
      %778 = vst [vmem:[#allocation2 + $0xc0] sm:$0xff] %v746
      %779 = vst [vmem:[#allocation2 + $0xc8] sm:$0xff] %v747
      %780 = vst [vmem:[#allocation2 + $0xd0] sm:$0xff] %v748
      %781 = vst [vmem:[#allocation2 + $0xd8] sm:$0xff] %v749
      %782 = vst [vmem:[#allocation2 + $0xe0] sm:$0xff] %v750
      %783 = vst [vmem:[#allocation2 + $0xe8] sm:$0xff] %v751
      %784 = vst [vmem:[#allocation2 + $0xf0] sm:$0xff] %v752
      %785 = vst [vmem:[#allocation2 + $0xf8] sm:$0xff] %v753
      // Predicated region
      $region49: #{neck_forward.29} parent=43 // pred_check
        %p786 = pneg %p301
      $region50: #{neck_forward.29} parent=43 // pred_check_branch
        %788 = sbr.rel (%p786) target = $region52
      $region51: #{neck_forward.29} parent=43 // pred_region
        %v789 = vld [vmem:[#allocation2] sm:$0xff]
        %v790 = vld [vmem:[#allocation2 + $0x8] sm:$0xff]
        %v791 = vld [vmem:[#allocation2 + $0x10] sm:$0xff]
        %v792 = vld [vmem:[#allocation2 + $0x18] sm:$0xff]
        %v793 = vld [vmem:[#allocation2 + $0x20] sm:$0xff]
        %v794 = vld [vmem:[#allocation2 + $0x28] sm:$0xff]
        %v795 = vld [vmem:[#allocation2 + $0x30] sm:$0xff]
        %v796 = vld [vmem:[#allocation2 + $0x38] sm:$0xff]
        %v797 = vld [vmem:[#allocation2 + $0x40] sm:$0xff]
        %v798 = vld [vmem:[#allocation2 + $0x48] sm:$0xff]
        %v799 = vld [vmem:[#allocation2 + $0x50] sm:$0xff]
        %v800 = vld [vmem:[#allocation2 + $0x58] sm:$0xff]
        %v801 = vld [vmem:[#allocation2 + $0x60] sm:$0xff]
        %v802 = vld [vmem:[#allocation2 + $0x68] sm:$0xff]
        %v803 = vld [vmem:[#allocation2 + $0x70] sm:$0xff]
        %v804 = vld [vmem:[#allocation2 + $0x78] sm:$0xff]
        %v805 = vld [vmem:[#allocation2 + $0x80] sm:$0xff]
        %v806 = vld [vmem:[#allocation2 + $0x88] sm:$0xff]
        %v807 = vld [vmem:[#allocation2 + $0x90] sm:$0xff]
        %v808 = vld [vmem:[#allocation2 + $0x98] sm:$0xff]
        %v809 = vld [vmem:[#allocation2 + $0xa0] sm:$0xff]
        %v810 = vld [vmem:[#allocation2 + $0xa8] sm:$0xff]
        %v811 = vld [vmem:[#allocation2 + $0xb0] sm:$0xff]
        %v812 = vld [vmem:[#allocation2 + $0xb8] sm:$0xff]
        %v813 = vld [vmem:[#allocation2 + $0xc0] sm:$0xff]
        %v814 = vld [vmem:[#allocation2 + $0xc8] sm:$0xff]
        %v815 = vld [vmem:[#allocation2 + $0xd0] sm:$0xff]
        %v816 = vld [vmem:[#allocation2 + $0xd8] sm:$0xff]
        %v817 = vld [vmem:[#allocation2 + $0xe0] sm:$0xff]
        %v818 = vld [vmem:[#allocation2 + $0xe8] sm:$0xff]
        %v819 = vld [vmem:[#allocation2 + $0xf0] sm:$0xff]
        %v820 = vld [vmem:[#allocation2 + $0xf8] sm:$0xff]
        %v821 = vld [vmem:[%s2] sm:$0x1]
        %v823 = vlaneseq
        %v824 = vshrl.u32 %v823, 7
        %v825 = vsub.s32 0, %v824
        %v826 = vrot.slane %v821, %v825
        %v828 = vadd.f32 %v789, %v826
        %v829 = vadd.f32 %v790, %v826
        %v830 = vadd.f32 %v791, %v826
        %v831 = vadd.f32 %v792, %v826
        %v832 = vadd.f32 %v793, %v826
        %v833 = vadd.f32 %v794, %v826
        %v834 = vadd.f32 %v795, %v826
        %v835 = vadd.f32 %v796, %v826
        %v836 = vadd.f32 %v797, %v826
        %v837 = vadd.f32 %v798, %v826
        %v838 = vadd.f32 %v799, %v826
        %v839 = vadd.f32 %v800, %v826
        %v840 = vadd.f32 %v801, %v826
        %v841 = vadd.f32 %v802, %v826
        %v842 = vadd.f32 %v803, %v826
        %v843 = vadd.f32 %v804, %v826
        %v844 = vadd.f32 %v805, %v826
        %v845 = vadd.f32 %v806, %v826
        %v846 = vadd.f32 %v807, %v826
        %v847 = vadd.f32 %v808, %v826
        %v848 = vadd.f32 %v809, %v826
        %v849 = vadd.f32 %v810, %v826
        %v850 = vadd.f32 %v811, %v826
        %v851 = vadd.f32 %v812, %v826
        %v852 = vadd.f32 %v813, %v826
        %v853 = vadd.f32 %v814, %v826
        %v854 = vadd.f32 %v815, %v826
        %v855 = vadd.f32 %v816, %v826
        %v856 = vadd.f32 %v817, %v826
        %v857 = vadd.f32 %v818, %v826
        %v858 = vadd.f32 %v819, %v826
        %v859 = vadd.f32 %v820, %v826
        %v860 = vpack.c.bf16 %v829, %v828
        %v861 = vpack.c.bf16 %v831, %v830
        %v862 = vpack.c.bf16 %v833, %v832
        %v863 = vpack.c.bf16 %v835, %v834
        %v864 = vpack.c.bf16 %v837, %v836
        %v865 = vpack.c.bf16 %v839, %v838
        %v866 = vpack.c.bf16 %v841, %v840
        %v867 = vpack.c.bf16 %v843, %v842
        %v868 = vpack.c.bf16 %v845, %v844
        %v869 = vpack.c.bf16 %v847, %v846
        %v870 = vpack.c.bf16 %v849, %v848
        %v871 = vpack.c.bf16 %v851, %v850
        %v872 = vpack.c.bf16 %v853, %v852
        %v873 = vpack.c.bf16 %v855, %v854
        %v874 = vpack.c.bf16 %v857, %v856
        %v875 = vpack.c.bf16 %v859, %v858
        %v876 = vld [vmem:[%s3] sm:$0xf]
        %v877 = vld [vmem:[%s3 + $0x4] sm:$0xf]
        %v878 = vld [vmem:[%s3 + $0x8] sm:$0xf]
        %v879 = vld [vmem:[%s3 + $0xc] sm:$0xf]
        %v880 = vld [vmem:[%s3 + $0x10] sm:$0xf]
        %v881 = vld [vmem:[%s3 + $0x14] sm:$0xf]
        %v882 = vld [vmem:[%s3 + $0x18] sm:$0xf]
        %v883 = vld [vmem:[%s3 + $0x1c] sm:$0xf]
        %v884 = vld [vmem:[%s3 + $0x20] sm:$0xf]
        %v885 = vld [vmem:[%s3 + $0x24] sm:$0xf]
        %v886 = vld [vmem:[%s3 + $0x28] sm:$0xf]
        %v887 = vld [vmem:[%s3 + $0x2c] sm:$0xf]
        %v888 = vld [vmem:[%s3 + $0x30] sm:$0xf]
        %v889 = vld [vmem:[%s3 + $0x34] sm:$0xf]
        %v890 = vld [vmem:[%s3 + $0x38] sm:$0xf]
        %v891 = vld [vmem:[%s3 + $0x3c] sm:$0xf]
        %v892 = vld [vmem:[%s4] sm:$0x1]
        %v894 = vlaneseq
        %v895 = vshrl.u32 %v894, 7
        %v896 = vsub.s32 0, %v895
        %v897 = vrot.slane %v892, %v896
        %v915 = vunpack.c.l.b16 %v876
        %v916 = vunpack.c.l.b16 %v877
        %v917 = vunpack.c.l.b16 %v878
        %v918 = vunpack.c.l.b16 %v879
        %v919 = vunpack.c.l.b16 %v880
        %v920 = vunpack.c.l.b16 %v881
        %v921 = vunpack.c.l.b16 %v882
        %v922 = vunpack.c.l.b16 %v883
        %v923 = vunpack.c.l.b16 %v884
        %v924 = vunpack.c.l.b16 %v885
        %v925 = vunpack.c.l.b16 %v886
        %v926 = vunpack.c.l.b16 %v887
        %v927 = vunpack.c.l.b16 %v888
        %v928 = vunpack.c.l.b16 %v889
        %v929 = vunpack.c.l.b16 %v890
        %v930 = vunpack.c.l.b16 %v891
        %v931 = vpack.c.b16 %v916, %v915
        %v932 = vpack.c.b16 %v918, %v917
        %v933 = vpack.c.b16 %v920, %v919
        %v934 = vpack.c.b16 %v922, %v921
        %v935 = vpack.c.b16 %v924, %v923
        %v936 = vpack.c.b16 %v926, %v925
        %v937 = vpack.c.b16 %v928, %v927
        %v938 = vpack.c.b16 %v930, %v929
        %947 = vmatprep.subr.bf16.mxu0 0
        %948 = vmatpush1.bf16.msra.mxu0 %v938
        %949 = vmatprep.subr.bf16.mxu0 0
        %950 = vmatpush1.bf16.msra.mxu0 %v937
        %951 = vmatprep.subr.bf16.mxu0 0
        %952 = vmatpush1.bf16.msra.mxu0 %v936
        %953 = vmatprep.subr.bf16.mxu0 0
        %954 = vmatpush1.bf16.msra.mxu0 %v935
        %955 = vmatprep.subr.bf16.mxu0 0
        %956 = vmatpush1.bf16.msra.mxu0 %v934
        %957 = vmatprep.subr.bf16.mxu0 0
        %958 = vmatpush1.bf16.msra.mxu0 %v933
        %959 = vmatprep.subr.bf16.mxu0 0
        %960 = vmatpush1.bf16.msra.mxu0 %v932
        %961 = vmatprep.subr.bf16.mxu0 0
        %962 = vmatpush1.bf16.msra.mxu0 %v931
        %963 = vmatprep.subr.bf16.mxu0 0
        %964 = vmatpush2.bf16.msra.mxu0 0
        %965 = vmatprep.subr.bf16.mxu0 0
        %966 = vmatpush2.bf16.msra.mxu0 0
        %967 = vmatprep.subr.bf16.mxu0 0
        %968 = vmatpush2.bf16.msra.mxu0 0
        %969 = vmatprep.subr.bf16.mxu0 0
        %970 = vmatpush2.bf16.msra.mxu0 0
        %971 = vmatprep.subr.bf16.mxu0 0
        %972 = vmatpush2.bf16.msra.mxu0 0
        %973 = vmatprep.subr.bf16.mxu0 0
        %974 = vmatpush2.bf16.msra.mxu0 0
        %975 = vmatprep.subr.bf16.mxu0 0
        %976 = vmatpush2.bf16.msra.mxu0 0
        %977 = vmatprep.subr.bf16.mxu0 0
        %978 = vmatpush2.bf16.msra.mxu0 0
        %979 = vmatprep.mubr.bf16.mxu0 0
        %980 = vmatmul.mubr.bf16.gmra.mxu0 %v860
        %v981 = vpop.f32.mrf.mxu0
        %v982 = vadd.f32 %v897, %v981
        %v983 = vpop.f32.mrf.mxu0
        %v984 = vpop.f32.mrf.mxu0
        %v985 = vadd.f32 %v897, %v984
        %v986 = vpop.f32.mrf.mxu0
        %987 = vmatprep.mubr.bf16.mxu0 0
        %988 = vmatmul.mubr.bf16.gmra.mxu0 %v861
        %v989 = vpop.f32.mrf.mxu0
        %v990 = vadd.f32 %v897, %v989
        %v991 = vpop.f32.mrf.mxu0
        %v992 = vpop.f32.mrf.mxu0
        %v993 = vadd.f32 %v897, %v992
        %v994 = vpop.f32.mrf.mxu0
        %995 = vmatprep.mubr.bf16.mxu0 0
        %996 = vmatmul.mubr.bf16.gmra.mxu0 %v862
        %v997 = vpop.f32.mrf.mxu0
        %v998 = vadd.f32 %v897, %v997
        %v999 = vpop.f32.mrf.mxu0
        %v1000 = vpop.f32.mrf.mxu0
        %v1001 = vadd.f32 %v897, %v1000
        %v1002 = vpop.f32.mrf.mxu0
        %1003 = vmatprep.mubr.bf16.mxu0 0
        %1004 = vmatmul.mubr.bf16.gmra.mxu0 %v863
        %v1005 = vpop.f32.mrf.mxu0
        %v1006 = vadd.f32 %v897, %v1005
        %v1007 = vpop.f32.mrf.mxu0
        %v1008 = vpop.f32.mrf.mxu0
        %v1009 = vadd.f32 %v897, %v1008
        %v1010 = vpop.f32.mrf.mxu0
        %1011 = vmatprep.mubr.bf16.mxu0 0
        %1012 = vmatmul.mubr.bf16.gmra.mxu0 %v864
        %v1013 = vpop.f32.mrf.mxu0
        %v1014 = vadd.f32 %v897, %v1013
        %v1015 = vpop.f32.mrf.mxu0
        %v1016 = vpop.f32.mrf.mxu0
        %v1017 = vadd.f32 %v897, %v1016
        %v1018 = vpop.f32.mrf.mxu0
        %1019 = vmatprep.mubr.bf16.mxu0 0
        %1020 = vmatmul.mubr.bf16.gmra.mxu0 %v865
        %v1021 = vpop.f32.mrf.mxu0
        %v1022 = vadd.f32 %v897, %v1021
        %v1023 = vpop.f32.mrf.mxu0
        %v1024 = vpop.f32.mrf.mxu0
        %v1025 = vadd.f32 %v897, %v1024
        %v1026 = vpop.f32.mrf.mxu0
        %1027 = vmatprep.mubr.bf16.mxu0 0
        %1028 = vmatmul.mubr.bf16.gmra.mxu0 %v866
        %v1029 = vpop.f32.mrf.mxu0
        %v1030 = vadd.f32 %v897, %v1029
        %v1031 = vpop.f32.mrf.mxu0
        %v1032 = vpop.f32.mrf.mxu0
        %v1033 = vadd.f32 %v897, %v1032
        %v1034 = vpop.f32.mrf.mxu0
        %1035 = vmatprep.mubr.bf16.mxu0 0
        %1036 = vmatmul.mubr.bf16.gmra.mxu0 %v867
        %v1037 = vpop.f32.mrf.mxu0
        %v1038 = vadd.f32 %v897, %v1037
        %v1039 = vpop.f32.mrf.mxu0
        %v1040 = vpop.f32.mrf.mxu0
        %v1041 = vadd.f32 %v897, %v1040
        %v1042 = vpop.f32.mrf.mxu0
        %1043 = vmatprep.mubr.bf16.mxu0 0
        %1044 = vmatmul.mubr.bf16.gmra.mxu0 %v868
        %v1045 = vpop.f32.mrf.mxu0
        %v1046 = vadd.f32 %v897, %v1045
        %v1047 = vpop.f32.mrf.mxu0
        %v1048 = vpop.f32.mrf.mxu0
        %v1049 = vadd.f32 %v897, %v1048
        %v1050 = vpop.f32.mrf.mxu0
        %1051 = vmatprep.mubr.bf16.mxu0 0
        %1052 = vmatmul.mubr.bf16.gmra.mxu0 %v869
        %v1053 = vpop.f32.mrf.mxu0
        %v1054 = vadd.f32 %v897, %v1053
        %v1055 = vpop.f32.mrf.mxu0
        %v1056 = vpop.f32.mrf.mxu0
        %v1057 = vadd.f32 %v897, %v1056
        %v1058 = vpop.f32.mrf.mxu0
        %1059 = vmatprep.mubr.bf16.mxu0 0
        %1060 = vmatmul.mubr.bf16.gmra.mxu0 %v870
        %v1061 = vpop.f32.mrf.mxu0
        %v1062 = vadd.f32 %v897, %v1061
        %v1063 = vpop.f32.mrf.mxu0
        %v1064 = vpop.f32.mrf.mxu0
        %v1065 = vadd.f32 %v897, %v1064
        %v1066 = vpop.f32.mrf.mxu0
        %1067 = vmatprep.mubr.bf16.mxu0 0
        %1068 = vmatmul.mubr.bf16.gmra.mxu0 %v871
        %v1069 = vpop.f32.mrf.mxu0
        %v1070 = vadd.f32 %v897, %v1069
        %v1071 = vpop.f32.mrf.mxu0
        %v1072 = vpop.f32.mrf.mxu0
        %v1073 = vadd.f32 %v897, %v1072
        %v1074 = vpop.f32.mrf.mxu0
        %1075 = vmatprep.mubr.bf16.mxu0 0
        %1076 = vmatmul.mubr.bf16.gmra.mxu0 %v872
        %v1077 = vpop.f32.mrf.mxu0
        %v1078 = vadd.f32 %v897, %v1077
        %v1079 = vpop.f32.mrf.mxu0
        %v1080 = vpop.f32.mrf.mxu0
        %v1081 = vadd.f32 %v897, %v1080
        %v1082 = vpop.f32.mrf.mxu0
        %1083 = vmatprep.mubr.bf16.mxu0 0
        %1084 = vmatmul.mubr.bf16.gmra.mxu0 %v873
        %v1085 = vpop.f32.mrf.mxu0
        %v1086 = vadd.f32 %v897, %v1085
        %v1087 = vpop.f32.mrf.mxu0
        %v1088 = vpop.f32.mrf.mxu0
        %v1089 = vadd.f32 %v897, %v1088
        %v1090 = vpop.f32.mrf.mxu0
        %1091 = vmatprep.mubr.bf16.mxu0 0
        %1092 = vmatmul.mubr.bf16.gmra.mxu0 %v874
        %v1093 = vpop.f32.mrf.mxu0
        %v1094 = vadd.f32 %v897, %v1093
        %v1095 = vpop.f32.mrf.mxu0
        %v1096 = vpop.f32.mrf.mxu0
        %v1097 = vadd.f32 %v897, %v1096
        %v1098 = vpop.f32.mrf.mxu0
        %1099 = vmatprep.mubr.bf16.mxu0 0
        %1100 = vmatmul.mubr.bf16.gmra.mxu0 %v875
        %v1101 = vpop.f32.mrf.mxu0
        %v1102 = vadd.f32 %v897, %v1101
        %v1103 = vpop.f32.mrf.mxu0
        %v1104 = vpop.f32.mrf.mxu0
        %v1105 = vadd.f32 %v897, %v1104
        %v1106 = vpop.f32.mrf.mxu0
        %1107 = vdwg.mxu0
        %v1108 = vpack.c.bf16 %v985, %v982
        %v1109 = vpack.c.bf16 %v993, %v990
        %v1110 = vpack.c.bf16 %v1001, %v998
        %v1111 = vpack.c.bf16 %v1009, %v1006
        %v1112 = vpack.c.bf16 %v1017, %v1014
        %v1113 = vpack.c.bf16 %v1025, %v1022
        %v1114 = vpack.c.bf16 %v1033, %v1030
        %v1115 = vpack.c.bf16 %v1041, %v1038
        %v1116 = vpack.c.bf16 %v1049, %v1046
        %v1117 = vpack.c.bf16 %v1057, %v1054
        %v1118 = vpack.c.bf16 %v1065, %v1062
        %v1119 = vpack.c.bf16 %v1073, %v1070
        %v1120 = vpack.c.bf16 %v1081, %v1078
        %v1121 = vpack.c.bf16 %v1089, %v1086
        %v1122 = vpack.c.bf16 %v1097, %v1094
        %v1123 = vpack.c.bf16 %v1105, %v1102
        %v1124 = vld [vmem:[%s5] sm:$0xf]
        %v1125 = vld [vmem:[%s5 + $0x4] sm:$0xf]
        %v1126 = vld [vmem:[%s5 + $0x8] sm:$0xf]
        %v1127 = vld [vmem:[%s5 + $0xc] sm:$0xf]
        %v1128 = vld [vmem:[%s5 + $0x10] sm:$0xf]
        %v1129 = vld [vmem:[%s5 + $0x14] sm:$0xf]
        %v1130 = vld [vmem:[%s5 + $0x18] sm:$0xf]
        %v1131 = vld [vmem:[%s5 + $0x1c] sm:$0xf]
        %v1132 = vld [vmem:[%s5 + $0x20] sm:$0xf]
        %v1133 = vld [vmem:[%s5 + $0x24] sm:$0xf]
        %v1134 = vld [vmem:[%s5 + $0x28] sm:$0xf]
        %v1135 = vld [vmem:[%s5 + $0x2c] sm:$0xf]
        %v1136 = vld [vmem:[%s5 + $0x30] sm:$0xf]
        %v1137 = vld [vmem:[%s5 + $0x34] sm:$0xf]
        %v1138 = vld [vmem:[%s5 + $0x38] sm:$0xf]
        %v1139 = vld [vmem:[%s5 + $0x3c] sm:$0xf]
        %v1156 = vunpack.c.l.b16 %v1124
        %v1157 = vunpack.c.l.b16 %v1125
        %v1158 = vunpack.c.l.b16 %v1126
        %v1159 = vunpack.c.l.b16 %v1127
        %v1160 = vunpack.c.l.b16 %v1128
        %v1161 = vunpack.c.l.b16 %v1129
        %v1162 = vunpack.c.l.b16 %v1130
        %v1163 = vunpack.c.l.b16 %v1131
        %v1164 = vunpack.c.l.b16 %v1132
        %v1165 = vunpack.c.l.b16 %v1133
        %v1166 = vunpack.c.l.b16 %v1134
        %v1167 = vunpack.c.l.b16 %v1135
        %v1168 = vunpack.c.l.b16 %v1136
        %v1169 = vunpack.c.l.b16 %v1137
        %v1170 = vunpack.c.l.b16 %v1138
        %v1171 = vunpack.c.l.b16 %v1139
        %v1172 = vpack.c.b16 %v1157, %v1156
        %v1173 = vpack.c.b16 %v1159, %v1158
        %v1174 = vpack.c.b16 %v1161, %v1160
        %v1175 = vpack.c.b16 %v1163, %v1162
        %v1176 = vpack.c.b16 %v1165, %v1164
        %v1177 = vpack.c.b16 %v1167, %v1166
        %v1178 = vpack.c.b16 %v1169, %v1168
        %v1179 = vpack.c.b16 %v1171, %v1170
        %1188 = vmatprep.subr.bf16.mxu0 0
        %1189 = vmatpush1.bf16.msra.mxu0 %v1179
        %1190 = vmatprep.subr.bf16.mxu0 0
        %1191 = vmatpush1.bf16.msra.mxu0 %v1178
        %1192 = vmatprep.subr.bf16.mxu0 0
        %1193 = vmatpush1.bf16.msra.mxu0 %v1177
        %1194 = vmatprep.subr.bf16.mxu0 0
        %1195 = vmatpush1.bf16.msra.mxu0 %v1176
        %1196 = vmatprep.subr.bf16.mxu0 0
        %1197 = vmatpush1.bf16.msra.mxu0 %v1175
        %1198 = vmatprep.subr.bf16.mxu0 0
        %1199 = vmatpush1.bf16.msra.mxu0 %v1174
        %1200 = vmatprep.subr.bf16.mxu0 0
        %1201 = vmatpush1.bf16.msra.mxu0 %v1173
        %1202 = vmatprep.subr.bf16.mxu0 0
        %1203 = vmatpush1.bf16.msra.mxu0 %v1172
        %1204 = vmatprep.subr.bf16.mxu0 0
        %1205 = vmatpush2.bf16.msra.mxu0 0
        %1206 = vmatprep.subr.bf16.mxu0 0
        %1207 = vmatpush2.bf16.msra.mxu0 0
        %1208 = vmatprep.subr.bf16.mxu0 0
        %1209 = vmatpush2.bf16.msra.mxu0 0
        %1210 = vmatprep.subr.bf16.mxu0 0
        %1211 = vmatpush2.bf16.msra.mxu0 0
        %1212 = vmatprep.subr.bf16.mxu0 0
        %1213 = vmatpush2.bf16.msra.mxu0 0
        %1214 = vmatprep.subr.bf16.mxu0 0
        %1215 = vmatpush2.bf16.msra.mxu0 0
        %1216 = vmatprep.subr.bf16.mxu0 0
        %1217 = vmatpush2.bf16.msra.mxu0 0
        %1218 = vmatprep.subr.bf16.mxu0 0
        %1219 = vmatpush2.bf16.msra.mxu0 0
        %1220 = vmatprep.mubr.bf16.mxu0 0
        %1221 = vmatmul.mubr.bf16.gmra.mxu0 %v1108
        %v1222 = vpop.f32.mrf.mxu0
        %v1223 = vadd.f32 0.0, %v1222
        %v1224 = vpop.f32.mrf.mxu0
        %v1225 = vpop.f32.mrf.mxu0
        %v1226 = vadd.f32 0.0, %v1225
        %v1227 = vpop.f32.mrf.mxu0
        %1228 = vmatprep.mubr.bf16.mxu0 0
        %1229 = vmatmul.mubr.bf16.gmra.mxu0 %v1109
        %v1230 = vpop.f32.mrf.mxu0
        %v1231 = vadd.f32 0.0, %v1230
        %v1232 = vpop.f32.mrf.mxu0
        %v1233 = vpop.f32.mrf.mxu0
        %v1234 = vadd.f32 0.0, %v1233
        %v1235 = vpop.f32.mrf.mxu0
        %1236 = vmatprep.mubr.bf16.mxu0 0
        %1237 = vmatmul.mubr.bf16.gmra.mxu0 %v1110
        %v1238 = vpop.f32.mrf.mxu0
        %v1239 = vadd.f32 0.0, %v1238
        %v1240 = vpop.f32.mrf.mxu0
        %v1241 = vpop.f32.mrf.mxu0
        %v1242 = vadd.f32 0.0, %v1241
        %v1243 = vpop.f32.mrf.mxu0
        %1244 = vmatprep.mubr.bf16.mxu0 0
        %1245 = vmatmul.mubr.bf16.gmra.mxu0 %v1111
        %v1246 = vpop.f32.mrf.mxu0
        %v1247 = vadd.f32 0.0, %v1246
        %v1248 = vpop.f32.mrf.mxu0
        %v1249 = vpop.f32.mrf.mxu0
        %v1250 = vadd.f32 0.0, %v1249
        %v1251 = vpop.f32.mrf.mxu0
        %1252 = vmatprep.mubr.bf16.mxu0 0
        %1253 = vmatmul.mubr.bf16.gmra.mxu0 %v1112
        %v1254 = vpop.f32.mrf.mxu0
        %v1255 = vadd.f32 0.0, %v1254
        %v1256 = vpop.f32.mrf.mxu0
        %v1257 = vpop.f32.mrf.mxu0
        %v1258 = vadd.f32 0.0, %v1257
        %v1259 = vpop.f32.mrf.mxu0
        %1260 = vmatprep.mubr.bf16.mxu0 0
        %1261 = vmatmul.mubr.bf16.gmra.mxu0 %v1113
        %v1262 = vpop.f32.mrf.mxu0
        %v1263 = vadd.f32 0.0, %v1262
        %v1264 = vpop.f32.mrf.mxu0
        %v1265 = vpop.f32.mrf.mxu0
        %v1266 = vadd.f32 0.0, %v1265
        %v1267 = vpop.f32.mrf.mxu0
        %1268 = vmatprep.mubr.bf16.mxu0 0
        %1269 = vmatmul.mubr.bf16.gmra.mxu0 %v1114
        %v1270 = vpop.f32.mrf.mxu0
        %v1271 = vadd.f32 0.0, %v1270
        %v1272 = vpop.f32.mrf.mxu0
        %v1273 = vpop.f32.mrf.mxu0
        %v1274 = vadd.f32 0.0, %v1273
        %v1275 = vpop.f32.mrf.mxu0
        %1276 = vmatprep.mubr.bf16.mxu0 0
        %1277 = vmatmul.mubr.bf16.gmra.mxu0 %v1115
        %v1278 = vpop.f32.mrf.mxu0
        %v1279 = vadd.f32 0.0, %v1278
        %v1280 = vpop.f32.mrf.mxu0
        %v1281 = vpop.f32.mrf.mxu0
        %v1282 = vadd.f32 0.0, %v1281
        %v1283 = vpop.f32.mrf.mxu0
        %1284 = vmatprep.mubr.bf16.mxu0 0
        %1285 = vmatmul.mubr.bf16.gmra.mxu0 %v1116
        %v1286 = vpop.f32.mrf.mxu0
        %v1287 = vadd.f32 0.0, %v1286
        %v1288 = vpop.f32.mrf.mxu0
        %v1289 = vpop.f32.mrf.mxu0
        %v1290 = vadd.f32 0.0, %v1289
        %v1291 = vpop.f32.mrf.mxu0
        %1292 = vmatprep.mubr.bf16.mxu0 0
        %1293 = vmatmul.mubr.bf16.gmra.mxu0 %v1117
        %v1294 = vpop.f32.mrf.mxu0
        %v1295 = vadd.f32 0.0, %v1294
        %v1296 = vpop.f32.mrf.mxu0
        %v1297 = vpop.f32.mrf.mxu0
        %v1298 = vadd.f32 0.0, %v1297
        %v1299 = vpop.f32.mrf.mxu0
        %1300 = vmatprep.mubr.bf16.mxu0 0
        %1301 = vmatmul.mubr.bf16.gmra.mxu0 %v1118
        %v1302 = vpop.f32.mrf.mxu0
        %v1303 = vadd.f32 0.0, %v1302
        %v1304 = vpop.f32.mrf.mxu0
        %v1305 = vpop.f32.mrf.mxu0
        %v1306 = vadd.f32 0.0, %v1305
        %v1307 = vpop.f32.mrf.mxu0
        %1308 = vmatprep.mubr.bf16.mxu0 0
        %1309 = vmatmul.mubr.bf16.gmra.mxu0 %v1119
        %v1310 = vpop.f32.mrf.mxu0
        %v1311 = vadd.f32 0.0, %v1310
        %v1312 = vpop.f32.mrf.mxu0
        %v1313 = vpop.f32.mrf.mxu0
        %v1314 = vadd.f32 0.0, %v1313
        %v1315 = vpop.f32.mrf.mxu0
        %1316 = vmatprep.mubr.bf16.mxu0 0
        %1317 = vmatmul.mubr.bf16.gmra.mxu0 %v1120
        %v1318 = vpop.f32.mrf.mxu0
        %v1319 = vadd.f32 0.0, %v1318
        %v1320 = vpop.f32.mrf.mxu0
        %v1321 = vpop.f32.mrf.mxu0
        %v1322 = vadd.f32 0.0, %v1321
        %v1323 = vpop.f32.mrf.mxu0
        %1324 = vmatprep.mubr.bf16.mxu0 0
        %1325 = vmatmul.mubr.bf16.gmra.mxu0 %v1121
        %v1326 = vpop.f32.mrf.mxu0
        %v1327 = vadd.f32 0.0, %v1326
        %v1328 = vpop.f32.mrf.mxu0
        %v1329 = vpop.f32.mrf.mxu0
        %v1330 = vadd.f32 0.0, %v1329
        %v1331 = vpop.f32.mrf.mxu0
        %1332 = vmatprep.mubr.bf16.mxu0 0
        %1333 = vmatmul.mubr.bf16.gmra.mxu0 %v1122
        %v1334 = vpop.f32.mrf.mxu0
        %v1335 = vadd.f32 0.0, %v1334
        %v1336 = vpop.f32.mrf.mxu0
        %v1337 = vpop.f32.mrf.mxu0
        %v1338 = vadd.f32 0.0, %v1337
        %v1339 = vpop.f32.mrf.mxu0
        %1340 = vmatprep.mubr.bf16.mxu0 0
        %1341 = vmatmul.mubr.bf16.gmra.mxu0 %v1123
        %v1342 = vpop.f32.mrf.mxu0
        %v1343 = vadd.f32 0.0, %v1342
        %v1344 = vpop.f32.mrf.mxu0
        %v1345 = vpop.f32.mrf.mxu0
        %v1346 = vadd.f32 0.0, %v1345
        %v1347 = vpop.f32.mrf.mxu0
        %1348 = vdwg.mxu0
        %1349 = vst [vmem:[%s298] sm:$0xff] %v1223
        %1350 = vst [vmem:[%s298 + $0x8] sm:$0xff] %v1226
        %1351 = vst [vmem:[%s298 + $0x10] sm:$0xff] %v1231
        %1352 = vst [vmem:[%s298 + $0x18] sm:$0xff] %v1234
        %1353 = vst [vmem:[%s298 + $0x20] sm:$0xff] %v1239
        %1354 = vst [vmem:[%s298 + $0x28] sm:$0xff] %v1242
        %1355 = vst [vmem:[%s298 + $0x30] sm:$0xff] %v1247
        %1356 = vst [vmem:[%s298 + $0x38] sm:$0xff] %v1250
        %1357 = vst [vmem:[%s298 + $0x40] sm:$0xff] %v1255
        %1358 = vst [vmem:[%s298 + $0x48] sm:$0xff] %v1258
        %1359 = vst [vmem:[%s298 + $0x50] sm:$0xff] %v1263
        %1360 = vst [vmem:[%s298 + $0x58] sm:$0xff] %v1266
        %1361 = vst [vmem:[%s298 + $0x60] sm:$0xff] %v1271
        %1362 = vst [vmem:[%s298 + $0x68] sm:$0xff] %v1274
        %1363 = vst [vmem:[%s298 + $0x70] sm:$0xff] %v1279
        %1364 = vst [vmem:[%s298 + $0x78] sm:$0xff] %v1282
        %1365 = vst [vmem:[%s298 + $0x80] sm:$0xff] %v1287
        %1366 = vst [vmem:[%s298 + $0x88] sm:$0xff] %v1290
        %1367 = vst [vmem:[%s298 + $0x90] sm:$0xff] %v1295
        %1368 = vst [vmem:[%s298 + $0x98] sm:$0xff] %v1298
        %1369 = vst [vmem:[%s298 + $0xa0] sm:$0xff] %v1303
        %1370 = vst [vmem:[%s298 + $0xa8] sm:$0xff] %v1306
        %1371 = vst [vmem:[%s298 + $0xb0] sm:$0xff] %v1311
        %1372 = vst [vmem:[%s298 + $0xb8] sm:$0xff] %v1314
        %1373 = vst [vmem:[%s298 + $0xc0] sm:$0xff] %v1319
        %1374 = vst [vmem:[%s298 + $0xc8] sm:$0xff] %v1322
        %1375 = vst [vmem:[%s298 + $0xd0] sm:$0xff] %v1327
        %1376 = vst [vmem:[%s298 + $0xd8] sm:$0xff] %v1330
        %1377 = vst [vmem:[%s298 + $0xe0] sm:$0xff] %v1335
        %1378 = vst [vmem:[%s298 + $0xe8] sm:$0xff] %v1338
        %1379 = vst [vmem:[%s298 + $0xf0] sm:$0xff] %v1343
        %1380 = vst [vmem:[%s298 + $0xf8] sm:$0xff] %v1346
      $region52: #{neck_forward.29} parent=43 // pred_fallthru
        _
      %s1381 = smul.u32 32, %s21
      %p1382 = scmp.lt.s32.totalorder %s1381, 255
      %s1383 = scalar_select %p1382, %s1381, 255
      %s1384 = smul.addr %s1383, 8
      %s1385 = scalar_lea.vmem %s6, %s1384
      // Predicated region
      $region53: #{neck_forward.29} parent=43 // pred_check
        %p1386 = pneg %p185
      $region54: #{neck_forward.29} parent=43 // pred_check_branch
        %1388 = sbr.rel (%p1386) target = $region56
      $region55: #{neck_forward.29} parent=43 // pred_region
        %s1389 = smul.u32 32, %s21
      $region56: #{neck_forward.29} parent=43 // pred_fallthru
        _
    $region44: #{neck_forward.29} parent=5 // pred_fallthru
      _
    %p1390 = scmp.le.s32.totalorder 2, %s12
    // Predicated region
    $region57: #{neck_forward.29} parent=5 // pred_check
      %p1391 = pneg %p1390
    $region58: #{neck_forward.29} parent=5 // pred_check_branch
      %1393 = sbr.rel (%p1391) target = $region60
    $region59: #{neck_forward.29} parent=5 // pred_region
      %s1394 = ssub.s32 %s12, 2
      // Predicated region
      $region61: #{neck_forward.29} parent=59 // pred_check
        %p1395 = pneg %p191
      $region62: #{neck_forward.29} parent=59 // pred_check_branch
        %1397 = sbr.rel (%p1395) target = $region64
      $region63: #{neck_forward.29} parent=59 // pred_region
        %s1398 = smul.u32 32, %s23
        %p1399 = scmp.lt.s32.totalorder %s1398, 255
        %s1400 = scalar_select %p1399, %s1398, 255
        %s1401 = smul.addr %s1400, 8
        %s1402 = scalar_lea.vmem %s6, %s1401
      $region64: #{neck_forward.29} parent=59 // pred_fallthru
        _
    $region60: #{neck_forward.29} parent=5 // pred_fallthru
      _
  $region6: #{neck_forward.29} parent=0 // loop_footer
    %s16 = sadd.s32 1, %s12
  $region7: #{neck_forward.29} parent=0 // loop_footer_branch
    %11 = sbr.rel target = $region3
  $region8: #{neck_forward.29} parent=0 // loop_exit
    _

</llo_original>
